<compile_context>
chip_gen: v7x
topology: tpu7x:2x2x1
jax: 0.10.0
libtpu: 0.0.40
codegen_flags: <defaults>
</compile_context>

<pallas_src>
import functools
import math

import jax
import jax.numpy as jnp
from jax.experimental import pallas as pl
from jax.experimental.pallas import tpu as pltpu

_BN_EPS = 1e-5


# ----------------------------------------------------------------------- VMEM budgeting
def _vmem_limit_bytes():
    """Generation-aware VMEM limit (~75% of physical VMEM per TensorCore)."""
    try:
        cap = int(pltpu.get_tpu_info().vmem_capacity_bytes)
    except Exception:                       # conservative default = v7x (64 MiB / TC)
        cap = 64 * 1024 * 1024
    return min(cap * 3 // 4, 112 * 1024 * 1024)


_VMEM_LIMIT = _vmem_limit_bytes()
_VMEM_BUDGET = max(_VMEM_LIMIT - 4 * 1024 * 1024, 8 * 1024 * 1024)


# ----------------------------------------------------------------------------- helpers
def _ceil_to(v, m):
    return ((v + m - 1) // m) * m


def _pad_last(a, c):
    pad = c - a.shape[-1]
    if pad == 0:
        return a
    return jnp.pad(a, [(0, 0)] * (a.ndim - 1) + [(0, pad)])


def _pad2(m, r, c):
    return jnp.pad(m, ((0, r - m.shape[0]), (0, c - m.shape[1])))


def _fold_bn(bn, cp, eps=_BN_EPS):
    gamma, beta, mean, var = bn
    scale = (gamma / jnp.sqrt(var + eps)).astype(jnp.float32)
    shift = (beta - mean * scale).astype(jnp.float32)
    scale = jnp.pad(scale, (0, cp - scale.shape[0])).reshape(1, cp)
    shift = jnp.pad(shift, (0, cp - shift.shape[0])).reshape(1, cp)
    return scale, shift


def _pick_tiles(m, cin, cout, x_bytes, w_bytes, out_bytes, has_residual, res_bytes):
    """Pick (tm, tk): biggest row tile (<=1024) such that double-buffered x / weight /
    residual / output streams plus the f32 accumulator fit the VMEM budget."""
    m_cap = min(1024, _ceil_to(m, 8))            # mem-bound 1x1s want the largest row tile
    if cin % 128 == 0:
        units = cin // 128
        tk_cands = sorted((128 * d for d in range(1, units + 1) if units % d == 0),
                          reverse=True)
    else:
        tk_cands = [cin]
    best = None
    for tk in tk_cands:
        fixed = 2 * tk * cout * w_bytes + 4 * cout * 4        # weight (x2 buffers) + scale/shift
        per_row = (2 * tk * x_bytes                           # x stream (x2 buffers)
                   + 2 * cout * out_bytes                     # output (x2 buffers)
                   + cout * 4                                 # f32 accumulator scratch
                   + (2 * cout * res_bytes if has_residual else 0))
        avail = _VMEM_BUDGET - fixed
        if avail <= 0:
            continue
        tm = min(m_cap, (avail // per_row) // 8 * 8)
        if tm < 8:
            continue
        if best is None or (tm, tk) > best:                   # prefer big tm, then big tk
            best = (tm, tk)
    if best is None:                                          # extreme fallback
        best = (8, 128 if cin % 128 == 0 else cin)
    return best


def _pick_dw_tc(h, w, c, in_bytes, out_bytes):
    """Channel tile for the depthwise kernel so the (double-buffered) plane blocks fit."""
    assert c % 128 == 0
    units = c // 128
    for d in sorted((d for d in range(1, units + 1) if units % d == 0), reverse=True):
        tc = 128 * d
        use = (2 * (h + 2) * (w + 2) * tc * in_bytes      # input block, double-buffered
               + 2 * h * w * tc * out_bytes               # output block, double-buffered
               + 2 * 11 * tc * 4)                         # 3x3 weight + scale + shift
        if use <= _VMEM_BUDGET:
            return tc
    return 128


# --------------------------------------------------------- fused K-tiled pointwise kernel
def _pointwise_kernel(x_ref, w_ref, scale_ref, shift_ref, *rest, relu, add_residual):
    if add_residual:
        res_ref, o_ref, acc_ref = rest
    else:
        o_ref, acc_ref = rest
    k = pl.program_id(1)

    @pl.when(k == 0)
    def _():
        acc_ref[...] = jnp.zeros_like(acc_ref)

    # Operands go straight to the MXU; f32 accumulate in the VMEM scratch.
    acc_ref[...] += jnp.dot(x_ref[...], w_ref[...], preferred_element_type=jnp.float32)

    @pl.when(k == pl.num_programs(1) - 1)
    def _():
        y = acc_ref[...] * scale_ref[...] + shift_ref[...]
        if add_residual:
            y = y + res_ref[...].astype(jnp.float32)
        if relu:
            y = jnp.maximum(y, 0.0)
        o_ref[...] = y.astype(o_ref.dtype)


def _pointwise(x, w, scale, shift, *, relu, residual=None, out_dtype=None):
    """y = relu?( (x @ w) * scale + shift + residual? ), tiled over rows (M) and K."""
    m, cin = x.shape
    cout = w.shape[1]
    out_dtype = out_dtype if out_dtype is not None else x.dtype
    xb = jnp.dtype(x.dtype).itemsize
    wb_ = jnp.dtype(w.dtype).itemsize
    ob = jnp.dtype(out_dtype).itemsize
    rb = jnp.dtype(residual.dtype).itemsize if residual is not None else 0

    tm, tk = _pick_tiles(m, cin, cout, xb, wb_, ob, residual is not None, rb)
    mp = _ceil_to(m, tm)
    if mp != m:
        x = jnp.pad(x, ((0, mp - m), (0, 0)))
        if residual is not None:
            residual = jnp.pad(residual, ((0, mp - m), (0, 0)))
    nk = cin // tk
    add_residual = residual is not None
    kernel = functools.partial(_pointwise_kernel, relu=relu, add_residual=add_residual)

    in_specs = [
        pl.BlockSpec((tm, tk), lambda i, k: (i, k)),       # streamed row tile
        pl.BlockSpec((tk, cout), lambda i, k: (k, 0)),     # streamed K tile of the weight
        pl.BlockSpec((1, cout), lambda i, k: (0, 0)),      # resident BN scale
        pl.BlockSpec((1, cout), lambda i, k: (0, 0)),      # resident BN shift
    ]
    args = [x, w, scale, shift]
    if add_residual:
        in_specs.append(pl.BlockSpec((tm, cout), lambda i, k: (i, 0)))
        args.append(residual)

    flops = 2 * mp * cin * cout
    bytes_acc = (mp * cin * xb + cin * cout * wb_ + mp * cout * ob
                 + (mp * cout * rb if add_residual else 0) + 2 * cout * 4)

    out = pl.pallas_call(
        kernel,
        out_shape=jax.ShapeDtypeStruct((mp, cout), out_dtype),
        grid=(mp // tm, nk),
        in_specs=in_specs,
        out_specs=pl.BlockSpec((tm, cout), lambda i, k: (i, 0)),
        scratch_shapes=[pltpu.VMEM((tm, cout), jnp.float32)],
        compiler_params=pltpu.CompilerParams(
            dimension_semantics=("parallel", "arbitrary"),
            vmem_limit_bytes=_VMEM_LIMIT),
        cost_estimate=pl.CostEstimate(flops=int(flops), transcendentals=0,
                                      bytes_accessed=int(bytes_acc)),
    )(*args)
    return out[:m] if mp != m else out


# ------------------------------------------------------------- depthwise 3x3 + BN + ReLU
def _dw3x3_kernel(x_ref, w_ref, scale_ref, shift_ref, o_ref):
    # x_ref: (1, H+2, W+2, TC)   w_ref: (3, 3, 1, TC) f32
    # scale/shift: (1, TC) f32   o_ref: (1, H, W, TC)
    H, W = o_ref.shape[1], o_ref.shape[2]
    acc = None
    for dy in range(3):
        # One band load (+ one upconvert) per dy, reused by all three dx taps.
        band = x_ref[0, dy:dy + H, :, :].astype(jnp.float32)
        for dx in range(3):
            # TODO(synk): the dx shift could go through pltpu.roll (XLU) instead of a
            #             sublane-offset value slice to offload the binding VALU/vld slots.
            tap = band[:, dx:dx + W, :] * w_ref[dy, dx, 0]
            acc = tap if acc is None else acc + tap
    y = acc * scale_ref[0] + shift_ref[0]
    o_ref[0] = jnp.maximum(y, 0.0).astype(o_ref.dtype)


def _depthwise3x3(x_nhwc, w33, scale, shift):
    """ReLU(affine(depthwise 3x3, stride 1, pad 1)).  Grid over (batch, channel tiles)."""
    n, h, w, c = x_nhwc.shape
    xpad = jnp.pad(x_nhwc, ((0, 0), (1, 1), (1, 1), (0, 0)))
    itemsize = int(jnp.dtype(x_nhwc.dtype).itemsize)
    tc = _pick_dw_tc(h, w, c, itemsize, itemsize)
    flops = 2 * 9 * n * h * w * c
    bytes_acc = (n * (h + 2) * (w + 2) * c + n * h * w * c) * itemsize + 11 * c * 4
    # TODO(synk): for very large H*W planes on v7x (64 MiB VMEM) tile over H with a
    #             1-row halo (manual DMA) instead of whole-plane blocks.
    return pl.pallas_call(
        _dw3x3_kernel,
        out_shape=jax.ShapeDtypeStruct((n, h, w, c), x_nhwc.dtype),
        grid=(n, c // tc),
        in_specs=[
            pl.BlockSpec((1, h + 2, w + 2, tc), lambda i, j: (i, 0, 0, j)),
            pl.BlockSpec((3, 3, 1, tc), lambda i, j: (0, 0, 0, j)),
            pl.BlockSpec((1, tc), lambda i, j: (0, j)),
            pl.BlockSpec((1, tc), lambda i, j: (0, j)),
        ],
        out_specs=pl.BlockSpec((1, h, w, tc), lambda i, j: (i, 0, 0, j)),
        compiler_params=pltpu.CompilerParams(
            dimension_semantics=("parallel", "parallel"),
            vmem_limit_bytes=_VMEM_LIMIT),
        cost_estimate=pl.CostEstimate(flops=int(flops), transcendentals=0,
                                      bytes_accessed=int(bytes_acc)),
    )(xpad, w33, scale, shift)


# -------------------------------------------------------------- weight prep (done once)
def _prepare_params(params, compute_dtype):
    wa, wb, wc = params["wa"], params["wb"], params["wc"]
    cin = wa.shape[1]
    w_b = wa.shape[0]
    width_out = wc.shape[0]
    g = w_b // wb.shape[1]
    proj = "wp" in params

    cin_p = _ceil_to(cin, 128)
    cmid_p = _ceil_to(w_b, 128)
    cout_p = _ceil_to(width_out, 128)

    prep = {}
    prep["A"] = _pad2(jnp.transpose(wa[:, :, 0, 0]), cin_p, cmid_p).astype(compute_dtype)
    prep["sa"], prep["ba"] = _fold_bn(params["bn_a"], cmid_p)
    prep["sb"], prep["bb"] = _fold_bn(params["bn_b"], cmid_p)

    depthwise = (g == w_b)
    if depthwise:
        prep["wdw"] = _pad_last(jnp.transpose(wb, (2, 3, 1, 0)), cmid_p).astype(jnp.float32)
    else:
        cpg = w_b // g
        wd = jnp.zeros((3, 3, w_b, w_b), dtype=jnp.float32)
        for gi in range(g):
            blk = jnp.transpose(wb[gi * cpg:(gi + 1) * cpg], (2, 3, 1, 0))   # [3,3,cin_g,cout_g]
            wd = wd.at[:, :, gi * cpg:(gi + 1) * cpg, gi * cpg:(gi + 1) * cpg].set(blk)
        wd = jnp.pad(wd, ((0, 0), (0, 0), (0, cmid_p - w_b), (0, cmid_p - w_b)))
        prep["wmat"] = wd.reshape(9 * cmid_p, cmid_p).astype(compute_dtype)

    prep["Cw"] = _pad2(jnp.transpose(wc[:, :, 0, 0]), cmid_p, cout_p).astype(compute_dtype)
    prep["sc"], prep["bc"] = _fold_bn(params["bn_c"], cout_p)
    if proj:
        prep["P"] = _pad2(jnp.transpose(params["wp"][:, :, 0, 0]), cin_p, cout_p).astype(compute_dtype)
        prep["sp"], prep["bp"] = _fold_bn(params["bn_p"], cout_p)

    meta = dict(cin=cin, cmid=w_b, cout=width_out, cin_p=cin_p, cmid_p=cmid_p,
                cout_p=cout_p, groups=g, depthwise=depthwise, proj=proj,
                compute_dtype=compute_dtype)
    return prep, meta


# ----------------------------------------------------------------------- forward (jitted)
def _forward(x_nchw, prep, *, stride, meta):
    n, cin, h, w = x_nchw.shape
    assert cin == meta["cin"], "input channels do not match prepared weights"
    cin_p, cmid_p, cout_p = meta["cin_p"], meta["cmid_p"], meta["cout_p"]
    cdt = meta["compute_dtype"]

    # NHWC, channels zero-padded to a lane-dense multiple of 128; bf16 activations.
    xp = _pad_last(jnp.transpose(x_nchw, (0, 2, 3, 1)).astype(cdt), cin_p)

    # ---- conv_a (1x1) + bn_a + relu --------------------------------------------------
    y1 = _pointwise(xp.reshape(n * h * w, cin_p), prep["A"], prep["sa"], prep["ba"],
                    relu=True).reshape(n, h, w, cmid_p)

    # ---- conv_b (3x3, groups, stride) + bn_b + relu ----------------------------------
    ho = (h - 1) // stride + 1
    wo = (w - 1) // stride + 1
    if meta["depthwise"]:
        y2 = _depthwise3x3(y1, prep["wdw"], prep["sb"], prep["bb"])
        if stride > 1:
            # TODO(synk): in-kernel strided taps would save ~stride^2 VPU work + writeback.
            y2 = y2[:, ::stride, ::stride, :]
    else:
        # General grouped conv: im2col patches through the K-tiled MXU pointwise kernel
        # with the pre-built block-diagonal dense weight (K-tiling bounds its VMEM use).
        # TODO(synk): per-group matmuls would avoid the g x FLOP and 9 x HBM blowup.
        y1p = jnp.pad(y1, ((0, 0), (1, 1), (1, 1), (0, 0)))
        taps = [y1p[:, dy:dy + (ho - 1) * stride + 1:stride,
                    dx:dx + (wo - 1) * stride + 1:stride, :]
                for dy in range(3) for dx in range(3)]
        patches = jnp.concatenate(taps, axis=-1).reshape(n * ho * wo, 9 * cmid_p)
        y2 = _pointwise(patches, prep["wmat"], prep["sb"], prep["bb"],
                        relu=True).reshape(n, ho, wo, cmid_p)

    # ---- residual path ---------------------------------------------------------------
    if meta["proj"]:
        xs = xp[:, ::stride, ::stride, :].reshape(n * ho * wo, cin_p)
        res = _pointwise(xs, prep["P"], prep["sp"], prep["bp"], relu=False)
        # TODO(synk): fuse the projection matmul into the final kernel to avoid the
        #             HBM round-trip of `res`.
    else:
        assert meta["cin"] == meta["cout"] and stride == 1, \
            "identity residual requires width_in == width_out and stride == 1"
        res = xp.reshape(n * h * w, cin_p)

    # ---- conv_c (1x1) + final_bn + residual add + relu (fully fused) ------------------
    y3 = _pointwise(y2.reshape(n * ho * wo, cmid_p), prep["Cw"], prep["sc"], prep["bc"],
                    relu=True, residual=res, out_dtype=x_nchw.dtype)

    out = y3.reshape(n, ho, wo, cout_p)[..., :meta["cout"]]
    return jnp.transpose(out, (0, 3, 1, 2))                     # back to NCHW


def make_res_bottleneck_block(params, *, stride=1, compute_dtype=jnp.bfloat16):
    """Fold BN / transpose / pad / densify weights ONCE and return a jitted forward."""
    prep, meta = _prepare_params(params, compute_dtype)
    fwd = jax.jit(functools.partial(_forward, stride=stride, meta=meta))
    return lambda x: fwd(x, prep)


def res_bottleneck_block(x, params, *, stride=1, compute_dtype=jnp.bfloat16):
    """One-shot convenience wrapper (weight prep is not cached across calls)."""
    return make_res_bottleneck_block(params, stride=stride, compute_dtype=compute_dtype)(x)


# ----------------------------------------------------------------------- reference + demo
def _ref_block(x, p, stride, eps=_BN_EPS):
    def conv(x, w, s=1, groups=1, pad=0):
        return jax.lax.conv_general_dilated(
            x, w, window_strides=(s, s), padding=[(pad, pad), (pad, pad)],
            dimension_numbers=("NCHW", "OIHW", "NCHW"),
            feature_group_count=groups, precision=jax.lax.Precision.HIGHEST)

    def bn(x, prm):
        gamma, beta, mean, var = prm
        s = gamma / jnp.sqrt(var + eps)
        return x * s[None, :, None, None] + (beta - mean * s)[None, :, None, None]

    relu = lambda t: jnp.maximum(t, 0.0)
    a = relu(bn(conv(x, p["wa"]), p["bn_a"]))
    g = a.shape[1] // p["wb"].shape[1]
    b = relu(bn(conv(a, p["wb"], s=stride, groups=g, pad=1), p["bn_b"]))
    c = bn(conv(b, p["wc"]), p["bn_c"])
    r = bn(conv(x, p["wp"], s=stride), p["bn_p"]) if "wp" in p else x
    return relu(r + c)


def _make_params(key, width_in, width_out, stride, group_width=1, bottleneck_multiplier=1.0):
    w_b = int(round(width_out * bottleneck_multiplier))
    g = w_b // group_width
    ks = jax.random.split(key, 8)

    def conv_w(k, co, ci, kh, kw):
        bound = 1.0 / math.sqrt(ci * kh * kw)
        return jax.random.uniform(k, (co, ci, kh, kw), jnp.float32, -bound, bound)

    def bn_p(k, c):
        k1, k2, k3, k4 = jax.random.split(k, 4)
        return (jax.random.uniform(k1, (c,), jnp.float32, 0.5, 1.5),
                jax.random.uniform(k2, (c,), jnp.float32, -0.5, 0.5),
                jax.random.uniform(k3, (c,), jnp.float32, -0.5, 0.5),
                jax.random.uniform(k4, (c,), jnp.float32, 0.5, 1.5))

    params = {
        "wa": conv_w(ks[0], w_b, width_in, 1, 1), "bn_a": bn_p(ks[1], w_b),
        "wb": conv_w(ks[2], w_b, w_b // g, 3, 3), "bn_b": bn_p(ks[3], w_b),
        "wc": conv_w(ks[4], width_out, w_b, 1, 1), "bn_c": bn_p(ks[5], width_out),
    }
    if width_in != width_out or stride != 1:
        params["wp"] = conv_w(ks[6], width_out, width_in, 1, 1)
        params["bn_p"] = bn_p(ks[7], width_out)
    return params


if __name__ == "__main__":
    key = jax.random.PRNGKey(0)
    k1, k2, k3, k4, k5, k6 = jax.random.split(key, 6)

    # Test 1: module defaults (group_width=1 -> depthwise 3x3), projection, stride 1 (bf16 path).
    x1 = jax.random.normal(k1, (2, 4, 16, 16), jnp.float32)
    p1 = _make_params(k2, width_in=4, width_out=8, stride=1, group_width=1)
    f1 = make_res_bottleneck_block(p1, stride=1)
    out1 = jax.block_until_ready(f1(x1))
    ref1 = _ref_block(x1, p1, stride=1)
    assert out1.shape == ref1.shape
    assert jnp.allclose(out1, ref1, atol=5e-2, rtol=5e-2), float(jnp.max(jnp.abs(out1 - ref1)))

    # Test 2: grouped 3x3 (group_width=4 -> 2 groups), stride 2, projection (bf16 path).
    x2 = jax.random.normal(k3, (2, 8, 16, 16), jnp.float32)
    p2 = _make_params(k4, width_in=8, width_out=8, stride=2, group_width=4)
    f2 = make_res_bottleneck_block(p2, stride=2)
    out2 = jax.block_until_ready(f2(x2))
    ref2 = _ref_block(x2, p2, stride=2)
    assert out2.shape == ref2.shape
    assert jnp.allclose(out2, ref2, atol=5e-2, rtol=5e-2), float(jnp.max(jnp.abs(out2 - ref2)))

    # Test 3: identity residual (width_in == width_out, stride 1), depthwise path, f32 compute.
    x3 = jax.random.normal(k5, (2, 8, 8, 8), jnp.float32)
    p3 = _make_params(k6, width_in=8, width_out=8, stride=1, group_width=1)
    f3 = make_res_bottleneck_block(p3, stride=1, compute_dtype=jnp.float32)
    out3 = jax.block_until_ready(f3(x3))
    ref3 = _ref_block(x3, p3, stride=1)
    assert out3.shape == ref3.shape
    assert jnp.allclose(out3, ref3, atol=2e-2, rtol=2e-2), float(jnp.max(jnp.abs(out3 - ref3)))

    print("KERNEL_OK")
</pallas_src>

<mosaic_0001>
module attributes {stable_mosaic.version = 11 : i64} {
  func.func @_pointwise_kernel(%arg0: i32, %arg1: i32, %arg2: memref<512x128xbf16, #tpu.memory_space<vmem>>, %arg3: memref<128x128xbf16, #tpu.memory_space<vmem>>, %arg4: memref<1x128xf32, #tpu.memory_space<vmem>>, %arg5: memref<1x128xf32, #tpu.memory_space<vmem>>, %arg6: memref<512x128xbf16, #tpu.memory_space<vmem>>, %arg7: memref<512x128xf32, #tpu.memory_space<vmem>>) attributes {dimension_semantics = [#tpu.dimension_semantics<parallel>, #tpu.dimension_semantics<arbitrary>], iteration_bounds = array<i64: 1, 1>, scalar_prefetch = 0 : i64, scratch_operands = 1 : i64, tpu.core_type = #tpu.core_type<tc>, window_params = [{transform_indices = @transform_0, window_bounds = array<i64: 512, 128>}, {transform_indices = @transform_1, window_bounds = array<i64: 128, 128>}, {pipeline_mode = #tpu.pipeline_mode<synchronous>, transform_indices = @transform_2, window_bounds = array<i64: 1, 128>}, {pipeline_mode = #tpu.pipeline_mode<synchronous>, transform_indices = @transform_3, window_bounds = array<i64: 1, 128>}, {transform_indices = @transform_4, window_bounds = array<i64: 512, 128>}]} {
    %c0_i32 = arith.constant 0 : i32
    %0 = arith.cmpi eq, %arg1, %c0_i32 : i32
    %1 = arith.extui %0 : i1 to i32
    %c0_i32_0 = arith.constant 0 : i32
    %2 = arith.cmpi ne, %1, %c0_i32_0 : i32
    scf.if %2 {
      %cst_10 = arith.constant 0.000000e+00 : f32
      %12 = vector.broadcast %cst_10 : f32 to vector<512x128xf32>
      %c0_11 = arith.constant 0 : index
      %c0_12 = arith.constant 0 : index
      %13 = vector.load %arg7[%c0_11, %c0_12] : memref<512x128xf32, #tpu.memory_space<vmem>>, vector<512x128xf32>
      tpu.vector_store %arg7[%c0_11, %c0_12], %12 {strides = array<i32>} : memref<512x128xf32, #tpu.memory_space<vmem>>, vector<512x128xf32>,
    } else {
    }
    %c0 = arith.constant 0 : index
    %c0_1 = arith.constant 0 : index
    %3 = vector.load %arg7[%c0, %c0_1] : memref<512x128xf32, #tpu.memory_space<vmem>>, vector<512x128xf32>
    %c0_2 = arith.constant 0 : index
    %c0_3 = arith.constant 0 : index
    %4 = vector.load %arg2[%c0_2, %c0_3] : memref<512x128xbf16, #tpu.memory_space<vmem>>, vector<512x128xbf16>
    %c0_4 = arith.constant 0 : index
    %c0_5 = arith.constant 0 : index
    %5 = vector.load %arg3[%c0_4, %c0_5] : memref<128x128xbf16, #tpu.memory_space<vmem>>, vector<128x128xbf16>
    %cst = arith.constant dense<0.000000e+00> : vector<512x128xf32>
    %6 = tpu.matmul %4, %5, %cst {dimension_numbers = #tpu.dot_dimension_numbers<[1], [0], [0], [1], [0, 0, 1, 1], [], []>} : vector<512x128xbf16>, vector<128x128xbf16>, vector<512x128xf32> -> vector<512x128xf32>
    %7 = arith.addf %3, %6 : vector<512x128xf32>
    %c0_6 = arith.constant 0 : index
    %c0_7 = arith.constant 0 : index
    %8 = vector.load %arg7[%c0_6, %c0_7] : memref<512x128xf32, #tpu.memory_space<vmem>>, vector<512x128xf32>
    tpu.vector_store %arg7[%c0_6, %c0_7], %7 {strides = array<i32>} : memref<512x128xf32, #tpu.memory_space<vmem>>, vector<512x128xf32>,
    %c0_i32_8 = arith.constant 0 : i32
    %9 = arith.cmpi eq, %arg1, %c0_i32_8 : i32
    %10 = arith.extui %9 : i1 to i32
    %c0_i32_9 = arith.constant 0 : i32
    %11 = arith.cmpi ne, %10, %c0_i32_9 : i32
    scf.if %11 {
      %c0_10 = arith.constant 0 : index
      %c0_11 = arith.constant 0 : index
      %12 = vector.load %arg7[%c0_10, %c0_11] : memref<512x128xf32, #tpu.memory_space<vmem>>, vector<512x128xf32>
      %c0_12 = arith.constant 0 : index
      %c0_13 = arith.constant 0 : index
      %13 = vector.load %arg4[%c0_12, %c0_13] : memref<1x128xf32, #tpu.memory_space<vmem>>, vector<1x128xf32>
      %14 = vector.broadcast %13 : vector<1x128xf32> to vector<512x128xf32>
      %15 = arith.mulf %12, %14 : vector<512x128xf32>
      %c0_14 = arith.constant 0 : index
      %c0_15 = arith.constant 0 : index
      %16 = vector.load %arg5[%c0_14, %c0_15] : memref<1x128xf32, #tpu.memory_space<vmem>>, vector<1x128xf32>
      %17 = vector.broadcast %16 : vector<1x128xf32> to vector<512x128xf32>
      %18 = arith.addf %15, %17 : vector<512x128xf32>
      %19 = arith.truncf %18 : vector<512x128xf32> to vector<512x128xbf16>
      %c0_16 = arith.constant 0 : index
      %c0_17 = arith.constant 0 : index
      %20 = vector.load %arg6[%c0_16, %c0_17] : memref<512x128xbf16, #tpu.memory_space<vmem>>, vector<512x128xbf16>
      tpu.vector_store %arg6[%c0_16, %c0_17], %19 {strides = array<i32>} : memref<512x128xbf16, #tpu.memory_space<vmem>>, vector<512x128xbf16>,
    } else {
    }
    return
  }
  func.func @transform_0(%arg0: i32, %arg1: i32) -> (i32, i32) {
    %c0_i32 = arith.constant 0 : i32
    return %arg0, %arg1 : i32, i32
  }
  func.func @transform_1(%arg0: i32, %arg1: i32) -> (i32, i32) {
    %c0_i32 = arith.constant 0 : i32
    %c0_i32_0 = arith.constant 0 : i32
    return %arg1, %c0_i32 : i32, i32
  }
  func.func @transform_2(%arg0: i32, %arg1: i32) -> (i32, i32) {
    %c0_i32 = arith.constant 0 : i32
    %c0_i32_0 = arith.constant 0 : i32
    %c0_i32_1 = arith.constant 0 : i32
    return %c0_i32, %c0_i32_0 : i32, i32
  }
  func.func @transform_3(%arg0: i32, %arg1: i32) -> (i32, i32) {
    %c0_i32 = arith.constant 0 : i32
    %c0_i32_0 = arith.constant 0 : i32
    %c0_i32_1 = arith.constant 0 : i32
    return %c0_i32, %c0_i32_0 : i32, i32
  }
  func.func @transform_4(%arg0: i32, %arg1: i32) -> (i32, i32) {
    %c0_i32 = arith.constant 0 : i32
    %c0_i32_0 = arith.constant 0 : i32
    return %arg0, %c0_i32 : i32, i32
  }
}

module attributes {stable_mosaic.version = 11 : i64} {
  func.func @_pointwise_kernel(%arg0: i32, %arg1: i32, %arg2: memref<512x128xbf16, #tpu.memory_space<vmem>>, %arg3: memref<128x128xbf16, #tpu.memory_space<vmem>>, %arg4: memref<1x128xf32, #tpu.memory_space<vmem>>, %arg5: memref<1x128xf32, #tpu.memory_space<vmem>>, %arg6: memref<512x128xbf16, #tpu.memory_space<vmem>>, %arg7: memref<512x128xf32, #tpu.memory_space<vmem>>) attributes {dimension_semantics = [#tpu.dimension_semantics<parallel>, #tpu.dimension_semantics<arbitrary>], iteration_bounds = array<i64: 1, 1>, scalar_prefetch = 0 : i64, scratch_operands = 1 : i64, tpu.core_type = #tpu.core_type<tc>, window_params = [{transform_indices = @transform_0, window_bounds = array<i64: 512, 128>}, {transform_indices = @transform_1, window_bounds = array<i64: 128, 128>}, {pipeline_mode = #tpu.pipeline_mode<synchronous>, transform_indices = @transform_2, window_bounds = array<i64: 1, 128>}, {pipeline_mode = #tpu.pipeline_mode<synchronous>, transform_indices = @transform_3, window_bounds = array<i64: 1, 128>}, {transform_indices = @transform_4, window_bounds = array<i64: 512, 128>}]} {
    %c0_i32 = arith.constant 0 : i32
    %0 = arith.cmpi eq, %arg1, %c0_i32 : i32
    %1 = arith.extui %0 : i1 to i32
    %c0_i32_0 = arith.constant 0 : i32
    %2 = arith.cmpi ne, %1, %c0_i32_0 : i32
    scf.if %2 {
      %cst_10 = arith.constant 0.000000e+00 : f32
      %12 = vector.broadcast %cst_10 : f32 to vector<512x128xf32>
      %c0_11 = arith.constant 0 : index
      %c0_12 = arith.constant 0 : index
      %13 = vector.load %arg7[%c0_11, %c0_12] : memref<512x128xf32, #tpu.memory_space<vmem>>, vector<512x128xf32>
      tpu.vector_store %arg7[%c0_11, %c0_12], %12 {strides = array<i32>} : memref<512x128xf32, #tpu.memory_space<vmem>>, vector<512x128xf32>,
    } else {
    }
    %c0 = arith.constant 0 : index
    %c0_1 = arith.constant 0 : index
    %3 = vector.load %arg7[%c0, %c0_1] : memref<512x128xf32, #tpu.memory_space<vmem>>, vector<512x128xf32>
    %c0_2 = arith.constant 0 : index
    %c0_3 = arith.constant 0 : index
    %4 = vector.load %arg2[%c0_2, %c0_3] : memref<512x128xbf16, #tpu.memory_space<vmem>>, vector<512x128xbf16>
    %c0_4 = arith.constant 0 : index
    %c0_5 = arith.constant 0 : index
    %5 = vector.load %arg3[%c0_4, %c0_5] : memref<128x128xbf16, #tpu.memory_space<vmem>>, vector<128x128xbf16>
    %cst = arith.constant dense<0.000000e+00> : vector<512x128xf32>
    %6 = tpu.matmul %4, %5, %cst {dimension_numbers = #tpu.dot_dimension_numbers<[1], [0], [0], [1], [0, 0, 1, 1], [], []>} : vector<512x128xbf16>, vector<128x128xbf16>, vector<512x128xf32> -> vector<512x128xf32>
    %7 = arith.addf %3, %6 : vector<512x128xf32>
    %c0_6 = arith.constant 0 : index
    %c0_7 = arith.constant 0 : index
    %8 = vector.load %arg7[%c0_6, %c0_7] : memref<512x128xf32, #tpu.memory_space<vmem>>, vector<512x128xf32>
    tpu.vector_store %arg7[%c0_6, %c0_7], %7 {strides = array<i32>} : memref<512x128xf32, #tpu.memory_space<vmem>>, vector<512x128xf32>,
    %c0_i32_8 = arith.constant 0 : i32
    %9 = arith.cmpi eq, %arg1, %c0_i32_8 : i32
    %10 = arith.extui %9 : i1 to i32
    %c0_i32_9 = arith.constant 0 : i32
    %11 = arith.cmpi ne, %10, %c0_i32_9 : i32
    scf.if %11 {
      %c0_10 = arith.constant 0 : index
      %c0_11 = arith.constant 0 : index
      %12 = vector.load %arg7[%c0_10, %c0_11] : memref<512x128xf32, #tpu.memory_space<vmem>>, vector<512x128xf32>
      %c0_12 = arith.constant 0 : index
      %c0_13 = arith.constant 0 : index
      %13 = vector.load %arg4[%c0_12, %c0_13] : memref<1x128xf32, #tpu.memory_space<vmem>>, vector<1x128xf32>
      %14 = vector.broadcast %13 : vector<1x128xf32> to vector<512x128xf32>
      %15 = arith.mulf %12, %14 : vector<512x128xf32>
      %c0_14 = arith.constant 0 : index
      %c0_15 = arith.constant 0 : index
      %16 = vector.load %arg5[%c0_14, %c0_15] : memref<1x128xf32, #tpu.memory_space<vmem>>, vector<1x128xf32>
      %17 = vector.broadcast %16 : vector<1x128xf32> to vector<512x128xf32>
      %18 = arith.addf %15, %17 : vector<512x128xf32>
      %cst_16 = arith.constant 0.000000e+00 : f32
      %19 = vector.broadcast %cst_16 : f32 to vector<512x128xf32>
      %20 = arith.maximumf %18, %19 : vector<512x128xf32>
      %21 = arith.truncf %20 : vector<512x128xf32> to vector<512x128xbf16>
      %c0_17 = arith.constant 0 : index
      %c0_18 = arith.constant 0 : index
      %22 = vector.load %arg6[%c0_17, %c0_18] : memref<512x128xbf16, #tpu.memory_space<vmem>>, vector<512x128xbf16>
      tpu.vector_store %arg6[%c0_17, %c0_18], %21 {strides = array<i32>} : memref<512x128xbf16, #tpu.memory_space<vmem>>, vector<512x128xbf16>,
    } else {
    }
    return
  }
  func.func @transform_0(%arg0: i32, %arg1: i32) -> (i32, i32) {
    %c0_i32 = arith.constant 0 : i32
    return %arg0, %arg1 : i32, i32
  }
  func.func @transform_1(%arg0: i32, %arg1: i32) -> (i32, i32) {
    %c0_i32 = arith.constant 0 : i32
    %c0_i32_0 = arith.constant 0 : i32
    return %arg1, %c0_i32 : i32, i32
  }
  func.func @transform_2(%arg0: i32, %arg1: i32) -> (i32, i32) {
    %c0_i32 = arith.constant 0 : i32
    %c0_i32_0 = arith.constant 0 : i32
    %c0_i32_1 = arith.constant 0 : i32
    return %c0_i32, %c0_i32_0 : i32, i32
  }
  func.func @transform_3(%arg0: i32, %arg1: i32) -> (i32, i32) {
    %c0_i32 = arith.constant 0 : i32
    %c0_i32_0 = arith.constant 0 : i32
    %c0_i32_1 = arith.constant 0 : i32
    return %c0_i32, %c0_i32_0 : i32, i32
  }
  func.func @transform_4(%arg0: i32, %arg1: i32) -> (i32, i32) {
    %c0_i32 = arith.constant 0 : i32
    %c0_i32_0 = arith.constant 0 : i32
    return %arg0, %c0_i32 : i32, i32
  }
}

module attributes {stable_mosaic.version = 11 : i64} {
  func.func @_dw3x3_kernel(%arg0: i32, %arg1: i32, %arg2: memref<1x18x18x128xbf16, #tpu.memory_space<vmem>>, %arg3: memref<3x3x1x128xf32, #tpu.memory_space<vmem>>, %arg4: memref<1x128xf32, #tpu.memory_space<vmem>>, %arg5: memref<1x128xf32, #tpu.memory_space<vmem>>, %arg6: memref<1x16x16x128xbf16, #tpu.memory_space<vmem>>) attributes {dimension_semantics = [#tpu.dimension_semantics<parallel>, #tpu.dimension_semantics<parallel>], iteration_bounds = array<i64: 2, 1>, scalar_prefetch = 0 : i64, scratch_operands = 0 : i64, tpu.core_type = #tpu.core_type<tc>, window_params = [{transform_indices = @transform_0, window_bounds = array<i64: 1, 18, 18, 128>}, {transform_indices = @transform_1, window_bounds = array<i64: 3, 3, 1, 128>}, {transform_indices = @transform_2, window_bounds = array<i64: 1, 128>}, {transform_indices = @transform_3, window_bounds = array<i64: 1, 128>}, {transform_indices = @transform_4, window_bounds = array<i64: 1, 16, 16, 128>}]} {
    %c0 = arith.constant 0 : index
    %c0_0 = arith.constant 0 : index
    %c0_1 = arith.constant 0 : index
    %c0_2 = arith.constant 0 : index
    %0 = vector.load %arg2[%c0, %c0_0, %c0_1, %c0_2] : memref<1x18x18x128xbf16, #tpu.memory_space<vmem>>, vector<1x16x18x128xbf16>
    %1 = vector.shape_cast %0 : vector<1x16x18x128xbf16> to vector<16x18x128xbf16>
    %2 = arith.extf %1 : vector<16x18x128xbf16> to vector<16x18x128xf32>
    %3 = vector.extract_strided_slice %2 {offsets = [0, 0, 0], sizes = [16, 16, 128], strides = [1, 1, 1]} : vector<16x18x128xf32> to vector<16x16x128xf32>
    %c0_3 = arith.constant 0 : index
    %c0_4 = arith.constant 0 : index
    %c0_5 = arith.constant 0 : index
    %c0_6 = arith.constant 0 : index
    %4 = vector.load %arg3[%c0_3, %c0_4, %c0_5, %c0_6] : memref<3x3x1x128xf32, #tpu.memory_space<vmem>>, vector<1x1x1x128xf32>
    %5 = vector.shape_cast %4 : vector<1x1x1x128xf32> to vector<128xf32>
    %6 = vector.shape_cast %5 : vector<128xf32> to vector<1x1x128xf32>
    %7 = vector.broadcast %6 : vector<1x1x128xf32> to vector<16x16x128xf32>
    %8 = arith.mulf %3, %7 : vector<16x16x128xf32>
    %9 = vector.extract_strided_slice %2 {offsets = [0, 1, 0], sizes = [16, 16, 128], strides = [1, 1, 1]} : vector<16x18x128xf32> to vector<16x16x128xf32>
    %c0_7 = arith.constant 0 : index
    %c1 = arith.constant 1 : index
    %c0_8 = arith.constant 0 : index
    %c0_9 = arith.constant 0 : index
    %10 = vector.load %arg3[%c0_7, %c1, %c0_8, %c0_9] : memref<3x3x1x128xf32, #tpu.memory_space<vmem>>, vector<1x1x1x128xf32>
    %11 = vector.shape_cast %10 : vector<1x1x1x128xf32> to vector<128xf32>
    %12 = vector.shape_cast %11 : vector<128xf32> to vector<1x1x128xf32>
    %13 = vector.broadcast %12 : vector<1x1x128xf32> to vector<16x16x128xf32>
    %14 = arith.mulf %9, %13 : vector<16x16x128xf32>
    %15 = arith.addf %8, %14 : vector<16x16x128xf32>
    %16 = vector.extract_strided_slice %2 {offsets = [0, 2, 0], sizes = [16, 16, 128], strides = [1, 1, 1]} : vector<16x18x128xf32> to vector<16x16x128xf32>
    %c0_10 = arith.constant 0 : index
    %c2 = arith.constant 2 : index
    %c0_11 = arith.constant 0 : index
    %c0_12 = arith.constant 0 : index
    %17 = vector.load %arg3[%c0_10, %c2, %c0_11, %c0_12] : memref<3x3x1x128xf32, #tpu.memory_space<vmem>>, vector<1x1x1x128xf32>
    %18 = vector.shape_cast %17 : vector<1x1x1x128xf32> to vector<128xf32>
    %19 = vector.shape_cast %18 : vector<128xf32> to vector<1x1x128xf32>
    %20 = vector.broadcast %19 : vector<1x1x128xf32> to vector<16x16x128xf32>
    %21 = arith.mulf %16, %20 : vector<16x16x128xf32>
    %22 = arith.addf %15, %21 : vector<16x16x128xf32>
    %c0_13 = arith.constant 0 : index
    %c1_14 = arith.constant 1 : index
    %c0_15 = arith.constant 0 : index
    %c0_16 = arith.constant 0 : index
    %23 = vector.load %arg2[%c0_13, %c1_14, %c0_15, %c0_16] : memref<1x18x18x128xbf16, #tpu.memory_space<vmem>>, vector<1x16x18x128xbf16>
    %24 = vector.shape_cast %23 : vector<1x16x18x128xbf16> to vector<16x18x128xbf16>
    %25 = arith.extf %24 : vector<16x18x128xbf16> to vector<16x18x128xf32>
    %26 = vector.extract_strided_slice %25 {offsets = [0, 0, 0], sizes = [16, 16, 128], strides = [1, 1, 1]} : vector<16x18x128xf32> to vector<16x16x128xf32>
    %c1_17 = arith.constant 1 : index
    %c0_18 = arith.constant 0 : index
    %c0_19 = arith.constant 0 : index
    %c0_20 = arith.constant 0 : index
    %27 = vector.load %arg3[%c1_17, %c0_18, %c0_19, %c0_20] : memref<3x3x1x128xf32, #tpu.memory_space<vmem>>, vector<1x1x1x128xf32>
    %28 = vector.shape_cast %27 : vector<1x1x1x128xf32> to vector<128xf32>
    %29 = vector.shape_cast %28 : vector<128xf32> to vector<1x1x128xf32>
    %30 = vector.broadcast %29 : vector<1x1x128xf32> to vector<16x16x128xf32>
    %31 = arith.mulf %26, %30 : vector<16x16x128xf32>
    %32 = arith.addf %22, %31 : vector<16x16x128xf32>
    %33 = vector.extract_strided_slice %25 {offsets = [0, 1, 0], sizes = [16, 16, 128], strides = [1, 1, 1]} : vector<16x18x128xf32> to vector<16x16x128xf32>
    %c1_21 = arith.constant 1 : index
    %c1_22 = arith.constant 1 : index
    %c0_23 = arith.constant 0 : index
    %c0_24 = arith.constant 0 : index
    %34 = vector.load %arg3[%c1_21, %c1_22, %c0_23, %c0_24] : memref<3x3x1x128xf32, #tpu.memory_space<vmem>>, vector<1x1x1x128xf32>
    %35 = vector.shape_cast %34 : vector<1x1x1x128xf32> to vector<128xf32>
    %36 = vector.shape_cast %35 : vector<128xf32> to vector<1x1x128xf32>
    %37 = vector.broadcast %36 : vector<1x1x128xf32> to vector<16x16x128xf32>
    %38 = arith.mulf %33, %37 : vector<16x16x128xf32>
    %39 = arith.addf %32, %38 : vector<16x16x128xf32>
    %40 = vector.extract_strided_slice %25 {offsets = [0, 2, 0], sizes = [16, 16, 128], strides = [1, 1, 1]} : vector<16x18x128xf32> to vector<16x16x128xf32>
    %c1_25 = arith.constant 1 : index
    %c2_26 = arith.constant 2 : index
    %c0_27 = arith.constant 0 : index
    %c0_28 = arith.constant 0 : index
    %41 = vector.load %arg3[%c1_25, %c2_26, %c0_27, %c0_28] : memref<3x3x1x128xf32, #tpu.memory_space<vmem>>, vector<1x1x1x128xf32>
    %42 = vector.shape_cast %41 : vector<1x1x1x128xf32> to vector<128xf32>
    %43 = vector.shape_cast %42 : vector<128xf32> to vector<1x1x128xf32>
    %44 = vector.broadcast %43 : vector<1x1x128xf32> to vector<16x16x128xf32>
    %45 = arith.mulf %40, %44 : vector<16x16x128xf32>
    %46 = arith.addf %39, %45 : vector<16x16x128xf32>
    %c0_29 = arith.constant 0 : index
    %c2_30 = arith.constant 2 : index
    %c0_31 = arith.constant 0 : index
    %c0_32 = arith.constant 0 : index
    %47 = vector.load %arg2[%c0_29, %c2_30, %c0_31, %c0_32] : memref<1x18x18x128xbf16, #tpu.memory_space<vmem>>, vector<1x16x18x128xbf16>
    %48 = vector.shape_cast %47 : vector<1x16x18x128xbf16> to vector<16x18x128xbf16>
    %49 = arith.extf %48 : vector<16x18x128xbf16> to vector<16x18x128xf32>
    %50 = vector.extract_strided_slice %49 {offsets = [0, 0, 0], sizes = [16, 16, 128], strides = [1, 1, 1]} : vector<16x18x128xf32> to vector<16x16x128xf32>
    %c2_33 = arith.constant 2 : index
    %c0_34 = arith.constant 0 : index
    %c0_35 = arith.constant 0 : index
    %c0_36 = arith.constant 0 : index
    %51 = vector.load %arg3[%c2_33, %c0_34, %c0_35, %c0_36] : memref<3x3x1x128xf32, #tpu.memory_space<vmem>>, vector<1x1x1x128xf32>
    %52 = vector.shape_cast %51 : vector<1x1x1x128xf32> to vector<128xf32>
    %53 = vector.shape_cast %52 : vector<128xf32> to vector<1x1x128xf32>
    %54 = vector.broadcast %53 : vector<1x1x128xf32> to vector<16x16x128xf32>
    %55 = arith.mulf %50, %54 : vector<16x16x128xf32>
    %56 = arith.addf %46, %55 : vector<16x16x128xf32>
    %57 = vector.extract_strided_slice %49 {offsets = [0, 1, 0], sizes = [16, 16, 128], strides = [1, 1, 1]} : vector<16x18x128xf32> to vector<16x16x128xf32>
    %c2_37 = arith.constant 2 : index
    %c1_38 = arith.constant 1 : index
    %c0_39 = arith.constant 0 : index
    %c0_40 = arith.constant 0 : index
    %58 = vector.load %arg3[%c2_37, %c1_38, %c0_39, %c0_40] : memref<3x3x1x128xf32, #tpu.memory_space<vmem>>, vector<1x1x1x128xf32>
    %59 = vector.shape_cast %58 : vector<1x1x1x128xf32> to vector<128xf32>
    %60 = vector.shape_cast %59 : vector<128xf32> to vector<1x1x128xf32>
    %61 = vector.broadcast %60 : vector<1x1x128xf32> to vector<16x16x128xf32>
    %62 = arith.mulf %57, %61 : vector<16x16x128xf32>
    %63 = arith.addf %56, %62 : vector<16x16x128xf32>
    %64 = vector.extract_strided_slice %49 {offsets = [0, 2, 0], sizes = [16, 16, 128], strides = [1, 1, 1]} : vector<16x18x128xf32> to vector<16x16x128xf32>
    %c2_41 = arith.constant 2 : index
    %c2_42 = arith.constant 2 : index
    %c0_43 = arith.constant 0 : index
    %c0_44 = arith.constant 0 : index
    %65 = vector.load %arg3[%c2_41, %c2_42, %c0_43, %c0_44] : memref<3x3x1x128xf32, #tpu.memory_space<vmem>>, vector<1x1x1x128xf32>
    %66 = vector.shape_cast %65 : vector<1x1x1x128xf32> to vector<128xf32>
    %67 = vector.shape_cast %66 : vector<128xf32> to vector<1x1x128xf32>
    %68 = vector.broadcast %67 : vector<1x1x128xf32> to vector<16x16x128xf32>
    %69 = arith.mulf %64, %68 : vector<16x16x128xf32>
    %70 = arith.addf %63, %69 : vector<16x16x128xf32>
    %c0_45 = arith.constant 0 : index
    %c0_46 = arith.constant 0 : index
    %71 = vector.load %arg4[%c0_45, %c0_46] : memref<1x128xf32, #tpu.memory_space<vmem>>, vector<1x128xf32>
    %72 = vector.shape_cast %71 : vector<1x128xf32> to vector<128xf32>
    %73 = vector.shape_cast %72 : vector<128xf32> to vector<1x1x128xf32>
    %74 = vector.broadcast %73 : vector<1x1x128xf32> to vector<16x16x128xf32>
    %75 = arith.mulf %70, %74 : vector<16x16x128xf32>
    %c0_47 = arith.constant 0 : index
    %c0_48 = arith.constant 0 : index
    %76 = vector.load %arg5[%c0_47, %c0_48] : memref<1x128xf32, #tpu.memory_space<vmem>>, vector<1x128xf32>
    %77 = vector.shape_cast %76 : vector<1x128xf32> to vector<128xf32>
    %78 = vector.shape_cast %77 : vector<128xf32> to vector<1x1x128xf32>
    %79 = vector.broadcast %78 : vector<1x1x128xf32> to vector<16x16x128xf32>
    %80 = arith.addf %75, %79 : vector<16x16x128xf32>
    %cst = arith.constant 0.000000e+00 : f32
    %81 = vector.broadcast %cst : f32 to vector<16x16x128xf32>
    %82 = arith.maximumf %80, %81 : vector<16x16x128xf32>
    %83 = arith.truncf %82 : vector<16x16x128xf32> to vector<16x16x128xbf16>
    %c0_49 = arith.constant 0 : index
    %c0_50 = arith.constant 0 : index
    %c0_51 = arith.constant 0 : index
    %c0_52 = arith.constant 0 : index
    %84 = vector.load %arg6[%c0_49, %c0_50, %c0_51, %c0_52] : memref<1x16x16x128xbf16, #tpu.memory_space<vmem>>, vector<1x16x16x128xbf16>
    %85 = vector.shape_cast %84 : vector<1x16x16x128xbf16> to vector<16x16x128xbf16>
    %86 = vector.shape_cast %83 : vector<16x16x128xbf16> to vector<1x16x16x128xbf16>
    tpu.vector_store %arg6[%c0_49, %c0_50, %c0_51, %c0_52], %86 {strides = array<i32>} : memref<1x16x16x128xbf16, #tpu.memory_space<vmem>>, vector<1x16x16x128xbf16>,
    return
  }
  func.func @transform_0(%arg0: i32, %arg1: i32) -> (i32, i32, i32, i32) {
    %c0_i32 = arith.constant 0 : i32
    %c0_i32_0 = arith.constant 0 : i32
    %c0_i32_1 = arith.constant 0 : i32
    return %arg0, %c0_i32, %c0_i32_0, %arg1 : i32, i32, i32, i32
  }
  func.func @transform_1(%arg0: i32, %arg1: i32) -> (i32, i32, i32, i32) {
    %c0_i32 = arith.constant 0 : i32
    %c0_i32_0 = arith.constant 0 : i32
    %c0_i32_1 = arith.constant 0 : i32
    %c0_i32_2 = arith.constant 0 : i32
    return %c0_i32, %c0_i32_0, %c0_i32_1, %arg1 : i32, i32, i32, i32
  }
  func.func @transform_2(%arg0: i32, %arg1: i32) -> (i32, i32) {
    %c0_i32 = arith.constant 0 : i32
    %c0_i32_0 = arith.constant 0 : i32
    return %c0_i32, %arg1 : i32, i32
  }
  func.func @transform_3(%arg0: i32, %arg1: i32) -> (i32, i32) {
    %c0_i32 = arith.constant 0 : i32
    %c0_i32_0 = arith.constant 0 : i32
    return %c0_i32, %arg1 : i32, i32
  }
  func.func @transform_4(%arg0: i32, %arg1: i32) -> (i32, i32, i32, i32) {
    %c0_i32 = arith.constant 0 : i32
    %c0_i32_0 = arith.constant 0 : i32
    %c0_i32_1 = arith.constant 0 : i32
    return %arg0, %c0_i32, %c0_i32_0, %arg1 : i32, i32, i32, i32
  }
}

module attributes {stable_mosaic.version = 11 : i64} {
  func.func @_pointwise_kernel(%arg0: i32, %arg1: i32, %arg2: memref<512x128xbf16, #tpu.memory_space<vmem>>, %arg3: memref<128x128xbf16, #tpu.memory_space<vmem>>, %arg4: memref<1x128xf32, #tpu.memory_space<vmem>>, %arg5: memref<1x128xf32, #tpu.memory_space<vmem>>, %arg6: memref<512x128xbf16, #tpu.memory_space<vmem>>, %arg7: memref<512x128xf32, #tpu.memory_space<vmem>>, %arg8: memref<512x128xf32, #tpu.memory_space<vmem>>) attributes {dimension_semantics = [#tpu.dimension_semantics<parallel>, #tpu.dimension_semantics<arbitrary>], iteration_bounds = array<i64: 1, 1>, scalar_prefetch = 0 : i64, scratch_operands = 1 : i64, tpu.core_type = #tpu.core_type<tc>, window_params = [{transform_indices = @transform_0, window_bounds = array<i64: 512, 128>}, {transform_indices = @transform_1, window_bounds = array<i64: 128, 128>}, {pipeline_mode = #tpu.pipeline_mode<synchronous>, transform_indices = @transform_2, window_bounds = array<i64: 1, 128>}, {pipeline_mode = #tpu.pipeline_mode<synchronous>, transform_indices = @transform_3, window_bounds = array<i64: 1, 128>}, {transform_indices = @transform_4, window_bounds = array<i64: 512, 128>}, {transform_indices = @transform_5, window_bounds = array<i64: 512, 128>}]} {
    %c0_i32 = arith.constant 0 : i32
    %0 = arith.cmpi eq, %arg1, %c0_i32 : i32
    %1 = arith.extui %0 : i1 to i32
    %c0_i32_0 = arith.constant 0 : i32
    %2 = arith.cmpi ne, %1, %c0_i32_0 : i32
    scf.if %2 {
      %cst_10 = arith.constant 0.000000e+00 : f32
      %12 = vector.broadcast %cst_10 : f32 to vector<512x128xf32>
      %c0_11 = arith.constant 0 : index
      %c0_12 = arith.constant 0 : index
      %13 = vector.load %arg8[%c0_11, %c0_12] : memref<512x128xf32, #tpu.memory_space<vmem>>, vector<512x128xf32>
      tpu.vector_store %arg8[%c0_11, %c0_12], %12 {strides = array<i32>} : memref<512x128xf32, #tpu.memory_space<vmem>>, vector<512x128xf32>,
    } else {
    }
    %c0 = arith.constant 0 : index
    %c0_1 = arith.constant 0 : index
    %3 = vector.load %arg8[%c0, %c0_1] : memref<512x128xf32, #tpu.memory_space<vmem>>, vector<512x128xf32>
    %c0_2 = arith.constant 0 : index
    %c0_3 = arith.constant 0 : index
    %4 = vector.load %arg2[%c0_2, %c0_3] : memref<512x128xbf16, #tpu.memory_space<vmem>>, vector<512x128xbf16>
    %c0_4 = arith.constant 0 : index
    %c0_5 = arith.constant 0 : index
    %5 = vector.load %arg3[%c0_4, %c0_5] : memref<128x128xbf16, #tpu.memory_space<vmem>>, vector<128x128xbf16>
    %cst = arith.constant dense<0.000000e+00> : vector<512x128xf32>
    %6 = tpu.matmul %4, %5, %cst {dimension_numbers = #tpu.dot_dimension_numbers<[1], [0], [0], [1], [0, 0, 1, 1], [], []>} : vector<512x128xbf16>, vector<128x128xbf16>, vector<512x128xf32> -> vector<512x128xf32>
    %7 = arith.addf %3, %6 : vector<512x128xf32>
    %c0_6 = arith.constant 0 : index
    %c0_7 = arith.constant 0 : index
    %8 = vector.load %arg8[%c0_6, %c0_7] : memref<512x128xf32, #tpu.memory_space<vmem>>, vector<512x128xf32>
    tpu.vector_store %arg8[%c0_6, %c0_7], %7 {strides = array<i32>} : memref<512x128xf32, #tpu.memory_space<vmem>>, vector<512x128xf32>,
    %c0_i32_8 = arith.constant 0 : i32
    %9 = arith.cmpi eq, %arg1, %c0_i32_8 : i32
    %10 = arith.extui %9 : i1 to i32
    %c0_i32_9 = arith.constant 0 : i32
    %11 = arith.cmpi ne, %10, %c0_i32_9 : i32
    scf.if %11 {
      %c0_10 = arith.constant 0 : index
      %c0_11 = arith.constant 0 : index
      %12 = vector.load %arg8[%c0_10, %c0_11] : memref<512x128xf32, #tpu.memory_space<vmem>>, vector<512x128xf32>
      %c0_12 = arith.constant 0 : index
      %c0_13 = arith.constant 0 : index
      %13 = vector.load %arg4[%c0_12, %c0_13] : memref<1x128xf32, #tpu.memory_space<vmem>>, vector<1x128xf32>
      %14 = vector.broadcast %13 : vector<1x128xf32> to vector<512x128xf32>
      %15 = arith.mulf %12, %14 : vector<512x128xf32>
      %c0_14 = arith.constant 0 : index
      %c0_15 = arith.constant 0 : index
      %16 = vector.load %arg5[%c0_14, %c0_15] : memref<1x128xf32, #tpu.memory_space<vmem>>, vector<1x128xf32>
      %17 = vector.broadcast %16 : vector<1x128xf32> to vector<512x128xf32>
      %18 = arith.addf %15, %17 : vector<512x128xf32>
      %c0_16 = arith.constant 0 : index
      %c0_17 = arith.constant 0 : index
      %19 = vector.load %arg6[%c0_16, %c0_17] : memref<512x128xbf16, #tpu.memory_space<vmem>>, vector<512x128xbf16>
      %20 = arith.extf %19 : vector<512x128xbf16> to vector<512x128xf32>
      %21 = arith.addf %18, %20 : vector<512x128xf32>
      %cst_18 = arith.constant 0.000000e+00 : f32
      %22 = vector.broadcast %cst_18 : f32 to vector<512x128xf32>
      %23 = arith.maximumf %21, %22 : vector<512x128xf32>
      %c0_19 = arith.constant 0 : index
      %c0_20 = arith.constant 0 : index
      %24 = vector.load %arg7[%c0_19, %c0_20] : memref<512x128xf32, #tpu.memory_space<vmem>>, vector<512x128xf32>
      tpu.vector_store %arg7[%c0_19, %c0_20], %23 {strides = array<i32>} : memref<512x128xf32, #tpu.memory_space<vmem>>, vector<512x128xf32>,
    } else {
    }
    return
  }
  func.func @transform_0(%arg0: i32, %arg1: i32) -> (i32, i32) {
    %c0_i32 = arith.constant 0 : i32
    return %arg0, %arg1 : i32, i32
  }
  func.func @transform_1(%arg0: i32, %arg1: i32) -> (i32, i32) {
    %c0_i32 = arith.constant 0 : i32
    %c0_i32_0 = arith.constant 0 : i32
    return %arg1, %c0_i32 : i32, i32
  }
  func.func @transform_2(%arg0: i32, %arg1: i32) -> (i32, i32) {
    %c0_i32 = arith.constant 0 : i32
    %c0_i32_0 = arith.constant 0 : i32
    %c0_i32_1 = arith.constant 0 : i32
    return %c0_i32, %c0_i32_0 : i32, i32
  }
  func.func @transform_3(%arg0: i32, %arg1: i32) -> (i32, i32) {
    %c0_i32 = arith.constant 0 : i32
    %c0_i32_0 = arith.constant 0 : i32
    %c0_i32_1 = arith.constant 0 : i32
    return %c0_i32, %c0_i32_0 : i32, i32
  }
  func.func @transform_4(%arg0: i32, %arg1: i32) -> (i32, i32) {
    %c0_i32 = arith.constant 0 : i32
    %c0_i32_0 = arith.constant 0 : i32
    return %arg0, %c0_i32 : i32, i32
  }
  func.func @transform_5(%arg0: i32, %arg1: i32) -> (i32, i32) {
    %c0_i32 = arith.constant 0 : i32
    %c0_i32_0 = arith.constant 0 : i32
    return %arg0, %c0_i32 : i32, i32
  }
}

</mosaic_0001>

<llo_original>
// kernel: _forward.6
$region0: #{_forward.6}
  #allocation0 [shape = 'u32[]', space=smem, size = 0x4, offset = 0x4, fixed_abs, tag = 'smem constant byte address 0x4 - core index']
  #allocation1 [shape = 'u32[144,128]{1,0:T(1,128)}', space=vmem, size = 0x12000, scoped, tag = 'internal scratch']
  #allocation2 [shape = 'f32[512,128]{1,0:T(8,128)}', space=vmem, size = 0x40000, scoped, tag = 'scratch operand']
  %s0 = inlined_call_operand.vmem [shape: bf16[512,128], index: 0, kind: input, shape index: {}]
  %s1 = inlined_call_operand.vmem [shape: bf16[128,128], index: 1, kind: input, shape index: {}]
  %s2 = inlined_call_operand.vmem [shape: f32[1,128], index: 2, kind: input, shape index: {}]
  %s3 = inlined_call_operand.vmem [shape: f32[1,128], index: 3, kind: input, shape index: {}]
  %s4 = inlined_call_operand.vmem [shape: bf16[512,128], index: 4, kind: output, shape index: {}]
  %s5 = sld [smem:[#allocation0]]
  $region34: #{_forward.6} parent=0
    _
  %s7 = ssub.s32 1, %s5
  %s8 = scalar_select 0, %s7, %s5
  // Predicated region
  $region2: #{_forward.6} parent=0 // pred_check
    _
  $region3: #{_forward.6} parent=0 // pred_check_branch
    %10 = sbr.rel (0) target = $region5
  $region4: #{_forward.6} parent=0 // pred_region
    _
  $region5: #{_forward.6} parent=0 // pred_fallthru
    _
  // Predicated region
  $region6: #{_forward.6} parent=0 // pred_check
    _
  $region7: #{_forward.6} parent=0 // pred_check_branch
    %12 = sbr.rel (0) target = $region9
  $region8: #{_forward.6} parent=0 // pred_region
    _
  $region9: #{_forward.6} parent=0 // pred_fallthru
    _
  // Predicated region
  $region10: #{_forward.6} parent=0 // pred_check
    _
  $region11: #{_forward.6} parent=0 // pred_check_branch
    %14 = sbr.rel (0) target = $region13
  $region12: #{_forward.6} parent=0 // pred_region
    _
  $region13: #{_forward.6} parent=0 // pred_fallthru
    _
  // Predicated region
  $region14: #{_forward.6} parent=0 // pred_check
    _
  $region15: #{_forward.6} parent=0 // pred_check_branch
    %16 = sbr.rel (0) target = $region17
  $region16: #{_forward.6} parent=0 // pred_region
    _
  $region17: #{_forward.6} parent=0 // pred_fallthru
    _
  %p18 = scmp.eq.s32.totalorder 0, 0
  // Predicated region
  $region18: #{_forward.6} parent=0 // pred_check
    %p19 = pneg %p18
  $region19: #{_forward.6} parent=0 // pred_check_branch
    %21 = sbr.rel (%p19) target = $region21
  $region20: #{_forward.6} parent=0 // pred_region
    %22 = vst [vmem:[#allocation2] sm:$0xff] 0.0
    %23 = vst [vmem:[#allocation2 + $0x8] sm:$0xff] 0.0
    %24 = vst [vmem:[#allocation2 + $0x10] sm:$0xff] 0.0
    %25 = vst [vmem:[#allocation2 + $0x18] sm:$0xff] 0.0
    %26 = vst [vmem:[#allocation2 + $0x20] sm:$0xff] 0.0
    %27 = vst [vmem:[#allocation2 + $0x28] sm:$0xff] 0.0
    %28 = vst [vmem:[#allocation2 + $0x30] sm:$0xff] 0.0
    %29 = vst [vmem:[#allocation2 + $0x38] sm:$0xff] 0.0
    %30 = vst [vmem:[#allocation2 + $0x40] sm:$0xff] 0.0
    %31 = vst [vmem:[#allocation2 + $0x48] sm:$0xff] 0.0
    %32 = vst [vmem:[#allocation2 + $0x50] sm:$0xff] 0.0
    %33 = vst [vmem:[#allocation2 + $0x58] sm:$0xff] 0.0
    %34 = vst [vmem:[#allocation2 + $0x60] sm:$0xff] 0.0
    %35 = vst [vmem:[#allocation2 + $0x68] sm:$0xff] 0.0
    %36 = vst [vmem:[#allocation2 + $0x70] sm:$0xff] 0.0
    %37 = vst [vmem:[#allocation2 + $0x78] sm:$0xff] 0.0
    %38 = vst [vmem:[#allocation2 + $0x80] sm:$0xff] 0.0
    %39 = vst [vmem:[#allocation2 + $0x88] sm:$0xff] 0.0
    %40 = vst [vmem:[#allocation2 + $0x90] sm:$0xff] 0.0
    %41 = vst [vmem:[#allocation2 + $0x98] sm:$0xff] 0.0
    %42 = vst [vmem:[#allocation2 + $0xa0] sm:$0xff] 0.0
    %43 = vst [vmem:[#allocation2 + $0xa8] sm:$0xff] 0.0
    %44 = vst [vmem:[#allocation2 + $0xb0] sm:$0xff] 0.0
    %45 = vst [vmem:[#allocation2 + $0xb8] sm:$0xff] 0.0
    %46 = vst [vmem:[#allocation2 + $0xc0] sm:$0xff] 0.0
    %47 = vst [vmem:[#allocation2 + $0xc8] sm:$0xff] 0.0
    %48 = vst [vmem:[#allocation2 + $0xd0] sm:$0xff] 0.0
    %49 = vst [vmem:[#allocation2 + $0xd8] sm:$0xff] 0.0
    %50 = vst [vmem:[#allocation2 + $0xe0] sm:$0xff] 0.0
    %51 = vst [vmem:[#allocation2 + $0xe8] sm:$0xff] 0.0
    %52 = vst [vmem:[#allocation2 + $0xf0] sm:$0xff] 0.0
    %53 = vst [vmem:[#allocation2 + $0xf8] sm:$0xff] 0.0
    %54 = vst [vmem:[#allocation2 + $0x100] sm:$0xff] 0.0
    %55 = vst [vmem:[#allocation2 + $0x108] sm:$0xff] 0.0
    %56 = vst [vmem:[#allocation2 + $0x110] sm:$0xff] 0.0
    %57 = vst [vmem:[#allocation2 + $0x118] sm:$0xff] 0.0
    %58 = vst [vmem:[#allocation2 + $0x120] sm:$0xff] 0.0
    %59 = vst [vmem:[#allocation2 + $0x128] sm:$0xff] 0.0
    %60 = vst [vmem:[#allocation2 + $0x130] sm:$0xff] 0.0
    %61 = vst [vmem:[#allocation2 + $0x138] sm:$0xff] 0.0
    %62 = vst [vmem:[#allocation2 + $0x140] sm:$0xff] 0.0
    %63 = vst [vmem:[#allocation2 + $0x148] sm:$0xff] 0.0
    %64 = vst [vmem:[#allocation2 + $0x150] sm:$0xff] 0.0
    %65 = vst [vmem:[#allocation2 + $0x158] sm:$0xff] 0.0
    %66 = vst [vmem:[#allocation2 + $0x160] sm:$0xff] 0.0
    %67 = vst [vmem:[#allocation2 + $0x168] sm:$0xff] 0.0
    %68 = vst [vmem:[#allocation2 + $0x170] sm:$0xff] 0.0
    %69 = vst [vmem:[#allocation2 + $0x178] sm:$0xff] 0.0
    %70 = vst [vmem:[#allocation2 + $0x180] sm:$0xff] 0.0
    %71 = vst [vmem:[#allocation2 + $0x188] sm:$0xff] 0.0
    %72 = vst [vmem:[#allocation2 + $0x190] sm:$0xff] 0.0
    %73 = vst [vmem:[#allocation2 + $0x198] sm:$0xff] 0.0
    %74 = vst [vmem:[#allocation2 + $0x1a0] sm:$0xff] 0.0
    %75 = vst [vmem:[#allocation2 + $0x1a8] sm:$0xff] 0.0
    %76 = vst [vmem:[#allocation2 + $0x1b0] sm:$0xff] 0.0
    %77 = vst [vmem:[#allocation2 + $0x1b8] sm:$0xff] 0.0
    %78 = vst [vmem:[#allocation2 + $0x1c0] sm:$0xff] 0.0
    %79 = vst [vmem:[#allocation2 + $0x1c8] sm:$0xff] 0.0
    %80 = vst [vmem:[#allocation2 + $0x1d0] sm:$0xff] 0.0
    %81 = vst [vmem:[#allocation2 + $0x1d8] sm:$0xff] 0.0
    %82 = vst [vmem:[#allocation2 + $0x1e0] sm:$0xff] 0.0
    %83 = vst [vmem:[#allocation2 + $0x1e8] sm:$0xff] 0.0
    %84 = vst [vmem:[#allocation2 + $0x1f0] sm:$0xff] 0.0
    %85 = vst [vmem:[#allocation2 + $0x1f8] sm:$0xff] 0.0
  $region21: #{_forward.6} parent=0 // pred_fallthru
    _
  %v86 = vld [vmem:[#allocation2] sm:$0xff]
  %v87 = vld [vmem:[#allocation2 + $0x8] sm:$0xff]
  %v88 = vld [vmem:[#allocation2 + $0x10] sm:$0xff]
  %v89 = vld [vmem:[#allocation2 + $0x18] sm:$0xff]
  %v90 = vld [vmem:[#allocation2 + $0x20] sm:$0xff]
  %v91 = vld [vmem:[#allocation2 + $0x28] sm:$0xff]
  %v92 = vld [vmem:[#allocation2 + $0x30] sm:$0xff]
  %v93 = vld [vmem:[#allocation2 + $0x38] sm:$0xff]
  %v94 = vld [vmem:[#allocation2 + $0x40] sm:$0xff]
  %v95 = vld [vmem:[#allocation2 + $0x48] sm:$0xff]
  %v96 = vld [vmem:[#allocation2 + $0x50] sm:$0xff]
  %v97 = vld [vmem:[#allocation2 + $0x58] sm:$0xff]
  %v98 = vld [vmem:[#allocation2 + $0x60] sm:$0xff]
  %v99 = vld [vmem:[#allocation2 + $0x68] sm:$0xff]
  %v100 = vld [vmem:[#allocation2 + $0x70] sm:$0xff]
  %v101 = vld [vmem:[#allocation2 + $0x78] sm:$0xff]
  %v102 = vld [vmem:[#allocation2 + $0x80] sm:$0xff]
  %v103 = vld [vmem:[#allocation2 + $0x88] sm:$0xff]
  %v104 = vld [vmem:[#allocation2 + $0x90] sm:$0xff]
  %v105 = vld [vmem:[#allocation2 + $0x98] sm:$0xff]
  %v106 = vld [vmem:[#allocation2 + $0xa0] sm:$0xff]
  %v107 = vld [vmem:[#allocation2 + $0xa8] sm:$0xff]
  %v108 = vld [vmem:[#allocation2 + $0xb0] sm:$0xff]
  %v109 = vld [vmem:[#allocation2 + $0xb8] sm:$0xff]
  %v110 = vld [vmem:[#allocation2 + $0xc0] sm:$0xff]
  %v111 = vld [vmem:[#allocation2 + $0xc8] sm:$0xff]
  %v112 = vld [vmem:[#allocation2 + $0xd0] sm:$0xff]
  %v113 = vld [vmem:[#allocation2 + $0xd8] sm:$0xff]
  %v114 = vld [vmem:[#allocation2 + $0xe0] sm:$0xff]
  %v115 = vld [vmem:[#allocation2 + $0xe8] sm:$0xff]
  %v116 = vld [vmem:[#allocation2 + $0xf0] sm:$0xff]
  %v117 = vld [vmem:[#allocation2 + $0xf8] sm:$0xff]
  %v118 = vld [vmem:[#allocation2 + $0x100] sm:$0xff]
  %v119 = vld [vmem:[#allocation2 + $0x108] sm:$0xff]
  %v120 = vld [vmem:[#allocation2 + $0x110] sm:$0xff]
  %v121 = vld [vmem:[#allocation2 + $0x118] sm:$0xff]
  %v122 = vld [vmem:[#allocation2 + $0x120] sm:$0xff]
  %v123 = vld [vmem:[#allocation2 + $0x128] sm:$0xff]
  %v124 = vld [vmem:[#allocation2 + $0x130] sm:$0xff]
  %v125 = vld [vmem:[#allocation2 + $0x138] sm:$0xff]
  %v126 = vld [vmem:[#allocation2 + $0x140] sm:$0xff]
  %v127 = vld [vmem:[#allocation2 + $0x148] sm:$0xff]
  %v128 = vld [vmem:[#allocation2 + $0x150] sm:$0xff]
  %v129 = vld [vmem:[#allocation2 + $0x158] sm:$0xff]
  %v130 = vld [vmem:[#allocation2 + $0x160] sm:$0xff]
  %v131 = vld [vmem:[#allocation2 + $0x168] sm:$0xff]
  %v132 = vld [vmem:[#allocation2 + $0x170] sm:$0xff]
  %v133 = vld [vmem:[#allocation2 + $0x178] sm:$0xff]
  %v134 = vld [vmem:[#allocation2 + $0x180] sm:$0xff]
  %v135 = vld [vmem:[#allocation2 + $0x188] sm:$0xff]
  %v136 = vld [vmem:[#allocation2 + $0x190] sm:$0xff]
  %v137 = vld [vmem:[#allocation2 + $0x198] sm:$0xff]
  %v138 = vld [vmem:[#allocation2 + $0x1a0] sm:$0xff]
  %v139 = vld [vmem:[#allocation2 + $0x1a8] sm:$0xff]
  %v140 = vld [vmem:[#allocation2 + $0x1b0] sm:$0xff]
  %v141 = vld [vmem:[#allocation2 + $0x1b8] sm:$0xff]
  %v142 = vld [vmem:[#allocation2 + $0x1c0] sm:$0xff]
  %v143 = vld [vmem:[#allocation2 + $0x1c8] sm:$0xff]
  %v144 = vld [vmem:[#allocation2 + $0x1d0] sm:$0xff]
  %v145 = vld [vmem:[#allocation2 + $0x1d8] sm:$0xff]
  %v146 = vld [vmem:[#allocation2 + $0x1e0] sm:$0xff]
  %v147 = vld [vmem:[#allocation2 + $0x1e8] sm:$0xff]
  %v148 = vld [vmem:[#allocation2 + $0x1f0] sm:$0xff]
  %v149 = vld [vmem:[#allocation2 + $0x1f8] sm:$0xff]
  %v150 = vld [vmem:[%s0] sm:$0xf]
  %v151 = vld [vmem:[%s0 + $0x4] sm:$0xf]
  %v152 = vld [vmem:[%s0 + $0x8] sm:$0xf]
  %v153 = vld [vmem:[%s0 + $0xc] sm:$0xf]
  %v154 = vld [vmem:[%s0 + $0x10] sm:$0xf]
  %v155 = vld [vmem:[%s0 + $0x14] sm:$0xf]
  %v156 = vld [vmem:[%s0 + $0x18] sm:$0xf]
  %v157 = vld [vmem:[%s0 + $0x1c] sm:$0xf]
  %v158 = vld [vmem:[%s0 + $0x20] sm:$0xf]
  %v159 = vld [vmem:[%s0 + $0x24] sm:$0xf]
  %v160 = vld [vmem:[%s0 + $0x28] sm:$0xf]
  %v161 = vld [vmem:[%s0 + $0x2c] sm:$0xf]
  %v162 = vld [vmem:[%s0 + $0x30] sm:$0xf]
  %v163 = vld [vmem:[%s0 + $0x34] sm:$0xf]
  %v164 = vld [vmem:[%s0 + $0x38] sm:$0xf]
  %v165 = vld [vmem:[%s0 + $0x3c] sm:$0xf]
  %v166 = vld [vmem:[%s0 + $0x40] sm:$0xf]
  %v167 = vld [vmem:[%s0 + $0x44] sm:$0xf]
  %v168 = vld [vmem:[%s0 + $0x48] sm:$0xf]
  %v169 = vld [vmem:[%s0 + $0x4c] sm:$0xf]
  %v170 = vld [vmem:[%s0 + $0x50] sm:$0xf]
  %v171 = vld [vmem:[%s0 + $0x54] sm:$0xf]
  %v172 = vld [vmem:[%s0 + $0x58] sm:$0xf]
  %v173 = vld [vmem:[%s0 + $0x5c] sm:$0xf]
  %v174 = vld [vmem:[%s0 + $0x60] sm:$0xf]
  %v175 = vld [vmem:[%s0 + $0x64] sm:$0xf]
  %v176 = vld [vmem:[%s0 + $0x68] sm:$0xf]
  %v177 = vld [vmem:[%s0 + $0x6c] sm:$0xf]
  %v178 = vld [vmem:[%s0 + $0x70] sm:$0xf]
  %v179 = vld [vmem:[%s0 + $0x74] sm:$0xf]
  %v180 = vld [vmem:[%s0 + $0x78] sm:$0xf]
  %v181 = vld [vmem:[%s0 + $0x7c] sm:$0xf]
  %v182 = vld [vmem:[%s0 + $0x80] sm:$0xf]
  %v183 = vld [vmem:[%s0 + $0x84] sm:$0xf]
  %v184 = vld [vmem:[%s0 + $0x88] sm:$0xf]
  %v185 = vld [vmem:[%s0 + $0x8c] sm:$0xf]
  %v186 = vld [vmem:[%s0 + $0x90] sm:$0xf]
  %v187 = vld [vmem:[%s0 + $0x94] sm:$0xf]
  %v188 = vld [vmem:[%s0 + $0x98] sm:$0xf]
  %v189 = vld [vmem:[%s0 + $0x9c] sm:$0xf]
  %v190 = vld [vmem:[%s0 + $0xa0] sm:$0xf]
  %v191 = vld [vmem:[%s0 + $0xa4] sm:$0xf]
  %v192 = vld [vmem:[%s0 + $0xa8] sm:$0xf]
  %v193 = vld [vmem:[%s0 + $0xac] sm:$0xf]
  %v194 = vld [vmem:[%s0 + $0xb0] sm:$0xf]
  %v195 = vld [vmem:[%s0 + $0xb4] sm:$0xf]
  %v196 = vld [vmem:[%s0 + $0xb8] sm:$0xf]
  %v197 = vld [vmem:[%s0 + $0xbc] sm:$0xf]
  %v198 = vld [vmem:[%s0 + $0xc0] sm:$0xf]
  %v199 = vld [vmem:[%s0 + $0xc4] sm:$0xf]
  %v200 = vld [vmem:[%s0 + $0xc8] sm:$0xf]
  %v201 = vld [vmem:[%s0 + $0xcc] sm:$0xf]
  %v202 = vld [vmem:[%s0 + $0xd0] sm:$0xf]
  %v203 = vld [vmem:[%s0 + $0xd4] sm:$0xf]
  %v204 = vld [vmem:[%s0 + $0xd8] sm:$0xf]
  %v205 = vld [vmem:[%s0 + $0xdc] sm:$0xf]
  %v206 = vld [vmem:[%s0 + $0xe0] sm:$0xf]
  %v207 = vld [vmem:[%s0 + $0xe4] sm:$0xf]
  %v208 = vld [vmem:[%s0 + $0xe8] sm:$0xf]
  %v209 = vld [vmem:[%s0 + $0xec] sm:$0xf]
  %v210 = vld [vmem:[%s0 + $0xf0] sm:$0xf]
  %v211 = vld [vmem:[%s0 + $0xf4] sm:$0xf]
  %v212 = vld [vmem:[%s0 + $0xf8] sm:$0xf]
  %v213 = vld [vmem:[%s0 + $0xfc] sm:$0xf]
  %v214 = vld [vmem:[%s1] sm:$0xf]
  %v215 = vld [vmem:[%s1 + $0x4] sm:$0xf]
  %v216 = vld [vmem:[%s1 + $0x8] sm:$0xf]
  %v217 = vld [vmem:[%s1 + $0xc] sm:$0xf]
  %v218 = vld [vmem:[%s1 + $0x10] sm:$0xf]
  %v219 = vld [vmem:[%s1 + $0x14] sm:$0xf]
  %v220 = vld [vmem:[%s1 + $0x18] sm:$0xf]
  %v221 = vld [vmem:[%s1 + $0x1c] sm:$0xf]
  %v222 = vld [vmem:[%s1 + $0x20] sm:$0xf]
  %v223 = vld [vmem:[%s1 + $0x24] sm:$0xf]
  %v224 = vld [vmem:[%s1 + $0x28] sm:$0xf]
  %v225 = vld [vmem:[%s1 + $0x2c] sm:$0xf]
  %v226 = vld [vmem:[%s1 + $0x30] sm:$0xf]
  %v227 = vld [vmem:[%s1 + $0x34] sm:$0xf]
  %v228 = vld [vmem:[%s1 + $0x38] sm:$0xf]
  %v229 = vld [vmem:[%s1 + $0x3c] sm:$0xf]
  %v294 = vunpack.c.l.b16 %v150
  %v295 = vunpack.c.l.b16 %v151
  %v296 = vunpack.c.l.b16 %v152
  %v297 = vunpack.c.l.b16 %v153
  %v298 = vunpack.c.l.b16 %v154
  %v299 = vunpack.c.l.b16 %v155
  %v300 = vunpack.c.l.b16 %v156
  %v301 = vunpack.c.l.b16 %v157
  %v302 = vunpack.c.l.b16 %v158
  %v303 = vunpack.c.l.b16 %v159
  %v304 = vunpack.c.l.b16 %v160
  %v305 = vunpack.c.l.b16 %v161
  %v306 = vunpack.c.l.b16 %v162
  %v307 = vunpack.c.l.b16 %v163
  %v308 = vunpack.c.l.b16 %v164
  %v309 = vunpack.c.l.b16 %v165
  %v310 = vunpack.c.l.b16 %v166
  %v311 = vunpack.c.l.b16 %v167
  %v312 = vunpack.c.l.b16 %v168
  %v313 = vunpack.c.l.b16 %v169
  %v314 = vunpack.c.l.b16 %v170
  %v315 = vunpack.c.l.b16 %v171
  %v316 = vunpack.c.l.b16 %v172
  %v317 = vunpack.c.l.b16 %v173
  %v318 = vunpack.c.l.b16 %v174
  %v319 = vunpack.c.l.b16 %v175
  %v320 = vunpack.c.l.b16 %v176
  %v321 = vunpack.c.l.b16 %v177
  %v322 = vunpack.c.l.b16 %v178
  %v323 = vunpack.c.l.b16 %v179
  %v324 = vunpack.c.l.b16 %v180
  %v325 = vunpack.c.l.b16 %v181
  %v326 = vunpack.c.l.b16 %v182
  %v327 = vunpack.c.l.b16 %v183
  %v328 = vunpack.c.l.b16 %v184
  %v329 = vunpack.c.l.b16 %v185
  %v330 = vunpack.c.l.b16 %v186
  %v331 = vunpack.c.l.b16 %v187
  %v332 = vunpack.c.l.b16 %v188
  %v333 = vunpack.c.l.b16 %v189
  %v334 = vunpack.c.l.b16 %v190
  %v335 = vunpack.c.l.b16 %v191
  %v336 = vunpack.c.l.b16 %v192
  %v337 = vunpack.c.l.b16 %v193
  %v338 = vunpack.c.l.b16 %v194
  %v339 = vunpack.c.l.b16 %v195
  %v340 = vunpack.c.l.b16 %v196
  %v341 = vunpack.c.l.b16 %v197
  %v342 = vunpack.c.l.b16 %v198
  %v343 = vunpack.c.l.b16 %v199
  %v344 = vunpack.c.l.b16 %v200
  %v345 = vunpack.c.l.b16 %v201
  %v346 = vunpack.c.l.b16 %v202
  %v347 = vunpack.c.l.b16 %v203
  %v348 = vunpack.c.l.b16 %v204
  %v349 = vunpack.c.l.b16 %v205
  %v350 = vunpack.c.l.b16 %v206
  %v351 = vunpack.c.l.b16 %v207
  %v352 = vunpack.c.l.b16 %v208
  %v353 = vunpack.c.l.b16 %v209
  %v354 = vunpack.c.l.b16 %v210
  %v355 = vunpack.c.l.b16 %v211
  %v356 = vunpack.c.l.b16 %v212
  %v357 = vunpack.c.l.b16 %v213
  %v358 = vpack.c.b16 %v295, %v294
  %v359 = vpack.c.b16 %v297, %v296
  %v360 = vpack.c.b16 %v299, %v298
  %v361 = vpack.c.b16 %v301, %v300
  %v362 = vpack.c.b16 %v303, %v302
  %v363 = vpack.c.b16 %v305, %v304
  %v364 = vpack.c.b16 %v307, %v306
  %v365 = vpack.c.b16 %v309, %v308
  %v366 = vpack.c.b16 %v311, %v310
  %v367 = vpack.c.b16 %v313, %v312
  %v368 = vpack.c.b16 %v315, %v314
  %v369 = vpack.c.b16 %v317, %v316
  %v370 = vpack.c.b16 %v319, %v318
  %v371 = vpack.c.b16 %v321, %v320
  %v372 = vpack.c.b16 %v323, %v322
  %v373 = vpack.c.b16 %v325, %v324
  %v374 = vpack.c.b16 %v327, %v326
  %v375 = vpack.c.b16 %v329, %v328
  %v376 = vpack.c.b16 %v331, %v330
  %v377 = vpack.c.b16 %v333, %v332
  %v378 = vpack.c.b16 %v335, %v334
  %v379 = vpack.c.b16 %v337, %v336
  %v380 = vpack.c.b16 %v339, %v338
  %v381 = vpack.c.b16 %v341, %v340
  %v382 = vpack.c.b16 %v343, %v342
  %v383 = vpack.c.b16 %v345, %v344
  %v384 = vpack.c.b16 %v347, %v346
  %v385 = vpack.c.b16 %v349, %v348
  %v386 = vpack.c.b16 %v351, %v350
  %v387 = vpack.c.b16 %v353, %v352
  %v388 = vpack.c.b16 %v355, %v354
  %v389 = vpack.c.b16 %v357, %v356
  %v438 = vunpack.c.l.b16 %v214
  %v439 = vunpack.c.l.b16 %v215
  %v440 = vunpack.c.l.b16 %v216
  %v441 = vunpack.c.l.b16 %v217
  %v442 = vunpack.c.l.b16 %v218
  %v443 = vunpack.c.l.b16 %v219
  %v444 = vunpack.c.l.b16 %v220
  %v445 = vunpack.c.l.b16 %v221
  %v446 = vunpack.c.l.b16 %v222
  %v447 = vunpack.c.l.b16 %v223
  %v448 = vunpack.c.l.b16 %v224
  %v449 = vunpack.c.l.b16 %v225
  %v450 = vunpack.c.l.b16 %v226
  %v451 = vunpack.c.l.b16 %v227
  %v452 = vunpack.c.l.b16 %v228
  %v453 = vunpack.c.l.b16 %v229
  %v454 = vpack.c.b16 %v439, %v438
  %v455 = vpack.c.b16 %v441, %v440
  %v456 = vpack.c.b16 %v443, %v442
  %v457 = vpack.c.b16 %v445, %v444
  %v458 = vpack.c.b16 %v447, %v446
  %v459 = vpack.c.b16 %v449, %v448
  %v460 = vpack.c.b16 %v451, %v450
  %v461 = vpack.c.b16 %v453, %v452
  %470 = vmatprep.subr.bf16.mxu0 0
  %471 = vmatpush1.bf16.msra.mxu0 %v454
  %472 = vmatprep.subr.bf16.mxu0 0
  %473 = vmatpush1.bf16.msra.mxu0 %v455
  %474 = vmatprep.subr.bf16.mxu0 0
  %475 = vmatpush1.bf16.msra.mxu0 %v456
  %476 = vmatprep.subr.bf16.mxu0 0
  %477 = vmatpush1.bf16.msra.mxu0 %v457
  %478 = vmatprep.subr.bf16.mxu0 0
  %479 = vmatpush1.bf16.msra.mxu0 %v458
  %480 = vmatprep.subr.bf16.mxu0 0
  %481 = vmatpush1.bf16.msra.mxu0 %v459
  %482 = vmatprep.subr.bf16.mxu0 0
  %483 = vmatpush1.bf16.msra.mxu0 %v460
  %484 = vmatprep.subr.bf16.mxu0 0
  %485 = vmatpush1.bf16.msra.mxu0 %v461
  %486 = vmatprep.subr.bf16.mxu0 0
  %487 = vmatpush1.bf16.msra.mxu0 0
  %488 = vmatprep.subr.bf16.mxu0 0
  %489 = vmatpush1.bf16.msra.mxu0 0
  %490 = vmatprep.subr.bf16.mxu0 0
  %491 = vmatpush1.bf16.msra.mxu0 0
  %492 = vmatprep.subr.bf16.mxu0 0
  %493 = vmatpush1.bf16.msra.mxu0 0
  %494 = vmatprep.subr.bf16.mxu0 0
  %495 = vmatpush1.bf16.msra.mxu0 0
  %496 = vmatprep.subr.bf16.mxu0 0
  %497 = vmatpush1.bf16.msra.mxu0 0
  %498 = vmatprep.subr.bf16.mxu0 0
  %499 = vmatpush1.bf16.msra.mxu0 0
  %500 = vmatprep.subr.bf16.mxu0 0
  %501 = vmatpush1.bf16.msra.mxu0 0
  %502 = vmatprep.mubr.bf16.mxu0 0
  %503 = vmatmul.mubr.bf16.gmra.mrb[0].mxu0 %v358
  %v504 = vpop.f32.mrb[0].mxu0
  %v505 = vadd.f32 0.0, %v504
  %v506 = vpop.f32.mrb[0].mxu0
  %v507 = vpop.f32.mrb[0].mxu0
  %v508 = vadd.f32 0.0, %v507
  %v509 = vpop.f32.mrb[0].mxu0
  %510 = vmatprep.mubr.bf16.mxu0 0
  %511 = vmatmul.mubr.bf16.gmra.mrb[0].mxu0 %v359
  %v512 = vpop.f32.mrb[0].mxu0
  %v513 = vadd.f32 0.0, %v512
  %v514 = vpop.f32.mrb[0].mxu0
  %v515 = vpop.f32.mrb[0].mxu0
  %v516 = vadd.f32 0.0, %v515
  %v517 = vpop.f32.mrb[0].mxu0
  %518 = vmatprep.mubr.bf16.mxu0 0
  %519 = vmatmul.mubr.bf16.gmra.mrb[0].mxu0 %v360
  %v520 = vpop.f32.mrb[0].mxu0
  %v521 = vadd.f32 0.0, %v520
  %v522 = vpop.f32.mrb[0].mxu0
  %v523 = vpop.f32.mrb[0].mxu0
  %v524 = vadd.f32 0.0, %v523
  %v525 = vpop.f32.mrb[0].mxu0
  %526 = vmatprep.mubr.bf16.mxu0 0
  %527 = vmatmul.mubr.bf16.gmra.mrb[0].mxu0 %v361
  %v528 = vpop.f32.mrb[0].mxu0
  %v529 = vadd.f32 0.0, %v528
  %v530 = vpop.f32.mrb[0].mxu0
  %v531 = vpop.f32.mrb[0].mxu0
  %v532 = vadd.f32 0.0, %v531
  %v533 = vpop.f32.mrb[0].mxu0
  %534 = vmatprep.mubr.bf16.mxu0 0
  %535 = vmatmul.mubr.bf16.gmra.mrb[0].mxu0 %v362
  %v536 = vpop.f32.mrb[0].mxu0
  %v537 = vadd.f32 0.0, %v536
  %v538 = vpop.f32.mrb[0].mxu0
  %v539 = vpop.f32.mrb[0].mxu0
  %v540 = vadd.f32 0.0, %v539
  %v541 = vpop.f32.mrb[0].mxu0
  %542 = vmatprep.mubr.bf16.mxu0 0
  %543 = vmatmul.mubr.bf16.gmra.mrb[0].mxu0 %v363
  %v544 = vpop.f32.mrb[0].mxu0
  %v545 = vadd.f32 0.0, %v544
  %v546 = vpop.f32.mrb[0].mxu0
  %v547 = vpop.f32.mrb[0].mxu0
  %v548 = vadd.f32 0.0, %v547
  %v549 = vpop.f32.mrb[0].mxu0
  %550 = vmatprep.mubr.bf16.mxu0 0
  %551 = vmatmul.mubr.bf16.gmra.mrb[0].mxu0 %v364
  %v552 = vpop.f32.mrb[0].mxu0
  %v553 = vadd.f32 0.0, %v552
  %v554 = vpop.f32.mrb[0].mxu0
  %v555 = vpop.f32.mrb[0].mxu0
  %v556 = vadd.f32 0.0, %v555
  %v557 = vpop.f32.mrb[0].mxu0
  %558 = vmatprep.mubr.bf16.mxu0 0
  %559 = vmatmul.mubr.bf16.gmra.mrb[0].mxu0 %v365
  %v560 = vpop.f32.mrb[0].mxu0
  %v561 = vadd.f32 0.0, %v560
  %v562 = vpop.f32.mrb[0].mxu0
  %v563 = vpop.f32.mrb[0].mxu0
  %v564 = vadd.f32 0.0, %v563
  %v565 = vpop.f32.mrb[0].mxu0
  %566 = vmatprep.mubr.bf16.mxu0 0
  %567 = vmatmul.mubr.bf16.gmra.mrb[0].mxu0 %v366
  %v568 = vpop.f32.mrb[0].mxu0
  %v569 = vadd.f32 0.0, %v568
  %v570 = vpop.f32.mrb[0].mxu0
  %v571 = vpop.f32.mrb[0].mxu0
  %v572 = vadd.f32 0.0, %v571
  %v573 = vpop.f32.mrb[0].mxu0
  %574 = vmatprep.mubr.bf16.mxu0 0
  %575 = vmatmul.mubr.bf16.gmra.mrb[0].mxu0 %v367
  %v576 = vpop.f32.mrb[0].mxu0
  %v577 = vadd.f32 0.0, %v576
  %v578 = vpop.f32.mrb[0].mxu0
  %v579 = vpop.f32.mrb[0].mxu0
  %v580 = vadd.f32 0.0, %v579
  %v581 = vpop.f32.mrb[0].mxu0
  %582 = vmatprep.mubr.bf16.mxu0 0
  %583 = vmatmul.mubr.bf16.gmra.mrb[0].mxu0 %v368
  %v584 = vpop.f32.mrb[0].mxu0
  %v585 = vadd.f32 0.0, %v584
  %v586 = vpop.f32.mrb[0].mxu0
  %v587 = vpop.f32.mrb[0].mxu0
  %v588 = vadd.f32 0.0, %v587
  %v589 = vpop.f32.mrb[0].mxu0
  %590 = vmatprep.mubr.bf16.mxu0 0
  %591 = vmatmul.mubr.bf16.gmra.mrb[0].mxu0 %v369
  %v592 = vpop.f32.mrb[0].mxu0
  %v593 = vadd.f32 0.0, %v592
  %v594 = vpop.f32.mrb[0].mxu0
  %v595 = vpop.f32.mrb[0].mxu0
  %v596 = vadd.f32 0.0, %v595
  %v597 = vpop.f32.mrb[0].mxu0
  %598 = vmatprep.mubr.bf16.mxu0 0
  %599 = vmatmul.mubr.bf16.gmra.mrb[0].mxu0 %v370
  %v600 = vpop.f32.mrb[0].mxu0
  %v601 = vadd.f32 0.0, %v600
  %v602 = vpop.f32.mrb[0].mxu0
  %v603 = vpop.f32.mrb[0].mxu0
  %v604 = vadd.f32 0.0, %v603
  %v605 = vpop.f32.mrb[0].mxu0
  %606 = vmatprep.mubr.bf16.mxu0 0
  %607 = vmatmul.mubr.bf16.gmra.mrb[0].mxu0 %v371
  %v608 = vpop.f32.mrb[0].mxu0
  %v609 = vadd.f32 0.0, %v608
  %v610 = vpop.f32.mrb[0].mxu0
  %v611 = vpop.f32.mrb[0].mxu0
  %v612 = vadd.f32 0.0, %v611
  %v613 = vpop.f32.mrb[0].mxu0
  %614 = vmatprep.mubr.bf16.mxu0 0
  %615 = vmatmul.mubr.bf16.gmra.mrb[0].mxu0 %v372
  %v616 = vpop.f32.mrb[0].mxu0
  %v617 = vadd.f32 0.0, %v616
  %v618 = vpop.f32.mrb[0].mxu0
  %v619 = vpop.f32.mrb[0].mxu0
  %v620 = vadd.f32 0.0, %v619
  %v621 = vpop.f32.mrb[0].mxu0
  %622 = vmatprep.mubr.bf16.mxu0 0
  %623 = vmatmul.mubr.bf16.gmra.mrb[0].mxu0 %v373
  %v624 = vpop.f32.mrb[0].mxu0
  %v625 = vadd.f32 0.0, %v624
  %v626 = vpop.f32.mrb[0].mxu0
  %v627 = vpop.f32.mrb[0].mxu0
  %v628 = vadd.f32 0.0, %v627
  %v629 = vpop.f32.mrb[0].mxu0
  %630 = vmatprep.mubr.bf16.mxu0 0
  %631 = vmatmul.mubr.bf16.gmra.mrb[0].mxu0 %v374
  %v632 = vpop.f32.mrb[0].mxu0
  %v633 = vadd.f32 0.0, %v632
  %v634 = vpop.f32.mrb[0].mxu0
  %v635 = vpop.f32.mrb[0].mxu0
  %v636 = vadd.f32 0.0, %v635
  %v637 = vpop.f32.mrb[0].mxu0
  %638 = vmatprep.mubr.bf16.mxu0 0
  %639 = vmatmul.mubr.bf16.gmra.mrb[0].mxu0 %v375
  %v640 = vpop.f32.mrb[0].mxu0
  %v641 = vadd.f32 0.0, %v640
  %v642 = vpop.f32.mrb[0].mxu0
  %v643 = vpop.f32.mrb[0].mxu0
  %v644 = vadd.f32 0.0, %v643
  %v645 = vpop.f32.mrb[0].mxu0
  %646 = vmatprep.mubr.bf16.mxu0 0
  %647 = vmatmul.mubr.bf16.gmra.mrb[0].mxu0 %v376
  %v648 = vpop.f32.mrb[0].mxu0
  %v649 = vadd.f32 0.0, %v648
  %v650 = vpop.f32.mrb[0].mxu0
  %v651 = vpop.f32.mrb[0].mxu0
  %v652 = vadd.f32 0.0, %v651
  %v653 = vpop.f32.mrb[0].mxu0
  %654 = vmatprep.mubr.bf16.mxu0 0
  %655 = vmatmul.mubr.bf16.gmra.mrb[0].mxu0 %v377
  %v656 = vpop.f32.mrb[0].mxu0
  %v657 = vadd.f32 0.0, %v656
  %v658 = vpop.f32.mrb[0].mxu0
  %v659 = vpop.f32.mrb[0].mxu0
  %v660 = vadd.f32 0.0, %v659
  %v661 = vpop.f32.mrb[0].mxu0
  %662 = vmatprep.mubr.bf16.mxu0 0
  %663 = vmatmul.mubr.bf16.gmra.mrb[0].mxu0 %v378
  %v664 = vpop.f32.mrb[0].mxu0
  %v665 = vadd.f32 0.0, %v664
  %v666 = vpop.f32.mrb[0].mxu0
  %v667 = vpop.f32.mrb[0].mxu0
  %v668 = vadd.f32 0.0, %v667
  %v669 = vpop.f32.mrb[0].mxu0
  %670 = vmatprep.mubr.bf16.mxu0 0
  %671 = vmatmul.mubr.bf16.gmra.mrb[0].mxu0 %v379
  %v672 = vpop.f32.mrb[0].mxu0
  %v673 = vadd.f32 0.0, %v672
  %v674 = vpop.f32.mrb[0].mxu0
  %v675 = vpop.f32.mrb[0].mxu0
  %v676 = vadd.f32 0.0, %v675
  %v677 = vpop.f32.mrb[0].mxu0
  %678 = vmatprep.mubr.bf16.mxu0 0
  %679 = vmatmul.mubr.bf16.gmra.mrb[0].mxu0 %v380
  %v680 = vpop.f32.mrb[0].mxu0
  %v681 = vadd.f32 0.0, %v680
  %v682 = vpop.f32.mrb[0].mxu0
  %v683 = vpop.f32.mrb[0].mxu0
  %v684 = vadd.f32 0.0, %v683
  %v685 = vpop.f32.mrb[0].mxu0
  %686 = vmatprep.mubr.bf16.mxu0 0
  %687 = vmatmul.mubr.bf16.gmra.mrb[0].mxu0 %v381
  %v688 = vpop.f32.mrb[0].mxu0
  %v689 = vadd.f32 0.0, %v688
  %v690 = vpop.f32.mrb[0].mxu0
  %v691 = vpop.f32.mrb[0].mxu0
  %v692 = vadd.f32 0.0, %v691
  %v693 = vpop.f32.mrb[0].mxu0
  %694 = vmatprep.mubr.bf16.mxu0 0
  %695 = vmatmul.mubr.bf16.gmra.mrb[0].mxu0 %v382
  %v696 = vpop.f32.mrb[0].mxu0
  %v697 = vadd.f32 0.0, %v696
  %v698 = vpop.f32.mrb[0].mxu0
  %v699 = vpop.f32.mrb[0].mxu0
  %v700 = vadd.f32 0.0, %v699
  %v701 = vpop.f32.mrb[0].mxu0
  %702 = vmatprep.mubr.bf16.mxu0 0
  %703 = vmatmul.mubr.bf16.gmra.mrb[0].mxu0 %v383
  %v704 = vpop.f32.mrb[0].mxu0
  %v705 = vadd.f32 0.0, %v704
  %v706 = vpop.f32.mrb[0].mxu0
  %v707 = vpop.f32.mrb[0].mxu0
  %v708 = vadd.f32 0.0, %v707
  %v709 = vpop.f32.mrb[0].mxu0
  %710 = vmatprep.mubr.bf16.mxu0 0
  %711 = vmatmul.mubr.bf16.gmra.mrb[0].mxu0 %v384
  %v712 = vpop.f32.mrb[0].mxu0
  %v713 = vadd.f32 0.0, %v712
  %v714 = vpop.f32.mrb[0].mxu0
  %v715 = vpop.f32.mrb[0].mxu0
  %v716 = vadd.f32 0.0, %v715
  %v717 = vpop.f32.mrb[0].mxu0
  %718 = vmatprep.mubr.bf16.mxu0 0
  %719 = vmatmul.mubr.bf16.gmra.mrb[0].mxu0 %v385
  %v720 = vpop.f32.mrb[0].mxu0
  %v721 = vadd.f32 0.0, %v720
  %v722 = vpop.f32.mrb[0].mxu0
  %v723 = vpop.f32.mrb[0].mxu0
  %v724 = vadd.f32 0.0, %v723
  %v725 = vpop.f32.mrb[0].mxu0
  %726 = vmatprep.mubr.bf16.mxu0 0
  %727 = vmatmul.mubr.bf16.gmra.mrb[0].mxu0 %v386
  %v728 = vpop.f32.mrb[0].mxu0
  %v729 = vadd.f32 0.0, %v728
  %v730 = vpop.f32.mrb[0].mxu0
  %v731 = vpop.f32.mrb[0].mxu0
  %v732 = vadd.f32 0.0, %v731
  %v733 = vpop.f32.mrb[0].mxu0
  %734 = vmatprep.mubr.bf16.mxu0 0
  %735 = vmatmul.mubr.bf16.gmra.mrb[0].mxu0 %v387
  %v736 = vpop.f32.mrb[0].mxu0
  %v737 = vadd.f32 0.0, %v736
  %v738 = vpop.f32.mrb[0].mxu0
  %v739 = vpop.f32.mrb[0].mxu0
  %v740 = vadd.f32 0.0, %v739
  %v741 = vpop.f32.mrb[0].mxu0
  %742 = vmatprep.mubr.bf16.mxu0 0
  %743 = vmatmul.mubr.bf16.gmra.mrb[0].mxu0 %v388
  %v744 = vpop.f32.mrb[0].mxu0
  %v745 = vadd.f32 0.0, %v744
  %v746 = vpop.f32.mrb[0].mxu0
  %v747 = vpop.f32.mrb[0].mxu0
  %v748 = vadd.f32 0.0, %v747
  %v749 = vpop.f32.mrb[0].mxu0
  %750 = vmatprep.mubr.bf16.mxu0 0
  %751 = vmatmul.mubr.bf16.gmra.mrb[0].mxu0 %v389
  %v752 = vpop.f32.mrb[0].mxu0
  %v753 = vadd.f32 0.0, %v752
  %v754 = vpop.f32.mrb[0].mxu0
  %v755 = vpop.f32.mrb[0].mxu0
  %v756 = vadd.f32 0.0, %v755
  %v757 = vpop.f32.mrb[0].mxu0
  %758 = vdwg.mxu0
  %v759 = vadd.f32 %v86, %v505
  %v760 = vadd.f32 %v87, %v508
  %v761 = vadd.f32 %v88, %v513
  %v762 = vadd.f32 %v89, %v516
  %v763 = vadd.f32 %v90, %v521
  %v764 = vadd.f32 %v91, %v524
  %v765 = vadd.f32 %v92, %v529
  %v766 = vadd.f32 %v93, %v532
  %v767 = vadd.f32 %v94, %v537
  %v768 = vadd.f32 %v95, %v540
  %v769 = vadd.f32 %v96, %v545
  %v770 = vadd.f32 %v97, %v548
  %v771 = vadd.f32 %v98, %v553
  %v772 = vadd.f32 %v99, %v556
  %v773 = vadd.f32 %v100, %v561
  %v774 = vadd.f32 %v101, %v564
  %v775 = vadd.f32 %v102, %v569
  %v776 = vadd.f32 %v103, %v572
  %v777 = vadd.f32 %v104, %v577
  %v778 = vadd.f32 %v105, %v580
  %v779 = vadd.f32 %v106, %v585
  %v780 = vadd.f32 %v107, %v588
  %v781 = vadd.f32 %v108, %v593
  %v782 = vadd.f32 %v109, %v596
  %v783 = vadd.f32 %v110, %v601
  %v784 = vadd.f32 %v111, %v604
  %v785 = vadd.f32 %v112, %v609
  %v786 = vadd.f32 %v113, %v612
  %v787 = vadd.f32 %v114, %v617
  %v788 = vadd.f32 %v115, %v620
  %v789 = vadd.f32 %v116, %v625
  %v790 = vadd.f32 %v117, %v628
  %v791 = vadd.f32 %v118, %v633
  %v792 = vadd.f32 %v119, %v636
  %v793 = vadd.f32 %v120, %v641
  %v794 = vadd.f32 %v121, %v644
  %v795 = vadd.f32 %v122, %v649
  %v796 = vadd.f32 %v123, %v652
  %v797 = vadd.f32 %v124, %v657
  %v798 = vadd.f32 %v125, %v660
  %v799 = vadd.f32 %v126, %v665
  %v800 = vadd.f32 %v127, %v668
  %v801 = vadd.f32 %v128, %v673
  %v802 = vadd.f32 %v129, %v676
  %v803 = vadd.f32 %v130, %v681
  %v804 = vadd.f32 %v131, %v684
  %v805 = vadd.f32 %v132, %v689
  %v806 = vadd.f32 %v133, %v692
  %v807 = vadd.f32 %v134, %v697
  %v808 = vadd.f32 %v135, %v700
  %v809 = vadd.f32 %v136, %v705
  %v810 = vadd.f32 %v137, %v708
  %v811 = vadd.f32 %v138, %v713
  %v812 = vadd.f32 %v139, %v716
  %v813 = vadd.f32 %v140, %v721
  %v814 = vadd.f32 %v141, %v724
  %v815 = vadd.f32 %v142, %v729
  %v816 = vadd.f32 %v143, %v732
  %v817 = vadd.f32 %v144, %v737
  %v818 = vadd.f32 %v145, %v740
  %v819 = vadd.f32 %v146, %v745
  %v820 = vadd.f32 %v147, %v748
  %v821 = vadd.f32 %v148, %v753
  %v822 = vadd.f32 %v149, %v756
  %823 = vst [vmem:[#allocation2] sm:$0xff] %v759
  %824 = vst [vmem:[#allocation2 + $0x8] sm:$0xff] %v760
  %825 = vst [vmem:[#allocation2 + $0x10] sm:$0xff] %v761
  %826 = vst [vmem:[#allocation2 + $0x18] sm:$0xff] %v762
  %827 = vst [vmem:[#allocation2 + $0x20] sm:$0xff] %v763
  %828 = vst [vmem:[#allocation2 + $0x28] sm:$0xff] %v764
  %829 = vst [vmem:[#allocation2 + $0x30] sm:$0xff] %v765
  %830 = vst [vmem:[#allocation2 + $0x38] sm:$0xff] %v766
  %831 = vst [vmem:[#allocation2 + $0x40] sm:$0xff] %v767
  %832 = vst [vmem:[#allocation2 + $0x48] sm:$0xff] %v768
  %833 = vst [vmem:[#allocation2 + $0x50] sm:$0xff] %v769
  %834 = vst [vmem:[#allocation2 + $0x58] sm:$0xff] %v770
  %835 = vst [vmem:[#allocation2 + $0x60] sm:$0xff] %v771
  %836 = vst [vmem:[#allocation2 + $0x68] sm:$0xff] %v772
  %837 = vst [vmem:[#allocation2 + $0x70] sm:$0xff] %v773
  %838 = vst [vmem:[#allocation2 + $0x78] sm:$0xff] %v774
  %839 = vst [vmem:[#allocation2 + $0x80] sm:$0xff] %v775
  %840 = vst [vmem:[#allocation2 + $0x88] sm:$0xff] %v776
  %841 = vst [vmem:[#allocation2 + $0x90] sm:$0xff] %v777
  %842 = vst [vmem:[#allocation2 + $0x98] sm:$0xff] %v778
  %843 = vst [vmem:[#allocation2 + $0xa0] sm:$0xff] %v779
  %844 = vst [vmem:[#allocation2 + $0xa8] sm:$0xff] %v780
  %845 = vst [vmem:[#allocation2 + $0xb0] sm:$0xff] %v781
  %846 = vst [vmem:[#allocation2 + $0xb8] sm:$0xff] %v782
  %847 = vst [vmem:[#allocation2 + $0xc0] sm:$0xff] %v783
  %848 = vst [vmem:[#allocation2 + $0xc8] sm:$0xff] %v784
  %849 = vst [vmem:[#allocation2 + $0xd0] sm:$0xff] %v785
  %850 = vst [vmem:[#allocation2 + $0xd8] sm:$0xff] %v786
  %851 = vst [vmem:[#allocation2 + $0xe0] sm:$0xff] %v787
  %852 = vst [vmem:[#allocation2 + $0xe8] sm:$0xff] %v788
  %853 = vst [vmem:[#allocation2 + $0xf0] sm:$0xff] %v789
  %854 = vst [vmem:[#allocation2 + $0xf8] sm:$0xff] %v790
  %855 = vst [vmem:[#allocation2 + $0x100] sm:$0xff] %v791
  %856 = vst [vmem:[#allocation2 + $0x108] sm:$0xff] %v792
  %857 = vst [vmem:[#allocation2 + $0x110] sm:$0xff] %v793
  %858 = vst [vmem:[#allocation2 + $0x118] sm:$0xff] %v794
  %859 = vst [vmem:[#allocation2 + $0x120] sm:$0xff] %v795
  %860 = vst [vmem:[#allocation2 + $0x128] sm:$0xff] %v796
  %861 = vst [vmem:[#allocation2 + $0x130] sm:$0xff] %v797
  %862 = vst [vmem:[#allocation2 + $0x138] sm:$0xff] %v798
  %863 = vst [vmem:[#allocation2 + $0x140] sm:$0xff] %v799
  %864 = vst [vmem:[#allocation2 + $0x148] sm:$0xff] %v800
  %865 = vst [vmem:[#allocation2 + $0x150] sm:$0xff] %v801
  %866 = vst [vmem:[#allocation2 + $0x158] sm:$0xff] %v802
  %867 = vst [vmem:[#allocation2 + $0x160] sm:$0xff] %v803
  %868 = vst [vmem:[#allocation2 + $0x168] sm:$0xff] %v804
  %869 = vst [vmem:[#allocation2 + $0x170] sm:$0xff] %v805
  %870 = vst [vmem:[#allocation2 + $0x178] sm:$0xff] %v806
  %871 = vst [vmem:[#allocation2 + $0x180] sm:$0xff] %v807
  %872 = vst [vmem:[#allocation2 + $0x188] sm:$0xff] %v808
  %873 = vst [vmem:[#allocation2 + $0x190] sm:$0xff] %v809
  %874 = vst [vmem:[#allocation2 + $0x198] sm:$0xff] %v810
  %875 = vst [vmem:[#allocation2 + $0x1a0] sm:$0xff] %v811
  %876 = vst [vmem:[#allocation2 + $0x1a8] sm:$0xff] %v812
  %877 = vst [vmem:[#allocation2 + $0x1b0] sm:$0xff] %v813
  %878 = vst [vmem:[#allocation2 + $0x1b8] sm:$0xff] %v814
  %879 = vst [vmem:[#allocation2 + $0x1c0] sm:$0xff] %v815
  %880 = vst [vmem:[#allocation2 + $0x1c8] sm:$0xff] %v816
  %881 = vst [vmem:[#allocation2 + $0x1d0] sm:$0xff] %v817
  %882 = vst [vmem:[#allocation2 + $0x1d8] sm:$0xff] %v818
  %883 = vst [vmem:[#allocation2 + $0x1e0] sm:$0xff] %v819
  %884 = vst [vmem:[#allocation2 + $0x1e8] sm:$0xff] %v820
  %885 = vst [vmem:[#allocation2 + $0x1f0] sm:$0xff] %v821
  %886 = vst [vmem:[#allocation2 + $0x1f8] sm:$0xff] %v822
  // Predicated region
  $region22: #{_forward.6} parent=0 // pred_check
    %p887 = pneg %p18
  $region23: #{_forward.6} parent=0 // pred_check_branch
    %889 = sbr.rel (%p887) target = $region25
  $region24: #{_forward.6} parent=0 // pred_region
    %v890 = vld [vmem:[#allocation2] sm:$0xff]
    %v891 = vld [vmem:[#allocation2 + $0x8] sm:$0xff]
    %v892 = vld [vmem:[#allocation2 + $0x10] sm:$0xff]
    %v893 = vld [vmem:[#allocation2 + $0x18] sm:$0xff]
    %v894 = vld [vmem:[#allocation2 + $0x20] sm:$0xff]
    %v895 = vld [vmem:[#allocation2 + $0x28] sm:$0xff]
    %v896 = vld [vmem:[#allocation2 + $0x30] sm:$0xff]
    %v897 = vld [vmem:[#allocation2 + $0x38] sm:$0xff]
    %v898 = vld [vmem:[#allocation2 + $0x40] sm:$0xff]
    %v899 = vld [vmem:[#allocation2 + $0x48] sm:$0xff]
    %v900 = vld [vmem:[#allocation2 + $0x50] sm:$0xff]
    %v901 = vld [vmem:[#allocation2 + $0x58] sm:$0xff]
    %v902 = vld [vmem:[#allocation2 + $0x60] sm:$0xff]
    %v903 = vld [vmem:[#allocation2 + $0x68] sm:$0xff]
    %v904 = vld [vmem:[#allocation2 + $0x70] sm:$0xff]
    %v905 = vld [vmem:[#allocation2 + $0x78] sm:$0xff]
    %v906 = vld [vmem:[#allocation2 + $0x80] sm:$0xff]
    %v907 = vld [vmem:[#allocation2 + $0x88] sm:$0xff]
    %v908 = vld [vmem:[#allocation2 + $0x90] sm:$0xff]
    %v909 = vld [vmem:[#allocation2 + $0x98] sm:$0xff]
    %v910 = vld [vmem:[#allocation2 + $0xa0] sm:$0xff]
    %v911 = vld [vmem:[#allocation2 + $0xa8] sm:$0xff]
    %v912 = vld [vmem:[#allocation2 + $0xb0] sm:$0xff]
    %v913 = vld [vmem:[#allocation2 + $0xb8] sm:$0xff]
    %v914 = vld [vmem:[#allocation2 + $0xc0] sm:$0xff]
    %v915 = vld [vmem:[#allocation2 + $0xc8] sm:$0xff]
    %v916 = vld [vmem:[#allocation2 + $0xd0] sm:$0xff]
    %v917 = vld [vmem:[#allocation2 + $0xd8] sm:$0xff]
    %v918 = vld [vmem:[#allocation2 + $0xe0] sm:$0xff]
    %v919 = vld [vmem:[#allocation2 + $0xe8] sm:$0xff]
    %v920 = vld [vmem:[#allocation2 + $0xf0] sm:$0xff]
    %v921 = vld [vmem:[#allocation2 + $0xf8] sm:$0xff]
    %v922 = vld [vmem:[#allocation2 + $0x100] sm:$0xff]
    %v923 = vld [vmem:[#allocation2 + $0x108] sm:$0xff]
    %v924 = vld [vmem:[#allocation2 + $0x110] sm:$0xff]
    %v925 = vld [vmem:[#allocation2 + $0x118] sm:$0xff]
    %v926 = vld [vmem:[#allocation2 + $0x120] sm:$0xff]
    %v927 = vld [vmem:[#allocation2 + $0x128] sm:$0xff]
    %v928 = vld [vmem:[#allocation2 + $0x130] sm:$0xff]
    %v929 = vld [vmem:[#allocation2 + $0x138] sm:$0xff]
    %v930 = vld [vmem:[#allocation2 + $0x140] sm:$0xff]
    %v931 = vld [vmem:[#allocation2 + $0x148] sm:$0xff]
    %v932 = vld [vmem:[#allocation2 + $0x150] sm:$0xff]
    %v933 = vld [vmem:[#allocation2 + $0x158] sm:$0xff]
    %v934 = vld [vmem:[#allocation2 + $0x160] sm:$0xff]
    %v935 = vld [vmem:[#allocation2 + $0x168] sm:$0xff]
    %v936 = vld [vmem:[#allocation2 + $0x170] sm:$0xff]
    %v937 = vld [vmem:[#allocation2 + $0x178] sm:$0xff]
    %v938 = vld [vmem:[#allocation2 + $0x180] sm:$0xff]
    %v939 = vld [vmem:[#allocation2 + $0x188] sm:$0xff]
    %v940 = vld [vmem:[#allocation2 + $0x190] sm:$0xff]
    %v941 = vld [vmem:[#allocation2 + $0x198] sm:$0xff]
    %v942 = vld [vmem:[#allocation2 + $0x1a0] sm:$0xff]
    %v943 = vld [vmem:[#allocation2 + $0x1a8] sm:$0xff]
    %v944 = vld [vmem:[#allocation2 + $0x1b0] sm:$0xff]
    %v945 = vld [vmem:[#allocation2 + $0x1b8] sm:$0xff]
    %v946 = vld [vmem:[#allocation2 + $0x1c0] sm:$0xff]
    %v947 = vld [vmem:[#allocation2 + $0x1c8] sm:$0xff]
    %v948 = vld [vmem:[#allocation2 + $0x1d0] sm:$0xff]
    %v949 = vld [vmem:[#allocation2 + $0x1d8] sm:$0xff]
    %v950 = vld [vmem:[#allocation2 + $0x1e0] sm:$0xff]
    %v951 = vld [vmem:[#allocation2 + $0x1e8] sm:$0xff]
    %v952 = vld [vmem:[#allocation2 + $0x1f0] sm:$0xff]
    %v953 = vld [vmem:[#allocation2 + $0x1f8] sm:$0xff]
    %v954 = vld [vmem:[%s2] sm:$0x1]
    %v956 = vlaneseq
    %v957 = vshrl.u32 %v956, 7
    %v958 = vsub.s32 0, %v957
    %v959 = vrot.slane %v954, %v958
    %v961 = vmul.f32 %v890, %v959
    %v962 = vmul.f32 %v891, %v959
    %v963 = vmul.f32 %v892, %v959
    %v964 = vmul.f32 %v893, %v959
    %v965 = vmul.f32 %v894, %v959
    %v966 = vmul.f32 %v895, %v959
    %v967 = vmul.f32 %v896, %v959
    %v968 = vmul.f32 %v897, %v959
    %v969 = vmul.f32 %v898, %v959
    %v970 = vmul.f32 %v899, %v959
    %v971 = vmul.f32 %v900, %v959
    %v972 = vmul.f32 %v901, %v959
    %v973 = vmul.f32 %v902, %v959
    %v974 = vmul.f32 %v903, %v959
    %v975 = vmul.f32 %v904, %v959
    %v976 = vmul.f32 %v905, %v959
    %v977 = vmul.f32 %v906, %v959
    %v978 = vmul.f32 %v907, %v959
    %v979 = vmul.f32 %v908, %v959
    %v980 = vmul.f32 %v909, %v959
    %v981 = vmul.f32 %v910, %v959
    %v982 = vmul.f32 %v911, %v959
    %v983 = vmul.f32 %v912, %v959
    %v984 = vmul.f32 %v913, %v959
    %v985 = vmul.f32 %v914, %v959
    %v986 = vmul.f32 %v915, %v959
    %v987 = vmul.f32 %v916, %v959
    %v988 = vmul.f32 %v917, %v959
    %v989 = vmul.f32 %v918, %v959
    %v990 = vmul.f32 %v919, %v959
    %v991 = vmul.f32 %v920, %v959
    %v992 = vmul.f32 %v921, %v959
    %v993 = vmul.f32 %v922, %v959
    %v994 = vmul.f32 %v923, %v959
    %v995 = vmul.f32 %v924, %v959
    %v996 = vmul.f32 %v925, %v959
    %v997 = vmul.f32 %v926, %v959
    %v998 = vmul.f32 %v927, %v959
    %v999 = vmul.f32 %v928, %v959
    %v1000 = vmul.f32 %v929, %v959
    %v1001 = vmul.f32 %v930, %v959
    %v1002 = vmul.f32 %v931, %v959
    %v1003 = vmul.f32 %v932, %v959
    %v1004 = vmul.f32 %v933, %v959
    %v1005 = vmul.f32 %v934, %v959
    %v1006 = vmul.f32 %v935, %v959
    %v1007 = vmul.f32 %v936, %v959
    %v1008 = vmul.f32 %v937, %v959
    %v1009 = vmul.f32 %v938, %v959
    %v1010 = vmul.f32 %v939, %v959
    %v1011 = vmul.f32 %v940, %v959
    %v1012 = vmul.f32 %v941, %v959
    %v1013 = vmul.f32 %v942, %v959
    %v1014 = vmul.f32 %v943, %v959
    %v1015 = vmul.f32 %v944, %v959
    %v1016 = vmul.f32 %v945, %v959
    %v1017 = vmul.f32 %v946, %v959
    %v1018 = vmul.f32 %v947, %v959
    %v1019 = vmul.f32 %v948, %v959
    %v1020 = vmul.f32 %v949, %v959
    %v1021 = vmul.f32 %v950, %v959
    %v1022 = vmul.f32 %v951, %v959
    %v1023 = vmul.f32 %v952, %v959
    %v1024 = vmul.f32 %v953, %v959
    %v1025 = vld [vmem:[%s3] sm:$0x1]
    %v1027 = vlaneseq
    %v1028 = vshrl.u32 %v1027, 7
    %v1029 = vsub.s32 0, %v1028
    %v1030 = vrot.slane %v1025, %v1029
    %v1032 = vadd.f32 %v961, %v1030
    %v1033 = vadd.f32 %v962, %v1030
    %v1034 = vadd.f32 %v963, %v1030
    %v1035 = vadd.f32 %v964, %v1030
    %v1036 = vadd.f32 %v965, %v1030
    %v1037 = vadd.f32 %v966, %v1030
    %v1038 = vadd.f32 %v967, %v1030
    %v1039 = vadd.f32 %v968, %v1030
    %v1040 = vadd.f32 %v969, %v1030
    %v1041 = vadd.f32 %v970, %v1030
    %v1042 = vadd.f32 %v971, %v1030
    %v1043 = vadd.f32 %v972, %v1030
    %v1044 = vadd.f32 %v973, %v1030
    %v1045 = vadd.f32 %v974, %v1030
    %v1046 = vadd.f32 %v975, %v1030
    %v1047 = vadd.f32 %v976, %v1030
    %v1048 = vadd.f32 %v977, %v1030
    %v1049 = vadd.f32 %v978, %v1030
    %v1050 = vadd.f32 %v979, %v1030
    %v1051 = vadd.f32 %v980, %v1030
    %v1052 = vadd.f32 %v981, %v1030
    %v1053 = vadd.f32 %v982, %v1030
    %v1054 = vadd.f32 %v983, %v1030
    %v1055 = vadd.f32 %v984, %v1030
    %v1056 = vadd.f32 %v985, %v1030
    %v1057 = vadd.f32 %v986, %v1030
    %v1058 = vadd.f32 %v987, %v1030
    %v1059 = vadd.f32 %v988, %v1030
    %v1060 = vadd.f32 %v989, %v1030
    %v1061 = vadd.f32 %v990, %v1030
    %v1062 = vadd.f32 %v991, %v1030
    %v1063 = vadd.f32 %v992, %v1030
    %v1064 = vadd.f32 %v993, %v1030
    %v1065 = vadd.f32 %v994, %v1030
    %v1066 = vadd.f32 %v995, %v1030
    %v1067 = vadd.f32 %v996, %v1030
    %v1068 = vadd.f32 %v997, %v1030
    %v1069 = vadd.f32 %v998, %v1030
    %v1070 = vadd.f32 %v999, %v1030
    %v1071 = vadd.f32 %v1000, %v1030
    %v1072 = vadd.f32 %v1001, %v1030
    %v1073 = vadd.f32 %v1002, %v1030
    %v1074 = vadd.f32 %v1003, %v1030
    %v1075 = vadd.f32 %v1004, %v1030
    %v1076 = vadd.f32 %v1005, %v1030
    %v1077 = vadd.f32 %v1006, %v1030
    %v1078 = vadd.f32 %v1007, %v1030
    %v1079 = vadd.f32 %v1008, %v1030
    %v1080 = vadd.f32 %v1009, %v1030
    %v1081 = vadd.f32 %v1010, %v1030
    %v1082 = vadd.f32 %v1011, %v1030
    %v1083 = vadd.f32 %v1012, %v1030
    %v1084 = vadd.f32 %v1013, %v1030
    %v1085 = vadd.f32 %v1014, %v1030
    %v1086 = vadd.f32 %v1015, %v1030
    %v1087 = vadd.f32 %v1016, %v1030
    %v1088 = vadd.f32 %v1017, %v1030
    %v1089 = vadd.f32 %v1018, %v1030
    %v1090 = vadd.f32 %v1019, %v1030
    %v1091 = vadd.f32 %v1020, %v1030
    %v1092 = vadd.f32 %v1021, %v1030
    %v1093 = vadd.f32 %v1022, %v1030
    %v1094 = vadd.f32 %v1023, %v1030
    %v1095 = vadd.f32 %v1024, %v1030
    %v1096 = vpack.c.bf16 %v1033, %v1032
    %v1097 = vpack.c.bf16 %v1035, %v1034
    %v1098 = vpack.c.bf16 %v1037, %v1036
    %v1099 = vpack.c.bf16 %v1039, %v1038
    %v1100 = vpack.c.bf16 %v1041, %v1040
    %v1101 = vpack.c.bf16 %v1043, %v1042
    %v1102 = vpack.c.bf16 %v1045, %v1044
    %v1103 = vpack.c.bf16 %v1047, %v1046
    %v1104 = vpack.c.bf16 %v1049, %v1048
    %v1105 = vpack.c.bf16 %v1051, %v1050
    %v1106 = vpack.c.bf16 %v1053, %v1052
    %v1107 = vpack.c.bf16 %v1055, %v1054
    %v1108 = vpack.c.bf16 %v1057, %v1056
    %v1109 = vpack.c.bf16 %v1059, %v1058
    %v1110 = vpack.c.bf16 %v1061, %v1060
    %v1111 = vpack.c.bf16 %v1063, %v1062
    %v1112 = vpack.c.bf16 %v1065, %v1064
    %v1113 = vpack.c.bf16 %v1067, %v1066
    %v1114 = vpack.c.bf16 %v1069, %v1068
    %v1115 = vpack.c.bf16 %v1071, %v1070
    %v1116 = vpack.c.bf16 %v1073, %v1072
    %v1117 = vpack.c.bf16 %v1075, %v1074
    %v1118 = vpack.c.bf16 %v1077, %v1076
    %v1119 = vpack.c.bf16 %v1079, %v1078
    %v1120 = vpack.c.bf16 %v1081, %v1080
    %v1121 = vpack.c.bf16 %v1083, %v1082
    %v1122 = vpack.c.bf16 %v1085, %v1084
    %v1123 = vpack.c.bf16 %v1087, %v1086
    %v1124 = vpack.c.bf16 %v1089, %v1088
    %v1125 = vpack.c.bf16 %v1091, %v1090
    %v1126 = vpack.c.bf16 %v1093, %v1092
    %v1127 = vpack.c.bf16 %v1095, %v1094
    %v1160 = vunpack.c.l.b16 %v1096
    %v1161 = vunpack.c.h.b16 %v1096
    %v1162 = vunpack.c.l.b16 %v1097
    %v1163 = vunpack.c.h.b16 %v1097
    %v1164 = vunpack.c.l.b16 %v1098
    %v1165 = vunpack.c.h.b16 %v1098
    %v1166 = vunpack.c.l.b16 %v1099
    %v1167 = vunpack.c.h.b16 %v1099
    %v1168 = vunpack.c.l.b16 %v1100
    %v1169 = vunpack.c.h.b16 %v1100
    %v1170 = vunpack.c.l.b16 %v1101
    %v1171 = vunpack.c.h.b16 %v1101
    %v1172 = vunpack.c.l.b16 %v1102
    %v1173 = vunpack.c.h.b16 %v1102
    %v1174 = vunpack.c.l.b16 %v1103
    %v1175 = vunpack.c.h.b16 %v1103
    %v1176 = vunpack.c.l.b16 %v1104
    %v1177 = vunpack.c.h.b16 %v1104
    %v1178 = vunpack.c.l.b16 %v1105
    %v1179 = vunpack.c.h.b16 %v1105
    %v1180 = vunpack.c.l.b16 %v1106
    %v1181 = vunpack.c.h.b16 %v1106
    %v1182 = vunpack.c.l.b16 %v1107
    %v1183 = vunpack.c.h.b16 %v1107
    %v1184 = vunpack.c.l.b16 %v1108
    %v1185 = vunpack.c.h.b16 %v1108
    %v1186 = vunpack.c.l.b16 %v1109
    %v1187 = vunpack.c.h.b16 %v1109
    %v1188 = vunpack.c.l.b16 %v1110
    %v1189 = vunpack.c.h.b16 %v1110
    %v1190 = vunpack.c.l.b16 %v1111
    %v1191 = vunpack.c.h.b16 %v1111
    %v1192 = vunpack.c.l.b16 %v1112
    %v1193 = vunpack.c.h.b16 %v1112
    %v1194 = vunpack.c.l.b16 %v1113
    %v1195 = vunpack.c.h.b16 %v1113
    %v1196 = vunpack.c.l.b16 %v1114
    %v1197 = vunpack.c.h.b16 %v1114
    %v1198 = vunpack.c.l.b16 %v1115
    %v1199 = vunpack.c.h.b16 %v1115
    %v1200 = vunpack.c.l.b16 %v1116
    %v1201 = vunpack.c.h.b16 %v1116
    %v1202 = vunpack.c.l.b16 %v1117
    %v1203 = vunpack.c.h.b16 %v1117
    %v1204 = vunpack.c.l.b16 %v1118
    %v1205 = vunpack.c.h.b16 %v1118
    %v1206 = vunpack.c.l.b16 %v1119
    %v1207 = vunpack.c.h.b16 %v1119
    %v1208 = vunpack.c.l.b16 %v1120
    %v1209 = vunpack.c.h.b16 %v1120
    %v1210 = vunpack.c.l.b16 %v1121
    %v1211 = vunpack.c.h.b16 %v1121
    %v1212 = vunpack.c.l.b16 %v1122
    %v1213 = vunpack.c.h.b16 %v1122
    %v1214 = vunpack.c.l.b16 %v1123
    %v1215 = vunpack.c.h.b16 %v1123
    %v1216 = vunpack.c.l.b16 %v1124
    %v1217 = vunpack.c.h.b16 %v1124
    %v1218 = vunpack.c.l.b16 %v1125
    %v1219 = vunpack.c.h.b16 %v1125
    %v1220 = vunpack.c.l.b16 %v1126
    %v1221 = vunpack.c.h.b16 %v1126
    %v1222 = vunpack.c.l.b16 %v1127
    %v1223 = vunpack.c.h.b16 %v1127
    %v1224 = vpack.c.b16 %v1160, %v1160
    %v1225 = vpack.c.b16 %v1161, %v1161
    %v1226 = vpack.c.b16 %v1162, %v1162
    %v1227 = vpack.c.b16 %v1163, %v1163
    %v1228 = vpack.c.b16 %v1164, %v1164
    %v1229 = vpack.c.b16 %v1165, %v1165
    %v1230 = vpack.c.b16 %v1166, %v1166
    %v1231 = vpack.c.b16 %v1167, %v1167
    %v1232 = vpack.c.b16 %v1168, %v1168
    %v1233 = vpack.c.b16 %v1169, %v1169
    %v1234 = vpack.c.b16 %v1170, %v1170
    %v1235 = vpack.c.b16 %v1171, %v1171
    %v1236 = vpack.c.b16 %v1172, %v1172
    %v1237 = vpack.c.b16 %v1173, %v1173
    %v1238 = vpack.c.b16 %v1174, %v1174
    %v1239 = vpack.c.b16 %v1175, %v1175
    %v1240 = vpack.c.b16 %v1176, %v1176
    %v1241 = vpack.c.b16 %v1177, %v1177
    %v1242 = vpack.c.b16 %v1178, %v1178
    %v1243 = vpack.c.b16 %v1179, %v1179
    %v1244 = vpack.c.b16 %v1180, %v1180
    %v1245 = vpack.c.b16 %v1181, %v1181
    %v1246 = vpack.c.b16 %v1182, %v1182
    %v1247 = vpack.c.b16 %v1183, %v1183
    %v1248 = vpack.c.b16 %v1184, %v1184
    %v1249 = vpack.c.b16 %v1185, %v1185
    %v1250 = vpack.c.b16 %v1186, %v1186
    %v1251 = vpack.c.b16 %v1187, %v1187
    %v1252 = vpack.c.b16 %v1188, %v1188
    %v1253 = vpack.c.b16 %v1189, %v1189
    %v1254 = vpack.c.b16 %v1190, %v1190
    %v1255 = vpack.c.b16 %v1191, %v1191
    %v1256 = vpack.c.b16 %v1192, %v1192
    %v1257 = vpack.c.b16 %v1193, %v1193
    %v1258 = vpack.c.b16 %v1194, %v1194
    %v1259 = vpack.c.b16 %v1195, %v1195
    %v1260 = vpack.c.b16 %v1196, %v1196
    %v1261 = vpack.c.b16 %v1197, %v1197
    %v1262 = vpack.c.b16 %v1198, %v1198
    %v1263 = vpack.c.b16 %v1199, %v1199
    %v1264 = vpack.c.b16 %v1200, %v1200
    %v1265 = vpack.c.b16 %v1201, %v1201
    %v1266 = vpack.c.b16 %v1202, %v1202
    %v1267 = vpack.c.b16 %v1203, %v1203
    %v1268 = vpack.c.b16 %v1204, %v1204
    %v1269 = vpack.c.b16 %v1205, %v1205
    %v1270 = vpack.c.b16 %v1206, %v1206
    %v1271 = vpack.c.b16 %v1207, %v1207
    %v1272 = vpack.c.b16 %v1208, %v1208
    %v1273 = vpack.c.b16 %v1209, %v1209
    %v1274 = vpack.c.b16 %v1210, %v1210
    %v1275 = vpack.c.b16 %v1211, %v1211
    %v1276 = vpack.c.b16 %v1212, %v1212
    %v1277 = vpack.c.b16 %v1213, %v1213
    %v1278 = vpack.c.b16 %v1214, %v1214
    %v1279 = vpack.c.b16 %v1215, %v1215
    %v1280 = vpack.c.b16 %v1216, %v1216
    %v1281 = vpack.c.b16 %v1217, %v1217
    %v1282 = vpack.c.b16 %v1218, %v1218
    %v1283 = vpack.c.b16 %v1219, %v1219
    %v1284 = vpack.c.b16 %v1220, %v1220
    %v1285 = vpack.c.b16 %v1221, %v1221
    %v1286 = vpack.c.b16 %v1222, %v1222
    %v1287 = vpack.c.b16 %v1223, %v1223
    %1352 = vst [vmem:[%s4] sm:$0xf] %v1224
    %1353 = vst [vmem:[%s4 + $0x4] sm:$0xf] %v1225
    %1354 = vst [vmem:[%s4 + $0x8] sm:$0xf] %v1226
    %1355 = vst [vmem:[%s4 + $0xc] sm:$0xf] %v1227
    %1356 = vst [vmem:[%s4 + $0x10] sm:$0xf] %v1228
    %1357 = vst [vmem:[%s4 + $0x14] sm:$0xf] %v1229
    %1358 = vst [vmem:[%s4 + $0x18] sm:$0xf] %v1230
    %1359 = vst [vmem:[%s4 + $0x1c] sm:$0xf] %v1231
    %1360 = vst [vmem:[%s4 + $0x20] sm:$0xf] %v1232
    %1361 = vst [vmem:[%s4 + $0x24] sm:$0xf] %v1233
    %1362 = vst [vmem:[%s4 + $0x28] sm:$0xf] %v1234
    %1363 = vst [vmem:[%s4 + $0x2c] sm:$0xf] %v1235
    %1364 = vst [vmem:[%s4 + $0x30] sm:$0xf] %v1236
    %1365 = vst [vmem:[%s4 + $0x34] sm:$0xf] %v1237
    %1366 = vst [vmem:[%s4 + $0x38] sm:$0xf] %v1238
    %1367 = vst [vmem:[%s4 + $0x3c] sm:$0xf] %v1239
    %1368 = vst [vmem:[%s4 + $0x40] sm:$0xf] %v1240
    %1369 = vst [vmem:[%s4 + $0x44] sm:$0xf] %v1241
    %1370 = vst [vmem:[%s4 + $0x48] sm:$0xf] %v1242
    %1371 = vst [vmem:[%s4 + $0x4c] sm:$0xf] %v1243
    %1372 = vst [vmem:[%s4 + $0x50] sm:$0xf] %v1244
    %1373 = vst [vmem:[%s4 + $0x54] sm:$0xf] %v1245
    %1374 = vst [vmem:[%s4 + $0x58] sm:$0xf] %v1246
    %1375 = vst [vmem:[%s4 + $0x5c] sm:$0xf] %v1247
    %1376 = vst [vmem:[%s4 + $0x60] sm:$0xf] %v1248
    %1377 = vst [vmem:[%s4 + $0x64] sm:$0xf] %v1249
    %1378 = vst [vmem:[%s4 + $0x68] sm:$0xf] %v1250
    %1379 = vst [vmem:[%s4 + $0x6c] sm:$0xf] %v1251
    %1380 = vst [vmem:[%s4 + $0x70] sm:$0xf] %v1252
    %1381 = vst [vmem:[%s4 + $0x74] sm:$0xf] %v1253
    %1382 = vst [vmem:[%s4 + $0x78] sm:$0xf] %v1254
    %1383 = vst [vmem:[%s4 + $0x7c] sm:$0xf] %v1255
    %1384 = vst [vmem:[%s4 + $0x80] sm:$0xf] %v1256
    %1385 = vst [vmem:[%s4 + $0x84] sm:$0xf] %v1257
    %1386 = vst [vmem:[%s4 + $0x88] sm:$0xf] %v1258
    %1387 = vst [vmem:[%s4 + $0x8c] sm:$0xf] %v1259
    %1388 = vst [vmem:[%s4 + $0x90] sm:$0xf] %v1260
    %1389 = vst [vmem:[%s4 + $0x94] sm:$0xf] %v1261
    %1390 = vst [vmem:[%s4 + $0x98] sm:$0xf] %v1262
    %1391 = vst [vmem:[%s4 + $0x9c] sm:$0xf] %v1263
    %1392 = vst [vmem:[%s4 + $0xa0] sm:$0xf] %v1264
    %1393 = vst [vmem:[%s4 + $0xa4] sm:$0xf] %v1265
    %1394 = vst [vmem:[%s4 + $0xa8] sm:$0xf] %v1266
    %1395 = vst [vmem:[%s4 + $0xac] sm:$0xf] %v1267
    %1396 = vst [vmem:[%s4 + $0xb0] sm:$0xf] %v1268
    %1397 = vst [vmem:[%s4 + $0xb4] sm:$0xf] %v1269
    %1398 = vst [vmem:[%s4 + $0xb8] sm:$0xf] %v1270
    %1399 = vst [vmem:[%s4 + $0xbc] sm:$0xf] %v1271
    %1400 = vst [vmem:[%s4 + $0xc0] sm:$0xf] %v1272
    %1401 = vst [vmem:[%s4 + $0xc4] sm:$0xf] %v1273
    %1402 = vst [vmem:[%s4 + $0xc8] sm:$0xf] %v1274
    %1403 = vst [vmem:[%s4 + $0xcc] sm:$0xf] %v1275
    %1404 = vst [vmem:[%s4 + $0xd0] sm:$0xf] %v1276
    %1405 = vst [vmem:[%s4 + $0xd4] sm:$0xf] %v1277
    %1406 = vst [vmem:[%s4 + $0xd8] sm:$0xf] %v1278
    %1407 = vst [vmem:[%s4 + $0xdc] sm:$0xf] %v1279
    %1408 = vst [vmem:[%s4 + $0xe0] sm:$0xf] %v1280
    %1409 = vst [vmem:[%s4 + $0xe4] sm:$0xf] %v1281
    %1410 = vst [vmem:[%s4 + $0xe8] sm:$0xf] %v1282
    %1411 = vst [vmem:[%s4 + $0xec] sm:$0xf] %v1283
    %1412 = vst [vmem:[%s4 + $0xf0] sm:$0xf] %v1284
    %1413 = vst [vmem:[%s4 + $0xf4] sm:$0xf] %v1285
    %1414 = vst [vmem:[%s4 + $0xf8] sm:$0xf] %v1286
    %1415 = vst [vmem:[%s4 + $0xfc] sm:$0xf] %v1287
  $region25: #{_forward.6} parent=0 // pred_fallthru
    _
  // Predicated region
  $region26: #{_forward.6} parent=0 // pred_check
    _
  $region27: #{_forward.6} parent=0 // pred_check_branch
    %1417 = sbr.rel (0) target = $region29
  $region28: #{_forward.6} parent=0 // pred_region
    _
  $region29: #{_forward.6} parent=0 // pred_fallthru
    _
  // Predicated region
  $region30: #{_forward.6} parent=0 // pred_check
    _
  $region31: #{_forward.6} parent=0 // pred_check_branch
    %1419 = sbr.rel (0) target = $region33
  $region32: #{_forward.6} parent=0 // pred_region
    _
  $region33: #{_forward.6} parent=0 // pred_fallthru
    _

// kernel: _forward.4
$region0: #{_forward.4}
  #allocation0 [shape = 'u32[]', space=smem, size = 0x4, offset = 0x4, fixed_abs, tag = 'smem constant byte address 0x4 - core index']
  #allocation1 [shape = 'u32[144,128]{1,0:T(1,128)}', space=vmem, size = 0x12000, scoped, tag = 'internal scratch']
  #allocation2 [shape = 'f32[512,128]{1,0:T(8,128)}', space=vmem, size = 0x40000, scoped, tag = 'scratch operand']
  %s0 = inlined_call_operand.vmem [shape: bf16[512,128], index: 0, kind: input, shape index: {}]
  %s1 = inlined_call_operand.vmem [shape: bf16[128,128], index: 1, kind: input, shape index: {}]
  %s2 = inlined_call_operand.vmem [shape: f32[1,128], index: 2, kind: input, shape index: {}]
  %s3 = inlined_call_operand.vmem [shape: f32[1,128], index: 3, kind: input, shape index: {}]
  %s4 = inlined_call_operand.vmem [shape: bf16[512,128], index: 4, kind: output, shape index: {}]
  %s5 = sld [smem:[#allocation0]]
  $region34: #{_forward.4} parent=0
    _
  %s7 = ssub.s32 1, %s5
  %s8 = scalar_select 0, %s7, %s5
  // Predicated region
  $region2: #{_forward.4} parent=0 // pred_check
    _
  $region3: #{_forward.4} parent=0 // pred_check_branch
    %10 = sbr.rel (0) target = $region5
  $region4: #{_forward.4} parent=0 // pred_region
    _
  $region5: #{_forward.4} parent=0 // pred_fallthru
    _
  // Predicated region
  $region6: #{_forward.4} parent=0 // pred_check
    _
  $region7: #{_forward.4} parent=0 // pred_check_branch
    %12 = sbr.rel (0) target = $region9
  $region8: #{_forward.4} parent=0 // pred_region
    _
  $region9: #{_forward.4} parent=0 // pred_fallthru
    _
  // Predicated region
  $region10: #{_forward.4} parent=0 // pred_check
    _
  $region11: #{_forward.4} parent=0 // pred_check_branch
    %14 = sbr.rel (0) target = $region13
  $region12: #{_forward.4} parent=0 // pred_region
    _
  $region13: #{_forward.4} parent=0 // pred_fallthru
    _
  // Predicated region
  $region14: #{_forward.4} parent=0 // pred_check
    _
  $region15: #{_forward.4} parent=0 // pred_check_branch
    %16 = sbr.rel (0) target = $region17
  $region16: #{_forward.4} parent=0 // pred_region
    _
  $region17: #{_forward.4} parent=0 // pred_fallthru
    _
  %p18 = scmp.eq.s32.totalorder 0, 0
  // Predicated region
  $region18: #{_forward.4} parent=0 // pred_check
    %p19 = pneg %p18
  $region19: #{_forward.4} parent=0 // pred_check_branch
    %21 = sbr.rel (%p19) target = $region21
  $region20: #{_forward.4} parent=0 // pred_region
    %22 = vst [vmem:[#allocation2] sm:$0xff] 0.0
    %23 = vst [vmem:[#allocation2 + $0x8] sm:$0xff] 0.0
    %24 = vst [vmem:[#allocation2 + $0x10] sm:$0xff] 0.0
    %25 = vst [vmem:[#allocation2 + $0x18] sm:$0xff] 0.0
    %26 = vst [vmem:[#allocation2 + $0x20] sm:$0xff] 0.0
    %27 = vst [vmem:[#allocation2 + $0x28] sm:$0xff] 0.0
    %28 = vst [vmem:[#allocation2 + $0x30] sm:$0xff] 0.0
    %29 = vst [vmem:[#allocation2 + $0x38] sm:$0xff] 0.0
    %30 = vst [vmem:[#allocation2 + $0x40] sm:$0xff] 0.0
    %31 = vst [vmem:[#allocation2 + $0x48] sm:$0xff] 0.0
    %32 = vst [vmem:[#allocation2 + $0x50] sm:$0xff] 0.0
    %33 = vst [vmem:[#allocation2 + $0x58] sm:$0xff] 0.0
    %34 = vst [vmem:[#allocation2 + $0x60] sm:$0xff] 0.0
    %35 = vst [vmem:[#allocation2 + $0x68] sm:$0xff] 0.0
    %36 = vst [vmem:[#allocation2 + $0x70] sm:$0xff] 0.0
    %37 = vst [vmem:[#allocation2 + $0x78] sm:$0xff] 0.0
    %38 = vst [vmem:[#allocation2 + $0x80] sm:$0xff] 0.0
    %39 = vst [vmem:[#allocation2 + $0x88] sm:$0xff] 0.0
    %40 = vst [vmem:[#allocation2 + $0x90] sm:$0xff] 0.0
    %41 = vst [vmem:[#allocation2 + $0x98] sm:$0xff] 0.0
    %42 = vst [vmem:[#allocation2 + $0xa0] sm:$0xff] 0.0
    %43 = vst [vmem:[#allocation2 + $0xa8] sm:$0xff] 0.0
    %44 = vst [vmem:[#allocation2 + $0xb0] sm:$0xff] 0.0
    %45 = vst [vmem:[#allocation2 + $0xb8] sm:$0xff] 0.0
    %46 = vst [vmem:[#allocation2 + $0xc0] sm:$0xff] 0.0
    %47 = vst [vmem:[#allocation2 + $0xc8] sm:$0xff] 0.0
    %48 = vst [vmem:[#allocation2 + $0xd0] sm:$0xff] 0.0
    %49 = vst [vmem:[#allocation2 + $0xd8] sm:$0xff] 0.0
    %50 = vst [vmem:[#allocation2 + $0xe0] sm:$0xff] 0.0
    %51 = vst [vmem:[#allocation2 + $0xe8] sm:$0xff] 0.0
    %52 = vst [vmem:[#allocation2 + $0xf0] sm:$0xff] 0.0
    %53 = vst [vmem:[#allocation2 + $0xf8] sm:$0xff] 0.0
    %54 = vst [vmem:[#allocation2 + $0x100] sm:$0xff] 0.0
    %55 = vst [vmem:[#allocation2 + $0x108] sm:$0xff] 0.0
    %56 = vst [vmem:[#allocation2 + $0x110] sm:$0xff] 0.0
    %57 = vst [vmem:[#allocation2 + $0x118] sm:$0xff] 0.0
    %58 = vst [vmem:[#allocation2 + $0x120] sm:$0xff] 0.0
    %59 = vst [vmem:[#allocation2 + $0x128] sm:$0xff] 0.0
    %60 = vst [vmem:[#allocation2 + $0x130] sm:$0xff] 0.0
    %61 = vst [vmem:[#allocation2 + $0x138] sm:$0xff] 0.0
    %62 = vst [vmem:[#allocation2 + $0x140] sm:$0xff] 0.0
    %63 = vst [vmem:[#allocation2 + $0x148] sm:$0xff] 0.0
    %64 = vst [vmem:[#allocation2 + $0x150] sm:$0xff] 0.0
    %65 = vst [vmem:[#allocation2 + $0x158] sm:$0xff] 0.0
    %66 = vst [vmem:[#allocation2 + $0x160] sm:$0xff] 0.0
    %67 = vst [vmem:[#allocation2 + $0x168] sm:$0xff] 0.0
    %68 = vst [vmem:[#allocation2 + $0x170] sm:$0xff] 0.0
    %69 = vst [vmem:[#allocation2 + $0x178] sm:$0xff] 0.0
    %70 = vst [vmem:[#allocation2 + $0x180] sm:$0xff] 0.0
    %71 = vst [vmem:[#allocation2 + $0x188] sm:$0xff] 0.0
    %72 = vst [vmem:[#allocation2 + $0x190] sm:$0xff] 0.0
    %73 = vst [vmem:[#allocation2 + $0x198] sm:$0xff] 0.0
    %74 = vst [vmem:[#allocation2 + $0x1a0] sm:$0xff] 0.0
    %75 = vst [vmem:[#allocation2 + $0x1a8] sm:$0xff] 0.0
    %76 = vst [vmem:[#allocation2 + $0x1b0] sm:$0xff] 0.0
    %77 = vst [vmem:[#allocation2 + $0x1b8] sm:$0xff] 0.0
    %78 = vst [vmem:[#allocation2 + $0x1c0] sm:$0xff] 0.0
    %79 = vst [vmem:[#allocation2 + $0x1c8] sm:$0xff] 0.0
    %80 = vst [vmem:[#allocation2 + $0x1d0] sm:$0xff] 0.0
    %81 = vst [vmem:[#allocation2 + $0x1d8] sm:$0xff] 0.0
    %82 = vst [vmem:[#allocation2 + $0x1e0] sm:$0xff] 0.0
    %83 = vst [vmem:[#allocation2 + $0x1e8] sm:$0xff] 0.0
    %84 = vst [vmem:[#allocation2 + $0x1f0] sm:$0xff] 0.0
    %85 = vst [vmem:[#allocation2 + $0x1f8] sm:$0xff] 0.0
  $region21: #{_forward.4} parent=0 // pred_fallthru
    _
  %v86 = vld [vmem:[#allocation2] sm:$0xff]
  %v87 = vld [vmem:[#allocation2 + $0x8] sm:$0xff]
  %v88 = vld [vmem:[#allocation2 + $0x10] sm:$0xff]
  %v89 = vld [vmem:[#allocation2 + $0x18] sm:$0xff]
  %v90 = vld [vmem:[#allocation2 + $0x20] sm:$0xff]
  %v91 = vld [vmem:[#allocation2 + $0x28] sm:$0xff]
  %v92 = vld [vmem:[#allocation2 + $0x30] sm:$0xff]
  %v93 = vld [vmem:[#allocation2 + $0x38] sm:$0xff]
  %v94 = vld [vmem:[#allocation2 + $0x40] sm:$0xff]
  %v95 = vld [vmem:[#allocation2 + $0x48] sm:$0xff]
  %v96 = vld [vmem:[#allocation2 + $0x50] sm:$0xff]
  %v97 = vld [vmem:[#allocation2 + $0x58] sm:$0xff]
  %v98 = vld [vmem:[#allocation2 + $0x60] sm:$0xff]
  %v99 = vld [vmem:[#allocation2 + $0x68] sm:$0xff]
  %v100 = vld [vmem:[#allocation2 + $0x70] sm:$0xff]
  %v101 = vld [vmem:[#allocation2 + $0x78] sm:$0xff]
  %v102 = vld [vmem:[#allocation2 + $0x80] sm:$0xff]
  %v103 = vld [vmem:[#allocation2 + $0x88] sm:$0xff]
  %v104 = vld [vmem:[#allocation2 + $0x90] sm:$0xff]
  %v105 = vld [vmem:[#allocation2 + $0x98] sm:$0xff]
  %v106 = vld [vmem:[#allocation2 + $0xa0] sm:$0xff]
  %v107 = vld [vmem:[#allocation2 + $0xa8] sm:$0xff]
  %v108 = vld [vmem:[#allocation2 + $0xb0] sm:$0xff]
  %v109 = vld [vmem:[#allocation2 + $0xb8] sm:$0xff]
  %v110 = vld [vmem:[#allocation2 + $0xc0] sm:$0xff]
  %v111 = vld [vmem:[#allocation2 + $0xc8] sm:$0xff]
  %v112 = vld [vmem:[#allocation2 + $0xd0] sm:$0xff]
  %v113 = vld [vmem:[#allocation2 + $0xd8] sm:$0xff]
  %v114 = vld [vmem:[#allocation2 + $0xe0] sm:$0xff]
  %v115 = vld [vmem:[#allocation2 + $0xe8] sm:$0xff]
  %v116 = vld [vmem:[#allocation2 + $0xf0] sm:$0xff]
  %v117 = vld [vmem:[#allocation2 + $0xf8] sm:$0xff]
  %v118 = vld [vmem:[#allocation2 + $0x100] sm:$0xff]
  %v119 = vld [vmem:[#allocation2 + $0x108] sm:$0xff]
  %v120 = vld [vmem:[#allocation2 + $0x110] sm:$0xff]
  %v121 = vld [vmem:[#allocation2 + $0x118] sm:$0xff]
  %v122 = vld [vmem:[#allocation2 + $0x120] sm:$0xff]
  %v123 = vld [vmem:[#allocation2 + $0x128] sm:$0xff]
  %v124 = vld [vmem:[#allocation2 + $0x130] sm:$0xff]
  %v125 = vld [vmem:[#allocation2 + $0x138] sm:$0xff]
  %v126 = vld [vmem:[#allocation2 + $0x140] sm:$0xff]
  %v127 = vld [vmem:[#allocation2 + $0x148] sm:$0xff]
  %v128 = vld [vmem:[#allocation2 + $0x150] sm:$0xff]
  %v129 = vld [vmem:[#allocation2 + $0x158] sm:$0xff]
  %v130 = vld [vmem:[#allocation2 + $0x160] sm:$0xff]
  %v131 = vld [vmem:[#allocation2 + $0x168] sm:$0xff]
  %v132 = vld [vmem:[#allocation2 + $0x170] sm:$0xff]
  %v133 = vld [vmem:[#allocation2 + $0x178] sm:$0xff]
  %v134 = vld [vmem:[#allocation2 + $0x180] sm:$0xff]
  %v135 = vld [vmem:[#allocation2 + $0x188] sm:$0xff]
  %v136 = vld [vmem:[#allocation2 + $0x190] sm:$0xff]
  %v137 = vld [vmem:[#allocation2 + $0x198] sm:$0xff]
  %v138 = vld [vmem:[#allocation2 + $0x1a0] sm:$0xff]
  %v139 = vld [vmem:[#allocation2 + $0x1a8] sm:$0xff]
  %v140 = vld [vmem:[#allocation2 + $0x1b0] sm:$0xff]
  %v141 = vld [vmem:[#allocation2 + $0x1b8] sm:$0xff]
  %v142 = vld [vmem:[#allocation2 + $0x1c0] sm:$0xff]
  %v143 = vld [vmem:[#allocation2 + $0x1c8] sm:$0xff]
  %v144 = vld [vmem:[#allocation2 + $0x1d0] sm:$0xff]
  %v145 = vld [vmem:[#allocation2 + $0x1d8] sm:$0xff]
  %v146 = vld [vmem:[#allocation2 + $0x1e0] sm:$0xff]
  %v147 = vld [vmem:[#allocation2 + $0x1e8] sm:$0xff]
  %v148 = vld [vmem:[#allocation2 + $0x1f0] sm:$0xff]
  %v149 = vld [vmem:[#allocation2 + $0x1f8] sm:$0xff]
  %v150 = vld [vmem:[%s0] sm:$0xf]
  %v151 = vld [vmem:[%s0 + $0x4] sm:$0xf]
  %v152 = vld [vmem:[%s0 + $0x8] sm:$0xf]
  %v153 = vld [vmem:[%s0 + $0xc] sm:$0xf]
  %v154 = vld [vmem:[%s0 + $0x10] sm:$0xf]
  %v155 = vld [vmem:[%s0 + $0x14] sm:$0xf]
  %v156 = vld [vmem:[%s0 + $0x18] sm:$0xf]
  %v157 = vld [vmem:[%s0 + $0x1c] sm:$0xf]
  %v158 = vld [vmem:[%s0 + $0x20] sm:$0xf]
  %v159 = vld [vmem:[%s0 + $0x24] sm:$0xf]
  %v160 = vld [vmem:[%s0 + $0x28] sm:$0xf]
  %v161 = vld [vmem:[%s0 + $0x2c] sm:$0xf]
  %v162 = vld [vmem:[%s0 + $0x30] sm:$0xf]
  %v163 = vld [vmem:[%s0 + $0x34] sm:$0xf]
  %v164 = vld [vmem:[%s0 + $0x38] sm:$0xf]
  %v165 = vld [vmem:[%s0 + $0x3c] sm:$0xf]
  %v166 = vld [vmem:[%s0 + $0x40] sm:$0xf]
  %v167 = vld [vmem:[%s0 + $0x44] sm:$0xf]
  %v168 = vld [vmem:[%s0 + $0x48] sm:$0xf]
  %v169 = vld [vmem:[%s0 + $0x4c] sm:$0xf]
  %v170 = vld [vmem:[%s0 + $0x50] sm:$0xf]
  %v171 = vld [vmem:[%s0 + $0x54] sm:$0xf]
  %v172 = vld [vmem:[%s0 + $0x58] sm:$0xf]
  %v173 = vld [vmem:[%s0 + $0x5c] sm:$0xf]
  %v174 = vld [vmem:[%s0 + $0x60] sm:$0xf]
  %v175 = vld [vmem:[%s0 + $0x64] sm:$0xf]
  %v176 = vld [vmem:[%s0 + $0x68] sm:$0xf]
  %v177 = vld [vmem:[%s0 + $0x6c] sm:$0xf]
  %v178 = vld [vmem:[%s0 + $0x70] sm:$0xf]
  %v179 = vld [vmem:[%s0 + $0x74] sm:$0xf]
  %v180 = vld [vmem:[%s0 + $0x78] sm:$0xf]
  %v181 = vld [vmem:[%s0 + $0x7c] sm:$0xf]
  %v182 = vld [vmem:[%s0 + $0x80] sm:$0xf]
  %v183 = vld [vmem:[%s0 + $0x84] sm:$0xf]
  %v184 = vld [vmem:[%s0 + $0x88] sm:$0xf]
  %v185 = vld [vmem:[%s0 + $0x8c] sm:$0xf]
  %v186 = vld [vmem:[%s0 + $0x90] sm:$0xf]
  %v187 = vld [vmem:[%s0 + $0x94] sm:$0xf]
  %v188 = vld [vmem:[%s0 + $0x98] sm:$0xf]
  %v189 = vld [vmem:[%s0 + $0x9c] sm:$0xf]
  %v190 = vld [vmem:[%s0 + $0xa0] sm:$0xf]
  %v191 = vld [vmem:[%s0 + $0xa4] sm:$0xf]
  %v192 = vld [vmem:[%s0 + $0xa8] sm:$0xf]
  %v193 = vld [vmem:[%s0 + $0xac] sm:$0xf]
  %v194 = vld [vmem:[%s0 + $0xb0] sm:$0xf]
  %v195 = vld [vmem:[%s0 + $0xb4] sm:$0xf]
  %v196 = vld [vmem:[%s0 + $0xb8] sm:$0xf]
  %v197 = vld [vmem:[%s0 + $0xbc] sm:$0xf]
  %v198 = vld [vmem:[%s0 + $0xc0] sm:$0xf]
  %v199 = vld [vmem:[%s0 + $0xc4] sm:$0xf]
  %v200 = vld [vmem:[%s0 + $0xc8] sm:$0xf]
  %v201 = vld [vmem:[%s0 + $0xcc] sm:$0xf]
  %v202 = vld [vmem:[%s0 + $0xd0] sm:$0xf]
  %v203 = vld [vmem:[%s0 + $0xd4] sm:$0xf]
  %v204 = vld [vmem:[%s0 + $0xd8] sm:$0xf]
  %v205 = vld [vmem:[%s0 + $0xdc] sm:$0xf]
  %v206 = vld [vmem:[%s0 + $0xe0] sm:$0xf]
  %v207 = vld [vmem:[%s0 + $0xe4] sm:$0xf]
  %v208 = vld [vmem:[%s0 + $0xe8] sm:$0xf]
  %v209 = vld [vmem:[%s0 + $0xec] sm:$0xf]
  %v210 = vld [vmem:[%s0 + $0xf0] sm:$0xf]
  %v211 = vld [vmem:[%s0 + $0xf4] sm:$0xf]
  %v212 = vld [vmem:[%s0 + $0xf8] sm:$0xf]
  %v213 = vld [vmem:[%s0 + $0xfc] sm:$0xf]
  %v214 = vld [vmem:[%s1] sm:$0xf]
  %v215 = vld [vmem:[%s1 + $0x4] sm:$0xf]
  %v216 = vld [vmem:[%s1 + $0x8] sm:$0xf]
  %v217 = vld [vmem:[%s1 + $0xc] sm:$0xf]
  %v218 = vld [vmem:[%s1 + $0x10] sm:$0xf]
  %v219 = vld [vmem:[%s1 + $0x14] sm:$0xf]
  %v220 = vld [vmem:[%s1 + $0x18] sm:$0xf]
  %v221 = vld [vmem:[%s1 + $0x1c] sm:$0xf]
  %v222 = vld [vmem:[%s1 + $0x20] sm:$0xf]
  %v223 = vld [vmem:[%s1 + $0x24] sm:$0xf]
  %v224 = vld [vmem:[%s1 + $0x28] sm:$0xf]
  %v225 = vld [vmem:[%s1 + $0x2c] sm:$0xf]
  %v226 = vld [vmem:[%s1 + $0x30] sm:$0xf]
  %v227 = vld [vmem:[%s1 + $0x34] sm:$0xf]
  %v228 = vld [vmem:[%s1 + $0x38] sm:$0xf]
  %v229 = vld [vmem:[%s1 + $0x3c] sm:$0xf]
  %v294 = vunpack.c.l.b16 %v150
  %v295 = vunpack.c.l.b16 %v151
  %v296 = vunpack.c.l.b16 %v152
  %v297 = vunpack.c.l.b16 %v153
  %v298 = vunpack.c.l.b16 %v154
  %v299 = vunpack.c.l.b16 %v155
  %v300 = vunpack.c.l.b16 %v156
  %v301 = vunpack.c.l.b16 %v157
  %v302 = vunpack.c.l.b16 %v158
  %v303 = vunpack.c.l.b16 %v159
  %v304 = vunpack.c.l.b16 %v160
  %v305 = vunpack.c.l.b16 %v161
  %v306 = vunpack.c.l.b16 %v162
  %v307 = vunpack.c.l.b16 %v163
  %v308 = vunpack.c.l.b16 %v164
  %v309 = vunpack.c.l.b16 %v165
  %v310 = vunpack.c.l.b16 %v166
  %v311 = vunpack.c.l.b16 %v167
  %v312 = vunpack.c.l.b16 %v168
  %v313 = vunpack.c.l.b16 %v169
  %v314 = vunpack.c.l.b16 %v170
  %v315 = vunpack.c.l.b16 %v171
  %v316 = vunpack.c.l.b16 %v172
  %v317 = vunpack.c.l.b16 %v173
  %v318 = vunpack.c.l.b16 %v174
  %v319 = vunpack.c.l.b16 %v175
  %v320 = vunpack.c.l.b16 %v176
  %v321 = vunpack.c.l.b16 %v177
  %v322 = vunpack.c.l.b16 %v178
  %v323 = vunpack.c.l.b16 %v179
  %v324 = vunpack.c.l.b16 %v180
  %v325 = vunpack.c.l.b16 %v181
  %v326 = vunpack.c.l.b16 %v182
  %v327 = vunpack.c.l.b16 %v183
  %v328 = vunpack.c.l.b16 %v184
  %v329 = vunpack.c.l.b16 %v185
  %v330 = vunpack.c.l.b16 %v186
  %v331 = vunpack.c.l.b16 %v187
  %v332 = vunpack.c.l.b16 %v188
  %v333 = vunpack.c.l.b16 %v189
  %v334 = vunpack.c.l.b16 %v190
  %v335 = vunpack.c.l.b16 %v191
  %v336 = vunpack.c.l.b16 %v192
  %v337 = vunpack.c.l.b16 %v193
  %v338 = vunpack.c.l.b16 %v194
  %v339 = vunpack.c.l.b16 %v195
  %v340 = vunpack.c.l.b16 %v196
  %v341 = vunpack.c.l.b16 %v197
  %v342 = vunpack.c.l.b16 %v198
  %v343 = vunpack.c.l.b16 %v199
  %v344 = vunpack.c.l.b16 %v200
  %v345 = vunpack.c.l.b16 %v201
  %v346 = vunpack.c.l.b16 %v202
  %v347 = vunpack.c.l.b16 %v203
  %v348 = vunpack.c.l.b16 %v204
  %v349 = vunpack.c.l.b16 %v205
  %v350 = vunpack.c.l.b16 %v206
  %v351 = vunpack.c.l.b16 %v207
  %v352 = vunpack.c.l.b16 %v208
  %v353 = vunpack.c.l.b16 %v209
  %v354 = vunpack.c.l.b16 %v210
  %v355 = vunpack.c.l.b16 %v211
  %v356 = vunpack.c.l.b16 %v212
  %v357 = vunpack.c.l.b16 %v213
  %v358 = vpack.c.b16 %v295, %v294
  %v359 = vpack.c.b16 %v297, %v296
  %v360 = vpack.c.b16 %v299, %v298
  %v361 = vpack.c.b16 %v301, %v300
  %v362 = vpack.c.b16 %v303, %v302
  %v363 = vpack.c.b16 %v305, %v304
  %v364 = vpack.c.b16 %v307, %v306
  %v365 = vpack.c.b16 %v309, %v308
  %v366 = vpack.c.b16 %v311, %v310
  %v367 = vpack.c.b16 %v313, %v312
  %v368 = vpack.c.b16 %v315, %v314
  %v369 = vpack.c.b16 %v317, %v316
  %v370 = vpack.c.b16 %v319, %v318
  %v371 = vpack.c.b16 %v321, %v320
  %v372 = vpack.c.b16 %v323, %v322
  %v373 = vpack.c.b16 %v325, %v324
  %v374 = vpack.c.b16 %v327, %v326
  %v375 = vpack.c.b16 %v329, %v328
  %v376 = vpack.c.b16 %v331, %v330
  %v377 = vpack.c.b16 %v333, %v332
  %v378 = vpack.c.b16 %v335, %v334
  %v379 = vpack.c.b16 %v337, %v336
  %v380 = vpack.c.b16 %v339, %v338
  %v381 = vpack.c.b16 %v341, %v340
  %v382 = vpack.c.b16 %v343, %v342
  %v383 = vpack.c.b16 %v345, %v344
  %v384 = vpack.c.b16 %v347, %v346
  %v385 = vpack.c.b16 %v349, %v348
  %v386 = vpack.c.b16 %v351, %v350
  %v387 = vpack.c.b16 %v353, %v352
  %v388 = vpack.c.b16 %v355, %v354
  %v389 = vpack.c.b16 %v357, %v356
  %v438 = vunpack.c.l.b16 %v214
  %v439 = vunpack.c.l.b16 %v215
  %v440 = vunpack.c.l.b16 %v216
  %v441 = vunpack.c.l.b16 %v217
  %v442 = vunpack.c.l.b16 %v218
  %v443 = vunpack.c.l.b16 %v219
  %v444 = vunpack.c.l.b16 %v220
  %v445 = vunpack.c.l.b16 %v221
  %v446 = vunpack.c.l.b16 %v222
  %v447 = vunpack.c.l.b16 %v223
  %v448 = vunpack.c.l.b16 %v224
  %v449 = vunpack.c.l.b16 %v225
  %v450 = vunpack.c.l.b16 %v226
  %v451 = vunpack.c.l.b16 %v227
  %v452 = vunpack.c.l.b16 %v228
  %v453 = vunpack.c.l.b16 %v229
  %v454 = vpack.c.b16 %v439, %v438
  %v455 = vpack.c.b16 %v441, %v440
  %v456 = vpack.c.b16 %v443, %v442
  %v457 = vpack.c.b16 %v445, %v444
  %v458 = vpack.c.b16 %v447, %v446
  %v459 = vpack.c.b16 %v449, %v448
  %v460 = vpack.c.b16 %v451, %v450
  %v461 = vpack.c.b16 %v453, %v452
  %470 = vmatprep.subr.bf16.mxu0 0
  %471 = vmatpush1.bf16.msra.mxu0 %v454
  %472 = vmatprep.subr.bf16.mxu0 0
  %473 = vmatpush1.bf16.msra.mxu0 %v455
  %474 = vmatprep.subr.bf16.mxu0 0
  %475 = vmatpush1.bf16.msra.mxu0 %v456
  %476 = vmatprep.subr.bf16.mxu0 0
  %477 = vmatpush1.bf16.msra.mxu0 %v457
  %478 = vmatprep.subr.bf16.mxu0 0
  %479 = vmatpush1.bf16.msra.mxu0 %v458
  %480 = vmatprep.subr.bf16.mxu0 0
  %481 = vmatpush1.bf16.msra.mxu0 %v459
  %482 = vmatprep.subr.bf16.mxu0 0
  %483 = vmatpush1.bf16.msra.mxu0 %v460
  %484 = vmatprep.subr.bf16.mxu0 0
  %485 = vmatpush1.bf16.msra.mxu0 %v461
  %486 = vmatprep.subr.bf16.mxu0 0
  %487 = vmatpush1.bf16.msra.mxu0 0
  %488 = vmatprep.subr.bf16.mxu0 0
  %489 = vmatpush1.bf16.msra.mxu0 0
  %490 = vmatprep.subr.bf16.mxu0 0
  %491 = vmatpush1.bf16.msra.mxu0 0
  %492 = vmatprep.subr.bf16.mxu0 0
  %493 = vmatpush1.bf16.msra.mxu0 0
  %494 = vmatprep.subr.bf16.mxu0 0
  %495 = vmatpush1.bf16.msra.mxu0 0
  %496 = vmatprep.subr.bf16.mxu0 0
  %497 = vmatpush1.bf16.msra.mxu0 0
  %498 = vmatprep.subr.bf16.mxu0 0
  %499 = vmatpush1.bf16.msra.mxu0 0
  %500 = vmatprep.subr.bf16.mxu0 0
  %501 = vmatpush1.bf16.msra.mxu0 0
  %502 = vmatprep.mubr.bf16.mxu0 0
  %503 = vmatmul.mubr.bf16.gmra.mrb[0].mxu0 %v358
  %v504 = vpop.f32.mrb[0].mxu0
  %v505 = vadd.f32 0.0, %v504
  %v506 = vpop.f32.mrb[0].mxu0
  %v507 = vpop.f32.mrb[0].mxu0
  %v508 = vadd.f32 0.0, %v507
  %v509 = vpop.f32.mrb[0].mxu0
  %510 = vmatprep.mubr.bf16.mxu0 0
  %511 = vmatmul.mubr.bf16.gmra.mrb[0].mxu0 %v359
  %v512 = vpop.f32.mrb[0].mxu0
  %v513 = vadd.f32 0.0, %v512
  %v514 = vpop.f32.mrb[0].mxu0
  %v515 = vpop.f32.mrb[0].mxu0
  %v516 = vadd.f32 0.0, %v515
  %v517 = vpop.f32.mrb[0].mxu0
  %518 = vmatprep.mubr.bf16.mxu0 0
  %519 = vmatmul.mubr.bf16.gmra.mrb[0].mxu0 %v360
  %v520 = vpop.f32.mrb[0].mxu0
  %v521 = vadd.f32 0.0, %v520
  %v522 = vpop.f32.mrb[0].mxu0
  %v523 = vpop.f32.mrb[0].mxu0
  %v524 = vadd.f32 0.0, %v523
  %v525 = vpop.f32.mrb[0].mxu0
  %526 = vmatprep.mubr.bf16.mxu0 0
  %527 = vmatmul.mubr.bf16.gmra.mrb[0].mxu0 %v361
  %v528 = vpop.f32.mrb[0].mxu0
  %v529 = vadd.f32 0.0, %v528
  %v530 = vpop.f32.mrb[0].mxu0
  %v531 = vpop.f32.mrb[0].mxu0
  %v532 = vadd.f32 0.0, %v531
  %v533 = vpop.f32.mrb[0].mxu0
  %534 = vmatprep.mubr.bf16.mxu0 0
  %535 = vmatmul.mubr.bf16.gmra.mrb[0].mxu0 %v362
  %v536 = vpop.f32.mrb[0].mxu0
  %v537 = vadd.f32 0.0, %v536
  %v538 = vpop.f32.mrb[0].mxu0
  %v539 = vpop.f32.mrb[0].mxu0
  %v540 = vadd.f32 0.0, %v539
  %v541 = vpop.f32.mrb[0].mxu0
  %542 = vmatprep.mubr.bf16.mxu0 0
  %543 = vmatmul.mubr.bf16.gmra.mrb[0].mxu0 %v363
  %v544 = vpop.f32.mrb[0].mxu0
  %v545 = vadd.f32 0.0, %v544
  %v546 = vpop.f32.mrb[0].mxu0
  %v547 = vpop.f32.mrb[0].mxu0
  %v548 = vadd.f32 0.0, %v547
  %v549 = vpop.f32.mrb[0].mxu0
  %550 = vmatprep.mubr.bf16.mxu0 0
  %551 = vmatmul.mubr.bf16.gmra.mrb[0].mxu0 %v364
  %v552 = vpop.f32.mrb[0].mxu0
  %v553 = vadd.f32 0.0, %v552
  %v554 = vpop.f32.mrb[0].mxu0
  %v555 = vpop.f32.mrb[0].mxu0
  %v556 = vadd.f32 0.0, %v555
  %v557 = vpop.f32.mrb[0].mxu0
  %558 = vmatprep.mubr.bf16.mxu0 0
  %559 = vmatmul.mubr.bf16.gmra.mrb[0].mxu0 %v365
  %v560 = vpop.f32.mrb[0].mxu0
  %v561 = vadd.f32 0.0, %v560
  %v562 = vpop.f32.mrb[0].mxu0
  %v563 = vpop.f32.mrb[0].mxu0
  %v564 = vadd.f32 0.0, %v563
  %v565 = vpop.f32.mrb[0].mxu0
  %566 = vmatprep.mubr.bf16.mxu0 0
  %567 = vmatmul.mubr.bf16.gmra.mrb[0].mxu0 %v366
  %v568 = vpop.f32.mrb[0].mxu0
  %v569 = vadd.f32 0.0, %v568
  %v570 = vpop.f32.mrb[0].mxu0
  %v571 = vpop.f32.mrb[0].mxu0
  %v572 = vadd.f32 0.0, %v571
  %v573 = vpop.f32.mrb[0].mxu0
  %574 = vmatprep.mubr.bf16.mxu0 0
  %575 = vmatmul.mubr.bf16.gmra.mrb[0].mxu0 %v367
  %v576 = vpop.f32.mrb[0].mxu0
  %v577 = vadd.f32 0.0, %v576
  %v578 = vpop.f32.mrb[0].mxu0
  %v579 = vpop.f32.mrb[0].mxu0
  %v580 = vadd.f32 0.0, %v579
  %v581 = vpop.f32.mrb[0].mxu0
  %582 = vmatprep.mubr.bf16.mxu0 0
  %583 = vmatmul.mubr.bf16.gmra.mrb[0].mxu0 %v368
  %v584 = vpop.f32.mrb[0].mxu0
  %v585 = vadd.f32 0.0, %v584
  %v586 = vpop.f32.mrb[0].mxu0
  %v587 = vpop.f32.mrb[0].mxu0
  %v588 = vadd.f32 0.0, %v587
  %v589 = vpop.f32.mrb[0].mxu0
  %590 = vmatprep.mubr.bf16.mxu0 0
  %591 = vmatmul.mubr.bf16.gmra.mrb[0].mxu0 %v369
  %v592 = vpop.f32.mrb[0].mxu0
  %v593 = vadd.f32 0.0, %v592
  %v594 = vpop.f32.mrb[0].mxu0
  %v595 = vpop.f32.mrb[0].mxu0
  %v596 = vadd.f32 0.0, %v595
  %v597 = vpop.f32.mrb[0].mxu0
  %598 = vmatprep.mubr.bf16.mxu0 0
  %599 = vmatmul.mubr.bf16.gmra.mrb[0].mxu0 %v370
  %v600 = vpop.f32.mrb[0].mxu0
  %v601 = vadd.f32 0.0, %v600
  %v602 = vpop.f32.mrb[0].mxu0
  %v603 = vpop.f32.mrb[0].mxu0
  %v604 = vadd.f32 0.0, %v603
  %v605 = vpop.f32.mrb[0].mxu0
  %606 = vmatprep.mubr.bf16.mxu0 0
  %607 = vmatmul.mubr.bf16.gmra.mrb[0].mxu0 %v371
  %v608 = vpop.f32.mrb[0].mxu0
  %v609 = vadd.f32 0.0, %v608
  %v610 = vpop.f32.mrb[0].mxu0
  %v611 = vpop.f32.mrb[0].mxu0
  %v612 = vadd.f32 0.0, %v611
  %v613 = vpop.f32.mrb[0].mxu0
  %614 = vmatprep.mubr.bf16.mxu0 0
  %615 = vmatmul.mubr.bf16.gmra.mrb[0].mxu0 %v372
  %v616 = vpop.f32.mrb[0].mxu0
  %v617 = vadd.f32 0.0, %v616
  %v618 = vpop.f32.mrb[0].mxu0
  %v619 = vpop.f32.mrb[0].mxu0
  %v620 = vadd.f32 0.0, %v619
  %v621 = vpop.f32.mrb[0].mxu0
  %622 = vmatprep.mubr.bf16.mxu0 0
  %623 = vmatmul.mubr.bf16.gmra.mrb[0].mxu0 %v373
  %v624 = vpop.f32.mrb[0].mxu0
  %v625 = vadd.f32 0.0, %v624
  %v626 = vpop.f32.mrb[0].mxu0
  %v627 = vpop.f32.mrb[0].mxu0
  %v628 = vadd.f32 0.0, %v627
  %v629 = vpop.f32.mrb[0].mxu0
  %630 = vmatprep.mubr.bf16.mxu0 0
  %631 = vmatmul.mubr.bf16.gmra.mrb[0].mxu0 %v374
  %v632 = vpop.f32.mrb[0].mxu0
  %v633 = vadd.f32 0.0, %v632
  %v634 = vpop.f32.mrb[0].mxu0
  %v635 = vpop.f32.mrb[0].mxu0
  %v636 = vadd.f32 0.0, %v635
  %v637 = vpop.f32.mrb[0].mxu0
  %638 = vmatprep.mubr.bf16.mxu0 0
  %639 = vmatmul.mubr.bf16.gmra.mrb[0].mxu0 %v375
  %v640 = vpop.f32.mrb[0].mxu0
  %v641 = vadd.f32 0.0, %v640
  %v642 = vpop.f32.mrb[0].mxu0
  %v643 = vpop.f32.mrb[0].mxu0
  %v644 = vadd.f32 0.0, %v643
  %v645 = vpop.f32.mrb[0].mxu0
  %646 = vmatprep.mubr.bf16.mxu0 0
  %647 = vmatmul.mubr.bf16.gmra.mrb[0].mxu0 %v376
  %v648 = vpop.f32.mrb[0].mxu0
  %v649 = vadd.f32 0.0, %v648
  %v650 = vpop.f32.mrb[0].mxu0
  %v651 = vpop.f32.mrb[0].mxu0
  %v652 = vadd.f32 0.0, %v651
  %v653 = vpop.f32.mrb[0].mxu0
  %654 = vmatprep.mubr.bf16.mxu0 0
  %655 = vmatmul.mubr.bf16.gmra.mrb[0].mxu0 %v377
  %v656 = vpop.f32.mrb[0].mxu0
  %v657 = vadd.f32 0.0, %v656
  %v658 = vpop.f32.mrb[0].mxu0
  %v659 = vpop.f32.mrb[0].mxu0
  %v660 = vadd.f32 0.0, %v659
  %v661 = vpop.f32.mrb[0].mxu0
  %662 = vmatprep.mubr.bf16.mxu0 0
  %663 = vmatmul.mubr.bf16.gmra.mrb[0].mxu0 %v378
  %v664 = vpop.f32.mrb[0].mxu0
  %v665 = vadd.f32 0.0, %v664
  %v666 = vpop.f32.mrb[0].mxu0
  %v667 = vpop.f32.mrb[0].mxu0
  %v668 = vadd.f32 0.0, %v667
  %v669 = vpop.f32.mrb[0].mxu0
  %670 = vmatprep.mubr.bf16.mxu0 0
  %671 = vmatmul.mubr.bf16.gmra.mrb[0].mxu0 %v379
  %v672 = vpop.f32.mrb[0].mxu0
  %v673 = vadd.f32 0.0, %v672
  %v674 = vpop.f32.mrb[0].mxu0
  %v675 = vpop.f32.mrb[0].mxu0
  %v676 = vadd.f32 0.0, %v675
  %v677 = vpop.f32.mrb[0].mxu0
  %678 = vmatprep.mubr.bf16.mxu0 0
  %679 = vmatmul.mubr.bf16.gmra.mrb[0].mxu0 %v380
  %v680 = vpop.f32.mrb[0].mxu0
  %v681 = vadd.f32 0.0, %v680
  %v682 = vpop.f32.mrb[0].mxu0
  %v683 = vpop.f32.mrb[0].mxu0
  %v684 = vadd.f32 0.0, %v683
  %v685 = vpop.f32.mrb[0].mxu0
  %686 = vmatprep.mubr.bf16.mxu0 0
  %687 = vmatmul.mubr.bf16.gmra.mrb[0].mxu0 %v381
  %v688 = vpop.f32.mrb[0].mxu0
  %v689 = vadd.f32 0.0, %v688
  %v690 = vpop.f32.mrb[0].mxu0
  %v691 = vpop.f32.mrb[0].mxu0
  %v692 = vadd.f32 0.0, %v691
  %v693 = vpop.f32.mrb[0].mxu0
  %694 = vmatprep.mubr.bf16.mxu0 0
  %695 = vmatmul.mubr.bf16.gmra.mrb[0].mxu0 %v382
  %v696 = vpop.f32.mrb[0].mxu0
  %v697 = vadd.f32 0.0, %v696
  %v698 = vpop.f32.mrb[0].mxu0
  %v699 = vpop.f32.mrb[0].mxu0
  %v700 = vadd.f32 0.0, %v699
  %v701 = vpop.f32.mrb[0].mxu0
  %702 = vmatprep.mubr.bf16.mxu0 0
  %703 = vmatmul.mubr.bf16.gmra.mrb[0].mxu0 %v383
  %v704 = vpop.f32.mrb[0].mxu0
  %v705 = vadd.f32 0.0, %v704
  %v706 = vpop.f32.mrb[0].mxu0
  %v707 = vpop.f32.mrb[0].mxu0
  %v708 = vadd.f32 0.0, %v707
  %v709 = vpop.f32.mrb[0].mxu0
  %710 = vmatprep.mubr.bf16.mxu0 0
  %711 = vmatmul.mubr.bf16.gmra.mrb[0].mxu0 %v384
  %v712 = vpop.f32.mrb[0].mxu0
  %v713 = vadd.f32 0.0, %v712
  %v714 = vpop.f32.mrb[0].mxu0
  %v715 = vpop.f32.mrb[0].mxu0
  %v716 = vadd.f32 0.0, %v715
  %v717 = vpop.f32.mrb[0].mxu0
  %718 = vmatprep.mubr.bf16.mxu0 0
  %719 = vmatmul.mubr.bf16.gmra.mrb[0].mxu0 %v385
  %v720 = vpop.f32.mrb[0].mxu0
  %v721 = vadd.f32 0.0, %v720
  %v722 = vpop.f32.mrb[0].mxu0
  %v723 = vpop.f32.mrb[0].mxu0
  %v724 = vadd.f32 0.0, %v723
  %v725 = vpop.f32.mrb[0].mxu0
  %726 = vmatprep.mubr.bf16.mxu0 0
  %727 = vmatmul.mubr.bf16.gmra.mrb[0].mxu0 %v386
  %v728 = vpop.f32.mrb[0].mxu0
  %v729 = vadd.f32 0.0, %v728
  %v730 = vpop.f32.mrb[0].mxu0
  %v731 = vpop.f32.mrb[0].mxu0
  %v732 = vadd.f32 0.0, %v731
  %v733 = vpop.f32.mrb[0].mxu0
  %734 = vmatprep.mubr.bf16.mxu0 0
  %735 = vmatmul.mubr.bf16.gmra.mrb[0].mxu0 %v387
  %v736 = vpop.f32.mrb[0].mxu0
  %v737 = vadd.f32 0.0, %v736
  %v738 = vpop.f32.mrb[0].mxu0
  %v739 = vpop.f32.mrb[0].mxu0
  %v740 = vadd.f32 0.0, %v739
  %v741 = vpop.f32.mrb[0].mxu0
  %742 = vmatprep.mubr.bf16.mxu0 0
  %743 = vmatmul.mubr.bf16.gmra.mrb[0].mxu0 %v388
  %v744 = vpop.f32.mrb[0].mxu0
  %v745 = vadd.f32 0.0, %v744
  %v746 = vpop.f32.mrb[0].mxu0
  %v747 = vpop.f32.mrb[0].mxu0
  %v748 = vadd.f32 0.0, %v747
  %v749 = vpop.f32.mrb[0].mxu0
  %750 = vmatprep.mubr.bf16.mxu0 0
  %751 = vmatmul.mubr.bf16.gmra.mrb[0].mxu0 %v389
  %v752 = vpop.f32.mrb[0].mxu0
  %v753 = vadd.f32 0.0, %v752
  %v754 = vpop.f32.mrb[0].mxu0
  %v755 = vpop.f32.mrb[0].mxu0
  %v756 = vadd.f32 0.0, %v755
  %v757 = vpop.f32.mrb[0].mxu0
  %758 = vdwg.mxu0
  %v759 = vadd.f32 %v86, %v505
  %v760 = vadd.f32 %v87, %v508
  %v761 = vadd.f32 %v88, %v513
  %v762 = vadd.f32 %v89, %v516
  %v763 = vadd.f32 %v90, %v521
  %v764 = vadd.f32 %v91, %v524
  %v765 = vadd.f32 %v92, %v529
  %v766 = vadd.f32 %v93, %v532
  %v767 = vadd.f32 %v94, %v537
  %v768 = vadd.f32 %v95, %v540
  %v769 = vadd.f32 %v96, %v545
  %v770 = vadd.f32 %v97, %v548
  %v771 = vadd.f32 %v98, %v553
  %v772 = vadd.f32 %v99, %v556
  %v773 = vadd.f32 %v100, %v561
  %v774 = vadd.f32 %v101, %v564
  %v775 = vadd.f32 %v102, %v569
  %v776 = vadd.f32 %v103, %v572
  %v777 = vadd.f32 %v104, %v577
  %v778 = vadd.f32 %v105, %v580
  %v779 = vadd.f32 %v106, %v585
  %v780 = vadd.f32 %v107, %v588
  %v781 = vadd.f32 %v108, %v593
  %v782 = vadd.f32 %v109, %v596
  %v783 = vadd.f32 %v110, %v601
  %v784 = vadd.f32 %v111, %v604
  %v785 = vadd.f32 %v112, %v609
  %v786 = vadd.f32 %v113, %v612
  %v787 = vadd.f32 %v114, %v617
  %v788 = vadd.f32 %v115, %v620
  %v789 = vadd.f32 %v116, %v625
  %v790 = vadd.f32 %v117, %v628
  %v791 = vadd.f32 %v118, %v633
  %v792 = vadd.f32 %v119, %v636
  %v793 = vadd.f32 %v120, %v641
  %v794 = vadd.f32 %v121, %v644
  %v795 = vadd.f32 %v122, %v649
  %v796 = vadd.f32 %v123, %v652
  %v797 = vadd.f32 %v124, %v657
  %v798 = vadd.f32 %v125, %v660
  %v799 = vadd.f32 %v126, %v665
  %v800 = vadd.f32 %v127, %v668
  %v801 = vadd.f32 %v128, %v673
  %v802 = vadd.f32 %v129, %v676
  %v803 = vadd.f32 %v130, %v681
  %v804 = vadd.f32 %v131, %v684
  %v805 = vadd.f32 %v132, %v689
  %v806 = vadd.f32 %v133, %v692
  %v807 = vadd.f32 %v134, %v697
  %v808 = vadd.f32 %v135, %v700
  %v809 = vadd.f32 %v136, %v705
  %v810 = vadd.f32 %v137, %v708
  %v811 = vadd.f32 %v138, %v713
  %v812 = vadd.f32 %v139, %v716
  %v813 = vadd.f32 %v140, %v721
  %v814 = vadd.f32 %v141, %v724
  %v815 = vadd.f32 %v142, %v729
  %v816 = vadd.f32 %v143, %v732
  %v817 = vadd.f32 %v144, %v737
  %v818 = vadd.f32 %v145, %v740
  %v819 = vadd.f32 %v146, %v745
  %v820 = vadd.f32 %v147, %v748
  %v821 = vadd.f32 %v148, %v753
  %v822 = vadd.f32 %v149, %v756
  %823 = vst [vmem:[#allocation2] sm:$0xff] %v759
  %824 = vst [vmem:[#allocation2 + $0x8] sm:$0xff] %v760
  %825 = vst [vmem:[#allocation2 + $0x10] sm:$0xff] %v761
  %826 = vst [vmem:[#allocation2 + $0x18] sm:$0xff] %v762
  %827 = vst [vmem:[#allocation2 + $0x20] sm:$0xff] %v763
  %828 = vst [vmem:[#allocation2 + $0x28] sm:$0xff] %v764
  %829 = vst [vmem:[#allocation2 + $0x30] sm:$0xff] %v765
  %830 = vst [vmem:[#allocation2 + $0x38] sm:$0xff] %v766
  %831 = vst [vmem:[#allocation2 + $0x40] sm:$0xff] %v767
  %832 = vst [vmem:[#allocation2 + $0x48] sm:$0xff] %v768
  %833 = vst [vmem:[#allocation2 + $0x50] sm:$0xff] %v769
  %834 = vst [vmem:[#allocation2 + $0x58] sm:$0xff] %v770
  %835 = vst [vmem:[#allocation2 + $0x60] sm:$0xff] %v771
  %836 = vst [vmem:[#allocation2 + $0x68] sm:$0xff] %v772
  %837 = vst [vmem:[#allocation2 + $0x70] sm:$0xff] %v773
  %838 = vst [vmem:[#allocation2 + $0x78] sm:$0xff] %v774
  %839 = vst [vmem:[#allocation2 + $0x80] sm:$0xff] %v775
  %840 = vst [vmem:[#allocation2 + $0x88] sm:$0xff] %v776
  %841 = vst [vmem:[#allocation2 + $0x90] sm:$0xff] %v777
  %842 = vst [vmem:[#allocation2 + $0x98] sm:$0xff] %v778
  %843 = vst [vmem:[#allocation2 + $0xa0] sm:$0xff] %v779
  %844 = vst [vmem:[#allocation2 + $0xa8] sm:$0xff] %v780
  %845 = vst [vmem:[#allocation2 + $0xb0] sm:$0xff] %v781
  %846 = vst [vmem:[#allocation2 + $0xb8] sm:$0xff] %v782
  %847 = vst [vmem:[#allocation2 + $0xc0] sm:$0xff] %v783
  %848 = vst [vmem:[#allocation2 + $0xc8] sm:$0xff] %v784
  %849 = vst [vmem:[#allocation2 + $0xd0] sm:$0xff] %v785
  %850 = vst [vmem:[#allocation2 + $0xd8] sm:$0xff] %v786
  %851 = vst [vmem:[#allocation2 + $0xe0] sm:$0xff] %v787
  %852 = vst [vmem:[#allocation2 + $0xe8] sm:$0xff] %v788
  %853 = vst [vmem:[#allocation2 + $0xf0] sm:$0xff] %v789
  %854 = vst [vmem:[#allocation2 + $0xf8] sm:$0xff] %v790
  %855 = vst [vmem:[#allocation2 + $0x100] sm:$0xff] %v791
  %856 = vst [vmem:[#allocation2 + $0x108] sm:$0xff] %v792
  %857 = vst [vmem:[#allocation2 + $0x110] sm:$0xff] %v793
  %858 = vst [vmem:[#allocation2 + $0x118] sm:$0xff] %v794
  %859 = vst [vmem:[#allocation2 + $0x120] sm:$0xff] %v795
  %860 = vst [vmem:[#allocation2 + $0x128] sm:$0xff] %v796
  %861 = vst [vmem:[#allocation2 + $0x130] sm:$0xff] %v797
  %862 = vst [vmem:[#allocation2 + $0x138] sm:$0xff] %v798
  %863 = vst [vmem:[#allocation2 + $0x140] sm:$0xff] %v799
  %864 = vst [vmem:[#allocation2 + $0x148] sm:$0xff] %v800
  %865 = vst [vmem:[#allocation2 + $0x150] sm:$0xff] %v801
  %866 = vst [vmem:[#allocation2 + $0x158] sm:$0xff] %v802
  %867 = vst [vmem:[#allocation2 + $0x160] sm:$0xff] %v803
  %868 = vst [vmem:[#allocation2 + $0x168] sm:$0xff] %v804
  %869 = vst [vmem:[#allocation2 + $0x170] sm:$0xff] %v805
  %870 = vst [vmem:[#allocation2 + $0x178] sm:$0xff] %v806
  %871 = vst [vmem:[#allocation2 + $0x180] sm:$0xff] %v807
  %872 = vst [vmem:[#allocation2 + $0x188] sm:$0xff] %v808
  %873 = vst [vmem:[#allocation2 + $0x190] sm:$0xff] %v809
  %874 = vst [vmem:[#allocation2 + $0x198] sm:$0xff] %v810
  %875 = vst [vmem:[#allocation2 + $0x1a0] sm:$0xff] %v811
  %876 = vst [vmem:[#allocation2 + $0x1a8] sm:$0xff] %v812
  %877 = vst [vmem:[#allocation2 + $0x1b0] sm:$0xff] %v813
  %878 = vst [vmem:[#allocation2 + $0x1b8] sm:$0xff] %v814
  %879 = vst [vmem:[#allocation2 + $0x1c0] sm:$0xff] %v815
  %880 = vst [vmem:[#allocation2 + $0x1c8] sm:$0xff] %v816
  %881 = vst [vmem:[#allocation2 + $0x1d0] sm:$0xff] %v817
  %882 = vst [vmem:[#allocation2 + $0x1d8] sm:$0xff] %v818
  %883 = vst [vmem:[#allocation2 + $0x1e0] sm:$0xff] %v819
  %884 = vst [vmem:[#allocation2 + $0x1e8] sm:$0xff] %v820
  %885 = vst [vmem:[#allocation2 + $0x1f0] sm:$0xff] %v821
  %886 = vst [vmem:[#allocation2 + $0x1f8] sm:$0xff] %v822
  // Predicated region
  $region22: #{_forward.4} parent=0 // pred_check
    %p887 = pneg %p18
  $region23: #{_forward.4} parent=0 // pred_check_branch
    %889 = sbr.rel (%p887) target = $region25
  $region24: #{_forward.4} parent=0 // pred_region
    %v890 = vld [vmem:[#allocation2] sm:$0xff]
    %v891 = vld [vmem:[#allocation2 + $0x8] sm:$0xff]
    %v892 = vld [vmem:[#allocation2 + $0x10] sm:$0xff]
    %v893 = vld [vmem:[#allocation2 + $0x18] sm:$0xff]
    %v894 = vld [vmem:[#allocation2 + $0x20] sm:$0xff]
    %v895 = vld [vmem:[#allocation2 + $0x28] sm:$0xff]
    %v896 = vld [vmem:[#allocation2 + $0x30] sm:$0xff]
    %v897 = vld [vmem:[#allocation2 + $0x38] sm:$0xff]
    %v898 = vld [vmem:[#allocation2 + $0x40] sm:$0xff]
    %v899 = vld [vmem:[#allocation2 + $0x48] sm:$0xff]
    %v900 = vld [vmem:[#allocation2 + $0x50] sm:$0xff]
    %v901 = vld [vmem:[#allocation2 + $0x58] sm:$0xff]
    %v902 = vld [vmem:[#allocation2 + $0x60] sm:$0xff]
    %v903 = vld [vmem:[#allocation2 + $0x68] sm:$0xff]
    %v904 = vld [vmem:[#allocation2 + $0x70] sm:$0xff]
    %v905 = vld [vmem:[#allocation2 + $0x78] sm:$0xff]
    %v906 = vld [vmem:[#allocation2 + $0x80] sm:$0xff]
    %v907 = vld [vmem:[#allocation2 + $0x88] sm:$0xff]
    %v908 = vld [vmem:[#allocation2 + $0x90] sm:$0xff]
    %v909 = vld [vmem:[#allocation2 + $0x98] sm:$0xff]
    %v910 = vld [vmem:[#allocation2 + $0xa0] sm:$0xff]
    %v911 = vld [vmem:[#allocation2 + $0xa8] sm:$0xff]
    %v912 = vld [vmem:[#allocation2 + $0xb0] sm:$0xff]
    %v913 = vld [vmem:[#allocation2 + $0xb8] sm:$0xff]
    %v914 = vld [vmem:[#allocation2 + $0xc0] sm:$0xff]
    %v915 = vld [vmem:[#allocation2 + $0xc8] sm:$0xff]
    %v916 = vld [vmem:[#allocation2 + $0xd0] sm:$0xff]
    %v917 = vld [vmem:[#allocation2 + $0xd8] sm:$0xff]
    %v918 = vld [vmem:[#allocation2 + $0xe0] sm:$0xff]
    %v919 = vld [vmem:[#allocation2 + $0xe8] sm:$0xff]
    %v920 = vld [vmem:[#allocation2 + $0xf0] sm:$0xff]
    %v921 = vld [vmem:[#allocation2 + $0xf8] sm:$0xff]
    %v922 = vld [vmem:[#allocation2 + $0x100] sm:$0xff]
    %v923 = vld [vmem:[#allocation2 + $0x108] sm:$0xff]
    %v924 = vld [vmem:[#allocation2 + $0x110] sm:$0xff]
    %v925 = vld [vmem:[#allocation2 + $0x118] sm:$0xff]
    %v926 = vld [vmem:[#allocation2 + $0x120] sm:$0xff]
    %v927 = vld [vmem:[#allocation2 + $0x128] sm:$0xff]
    %v928 = vld [vmem:[#allocation2 + $0x130] sm:$0xff]
    %v929 = vld [vmem:[#allocation2 + $0x138] sm:$0xff]
    %v930 = vld [vmem:[#allocation2 + $0x140] sm:$0xff]
    %v931 = vld [vmem:[#allocation2 + $0x148] sm:$0xff]
    %v932 = vld [vmem:[#allocation2 + $0x150] sm:$0xff]
    %v933 = vld [vmem:[#allocation2 + $0x158] sm:$0xff]
    %v934 = vld [vmem:[#allocation2 + $0x160] sm:$0xff]
    %v935 = vld [vmem:[#allocation2 + $0x168] sm:$0xff]
    %v936 = vld [vmem:[#allocation2 + $0x170] sm:$0xff]
    %v937 = vld [vmem:[#allocation2 + $0x178] sm:$0xff]
    %v938 = vld [vmem:[#allocation2 + $0x180] sm:$0xff]
    %v939 = vld [vmem:[#allocation2 + $0x188] sm:$0xff]
    %v940 = vld [vmem:[#allocation2 + $0x190] sm:$0xff]
    %v941 = vld [vmem:[#allocation2 + $0x198] sm:$0xff]
    %v942 = vld [vmem:[#allocation2 + $0x1a0] sm:$0xff]
    %v943 = vld [vmem:[#allocation2 + $0x1a8] sm:$0xff]
    %v944 = vld [vmem:[#allocation2 + $0x1b0] sm:$0xff]
    %v945 = vld [vmem:[#allocation2 + $0x1b8] sm:$0xff]
    %v946 = vld [vmem:[#allocation2 + $0x1c0] sm:$0xff]
    %v947 = vld [vmem:[#allocation2 + $0x1c8] sm:$0xff]
    %v948 = vld [vmem:[#allocation2 + $0x1d0] sm:$0xff]
    %v949 = vld [vmem:[#allocation2 + $0x1d8] sm:$0xff]
    %v950 = vld [vmem:[#allocation2 + $0x1e0] sm:$0xff]
    %v951 = vld [vmem:[#allocation2 + $0x1e8] sm:$0xff]
    %v952 = vld [vmem:[#allocation2 + $0x1f0] sm:$0xff]
    %v953 = vld [vmem:[#allocation2 + $0x1f8] sm:$0xff]
    %v954 = vld [vmem:[%s2] sm:$0x1]
    %v956 = vlaneseq
    %v957 = vshrl.u32 %v956, 7
    %v958 = vsub.s32 0, %v957
    %v959 = vrot.slane %v954, %v958
    %v961 = vmul.f32 %v890, %v959
    %v962 = vmul.f32 %v891, %v959
    %v963 = vmul.f32 %v892, %v959
    %v964 = vmul.f32 %v893, %v959
    %v965 = vmul.f32 %v894, %v959
    %v966 = vmul.f32 %v895, %v959
    %v967 = vmul.f32 %v896, %v959
    %v968 = vmul.f32 %v897, %v959
    %v969 = vmul.f32 %v898, %v959
    %v970 = vmul.f32 %v899, %v959
    %v971 = vmul.f32 %v900, %v959
    %v972 = vmul.f32 %v901, %v959
    %v973 = vmul.f32 %v902, %v959
    %v974 = vmul.f32 %v903, %v959
    %v975 = vmul.f32 %v904, %v959
    %v976 = vmul.f32 %v905, %v959
    %v977 = vmul.f32 %v906, %v959
    %v978 = vmul.f32 %v907, %v959
    %v979 = vmul.f32 %v908, %v959
    %v980 = vmul.f32 %v909, %v959
    %v981 = vmul.f32 %v910, %v959
    %v982 = vmul.f32 %v911, %v959
    %v983 = vmul.f32 %v912, %v959
    %v984 = vmul.f32 %v913, %v959
    %v985 = vmul.f32 %v914, %v959
    %v986 = vmul.f32 %v915, %v959
    %v987 = vmul.f32 %v916, %v959
    %v988 = vmul.f32 %v917, %v959
    %v989 = vmul.f32 %v918, %v959
    %v990 = vmul.f32 %v919, %v959
    %v991 = vmul.f32 %v920, %v959
    %v992 = vmul.f32 %v921, %v959
    %v993 = vmul.f32 %v922, %v959
    %v994 = vmul.f32 %v923, %v959
    %v995 = vmul.f32 %v924, %v959
    %v996 = vmul.f32 %v925, %v959
    %v997 = vmul.f32 %v926, %v959
    %v998 = vmul.f32 %v927, %v959
    %v999 = vmul.f32 %v928, %v959
    %v1000 = vmul.f32 %v929, %v959
    %v1001 = vmul.f32 %v930, %v959
    %v1002 = vmul.f32 %v931, %v959
    %v1003 = vmul.f32 %v932, %v959
    %v1004 = vmul.f32 %v933, %v959
    %v1005 = vmul.f32 %v934, %v959
    %v1006 = vmul.f32 %v935, %v959
    %v1007 = vmul.f32 %v936, %v959
    %v1008 = vmul.f32 %v937, %v959
    %v1009 = vmul.f32 %v938, %v959
    %v1010 = vmul.f32 %v939, %v959
    %v1011 = vmul.f32 %v940, %v959
    %v1012 = vmul.f32 %v941, %v959
    %v1013 = vmul.f32 %v942, %v959
    %v1014 = vmul.f32 %v943, %v959
    %v1015 = vmul.f32 %v944, %v959
    %v1016 = vmul.f32 %v945, %v959
    %v1017 = vmul.f32 %v946, %v959
    %v1018 = vmul.f32 %v947, %v959
    %v1019 = vmul.f32 %v948, %v959
    %v1020 = vmul.f32 %v949, %v959
    %v1021 = vmul.f32 %v950, %v959
    %v1022 = vmul.f32 %v951, %v959
    %v1023 = vmul.f32 %v952, %v959
    %v1024 = vmul.f32 %v953, %v959
    %v1025 = vld [vmem:[%s3] sm:$0x1]
    %v1027 = vlaneseq
    %v1028 = vshrl.u32 %v1027, 7
    %v1029 = vsub.s32 0, %v1028
    %v1030 = vrot.slane %v1025, %v1029
    %v1032 = vadd.f32 %v961, %v1030
    %v1033 = vadd.f32 %v962, %v1030
    %v1034 = vadd.f32 %v963, %v1030
    %v1035 = vadd.f32 %v964, %v1030
    %v1036 = vadd.f32 %v965, %v1030
    %v1037 = vadd.f32 %v966, %v1030
    %v1038 = vadd.f32 %v967, %v1030
    %v1039 = vadd.f32 %v968, %v1030
    %v1040 = vadd.f32 %v969, %v1030
    %v1041 = vadd.f32 %v970, %v1030
    %v1042 = vadd.f32 %v971, %v1030
    %v1043 = vadd.f32 %v972, %v1030
    %v1044 = vadd.f32 %v973, %v1030
    %v1045 = vadd.f32 %v974, %v1030
    %v1046 = vadd.f32 %v975, %v1030
    %v1047 = vadd.f32 %v976, %v1030
    %v1048 = vadd.f32 %v977, %v1030
    %v1049 = vadd.f32 %v978, %v1030
    %v1050 = vadd.f32 %v979, %v1030
    %v1051 = vadd.f32 %v980, %v1030
    %v1052 = vadd.f32 %v981, %v1030
    %v1053 = vadd.f32 %v982, %v1030
    %v1054 = vadd.f32 %v983, %v1030
    %v1055 = vadd.f32 %v984, %v1030
    %v1056 = vadd.f32 %v985, %v1030
    %v1057 = vadd.f32 %v986, %v1030
    %v1058 = vadd.f32 %v987, %v1030
    %v1059 = vadd.f32 %v988, %v1030
    %v1060 = vadd.f32 %v989, %v1030
    %v1061 = vadd.f32 %v990, %v1030
    %v1062 = vadd.f32 %v991, %v1030
    %v1063 = vadd.f32 %v992, %v1030
    %v1064 = vadd.f32 %v993, %v1030
    %v1065 = vadd.f32 %v994, %v1030
    %v1066 = vadd.f32 %v995, %v1030
    %v1067 = vadd.f32 %v996, %v1030
    %v1068 = vadd.f32 %v997, %v1030
    %v1069 = vadd.f32 %v998, %v1030
    %v1070 = vadd.f32 %v999, %v1030
    %v1071 = vadd.f32 %v1000, %v1030
    %v1072 = vadd.f32 %v1001, %v1030
    %v1073 = vadd.f32 %v1002, %v1030
    %v1074 = vadd.f32 %v1003, %v1030
    %v1075 = vadd.f32 %v1004, %v1030
    %v1076 = vadd.f32 %v1005, %v1030
    %v1077 = vadd.f32 %v1006, %v1030
    %v1078 = vadd.f32 %v1007, %v1030
    %v1079 = vadd.f32 %v1008, %v1030
    %v1080 = vadd.f32 %v1009, %v1030
    %v1081 = vadd.f32 %v1010, %v1030
    %v1082 = vadd.f32 %v1011, %v1030
    %v1083 = vadd.f32 %v1012, %v1030
    %v1084 = vadd.f32 %v1013, %v1030
    %v1085 = vadd.f32 %v1014, %v1030
    %v1086 = vadd.f32 %v1015, %v1030
    %v1087 = vadd.f32 %v1016, %v1030
    %v1088 = vadd.f32 %v1017, %v1030
    %v1089 = vadd.f32 %v1018, %v1030
    %v1090 = vadd.f32 %v1019, %v1030
    %v1091 = vadd.f32 %v1020, %v1030
    %v1092 = vadd.f32 %v1021, %v1030
    %v1093 = vadd.f32 %v1022, %v1030
    %v1094 = vadd.f32 %v1023, %v1030
    %v1095 = vadd.f32 %v1024, %v1030
    %v1096 = vmax.f32 %v1032, 0.0
    %v1097 = vmax.f32 %v1033, 0.0
    %v1098 = vmax.f32 %v1034, 0.0
    %v1099 = vmax.f32 %v1035, 0.0
    %v1100 = vmax.f32 %v1036, 0.0
    %v1101 = vmax.f32 %v1037, 0.0
    %v1102 = vmax.f32 %v1038, 0.0
    %v1103 = vmax.f32 %v1039, 0.0
    %v1104 = vmax.f32 %v1040, 0.0
    %v1105 = vmax.f32 %v1041, 0.0
    %v1106 = vmax.f32 %v1042, 0.0
    %v1107 = vmax.f32 %v1043, 0.0
    %v1108 = vmax.f32 %v1044, 0.0
    %v1109 = vmax.f32 %v1045, 0.0
    %v1110 = vmax.f32 %v1046, 0.0
    %v1111 = vmax.f32 %v1047, 0.0
    %v1112 = vmax.f32 %v1048, 0.0
    %v1113 = vmax.f32 %v1049, 0.0
    %v1114 = vmax.f32 %v1050, 0.0
    %v1115 = vmax.f32 %v1051, 0.0
    %v1116 = vmax.f32 %v1052, 0.0
    %v1117 = vmax.f32 %v1053, 0.0
    %v1118 = vmax.f32 %v1054, 0.0
    %v1119 = vmax.f32 %v1055, 0.0
    %v1120 = vmax.f32 %v1056, 0.0
    %v1121 = vmax.f32 %v1057, 0.0
    %v1122 = vmax.f32 %v1058, 0.0
    %v1123 = vmax.f32 %v1059, 0.0
    %v1124 = vmax.f32 %v1060, 0.0
    %v1125 = vmax.f32 %v1061, 0.0
    %v1126 = vmax.f32 %v1062, 0.0
    %v1127 = vmax.f32 %v1063, 0.0
    %v1128 = vmax.f32 %v1064, 0.0
    %v1129 = vmax.f32 %v1065, 0.0
    %v1130 = vmax.f32 %v1066, 0.0
    %v1131 = vmax.f32 %v1067, 0.0
    %v1132 = vmax.f32 %v1068, 0.0
    %v1133 = vmax.f32 %v1069, 0.0
    %v1134 = vmax.f32 %v1070, 0.0
    %v1135 = vmax.f32 %v1071, 0.0
    %v1136 = vmax.f32 %v1072, 0.0
    %v1137 = vmax.f32 %v1073, 0.0
    %v1138 = vmax.f32 %v1074, 0.0
    %v1139 = vmax.f32 %v1075, 0.0
    %v1140 = vmax.f32 %v1076, 0.0
    %v1141 = vmax.f32 %v1077, 0.0
    %v1142 = vmax.f32 %v1078, 0.0
    %v1143 = vmax.f32 %v1079, 0.0
    %v1144 = vmax.f32 %v1080, 0.0
    %v1145 = vmax.f32 %v1081, 0.0
    %v1146 = vmax.f32 %v1082, 0.0
    %v1147 = vmax.f32 %v1083, 0.0
    %v1148 = vmax.f32 %v1084, 0.0
    %v1149 = vmax.f32 %v1085, 0.0
    %v1150 = vmax.f32 %v1086, 0.0
    %v1151 = vmax.f32 %v1087, 0.0
    %v1152 = vmax.f32 %v1088, 0.0
    %v1153 = vmax.f32 %v1089, 0.0
    %v1154 = vmax.f32 %v1090, 0.0
    %v1155 = vmax.f32 %v1091, 0.0
    %v1156 = vmax.f32 %v1092, 0.0
    %v1157 = vmax.f32 %v1093, 0.0
    %v1158 = vmax.f32 %v1094, 0.0
    %v1159 = vmax.f32 %v1095, 0.0
    %v1160 = vpack.c.bf16 %v1097, %v1096
    %v1161 = vpack.c.bf16 %v1099, %v1098
    %v1162 = vpack.c.bf16 %v1101, %v1100
    %v1163 = vpack.c.bf16 %v1103, %v1102
    %v1164 = vpack.c.bf16 %v1105, %v1104
    %v1165 = vpack.c.bf16 %v1107, %v1106
    %v1166 = vpack.c.bf16 %v1109, %v1108
    %v1167 = vpack.c.bf16 %v1111, %v1110
    %v1168 = vpack.c.bf16 %v1113, %v1112
    %v1169 = vpack.c.bf16 %v1115, %v1114
    %v1170 = vpack.c.bf16 %v1117, %v1116
    %v1171 = vpack.c.bf16 %v1119, %v1118
    %v1172 = vpack.c.bf16 %v1121, %v1120
    %v1173 = vpack.c.bf16 %v1123, %v1122
    %v1174 = vpack.c.bf16 %v1125, %v1124
    %v1175 = vpack.c.bf16 %v1127, %v1126
    %v1176 = vpack.c.bf16 %v1129, %v1128
    %v1177 = vpack.c.bf16 %v1131, %v1130
    %v1178 = vpack.c.bf16 %v1133, %v1132
    %v1179 = vpack.c.bf16 %v1135, %v1134
    %v1180 = vpack.c.bf16 %v1137, %v1136
    %v1181 = vpack.c.bf16 %v1139, %v1138
    %v1182 = vpack.c.bf16 %v1141, %v1140
    %v1183 = vpack.c.bf16 %v1143, %v1142
    %v1184 = vpack.c.bf16 %v1145, %v1144
    %v1185 = vpack.c.bf16 %v1147, %v1146
    %v1186 = vpack.c.bf16 %v1149, %v1148
    %v1187 = vpack.c.bf16 %v1151, %v1150
    %v1188 = vpack.c.bf16 %v1153, %v1152
    %v1189 = vpack.c.bf16 %v1155, %v1154
    %v1190 = vpack.c.bf16 %v1157, %v1156
    %v1191 = vpack.c.bf16 %v1159, %v1158
    %v1224 = vunpack.c.l.b16 %v1160
    %v1225 = vunpack.c.h.b16 %v1160
    %v1226 = vunpack.c.l.b16 %v1161
    %v1227 = vunpack.c.h.b16 %v1161
    %v1228 = vunpack.c.l.b16 %v1162
    %v1229 = vunpack.c.h.b16 %v1162
    %v1230 = vunpack.c.l.b16 %v1163
    %v1231 = vunpack.c.h.b16 %v1163
    %v1232 = vunpack.c.l.b16 %v1164
    %v1233 = vunpack.c.h.b16 %v1164
    %v1234 = vunpack.c.l.b16 %v1165
    %v1235 = vunpack.c.h.b16 %v1165
    %v1236 = vunpack.c.l.b16 %v1166
    %v1237 = vunpack.c.h.b16 %v1166
    %v1238 = vunpack.c.l.b16 %v1167
    %v1239 = vunpack.c.h.b16 %v1167
    %v1240 = vunpack.c.l.b16 %v1168
    %v1241 = vunpack.c.h.b16 %v1168
    %v1242 = vunpack.c.l.b16 %v1169
    %v1243 = vunpack.c.h.b16 %v1169
    %v1244 = vunpack.c.l.b16 %v1170
    %v1245 = vunpack.c.h.b16 %v1170
    %v1246 = vunpack.c.l.b16 %v1171
    %v1247 = vunpack.c.h.b16 %v1171
    %v1248 = vunpack.c.l.b16 %v1172
    %v1249 = vunpack.c.h.b16 %v1172
    %v1250 = vunpack.c.l.b16 %v1173
    %v1251 = vunpack.c.h.b16 %v1173
    %v1252 = vunpack.c.l.b16 %v1174
    %v1253 = vunpack.c.h.b16 %v1174
    %v1254 = vunpack.c.l.b16 %v1175
    %v1255 = vunpack.c.h.b16 %v1175
    %v1256 = vunpack.c.l.b16 %v1176
    %v1257 = vunpack.c.h.b16 %v1176
    %v1258 = vunpack.c.l.b16 %v1177
    %v1259 = vunpack.c.h.b16 %v1177
    %v1260 = vunpack.c.l.b16 %v1178
    %v1261 = vunpack.c.h.b16 %v1178
    %v1262 = vunpack.c.l.b16 %v1179
    %v1263 = vunpack.c.h.b16 %v1179
    %v1264 = vunpack.c.l.b16 %v1180
    %v1265 = vunpack.c.h.b16 %v1180
    %v1266 = vunpack.c.l.b16 %v1181
    %v1267 = vunpack.c.h.b16 %v1181
    %v1268 = vunpack.c.l.b16 %v1182
    %v1269 = vunpack.c.h.b16 %v1182
    %v1270 = vunpack.c.l.b16 %v1183
    %v1271 = vunpack.c.h.b16 %v1183
    %v1272 = vunpack.c.l.b16 %v1184
    %v1273 = vunpack.c.h.b16 %v1184
    %v1274 = vunpack.c.l.b16 %v1185
    %v1275 = vunpack.c.h.b16 %v1185
    %v1276 = vunpack.c.l.b16 %v1186
    %v1277 = vunpack.c.h.b16 %v1186
    %v1278 = vunpack.c.l.b16 %v1187
    %v1279 = vunpack.c.h.b16 %v1187
    %v1280 = vunpack.c.l.b16 %v1188
    %v1281 = vunpack.c.h.b16 %v1188
    %v1282 = vunpack.c.l.b16 %v1189
    %v1283 = vunpack.c.h.b16 %v1189
    %v1284 = vunpack.c.l.b16 %v1190
    %v1285 = vunpack.c.h.b16 %v1190
    %v1286 = vunpack.c.l.b16 %v1191
    %v1287 = vunpack.c.h.b16 %v1191
    %v1288 = vpack.c.b16 %v1224, %v1224
    %v1289 = vpack.c.b16 %v1225, %v1225
    %v1290 = vpack.c.b16 %v1226, %v1226
    %v1291 = vpack.c.b16 %v1227, %v1227
    %v1292 = vpack.c.b16 %v1228, %v1228
    %v1293 = vpack.c.b16 %v1229, %v1229
    %v1294 = vpack.c.b16 %v1230, %v1230
    %v1295 = vpack.c.b16 %v1231, %v1231
    %v1296 = vpack.c.b16 %v1232, %v1232
    %v1297 = vpack.c.b16 %v1233, %v1233
    %v1298 = vpack.c.b16 %v1234, %v1234
    %v1299 = vpack.c.b16 %v1235, %v1235
    %v1300 = vpack.c.b16 %v1236, %v1236
    %v1301 = vpack.c.b16 %v1237, %v1237
    %v1302 = vpack.c.b16 %v1238, %v1238
    %v1303 = vpack.c.b16 %v1239, %v1239
    %v1304 = vpack.c.b16 %v1240, %v1240
    %v1305 = vpack.c.b16 %v1241, %v1241
    %v1306 = vpack.c.b16 %v1242, %v1242
    %v1307 = vpack.c.b16 %v1243, %v1243
    %v1308 = vpack.c.b16 %v1244, %v1244
    %v1309 = vpack.c.b16 %v1245, %v1245
    %v1310 = vpack.c.b16 %v1246, %v1246
    %v1311 = vpack.c.b16 %v1247, %v1247
    %v1312 = vpack.c.b16 %v1248, %v1248
    %v1313 = vpack.c.b16 %v1249, %v1249
    %v1314 = vpack.c.b16 %v1250, %v1250
    %v1315 = vpack.c.b16 %v1251, %v1251
    %v1316 = vpack.c.b16 %v1252, %v1252
    %v1317 = vpack.c.b16 %v1253, %v1253
    %v1318 = vpack.c.b16 %v1254, %v1254
    %v1319 = vpack.c.b16 %v1255, %v1255
    %v1320 = vpack.c.b16 %v1256, %v1256
    %v1321 = vpack.c.b16 %v1257, %v1257
    %v1322 = vpack.c.b16 %v1258, %v1258
    %v1323 = vpack.c.b16 %v1259, %v1259
    %v1324 = vpack.c.b16 %v1260, %v1260
    %v1325 = vpack.c.b16 %v1261, %v1261
    %v1326 = vpack.c.b16 %v1262, %v1262
    %v1327 = vpack.c.b16 %v1263, %v1263
    %v1328 = vpack.c.b16 %v1264, %v1264
    %v1329 = vpack.c.b16 %v1265, %v1265
    %v1330 = vpack.c.b16 %v1266, %v1266
    %v1331 = vpack.c.b16 %v1267, %v1267
    %v1332 = vpack.c.b16 %v1268, %v1268
    %v1333 = vpack.c.b16 %v1269, %v1269
    %v1334 = vpack.c.b16 %v1270, %v1270
    %v1335 = vpack.c.b16 %v1271, %v1271
    %v1336 = vpack.c.b16 %v1272, %v1272
    %v1337 = vpack.c.b16 %v1273, %v1273
    %v1338 = vpack.c.b16 %v1274, %v1274
    %v1339 = vpack.c.b16 %v1275, %v1275
    %v1340 = vpack.c.b16 %v1276, %v1276
    %v1341 = vpack.c.b16 %v1277, %v1277
    %v1342 = vpack.c.b16 %v1278, %v1278
    %v1343 = vpack.c.b16 %v1279, %v1279
    %v1344 = vpack.c.b16 %v1280, %v1280
    %v1345 = vpack.c.b16 %v1281, %v1281
    %v1346 = vpack.c.b16 %v1282, %v1282
    %v1347 = vpack.c.b16 %v1283, %v1283
    %v1348 = vpack.c.b16 %v1284, %v1284
    %v1349 = vpack.c.b16 %v1285, %v1285
    %v1350 = vpack.c.b16 %v1286, %v1286
    %v1351 = vpack.c.b16 %v1287, %v1287
    %1416 = vst [vmem:[%s4] sm:$0xf] %v1288
    %1417 = vst [vmem:[%s4 + $0x4] sm:$0xf] %v1289
    %1418 = vst [vmem:[%s4 + $0x8] sm:$0xf] %v1290
    %1419 = vst [vmem:[%s4 + $0xc] sm:$0xf] %v1291
    %1420 = vst [vmem:[%s4 + $0x10] sm:$0xf] %v1292
    %1421 = vst [vmem:[%s4 + $0x14] sm:$0xf] %v1293
    %1422 = vst [vmem:[%s4 + $0x18] sm:$0xf] %v1294
    %1423 = vst [vmem:[%s4 + $0x1c] sm:$0xf] %v1295
    %1424 = vst [vmem:[%s4 + $0x20] sm:$0xf] %v1296
    %1425 = vst [vmem:[%s4 + $0x24] sm:$0xf] %v1297
    %1426 = vst [vmem:[%s4 + $0x28] sm:$0xf] %v1298
    %1427 = vst [vmem:[%s4 + $0x2c] sm:$0xf] %v1299
    %1428 = vst [vmem:[%s4 + $0x30] sm:$0xf] %v1300
    %1429 = vst [vmem:[%s4 + $0x34] sm:$0xf] %v1301
    %1430 = vst [vmem:[%s4 + $0x38] sm:$0xf] %v1302
    %1431 = vst [vmem:[%s4 + $0x3c] sm:$0xf] %v1303
    %1432 = vst [vmem:[%s4 + $0x40] sm:$0xf] %v1304
    %1433 = vst [vmem:[%s4 + $0x44] sm:$0xf] %v1305
    %1434 = vst [vmem:[%s4 + $0x48] sm:$0xf] %v1306
    %1435 = vst [vmem:[%s4 + $0x4c] sm:$0xf] %v1307
    %1436 = vst [vmem:[%s4 + $0x50] sm:$0xf] %v1308
    %1437 = vst [vmem:[%s4 + $0x54] sm:$0xf] %v1309
    %1438 = vst [vmem:[%s4 + $0x58] sm:$0xf] %v1310
    %1439 = vst [vmem:[%s4 + $0x5c] sm:$0xf] %v1311
    %1440 = vst [vmem:[%s4 + $0x60] sm:$0xf] %v1312
    %1441 = vst [vmem:[%s4 + $0x64] sm:$0xf] %v1313
    %1442 = vst [vmem:[%s4 + $0x68] sm:$0xf] %v1314
    %1443 = vst [vmem:[%s4 + $0x6c] sm:$0xf] %v1315
    %1444 = vst [vmem:[%s4 + $0x70] sm:$0xf] %v1316
    %1445 = vst [vmem:[%s4 + $0x74] sm:$0xf] %v1317
    %1446 = vst [vmem:[%s4 + $0x78] sm:$0xf] %v1318
    %1447 = vst [vmem:[%s4 + $0x7c] sm:$0xf] %v1319
    %1448 = vst [vmem:[%s4 + $0x80] sm:$0xf] %v1320
    %1449 = vst [vmem:[%s4 + $0x84] sm:$0xf] %v1321
    %1450 = vst [vmem:[%s4 + $0x88] sm:$0xf] %v1322
    %1451 = vst [vmem:[%s4 + $0x8c] sm:$0xf] %v1323
    %1452 = vst [vmem:[%s4 + $0x90] sm:$0xf] %v1324
    %1453 = vst [vmem:[%s4 + $0x94] sm:$0xf] %v1325
    %1454 = vst [vmem:[%s4 + $0x98] sm:$0xf] %v1326
    %1455 = vst [vmem:[%s4 + $0x9c] sm:$0xf] %v1327
    %1456 = vst [vmem:[%s4 + $0xa0] sm:$0xf] %v1328
    %1457 = vst [vmem:[%s4 + $0xa4] sm:$0xf] %v1329
    %1458 = vst [vmem:[%s4 + $0xa8] sm:$0xf] %v1330
    %1459 = vst [vmem:[%s4 + $0xac] sm:$0xf] %v1331
    %1460 = vst [vmem:[%s4 + $0xb0] sm:$0xf] %v1332
    %1461 = vst [vmem:[%s4 + $0xb4] sm:$0xf] %v1333
    %1462 = vst [vmem:[%s4 + $0xb8] sm:$0xf] %v1334
    %1463 = vst [vmem:[%s4 + $0xbc] sm:$0xf] %v1335
    %1464 = vst [vmem:[%s4 + $0xc0] sm:$0xf] %v1336
    %1465 = vst [vmem:[%s4 + $0xc4] sm:$0xf] %v1337
    %1466 = vst [vmem:[%s4 + $0xc8] sm:$0xf] %v1338
    %1467 = vst [vmem:[%s4 + $0xcc] sm:$0xf] %v1339
    %1468 = vst [vmem:[%s4 + $0xd0] sm:$0xf] %v1340
    %1469 = vst [vmem:[%s4 + $0xd4] sm:$0xf] %v1341
    %1470 = vst [vmem:[%s4 + $0xd8] sm:$0xf] %v1342
    %1471 = vst [vmem:[%s4 + $0xdc] sm:$0xf] %v1343
    %1472 = vst [vmem:[%s4 + $0xe0] sm:$0xf] %v1344
    %1473 = vst [vmem:[%s4 + $0xe4] sm:$0xf] %v1345
    %1474 = vst [vmem:[%s4 + $0xe8] sm:$0xf] %v1346
    %1475 = vst [vmem:[%s4 + $0xec] sm:$0xf] %v1347
    %1476 = vst [vmem:[%s4 + $0xf0] sm:$0xf] %v1348
    %1477 = vst [vmem:[%s4 + $0xf4] sm:$0xf] %v1349
    %1478 = vst [vmem:[%s4 + $0xf8] sm:$0xf] %v1350
    %1479 = vst [vmem:[%s4 + $0xfc] sm:$0xf] %v1351
  $region25: #{_forward.4} parent=0 // pred_fallthru
    _
  // Predicated region
  $region26: #{_forward.4} parent=0 // pred_check
    _
  $region27: #{_forward.4} parent=0 // pred_check_branch
    %1481 = sbr.rel (0) target = $region29
  $region28: #{_forward.4} parent=0 // pred_region
    _
  $region29: #{_forward.4} parent=0 // pred_fallthru
    _
  // Predicated region
  $region30: #{_forward.4} parent=0 // pred_check
    _
  $region31: #{_forward.4} parent=0 // pred_check_branch
    %1483 = sbr.rel (0) target = $region33
  $region32: #{_forward.4} parent=0 // pred_region
    _
  $region33: #{_forward.4} parent=0 // pred_fallthru
    _

// kernel: _forward.7
$region0: #{_forward.7}
  #allocation0 [shape = 'u32[]', space=smem, size = 0x4, offset = 0x4, fixed_abs, tag = 'smem constant byte address 0x4 - core index']
  #allocation1 [shape = 'u32[144,128]{1,0:T(1,128)}', space=vmem, size = 0x12000, scoped, tag = 'internal scratch']
  #allocation2 [shape = 'f32[512,128]{1,0:T(8,128)}', space=vmem, size = 0x40000, scoped, tag = 'scratch operand']
  %s0 = inlined_call_operand.vmem [shape: bf16[512,128], index: 0, kind: input, shape index: {}]
  %s1 = inlined_call_operand.vmem [shape: bf16[128,128], index: 1, kind: input, shape index: {}]
  %s2 = inlined_call_operand.vmem [shape: f32[1,128], index: 2, kind: input, shape index: {}]
  %s3 = inlined_call_operand.vmem [shape: f32[1,128], index: 3, kind: input, shape index: {}]
  %s4 = inlined_call_operand.vmem [shape: bf16[512,128], index: 4, kind: input, shape index: {}]
  %s5 = inlined_call_operand.vmem [shape: f32[512,128], index: 5, kind: output, shape index: {}]
  %s6 = sld [smem:[#allocation0]]
  $region38: #{_forward.7} parent=0
    _
  %s8 = ssub.s32 1, %s6
  %s9 = scalar_select 0, %s8, %s6
  // Predicated region
  $region2: #{_forward.7} parent=0 // pred_check
    _
  $region3: #{_forward.7} parent=0 // pred_check_branch
    %11 = sbr.rel (0) target = $region5
  $region4: #{_forward.7} parent=0 // pred_region
    _
  $region5: #{_forward.7} parent=0 // pred_fallthru
    _
  // Predicated region
  $region6: #{_forward.7} parent=0 // pred_check
    _
  $region7: #{_forward.7} parent=0 // pred_check_branch
    %13 = sbr.rel (0) target = $region9
  $region8: #{_forward.7} parent=0 // pred_region
    _
  $region9: #{_forward.7} parent=0 // pred_fallthru
    _
  // Predicated region
  $region10: #{_forward.7} parent=0 // pred_check
    _
  $region11: #{_forward.7} parent=0 // pred_check_branch
    %15 = sbr.rel (0) target = $region13
  $region12: #{_forward.7} parent=0 // pred_region
    _
  $region13: #{_forward.7} parent=0 // pred_fallthru
    _
  // Predicated region
  $region14: #{_forward.7} parent=0 // pred_check
    _
  $region15: #{_forward.7} parent=0 // pred_check_branch
    %17 = sbr.rel (0) target = $region17
  $region16: #{_forward.7} parent=0 // pred_region
    _
  $region17: #{_forward.7} parent=0 // pred_fallthru
    _
  // Predicated region
  $region18: #{_forward.7} parent=0 // pred_check
    _
  $region19: #{_forward.7} parent=0 // pred_check_branch
    %19 = sbr.rel (0) target = $region21
  $region20: #{_forward.7} parent=0 // pred_region
    _
  $region21: #{_forward.7} parent=0 // pred_fallthru
    _
  %p21 = scmp.eq.s32.totalorder 0, 0
  // Predicated region
  $region22: #{_forward.7} parent=0 // pred_check
    %p22 = pneg %p21
  $region23: #{_forward.7} parent=0 // pred_check_branch
    %24 = sbr.rel (%p22) target = $region25
  $region24: #{_forward.7} parent=0 // pred_region
    %25 = vst [vmem:[#allocation2] sm:$0xff] 0.0
    %26 = vst [vmem:[#allocation2 + $0x8] sm:$0xff] 0.0
    %27 = vst [vmem:[#allocation2 + $0x10] sm:$0xff] 0.0
    %28 = vst [vmem:[#allocation2 + $0x18] sm:$0xff] 0.0
    %29 = vst [vmem:[#allocation2 + $0x20] sm:$0xff] 0.0
    %30 = vst [vmem:[#allocation2 + $0x28] sm:$0xff] 0.0
    %31 = vst [vmem:[#allocation2 + $0x30] sm:$0xff] 0.0
    %32 = vst [vmem:[#allocation2 + $0x38] sm:$0xff] 0.0
    %33 = vst [vmem:[#allocation2 + $0x40] sm:$0xff] 0.0
    %34 = vst [vmem:[#allocation2 + $0x48] sm:$0xff] 0.0
    %35 = vst [vmem:[#allocation2 + $0x50] sm:$0xff] 0.0
    %36 = vst [vmem:[#allocation2 + $0x58] sm:$0xff] 0.0
    %37 = vst [vmem:[#allocation2 + $0x60] sm:$0xff] 0.0
    %38 = vst [vmem:[#allocation2 + $0x68] sm:$0xff] 0.0
    %39 = vst [vmem:[#allocation2 + $0x70] sm:$0xff] 0.0
    %40 = vst [vmem:[#allocation2 + $0x78] sm:$0xff] 0.0
    %41 = vst [vmem:[#allocation2 + $0x80] sm:$0xff] 0.0
    %42 = vst [vmem:[#allocation2 + $0x88] sm:$0xff] 0.0
    %43 = vst [vmem:[#allocation2 + $0x90] sm:$0xff] 0.0
    %44 = vst [vmem:[#allocation2 + $0x98] sm:$0xff] 0.0
    %45 = vst [vmem:[#allocation2 + $0xa0] sm:$0xff] 0.0
    %46 = vst [vmem:[#allocation2 + $0xa8] sm:$0xff] 0.0
    %47 = vst [vmem:[#allocation2 + $0xb0] sm:$0xff] 0.0
    %48 = vst [vmem:[#allocation2 + $0xb8] sm:$0xff] 0.0
    %49 = vst [vmem:[#allocation2 + $0xc0] sm:$0xff] 0.0
    %50 = vst [vmem:[#allocation2 + $0xc8] sm:$0xff] 0.0
    %51 = vst [vmem:[#allocation2 + $0xd0] sm:$0xff] 0.0
    %52 = vst [vmem:[#allocation2 + $0xd8] sm:$0xff] 0.0
    %53 = vst [vmem:[#allocation2 + $0xe0] sm:$0xff] 0.0
    %54 = vst [vmem:[#allocation2 + $0xe8] sm:$0xff] 0.0
    %55 = vst [vmem:[#allocation2 + $0xf0] sm:$0xff] 0.0
    %56 = vst [vmem:[#allocation2 + $0xf8] sm:$0xff] 0.0
    %57 = vst [vmem:[#allocation2 + $0x100] sm:$0xff] 0.0
    %58 = vst [vmem:[#allocation2 + $0x108] sm:$0xff] 0.0
    %59 = vst [vmem:[#allocation2 + $0x110] sm:$0xff] 0.0
    %60 = vst [vmem:[#allocation2 + $0x118] sm:$0xff] 0.0
    %61 = vst [vmem:[#allocation2 + $0x120] sm:$0xff] 0.0
    %62 = vst [vmem:[#allocation2 + $0x128] sm:$0xff] 0.0
    %63 = vst [vmem:[#allocation2 + $0x130] sm:$0xff] 0.0
    %64 = vst [vmem:[#allocation2 + $0x138] sm:$0xff] 0.0
    %65 = vst [vmem:[#allocation2 + $0x140] sm:$0xff] 0.0
    %66 = vst [vmem:[#allocation2 + $0x148] sm:$0xff] 0.0
    %67 = vst [vmem:[#allocation2 + $0x150] sm:$0xff] 0.0
    %68 = vst [vmem:[#allocation2 + $0x158] sm:$0xff] 0.0
    %69 = vst [vmem:[#allocation2 + $0x160] sm:$0xff] 0.0
    %70 = vst [vmem:[#allocation2 + $0x168] sm:$0xff] 0.0
    %71 = vst [vmem:[#allocation2 + $0x170] sm:$0xff] 0.0
    %72 = vst [vmem:[#allocation2 + $0x178] sm:$0xff] 0.0
    %73 = vst [vmem:[#allocation2 + $0x180] sm:$0xff] 0.0
    %74 = vst [vmem:[#allocation2 + $0x188] sm:$0xff] 0.0
    %75 = vst [vmem:[#allocation2 + $0x190] sm:$0xff] 0.0
    %76 = vst [vmem:[#allocation2 + $0x198] sm:$0xff] 0.0
    %77 = vst [vmem:[#allocation2 + $0x1a0] sm:$0xff] 0.0
    %78 = vst [vmem:[#allocation2 + $0x1a8] sm:$0xff] 0.0
    %79 = vst [vmem:[#allocation2 + $0x1b0] sm:$0xff] 0.0
    %80 = vst [vmem:[#allocation2 + $0x1b8] sm:$0xff] 0.0
    %81 = vst [vmem:[#allocation2 + $0x1c0] sm:$0xff] 0.0
    %82 = vst [vmem:[#allocation2 + $0x1c8] sm:$0xff] 0.0
    %83 = vst [vmem:[#allocation2 + $0x1d0] sm:$0xff] 0.0
    %84 = vst [vmem:[#allocation2 + $0x1d8] sm:$0xff] 0.0
    %85 = vst [vmem:[#allocation2 + $0x1e0] sm:$0xff] 0.0
    %86 = vst [vmem:[#allocation2 + $0x1e8] sm:$0xff] 0.0
    %87 = vst [vmem:[#allocation2 + $0x1f0] sm:$0xff] 0.0
    %88 = vst [vmem:[#allocation2 + $0x1f8] sm:$0xff] 0.0
  $region25: #{_forward.7} parent=0 // pred_fallthru
    _
  %v89 = vld [vmem:[#allocation2] sm:$0xff]
  %v90 = vld [vmem:[#allocation2 + $0x8] sm:$0xff]
  %v91 = vld [vmem:[#allocation2 + $0x10] sm:$0xff]
  %v92 = vld [vmem:[#allocation2 + $0x18] sm:$0xff]
  %v93 = vld [vmem:[#allocation2 + $0x20] sm:$0xff]
  %v94 = vld [vmem:[#allocation2 + $0x28] sm:$0xff]
  %v95 = vld [vmem:[#allocation2 + $0x30] sm:$0xff]
  %v96 = vld [vmem:[#allocation2 + $0x38] sm:$0xff]
  %v97 = vld [vmem:[#allocation2 + $0x40] sm:$0xff]
  %v98 = vld [vmem:[#allocation2 + $0x48] sm:$0xff]
  %v99 = vld [vmem:[#allocation2 + $0x50] sm:$0xff]
  %v100 = vld [vmem:[#allocation2 + $0x58] sm:$0xff]
  %v101 = vld [vmem:[#allocation2 + $0x60] sm:$0xff]
  %v102 = vld [vmem:[#allocation2 + $0x68] sm:$0xff]
  %v103 = vld [vmem:[#allocation2 + $0x70] sm:$0xff]
  %v104 = vld [vmem:[#allocation2 + $0x78] sm:$0xff]
  %v105 = vld [vmem:[#allocation2 + $0x80] sm:$0xff]
  %v106 = vld [vmem:[#allocation2 + $0x88] sm:$0xff]
  %v107 = vld [vmem:[#allocation2 + $0x90] sm:$0xff]
  %v108 = vld [vmem:[#allocation2 + $0x98] sm:$0xff]
  %v109 = vld [vmem:[#allocation2 + $0xa0] sm:$0xff]
  %v110 = vld [vmem:[#allocation2 + $0xa8] sm:$0xff]
  %v111 = vld [vmem:[#allocation2 + $0xb0] sm:$0xff]
  %v112 = vld [vmem:[#allocation2 + $0xb8] sm:$0xff]
  %v113 = vld [vmem:[#allocation2 + $0xc0] sm:$0xff]
  %v114 = vld [vmem:[#allocation2 + $0xc8] sm:$0xff]
  %v115 = vld [vmem:[#allocation2 + $0xd0] sm:$0xff]
  %v116 = vld [vmem:[#allocation2 + $0xd8] sm:$0xff]
  %v117 = vld [vmem:[#allocation2 + $0xe0] sm:$0xff]
  %v118 = vld [vmem:[#allocation2 + $0xe8] sm:$0xff]
  %v119 = vld [vmem:[#allocation2 + $0xf0] sm:$0xff]
  %v120 = vld [vmem:[#allocation2 + $0xf8] sm:$0xff]
  %v121 = vld [vmem:[#allocation2 + $0x100] sm:$0xff]
  %v122 = vld [vmem:[#allocation2 + $0x108] sm:$0xff]
  %v123 = vld [vmem:[#allocation2 + $0x110] sm:$0xff]
  %v124 = vld [vmem:[#allocation2 + $0x118] sm:$0xff]
  %v125 = vld [vmem:[#allocation2 + $0x120] sm:$0xff]
  %v126 = vld [vmem:[#allocation2 + $0x128] sm:$0xff]
  %v127 = vld [vmem:[#allocation2 + $0x130] sm:$0xff]
  %v128 = vld [vmem:[#allocation2 + $0x138] sm:$0xff]
  %v129 = vld [vmem:[#allocation2 + $0x140] sm:$0xff]
  %v130 = vld [vmem:[#allocation2 + $0x148] sm:$0xff]
  %v131 = vld [vmem:[#allocation2 + $0x150] sm:$0xff]
  %v132 = vld [vmem:[#allocation2 + $0x158] sm:$0xff]
  %v133 = vld [vmem:[#allocation2 + $0x160] sm:$0xff]
  %v134 = vld [vmem:[#allocation2 + $0x168] sm:$0xff]
  %v135 = vld [vmem:[#allocation2 + $0x170] sm:$0xff]
  %v136 = vld [vmem:[#allocation2 + $0x178] sm:$0xff]
  %v137 = vld [vmem:[#allocation2 + $0x180] sm:$0xff]
  %v138 = vld [vmem:[#allocation2 + $0x188] sm:$0xff]
  %v139 = vld [vmem:[#allocation2 + $0x190] sm:$0xff]
  %v140 = vld [vmem:[#allocation2 + $0x198] sm:$0xff]
  %v141 = vld [vmem:[#allocation2 + $0x1a0] sm:$0xff]
  %v142 = vld [vmem:[#allocation2 + $0x1a8] sm:$0xff]
  %v143 = vld [vmem:[#allocation2 + $0x1b0] sm:$0xff]
  %v144 = vld [vmem:[#allocation2 + $0x1b8] sm:$0xff]
  %v145 = vld [vmem:[#allocation2 + $0x1c0] sm:$0xff]
  %v146 = vld [vmem:[#allocation2 + $0x1c8] sm:$0xff]
  %v147 = vld [vmem:[#allocation2 + $0x1d0] sm:$0xff]
  %v148 = vld [vmem:[#allocation2 + $0x1d8] sm:$0xff]
  %v149 = vld [vmem:[#allocation2 + $0x1e0] sm:$0xff]
  %v150 = vld [vmem:[#allocation2 + $0x1e8] sm:$0xff]
  %v151 = vld [vmem:[#allocation2 + $0x1f0] sm:$0xff]
  %v152 = vld [vmem:[#allocation2 + $0x1f8] sm:$0xff]
  %v153 = vld [vmem:[%s0] sm:$0xf]
  %v154 = vld [vmem:[%s0 + $0x4] sm:$0xf]
  %v155 = vld [vmem:[%s0 + $0x8] sm:$0xf]
  %v156 = vld [vmem:[%s0 + $0xc] sm:$0xf]
  %v157 = vld [vmem:[%s0 + $0x10] sm:$0xf]
  %v158 = vld [vmem:[%s0 + $0x14] sm:$0xf]
  %v159 = vld [vmem:[%s0 + $0x18] sm:$0xf]
  %v160 = vld [vmem:[%s0 + $0x1c] sm:$0xf]
  %v161 = vld [vmem:[%s0 + $0x20] sm:$0xf]
  %v162 = vld [vmem:[%s0 + $0x24] sm:$0xf]
  %v163 = vld [vmem:[%s0 + $0x28] sm:$0xf]
  %v164 = vld [vmem:[%s0 + $0x2c] sm:$0xf]
  %v165 = vld [vmem:[%s0 + $0x30] sm:$0xf]
  %v166 = vld [vmem:[%s0 + $0x34] sm:$0xf]
  %v167 = vld [vmem:[%s0 + $0x38] sm:$0xf]
  %v168 = vld [vmem:[%s0 + $0x3c] sm:$0xf]
  %v169 = vld [vmem:[%s0 + $0x40] sm:$0xf]
  %v170 = vld [vmem:[%s0 + $0x44] sm:$0xf]
  %v171 = vld [vmem:[%s0 + $0x48] sm:$0xf]
  %v172 = vld [vmem:[%s0 + $0x4c] sm:$0xf]
  %v173 = vld [vmem:[%s0 + $0x50] sm:$0xf]
  %v174 = vld [vmem:[%s0 + $0x54] sm:$0xf]
  %v175 = vld [vmem:[%s0 + $0x58] sm:$0xf]
  %v176 = vld [vmem:[%s0 + $0x5c] sm:$0xf]
  %v177 = vld [vmem:[%s0 + $0x60] sm:$0xf]
  %v178 = vld [vmem:[%s0 + $0x64] sm:$0xf]
  %v179 = vld [vmem:[%s0 + $0x68] sm:$0xf]
  %v180 = vld [vmem:[%s0 + $0x6c] sm:$0xf]
  %v181 = vld [vmem:[%s0 + $0x70] sm:$0xf]
  %v182 = vld [vmem:[%s0 + $0x74] sm:$0xf]
  %v183 = vld [vmem:[%s0 + $0x78] sm:$0xf]
  %v184 = vld [vmem:[%s0 + $0x7c] sm:$0xf]
  %v185 = vld [vmem:[%s0 + $0x80] sm:$0xf]
  %v186 = vld [vmem:[%s0 + $0x84] sm:$0xf]
  %v187 = vld [vmem:[%s0 + $0x88] sm:$0xf]
  %v188 = vld [vmem:[%s0 + $0x8c] sm:$0xf]
  %v189 = vld [vmem:[%s0 + $0x90] sm:$0xf]
  %v190 = vld [vmem:[%s0 + $0x94] sm:$0xf]
  %v191 = vld [vmem:[%s0 + $0x98] sm:$0xf]
  %v192 = vld [vmem:[%s0 + $0x9c] sm:$0xf]
  %v193 = vld [vmem:[%s0 + $0xa0] sm:$0xf]
  %v194 = vld [vmem:[%s0 + $0xa4] sm:$0xf]
  %v195 = vld [vmem:[%s0 + $0xa8] sm:$0xf]
  %v196 = vld [vmem:[%s0 + $0xac] sm:$0xf]
  %v197 = vld [vmem:[%s0 + $0xb0] sm:$0xf]
  %v198 = vld [vmem:[%s0 + $0xb4] sm:$0xf]
  %v199 = vld [vmem:[%s0 + $0xb8] sm:$0xf]
  %v200 = vld [vmem:[%s0 + $0xbc] sm:$0xf]
  %v201 = vld [vmem:[%s0 + $0xc0] sm:$0xf]
  %v202 = vld [vmem:[%s0 + $0xc4] sm:$0xf]
  %v203 = vld [vmem:[%s0 + $0xc8] sm:$0xf]
  %v204 = vld [vmem:[%s0 + $0xcc] sm:$0xf]
  %v205 = vld [vmem:[%s0 + $0xd0] sm:$0xf]
  %v206 = vld [vmem:[%s0 + $0xd4] sm:$0xf]
  %v207 = vld [vmem:[%s0 + $0xd8] sm:$0xf]
  %v208 = vld [vmem:[%s0 + $0xdc] sm:$0xf]
  %v209 = vld [vmem:[%s0 + $0xe0] sm:$0xf]
  %v210 = vld [vmem:[%s0 + $0xe4] sm:$0xf]
  %v211 = vld [vmem:[%s0 + $0xe8] sm:$0xf]
  %v212 = vld [vmem:[%s0 + $0xec] sm:$0xf]
  %v213 = vld [vmem:[%s0 + $0xf0] sm:$0xf]
  %v214 = vld [vmem:[%s0 + $0xf4] sm:$0xf]
  %v215 = vld [vmem:[%s0 + $0xf8] sm:$0xf]
  %v216 = vld [vmem:[%s0 + $0xfc] sm:$0xf]
  %v217 = vld [vmem:[%s1] sm:$0xf]
  %v218 = vld [vmem:[%s1 + $0x4] sm:$0xf]
  %v219 = vld [vmem:[%s1 + $0x8] sm:$0xf]
  %v220 = vld [vmem:[%s1 + $0xc] sm:$0xf]
  %v221 = vld [vmem:[%s1 + $0x10] sm:$0xf]
  %v222 = vld [vmem:[%s1 + $0x14] sm:$0xf]
  %v223 = vld [vmem:[%s1 + $0x18] sm:$0xf]
  %v224 = vld [vmem:[%s1 + $0x1c] sm:$0xf]
  %v225 = vld [vmem:[%s1 + $0x20] sm:$0xf]
  %v226 = vld [vmem:[%s1 + $0x24] sm:$0xf]
  %v227 = vld [vmem:[%s1 + $0x28] sm:$0xf]
  %v228 = vld [vmem:[%s1 + $0x2c] sm:$0xf]
  %v229 = vld [vmem:[%s1 + $0x30] sm:$0xf]
  %v230 = vld [vmem:[%s1 + $0x34] sm:$0xf]
  %v231 = vld [vmem:[%s1 + $0x38] sm:$0xf]
  %v232 = vld [vmem:[%s1 + $0x3c] sm:$0xf]
  %v297 = vunpack.c.l.b16 %v153
  %v298 = vunpack.c.l.b16 %v154
  %v299 = vunpack.c.l.b16 %v155
  %v300 = vunpack.c.l.b16 %v156
  %v301 = vunpack.c.l.b16 %v157
  %v302 = vunpack.c.l.b16 %v158
  %v303 = vunpack.c.l.b16 %v159
  %v304 = vunpack.c.l.b16 %v160
  %v305 = vunpack.c.l.b16 %v161
  %v306 = vunpack.c.l.b16 %v162
  %v307 = vunpack.c.l.b16 %v163
  %v308 = vunpack.c.l.b16 %v164
  %v309 = vunpack.c.l.b16 %v165
  %v310 = vunpack.c.l.b16 %v166
  %v311 = vunpack.c.l.b16 %v167
  %v312 = vunpack.c.l.b16 %v168
  %v313 = vunpack.c.l.b16 %v169
  %v314 = vunpack.c.l.b16 %v170
  %v315 = vunpack.c.l.b16 %v171
  %v316 = vunpack.c.l.b16 %v172
  %v317 = vunpack.c.l.b16 %v173
  %v318 = vunpack.c.l.b16 %v174
  %v319 = vunpack.c.l.b16 %v175
  %v320 = vunpack.c.l.b16 %v176
  %v321 = vunpack.c.l.b16 %v177
  %v322 = vunpack.c.l.b16 %v178
  %v323 = vunpack.c.l.b16 %v179
  %v324 = vunpack.c.l.b16 %v180
  %v325 = vunpack.c.l.b16 %v181
  %v326 = vunpack.c.l.b16 %v182
  %v327 = vunpack.c.l.b16 %v183
  %v328 = vunpack.c.l.b16 %v184
  %v329 = vunpack.c.l.b16 %v185
  %v330 = vunpack.c.l.b16 %v186
  %v331 = vunpack.c.l.b16 %v187
  %v332 = vunpack.c.l.b16 %v188
  %v333 = vunpack.c.l.b16 %v189
  %v334 = vunpack.c.l.b16 %v190
  %v335 = vunpack.c.l.b16 %v191
  %v336 = vunpack.c.l.b16 %v192
  %v337 = vunpack.c.l.b16 %v193
  %v338 = vunpack.c.l.b16 %v194
  %v339 = vunpack.c.l.b16 %v195
  %v340 = vunpack.c.l.b16 %v196
  %v341 = vunpack.c.l.b16 %v197
  %v342 = vunpack.c.l.b16 %v198
  %v343 = vunpack.c.l.b16 %v199
  %v344 = vunpack.c.l.b16 %v200
  %v345 = vunpack.c.l.b16 %v201
  %v346 = vunpack.c.l.b16 %v202
  %v347 = vunpack.c.l.b16 %v203
  %v348 = vunpack.c.l.b16 %v204
  %v349 = vunpack.c.l.b16 %v205
  %v350 = vunpack.c.l.b16 %v206
  %v351 = vunpack.c.l.b16 %v207
  %v352 = vunpack.c.l.b16 %v208
  %v353 = vunpack.c.l.b16 %v209
  %v354 = vunpack.c.l.b16 %v210
  %v355 = vunpack.c.l.b16 %v211
  %v356 = vunpack.c.l.b16 %v212
  %v357 = vunpack.c.l.b16 %v213
  %v358 = vunpack.c.l.b16 %v214
  %v359 = vunpack.c.l.b16 %v215
  %v360 = vunpack.c.l.b16 %v216
  %v361 = vpack.c.b16 %v298, %v297
  %v362 = vpack.c.b16 %v300, %v299
  %v363 = vpack.c.b16 %v302, %v301
  %v364 = vpack.c.b16 %v304, %v303
  %v365 = vpack.c.b16 %v306, %v305
  %v366 = vpack.c.b16 %v308, %v307
  %v367 = vpack.c.b16 %v310, %v309
  %v368 = vpack.c.b16 %v312, %v311
  %v369 = vpack.c.b16 %v314, %v313
  %v370 = vpack.c.b16 %v316, %v315
  %v371 = vpack.c.b16 %v318, %v317
  %v372 = vpack.c.b16 %v320, %v319
  %v373 = vpack.c.b16 %v322, %v321
  %v374 = vpack.c.b16 %v324, %v323
  %v375 = vpack.c.b16 %v326, %v325
  %v376 = vpack.c.b16 %v328, %v327
  %v377 = vpack.c.b16 %v330, %v329
  %v378 = vpack.c.b16 %v332, %v331
  %v379 = vpack.c.b16 %v334, %v333
  %v380 = vpack.c.b16 %v336, %v335
  %v381 = vpack.c.b16 %v338, %v337
  %v382 = vpack.c.b16 %v340, %v339
  %v383 = vpack.c.b16 %v342, %v341
  %v384 = vpack.c.b16 %v344, %v343
  %v385 = vpack.c.b16 %v346, %v345
  %v386 = vpack.c.b16 %v348, %v347
  %v387 = vpack.c.b16 %v350, %v349
  %v388 = vpack.c.b16 %v352, %v351
  %v389 = vpack.c.b16 %v354, %v353
  %v390 = vpack.c.b16 %v356, %v355
  %v391 = vpack.c.b16 %v358, %v357
  %v392 = vpack.c.b16 %v360, %v359
  %v441 = vunpack.c.l.b16 %v217
  %v442 = vunpack.c.l.b16 %v218
  %v443 = vunpack.c.l.b16 %v219
  %v444 = vunpack.c.l.b16 %v220
  %v445 = vunpack.c.l.b16 %v221
  %v446 = vunpack.c.l.b16 %v222
  %v447 = vunpack.c.l.b16 %v223
  %v448 = vunpack.c.l.b16 %v224
  %v449 = vunpack.c.l.b16 %v225
  %v450 = vunpack.c.l.b16 %v226
  %v451 = vunpack.c.l.b16 %v227
  %v452 = vunpack.c.l.b16 %v228
  %v453 = vunpack.c.l.b16 %v229
  %v454 = vunpack.c.l.b16 %v230
  %v455 = vunpack.c.l.b16 %v231
  %v456 = vunpack.c.l.b16 %v232
  %v457 = vpack.c.b16 %v442, %v441
  %v458 = vpack.c.b16 %v444, %v443
  %v459 = vpack.c.b16 %v446, %v445
  %v460 = vpack.c.b16 %v448, %v447
  %v461 = vpack.c.b16 %v450, %v449
  %v462 = vpack.c.b16 %v452, %v451
  %v463 = vpack.c.b16 %v454, %v453
  %v464 = vpack.c.b16 %v456, %v455
  %473 = vmatprep.subr.bf16.mxu0 0
  %474 = vmatpush1.bf16.msra.mxu0 %v457
  %475 = vmatprep.subr.bf16.mxu0 0
  %476 = vmatpush1.bf16.msra.mxu0 %v458
  %477 = vmatprep.subr.bf16.mxu0 0
  %478 = vmatpush1.bf16.msra.mxu0 %v459
  %479 = vmatprep.subr.bf16.mxu0 0
  %480 = vmatpush1.bf16.msra.mxu0 %v460
  %481 = vmatprep.subr.bf16.mxu0 0
  %482 = vmatpush1.bf16.msra.mxu0 %v461
  %483 = vmatprep.subr.bf16.mxu0 0
  %484 = vmatpush1.bf16.msra.mxu0 %v462
  %485 = vmatprep.subr.bf16.mxu0 0
  %486 = vmatpush1.bf16.msra.mxu0 %v463
  %487 = vmatprep.subr.bf16.mxu0 0
  %488 = vmatpush1.bf16.msra.mxu0 %v464
  %489 = vmatprep.subr.bf16.mxu0 0
  %490 = vmatpush1.bf16.msra.mxu0 0
  %491 = vmatprep.subr.bf16.mxu0 0
  %492 = vmatpush1.bf16.msra.mxu0 0
  %493 = vmatprep.subr.bf16.mxu0 0
  %494 = vmatpush1.bf16.msra.mxu0 0
  %495 = vmatprep.subr.bf16.mxu0 0
  %496 = vmatpush1.bf16.msra.mxu0 0
  %497 = vmatprep.subr.bf16.mxu0 0
  %498 = vmatpush1.bf16.msra.mxu0 0
  %499 = vmatprep.subr.bf16.mxu0 0
  %500 = vmatpush1.bf16.msra.mxu0 0
  %501 = vmatprep.subr.bf16.mxu0 0
  %502 = vmatpush1.bf16.msra.mxu0 0
  %503 = vmatprep.subr.bf16.mxu0 0
  %504 = vmatpush1.bf16.msra.mxu0 0
  %505 = vmatprep.mubr.bf16.mxu0 0
  %506 = vmatmul.mubr.bf16.gmra.mrb[0].mxu0 %v361
  %v507 = vpop.f32.mrb[0].mxu0
  %v508 = vadd.f32 0.0, %v507
  %v509 = vpop.f32.mrb[0].mxu0
  %v510 = vpop.f32.mrb[0].mxu0
  %v511 = vadd.f32 0.0, %v510
  %v512 = vpop.f32.mrb[0].mxu0
  %513 = vmatprep.mubr.bf16.mxu0 0
  %514 = vmatmul.mubr.bf16.gmra.mrb[0].mxu0 %v362
  %v515 = vpop.f32.mrb[0].mxu0
  %v516 = vadd.f32 0.0, %v515
  %v517 = vpop.f32.mrb[0].mxu0
  %v518 = vpop.f32.mrb[0].mxu0
  %v519 = vadd.f32 0.0, %v518
  %v520 = vpop.f32.mrb[0].mxu0
  %521 = vmatprep.mubr.bf16.mxu0 0
  %522 = vmatmul.mubr.bf16.gmra.mrb[0].mxu0 %v363
  %v523 = vpop.f32.mrb[0].mxu0
  %v524 = vadd.f32 0.0, %v523
  %v525 = vpop.f32.mrb[0].mxu0
  %v526 = vpop.f32.mrb[0].mxu0
  %v527 = vadd.f32 0.0, %v526
  %v528 = vpop.f32.mrb[0].mxu0
  %529 = vmatprep.mubr.bf16.mxu0 0
  %530 = vmatmul.mubr.bf16.gmra.mrb[0].mxu0 %v364
  %v531 = vpop.f32.mrb[0].mxu0
  %v532 = vadd.f32 0.0, %v531
  %v533 = vpop.f32.mrb[0].mxu0
  %v534 = vpop.f32.mrb[0].mxu0
  %v535 = vadd.f32 0.0, %v534
  %v536 = vpop.f32.mrb[0].mxu0
  %537 = vmatprep.mubr.bf16.mxu0 0
  %538 = vmatmul.mubr.bf16.gmra.mrb[0].mxu0 %v365
  %v539 = vpop.f32.mrb[0].mxu0
  %v540 = vadd.f32 0.0, %v539
  %v541 = vpop.f32.mrb[0].mxu0
  %v542 = vpop.f32.mrb[0].mxu0
  %v543 = vadd.f32 0.0, %v542
  %v544 = vpop.f32.mrb[0].mxu0
  %545 = vmatprep.mubr.bf16.mxu0 0
  %546 = vmatmul.mubr.bf16.gmra.mrb[0].mxu0 %v366
  %v547 = vpop.f32.mrb[0].mxu0
  %v548 = vadd.f32 0.0, %v547
  %v549 = vpop.f32.mrb[0].mxu0
  %v550 = vpop.f32.mrb[0].mxu0
  %v551 = vadd.f32 0.0, %v550
  %v552 = vpop.f32.mrb[0].mxu0
  %553 = vmatprep.mubr.bf16.mxu0 0
  %554 = vmatmul.mubr.bf16.gmra.mrb[0].mxu0 %v367
  %v555 = vpop.f32.mrb[0].mxu0
  %v556 = vadd.f32 0.0, %v555
  %v557 = vpop.f32.mrb[0].mxu0
  %v558 = vpop.f32.mrb[0].mxu0
  %v559 = vadd.f32 0.0, %v558
  %v560 = vpop.f32.mrb[0].mxu0
  %561 = vmatprep.mubr.bf16.mxu0 0
  %562 = vmatmul.mubr.bf16.gmra.mrb[0].mxu0 %v368
  %v563 = vpop.f32.mrb[0].mxu0
  %v564 = vadd.f32 0.0, %v563
  %v565 = vpop.f32.mrb[0].mxu0
  %v566 = vpop.f32.mrb[0].mxu0
  %v567 = vadd.f32 0.0, %v566
  %v568 = vpop.f32.mrb[0].mxu0
  %569 = vmatprep.mubr.bf16.mxu0 0
  %570 = vmatmul.mubr.bf16.gmra.mrb[0].mxu0 %v369
  %v571 = vpop.f32.mrb[0].mxu0
  %v572 = vadd.f32 0.0, %v571
  %v573 = vpop.f32.mrb[0].mxu0
  %v574 = vpop.f32.mrb[0].mxu0
  %v575 = vadd.f32 0.0, %v574
  %v576 = vpop.f32.mrb[0].mxu0
  %577 = vmatprep.mubr.bf16.mxu0 0
  %578 = vmatmul.mubr.bf16.gmra.mrb[0].mxu0 %v370
  %v579 = vpop.f32.mrb[0].mxu0
  %v580 = vadd.f32 0.0, %v579
  %v581 = vpop.f32.mrb[0].mxu0
  %v582 = vpop.f32.mrb[0].mxu0
  %v583 = vadd.f32 0.0, %v582
  %v584 = vpop.f32.mrb[0].mxu0
  %585 = vmatprep.mubr.bf16.mxu0 0
  %586 = vmatmul.mubr.bf16.gmra.mrb[0].mxu0 %v371
  %v587 = vpop.f32.mrb[0].mxu0
  %v588 = vadd.f32 0.0, %v587
  %v589 = vpop.f32.mrb[0].mxu0
  %v590 = vpop.f32.mrb[0].mxu0
  %v591 = vadd.f32 0.0, %v590
  %v592 = vpop.f32.mrb[0].mxu0
  %593 = vmatprep.mubr.bf16.mxu0 0
  %594 = vmatmul.mubr.bf16.gmra.mrb[0].mxu0 %v372
  %v595 = vpop.f32.mrb[0].mxu0
  %v596 = vadd.f32 0.0, %v595
  %v597 = vpop.f32.mrb[0].mxu0
  %v598 = vpop.f32.mrb[0].mxu0
  %v599 = vadd.f32 0.0, %v598
  %v600 = vpop.f32.mrb[0].mxu0
  %601 = vmatprep.mubr.bf16.mxu0 0
  %602 = vmatmul.mubr.bf16.gmra.mrb[0].mxu0 %v373
  %v603 = vpop.f32.mrb[0].mxu0
  %v604 = vadd.f32 0.0, %v603
  %v605 = vpop.f32.mrb[0].mxu0
  %v606 = vpop.f32.mrb[0].mxu0
  %v607 = vadd.f32 0.0, %v606
  %v608 = vpop.f32.mrb[0].mxu0
  %609 = vmatprep.mubr.bf16.mxu0 0
  %610 = vmatmul.mubr.bf16.gmra.mrb[0].mxu0 %v374
  %v611 = vpop.f32.mrb[0].mxu0
  %v612 = vadd.f32 0.0, %v611
  %v613 = vpop.f32.mrb[0].mxu0
  %v614 = vpop.f32.mrb[0].mxu0
  %v615 = vadd.f32 0.0, %v614
  %v616 = vpop.f32.mrb[0].mxu0
  %617 = vmatprep.mubr.bf16.mxu0 0
  %618 = vmatmul.mubr.bf16.gmra.mrb[0].mxu0 %v375
  %v619 = vpop.f32.mrb[0].mxu0
  %v620 = vadd.f32 0.0, %v619
  %v621 = vpop.f32.mrb[0].mxu0
  %v622 = vpop.f32.mrb[0].mxu0
  %v623 = vadd.f32 0.0, %v622
  %v624 = vpop.f32.mrb[0].mxu0
  %625 = vmatprep.mubr.bf16.mxu0 0
  %626 = vmatmul.mubr.bf16.gmra.mrb[0].mxu0 %v376
  %v627 = vpop.f32.mrb[0].mxu0
  %v628 = vadd.f32 0.0, %v627
  %v629 = vpop.f32.mrb[0].mxu0
  %v630 = vpop.f32.mrb[0].mxu0
  %v631 = vadd.f32 0.0, %v630
  %v632 = vpop.f32.mrb[0].mxu0
  %633 = vmatprep.mubr.bf16.mxu0 0
  %634 = vmatmul.mubr.bf16.gmra.mrb[0].mxu0 %v377
  %v635 = vpop.f32.mrb[0].mxu0
  %v636 = vadd.f32 0.0, %v635
  %v637 = vpop.f32.mrb[0].mxu0
  %v638 = vpop.f32.mrb[0].mxu0
  %v639 = vadd.f32 0.0, %v638
  %v640 = vpop.f32.mrb[0].mxu0
  %641 = vmatprep.mubr.bf16.mxu0 0
  %642 = vmatmul.mubr.bf16.gmra.mrb[0].mxu0 %v378
  %v643 = vpop.f32.mrb[0].mxu0
  %v644 = vadd.f32 0.0, %v643
  %v645 = vpop.f32.mrb[0].mxu0
  %v646 = vpop.f32.mrb[0].mxu0
  %v647 = vadd.f32 0.0, %v646
  %v648 = vpop.f32.mrb[0].mxu0
  %649 = vmatprep.mubr.bf16.mxu0 0
  %650 = vmatmul.mubr.bf16.gmra.mrb[0].mxu0 %v379
  %v651 = vpop.f32.mrb[0].mxu0
  %v652 = vadd.f32 0.0, %v651
  %v653 = vpop.f32.mrb[0].mxu0
  %v654 = vpop.f32.mrb[0].mxu0
  %v655 = vadd.f32 0.0, %v654
  %v656 = vpop.f32.mrb[0].mxu0
  %657 = vmatprep.mubr.bf16.mxu0 0
  %658 = vmatmul.mubr.bf16.gmra.mrb[0].mxu0 %v380
  %v659 = vpop.f32.mrb[0].mxu0
  %v660 = vadd.f32 0.0, %v659
  %v661 = vpop.f32.mrb[0].mxu0
  %v662 = vpop.f32.mrb[0].mxu0
  %v663 = vadd.f32 0.0, %v662
  %v664 = vpop.f32.mrb[0].mxu0
  %665 = vmatprep.mubr.bf16.mxu0 0
  %666 = vmatmul.mubr.bf16.gmra.mrb[0].mxu0 %v381
  %v667 = vpop.f32.mrb[0].mxu0
  %v668 = vadd.f32 0.0, %v667
  %v669 = vpop.f32.mrb[0].mxu0
  %v670 = vpop.f32.mrb[0].mxu0
  %v671 = vadd.f32 0.0, %v670
  %v672 = vpop.f32.mrb[0].mxu0
  %673 = vmatprep.mubr.bf16.mxu0 0
  %674 = vmatmul.mubr.bf16.gmra.mrb[0].mxu0 %v382
  %v675 = vpop.f32.mrb[0].mxu0
  %v676 = vadd.f32 0.0, %v675
  %v677 = vpop.f32.mrb[0].mxu0
  %v678 = vpop.f32.mrb[0].mxu0
  %v679 = vadd.f32 0.0, %v678
  %v680 = vpop.f32.mrb[0].mxu0
  %681 = vmatprep.mubr.bf16.mxu0 0
  %682 = vmatmul.mubr.bf16.gmra.mrb[0].mxu0 %v383
  %v683 = vpop.f32.mrb[0].mxu0
  %v684 = vadd.f32 0.0, %v683
  %v685 = vpop.f32.mrb[0].mxu0
  %v686 = vpop.f32.mrb[0].mxu0
  %v687 = vadd.f32 0.0, %v686
  %v688 = vpop.f32.mrb[0].mxu0
  %689 = vmatprep.mubr.bf16.mxu0 0
  %690 = vmatmul.mubr.bf16.gmra.mrb[0].mxu0 %v384
  %v691 = vpop.f32.mrb[0].mxu0
  %v692 = vadd.f32 0.0, %v691
  %v693 = vpop.f32.mrb[0].mxu0
  %v694 = vpop.f32.mrb[0].mxu0
  %v695 = vadd.f32 0.0, %v694
  %v696 = vpop.f32.mrb[0].mxu0
  %697 = vmatprep.mubr.bf16.mxu0 0
  %698 = vmatmul.mubr.bf16.gmra.mrb[0].mxu0 %v385
  %v699 = vpop.f32.mrb[0].mxu0
  %v700 = vadd.f32 0.0, %v699
  %v701 = vpop.f32.mrb[0].mxu0
  %v702 = vpop.f32.mrb[0].mxu0
  %v703 = vadd.f32 0.0, %v702
  %v704 = vpop.f32.mrb[0].mxu0
  %705 = vmatprep.mubr.bf16.mxu0 0
  %706 = vmatmul.mubr.bf16.gmra.mrb[0].mxu0 %v386
  %v707 = vpop.f32.mrb[0].mxu0
  %v708 = vadd.f32 0.0, %v707
  %v709 = vpop.f32.mrb[0].mxu0
  %v710 = vpop.f32.mrb[0].mxu0
  %v711 = vadd.f32 0.0, %v710
  %v712 = vpop.f32.mrb[0].mxu0
  %713 = vmatprep.mubr.bf16.mxu0 0
  %714 = vmatmul.mubr.bf16.gmra.mrb[0].mxu0 %v387
  %v715 = vpop.f32.mrb[0].mxu0
  %v716 = vadd.f32 0.0, %v715
  %v717 = vpop.f32.mrb[0].mxu0
  %v718 = vpop.f32.mrb[0].mxu0
  %v719 = vadd.f32 0.0, %v718
  %v720 = vpop.f32.mrb[0].mxu0
  %721 = vmatprep.mubr.bf16.mxu0 0
  %722 = vmatmul.mubr.bf16.gmra.mrb[0].mxu0 %v388
  %v723 = vpop.f32.mrb[0].mxu0
  %v724 = vadd.f32 0.0, %v723
  %v725 = vpop.f32.mrb[0].mxu0
  %v726 = vpop.f32.mrb[0].mxu0
  %v727 = vadd.f32 0.0, %v726
  %v728 = vpop.f32.mrb[0].mxu0
  %729 = vmatprep.mubr.bf16.mxu0 0
  %730 = vmatmul.mubr.bf16.gmra.mrb[0].mxu0 %v389
  %v731 = vpop.f32.mrb[0].mxu0
  %v732 = vadd.f32 0.0, %v731
  %v733 = vpop.f32.mrb[0].mxu0
  %v734 = vpop.f32.mrb[0].mxu0
  %v735 = vadd.f32 0.0, %v734
  %v736 = vpop.f32.mrb[0].mxu0
  %737 = vmatprep.mubr.bf16.mxu0 0
  %738 = vmatmul.mubr.bf16.gmra.mrb[0].mxu0 %v390
  %v739 = vpop.f32.mrb[0].mxu0
  %v740 = vadd.f32 0.0, %v739
  %v741 = vpop.f32.mrb[0].mxu0
  %v742 = vpop.f32.mrb[0].mxu0
  %v743 = vadd.f32 0.0, %v742
  %v744 = vpop.f32.mrb[0].mxu0
  %745 = vmatprep.mubr.bf16.mxu0 0
  %746 = vmatmul.mubr.bf16.gmra.mrb[0].mxu0 %v391
  %v747 = vpop.f32.mrb[0].mxu0
  %v748 = vadd.f32 0.0, %v747
  %v749 = vpop.f32.mrb[0].mxu0
  %v750 = vpop.f32.mrb[0].mxu0
  %v751 = vadd.f32 0.0, %v750
  %v752 = vpop.f32.mrb[0].mxu0
  %753 = vmatprep.mubr.bf16.mxu0 0
  %754 = vmatmul.mubr.bf16.gmra.mrb[0].mxu0 %v392
  %v755 = vpop.f32.mrb[0].mxu0
  %v756 = vadd.f32 0.0, %v755
  %v757 = vpop.f32.mrb[0].mxu0
  %v758 = vpop.f32.mrb[0].mxu0
  %v759 = vadd.f32 0.0, %v758
  %v760 = vpop.f32.mrb[0].mxu0
  %761 = vdwg.mxu0
  %v762 = vadd.f32 %v89, %v508
  %v763 = vadd.f32 %v90, %v511
  %v764 = vadd.f32 %v91, %v516
  %v765 = vadd.f32 %v92, %v519
  %v766 = vadd.f32 %v93, %v524
  %v767 = vadd.f32 %v94, %v527
  %v768 = vadd.f32 %v95, %v532
  %v769 = vadd.f32 %v96, %v535
  %v770 = vadd.f32 %v97, %v540
  %v771 = vadd.f32 %v98, %v543
  %v772 = vadd.f32 %v99, %v548
  %v773 = vadd.f32 %v100, %v551
  %v774 = vadd.f32 %v101, %v556
  %v775 = vadd.f32 %v102, %v559
  %v776 = vadd.f32 %v103, %v564
  %v777 = vadd.f32 %v104, %v567
  %v778 = vadd.f32 %v105, %v572
  %v779 = vadd.f32 %v106, %v575
  %v780 = vadd.f32 %v107, %v580
  %v781 = vadd.f32 %v108, %v583
  %v782 = vadd.f32 %v109, %v588
  %v783 = vadd.f32 %v110, %v591
  %v784 = vadd.f32 %v111, %v596
  %v785 = vadd.f32 %v112, %v599
  %v786 = vadd.f32 %v113, %v604
  %v787 = vadd.f32 %v114, %v607
  %v788 = vadd.f32 %v115, %v612
  %v789 = vadd.f32 %v116, %v615
  %v790 = vadd.f32 %v117, %v620
  %v791 = vadd.f32 %v118, %v623
  %v792 = vadd.f32 %v119, %v628
  %v793 = vadd.f32 %v120, %v631
  %v794 = vadd.f32 %v121, %v636
  %v795 = vadd.f32 %v122, %v639
  %v796 = vadd.f32 %v123, %v644
  %v797 = vadd.f32 %v124, %v647
  %v798 = vadd.f32 %v125, %v652
  %v799 = vadd.f32 %v126, %v655
  %v800 = vadd.f32 %v127, %v660
  %v801 = vadd.f32 %v128, %v663
  %v802 = vadd.f32 %v129, %v668
  %v803 = vadd.f32 %v130, %v671
  %v804 = vadd.f32 %v131, %v676
  %v805 = vadd.f32 %v132, %v679
  %v806 = vadd.f32 %v133, %v684
  %v807 = vadd.f32 %v134, %v687
  %v808 = vadd.f32 %v135, %v692
  %v809 = vadd.f32 %v136, %v695
  %v810 = vadd.f32 %v137, %v700
  %v811 = vadd.f32 %v138, %v703
  %v812 = vadd.f32 %v139, %v708
  %v813 = vadd.f32 %v140, %v711
  %v814 = vadd.f32 %v141, %v716
  %v815 = vadd.f32 %v142, %v719
  %v816 = vadd.f32 %v143, %v724
  %v817 = vadd.f32 %v144, %v727
  %v818 = vadd.f32 %v145, %v732
  %v819 = vadd.f32 %v146, %v735
  %v820 = vadd.f32 %v147, %v740
  %v821 = vadd.f32 %v148, %v743
  %v822 = vadd.f32 %v149, %v748
  %v823 = vadd.f32 %v150, %v751
  %v824 = vadd.f32 %v151, %v756
  %v825 = vadd.f32 %v152, %v759
  %826 = vst [vmem:[#allocation2] sm:$0xff] %v762
  %827 = vst [vmem:[#allocation2 + $0x8] sm:$0xff] %v763
  %828 = vst [vmem:[#allocation2 + $0x10] sm:$0xff] %v764
  %829 = vst [vmem:[#allocation2 + $0x18] sm:$0xff] %v765
  %830 = vst [vmem:[#allocation2 + $0x20] sm:$0xff] %v766
  %831 = vst [vmem:[#allocation2 + $0x28] sm:$0xff] %v767
  %832 = vst [vmem:[#allocation2 + $0x30] sm:$0xff] %v768
  %833 = vst [vmem:[#allocation2 + $0x38] sm:$0xff] %v769
  %834 = vst [vmem:[#allocation2 + $0x40] sm:$0xff] %v770
  %835 = vst [vmem:[#allocation2 + $0x48] sm:$0xff] %v771
  %836 = vst [vmem:[#allocation2 + $0x50] sm:$0xff] %v772
  %837 = vst [vmem:[#allocation2 + $0x58] sm:$0xff] %v773
  %838 = vst [vmem:[#allocation2 + $0x60] sm:$0xff] %v774
  %839 = vst [vmem:[#allocation2 + $0x68] sm:$0xff] %v775
  %840 = vst [vmem:[#allocation2 + $0x70] sm:$0xff] %v776
  %841 = vst [vmem:[#allocation2 + $0x78] sm:$0xff] %v777
  %842 = vst [vmem:[#allocation2 + $0x80] sm:$0xff] %v778
  %843 = vst [vmem:[#allocation2 + $0x88] sm:$0xff] %v779
  %844 = vst [vmem:[#allocation2 + $0x90] sm:$0xff] %v780
  %845 = vst [vmem:[#allocation2 + $0x98] sm:$0xff] %v781
  %846 = vst [vmem:[#allocation2 + $0xa0] sm:$0xff] %v782
  %847 = vst [vmem:[#allocation2 + $0xa8] sm:$0xff] %v783
  %848 = vst [vmem:[#allocation2 + $0xb0] sm:$0xff] %v784
  %849 = vst [vmem:[#allocation2 + $0xb8] sm:$0xff] %v785
  %850 = vst [vmem:[#allocation2 + $0xc0] sm:$0xff] %v786
  %851 = vst [vmem:[#allocation2 + $0xc8] sm:$0xff] %v787
  %852 = vst [vmem:[#allocation2 + $0xd0] sm:$0xff] %v788
  %853 = vst [vmem:[#allocation2 + $0xd8] sm:$0xff] %v789
  %854 = vst [vmem:[#allocation2 + $0xe0] sm:$0xff] %v790
  %855 = vst [vmem:[#allocation2 + $0xe8] sm:$0xff] %v791
  %856 = vst [vmem:[#allocation2 + $0xf0] sm:$0xff] %v792
  %857 = vst [vmem:[#allocation2 + $0xf8] sm:$0xff] %v793
  %858 = vst [vmem:[#allocation2 + $0x100] sm:$0xff] %v794
  %859 = vst [vmem:[#allocation2 + $0x108] sm:$0xff] %v795
  %860 = vst [vmem:[#allocation2 + $0x110] sm:$0xff] %v796
  %861 = vst [vmem:[#allocation2 + $0x118] sm:$0xff] %v797
  %862 = vst [vmem:[#allocation2 + $0x120] sm:$0xff] %v798
  %863 = vst [vmem:[#allocation2 + $0x128] sm:$0xff] %v799
  %864 = vst [vmem:[#allocation2 + $0x130] sm:$0xff] %v800
  %865 = vst [vmem:[#allocation2 + $0x138] sm:$0xff] %v801
  %866 = vst [vmem:[#allocation2 + $0x140] sm:$0xff] %v802
  %867 = vst [vmem:[#allocation2 + $0x148] sm:$0xff] %v803
  %868 = vst [vmem:[#allocation2 + $0x150] sm:$0xff] %v804
  %869 = vst [vmem:[#allocation2 + $0x158] sm:$0xff] %v805
  %870 = vst [vmem:[#allocation2 + $0x160] sm:$0xff] %v806
  %871 = vst [vmem:[#allocation2 + $0x168] sm:$0xff] %v807
  %872 = vst [vmem:[#allocation2 + $0x170] sm:$0xff] %v808
  %873 = vst [vmem:[#allocation2 + $0x178] sm:$0xff] %v809
  %874 = vst [vmem:[#allocation2 + $0x180] sm:$0xff] %v810
  %875 = vst [vmem:[#allocation2 + $0x188] sm:$0xff] %v811
  %876 = vst [vmem:[#allocation2 + $0x190] sm:$0xff] %v812
  %877 = vst [vmem:[#allocation2 + $0x198] sm:$0xff] %v813
  %878 = vst [vmem:[#allocation2 + $0x1a0] sm:$0xff] %v814
  %879 = vst [vmem:[#allocation2 + $0x1a8] sm:$0xff] %v815
  %880 = vst [vmem:[#allocation2 + $0x1b0] sm:$0xff] %v816
  %881 = vst [vmem:[#allocation2 + $0x1b8] sm:$0xff] %v817
  %882 = vst [vmem:[#allocation2 + $0x1c0] sm:$0xff] %v818
  %883 = vst [vmem:[#allocation2 + $0x1c8] sm:$0xff] %v819
  %884 = vst [vmem:[#allocation2 + $0x1d0] sm:$0xff] %v820
  %885 = vst [vmem:[#allocation2 + $0x1d8] sm:$0xff] %v821
  %886 = vst [vmem:[#allocation2 + $0x1e0] sm:$0xff] %v822
  %887 = vst [vmem:[#allocation2 + $0x1e8] sm:$0xff] %v823
  %888 = vst [vmem:[#allocation2 + $0x1f0] sm:$0xff] %v824
  %889 = vst [vmem:[#allocation2 + $0x1f8] sm:$0xff] %v825
  // Predicated region
  $region26: #{_forward.7} parent=0 // pred_check
    %p890 = pneg %p21
  $region27: #{_forward.7} parent=0 // pred_check_branch
    %892 = sbr.rel (%p890) target = $region29
  $region28: #{_forward.7} parent=0 // pred_region
    %v893 = vld [vmem:[#allocation2] sm:$0xff]
    %v894 = vld [vmem:[#allocation2 + $0x8] sm:$0xff]
    %v895 = vld [vmem:[#allocation2 + $0x10] sm:$0xff]
    %v896 = vld [vmem:[#allocation2 + $0x18] sm:$0xff]
    %v897 = vld [vmem:[#allocation2 + $0x20] sm:$0xff]
    %v898 = vld [vmem:[#allocation2 + $0x28] sm:$0xff]
    %v899 = vld [vmem:[#allocation2 + $0x30] sm:$0xff]
    %v900 = vld [vmem:[#allocation2 + $0x38] sm:$0xff]
    %v901 = vld [vmem:[#allocation2 + $0x40] sm:$0xff]
    %v902 = vld [vmem:[#allocation2 + $0x48] sm:$0xff]
    %v903 = vld [vmem:[#allocation2 + $0x50] sm:$0xff]
    %v904 = vld [vmem:[#allocation2 + $0x58] sm:$0xff]
    %v905 = vld [vmem:[#allocation2 + $0x60] sm:$0xff]
    %v906 = vld [vmem:[#allocation2 + $0x68] sm:$0xff]
    %v907 = vld [vmem:[#allocation2 + $0x70] sm:$0xff]
    %v908 = vld [vmem:[#allocation2 + $0x78] sm:$0xff]
    %v909 = vld [vmem:[#allocation2 + $0x80] sm:$0xff]
    %v910 = vld [vmem:[#allocation2 + $0x88] sm:$0xff]
    %v911 = vld [vmem:[#allocation2 + $0x90] sm:$0xff]
    %v912 = vld [vmem:[#allocation2 + $0x98] sm:$0xff]
    %v913 = vld [vmem:[#allocation2 + $0xa0] sm:$0xff]
    %v914 = vld [vmem:[#allocation2 + $0xa8] sm:$0xff]
    %v915 = vld [vmem:[#allocation2 + $0xb0] sm:$0xff]
    %v916 = vld [vmem:[#allocation2 + $0xb8] sm:$0xff]
    %v917 = vld [vmem:[#allocation2 + $0xc0] sm:$0xff]
    %v918 = vld [vmem:[#allocation2 + $0xc8] sm:$0xff]
    %v919 = vld [vmem:[#allocation2 + $0xd0] sm:$0xff]
    %v920 = vld [vmem:[#allocation2 + $0xd8] sm:$0xff]
    %v921 = vld [vmem:[#allocation2 + $0xe0] sm:$0xff]
    %v922 = vld [vmem:[#allocation2 + $0xe8] sm:$0xff]
    %v923 = vld [vmem:[#allocation2 + $0xf0] sm:$0xff]
    %v924 = vld [vmem:[#allocation2 + $0xf8] sm:$0xff]
    %v925 = vld [vmem:[#allocation2 + $0x100] sm:$0xff]
    %v926 = vld [vmem:[#allocation2 + $0x108] sm:$0xff]
    %v927 = vld [vmem:[#allocation2 + $0x110] sm:$0xff]
    %v928 = vld [vmem:[#allocation2 + $0x118] sm:$0xff]
    %v929 = vld [vmem:[#allocation2 + $0x120] sm:$0xff]
    %v930 = vld [vmem:[#allocation2 + $0x128] sm:$0xff]
    %v931 = vld [vmem:[#allocation2 + $0x130] sm:$0xff]
    %v932 = vld [vmem:[#allocation2 + $0x138] sm:$0xff]
    %v933 = vld [vmem:[#allocation2 + $0x140] sm:$0xff]
    %v934 = vld [vmem:[#allocation2 + $0x148] sm:$0xff]
    %v935 = vld [vmem:[#allocation2 + $0x150] sm:$0xff]
    %v936 = vld [vmem:[#allocation2 + $0x158] sm:$0xff]
    %v937 = vld [vmem:[#allocation2 + $0x160] sm:$0xff]
    %v938 = vld [vmem:[#allocation2 + $0x168] sm:$0xff]
    %v939 = vld [vmem:[#allocation2 + $0x170] sm:$0xff]
    %v940 = vld [vmem:[#allocation2 + $0x178] sm:$0xff]
    %v941 = vld [vmem:[#allocation2 + $0x180] sm:$0xff]
    %v942 = vld [vmem:[#allocation2 + $0x188] sm:$0xff]
    %v943 = vld [vmem:[#allocation2 + $0x190] sm:$0xff]
    %v944 = vld [vmem:[#allocation2 + $0x198] sm:$0xff]
    %v945 = vld [vmem:[#allocation2 + $0x1a0] sm:$0xff]
    %v946 = vld [vmem:[#allocation2 + $0x1a8] sm:$0xff]
    %v947 = vld [vmem:[#allocation2 + $0x1b0] sm:$0xff]
    %v948 = vld [vmem:[#allocation2 + $0x1b8] sm:$0xff]
    %v949 = vld [vmem:[#allocation2 + $0x1c0] sm:$0xff]
    %v950 = vld [vmem:[#allocation2 + $0x1c8] sm:$0xff]
    %v951 = vld [vmem:[#allocation2 + $0x1d0] sm:$0xff]
    %v952 = vld [vmem:[#allocation2 + $0x1d8] sm:$0xff]
    %v953 = vld [vmem:[#allocation2 + $0x1e0] sm:$0xff]
    %v954 = vld [vmem:[#allocation2 + $0x1e8] sm:$0xff]
    %v955 = vld [vmem:[#allocation2 + $0x1f0] sm:$0xff]
    %v956 = vld [vmem:[#allocation2 + $0x1f8] sm:$0xff]
    %v957 = vld [vmem:[%s2] sm:$0x1]
    %v959 = vlaneseq
    %v960 = vshrl.u32 %v959, 7
    %v961 = vsub.s32 0, %v960
    %v962 = vrot.slane %v957, %v961
    %v964 = vmul.f32 %v893, %v962
    %v965 = vmul.f32 %v894, %v962
    %v966 = vmul.f32 %v895, %v962
    %v967 = vmul.f32 %v896, %v962
    %v968 = vmul.f32 %v897, %v962
    %v969 = vmul.f32 %v898, %v962
    %v970 = vmul.f32 %v899, %v962
    %v971 = vmul.f32 %v900, %v962
    %v972 = vmul.f32 %v901, %v962
    %v973 = vmul.f32 %v902, %v962
    %v974 = vmul.f32 %v903, %v962
    %v975 = vmul.f32 %v904, %v962
    %v976 = vmul.f32 %v905, %v962
    %v977 = vmul.f32 %v906, %v962
    %v978 = vmul.f32 %v907, %v962
    %v979 = vmul.f32 %v908, %v962
    %v980 = vmul.f32 %v909, %v962
    %v981 = vmul.f32 %v910, %v962
    %v982 = vmul.f32 %v911, %v962
    %v983 = vmul.f32 %v912, %v962
    %v984 = vmul.f32 %v913, %v962
    %v985 = vmul.f32 %v914, %v962
    %v986 = vmul.f32 %v915, %v962
    %v987 = vmul.f32 %v916, %v962
    %v988 = vmul.f32 %v917, %v962
    %v989 = vmul.f32 %v918, %v962
    %v990 = vmul.f32 %v919, %v962
    %v991 = vmul.f32 %v920, %v962
    %v992 = vmul.f32 %v921, %v962
    %v993 = vmul.f32 %v922, %v962
    %v994 = vmul.f32 %v923, %v962
    %v995 = vmul.f32 %v924, %v962
    %v996 = vmul.f32 %v925, %v962
    %v997 = vmul.f32 %v926, %v962
    %v998 = vmul.f32 %v927, %v962
    %v999 = vmul.f32 %v928, %v962
    %v1000 = vmul.f32 %v929, %v962
    %v1001 = vmul.f32 %v930, %v962
    %v1002 = vmul.f32 %v931, %v962
    %v1003 = vmul.f32 %v932, %v962
    %v1004 = vmul.f32 %v933, %v962
    %v1005 = vmul.f32 %v934, %v962
    %v1006 = vmul.f32 %v935, %v962
    %v1007 = vmul.f32 %v936, %v962
    %v1008 = vmul.f32 %v937, %v962
    %v1009 = vmul.f32 %v938, %v962
    %v1010 = vmul.f32 %v939, %v962
    %v1011 = vmul.f32 %v940, %v962
    %v1012 = vmul.f32 %v941, %v962
    %v1013 = vmul.f32 %v942, %v962
    %v1014 = vmul.f32 %v943, %v962
    %v1015 = vmul.f32 %v944, %v962
    %v1016 = vmul.f32 %v945, %v962
    %v1017 = vmul.f32 %v946, %v962
    %v1018 = vmul.f32 %v947, %v962
    %v1019 = vmul.f32 %v948, %v962
    %v1020 = vmul.f32 %v949, %v962
    %v1021 = vmul.f32 %v950, %v962
    %v1022 = vmul.f32 %v951, %v962
    %v1023 = vmul.f32 %v952, %v962
    %v1024 = vmul.f32 %v953, %v962
    %v1025 = vmul.f32 %v954, %v962
    %v1026 = vmul.f32 %v955, %v962
    %v1027 = vmul.f32 %v956, %v962
    %v1028 = vld [vmem:[%s3] sm:$0x1]
    %v1030 = vlaneseq
    %v1031 = vshrl.u32 %v1030, 7
    %v1032 = vsub.s32 0, %v1031
    %v1033 = vrot.slane %v1028, %v1032
    %v1035 = vadd.f32 %v964, %v1033
    %v1036 = vadd.f32 %v965, %v1033
    %v1037 = vadd.f32 %v966, %v1033
    %v1038 = vadd.f32 %v967, %v1033
    %v1039 = vadd.f32 %v968, %v1033
    %v1040 = vadd.f32 %v969, %v1033
    %v1041 = vadd.f32 %v970, %v1033
    %v1042 = vadd.f32 %v971, %v1033
    %v1043 = vadd.f32 %v972, %v1033
    %v1044 = vadd.f32 %v973, %v1033
    %v1045 = vadd.f32 %v974, %v1033
    %v1046 = vadd.f32 %v975, %v1033
    %v1047 = vadd.f32 %v976, %v1033
    %v1048 = vadd.f32 %v977, %v1033
    %v1049 = vadd.f32 %v978, %v1033
    %v1050 = vadd.f32 %v979, %v1033
    %v1051 = vadd.f32 %v980, %v1033
    %v1052 = vadd.f32 %v981, %v1033
    %v1053 = vadd.f32 %v982, %v1033
    %v1054 = vadd.f32 %v983, %v1033
    %v1055 = vadd.f32 %v984, %v1033
    %v1056 = vadd.f32 %v985, %v1033
    %v1057 = vadd.f32 %v986, %v1033
    %v1058 = vadd.f32 %v987, %v1033
    %v1059 = vadd.f32 %v988, %v1033
    %v1060 = vadd.f32 %v989, %v1033
    %v1061 = vadd.f32 %v990, %v1033
    %v1062 = vadd.f32 %v991, %v1033
    %v1063 = vadd.f32 %v992, %v1033
    %v1064 = vadd.f32 %v993, %v1033
    %v1065 = vadd.f32 %v994, %v1033
    %v1066 = vadd.f32 %v995, %v1033
    %v1067 = vadd.f32 %v996, %v1033
    %v1068 = vadd.f32 %v997, %v1033
    %v1069 = vadd.f32 %v998, %v1033
    %v1070 = vadd.f32 %v999, %v1033
    %v1071 = vadd.f32 %v1000, %v1033
    %v1072 = vadd.f32 %v1001, %v1033
    %v1073 = vadd.f32 %v1002, %v1033
    %v1074 = vadd.f32 %v1003, %v1033
    %v1075 = vadd.f32 %v1004, %v1033
    %v1076 = vadd.f32 %v1005, %v1033
    %v1077 = vadd.f32 %v1006, %v1033
    %v1078 = vadd.f32 %v1007, %v1033
    %v1079 = vadd.f32 %v1008, %v1033
    %v1080 = vadd.f32 %v1009, %v1033
    %v1081 = vadd.f32 %v1010, %v1033
    %v1082 = vadd.f32 %v1011, %v1033
    %v1083 = vadd.f32 %v1012, %v1033
    %v1084 = vadd.f32 %v1013, %v1033
    %v1085 = vadd.f32 %v1014, %v1033
    %v1086 = vadd.f32 %v1015, %v1033
    %v1087 = vadd.f32 %v1016, %v1033
    %v1088 = vadd.f32 %v1017, %v1033
    %v1089 = vadd.f32 %v1018, %v1033
    %v1090 = vadd.f32 %v1019, %v1033
    %v1091 = vadd.f32 %v1020, %v1033
    %v1092 = vadd.f32 %v1021, %v1033
    %v1093 = vadd.f32 %v1022, %v1033
    %v1094 = vadd.f32 %v1023, %v1033
    %v1095 = vadd.f32 %v1024, %v1033
    %v1096 = vadd.f32 %v1025, %v1033
    %v1097 = vadd.f32 %v1026, %v1033
    %v1098 = vadd.f32 %v1027, %v1033
    %v1099 = vld [vmem:[%s4] sm:$0xf]
    %v1100 = vld [vmem:[%s4 + $0x4] sm:$0xf]
    %v1101 = vld [vmem:[%s4 + $0x8] sm:$0xf]
    %v1102 = vld [vmem:[%s4 + $0xc] sm:$0xf]
    %v1103 = vld [vmem:[%s4 + $0x10] sm:$0xf]
    %v1104 = vld [vmem:[%s4 + $0x14] sm:$0xf]
    %v1105 = vld [vmem:[%s4 + $0x18] sm:$0xf]
    %v1106 = vld [vmem:[%s4 + $0x1c] sm:$0xf]
    %v1107 = vld [vmem:[%s4 + $0x20] sm:$0xf]
    %v1108 = vld [vmem:[%s4 + $0x24] sm:$0xf]
    %v1109 = vld [vmem:[%s4 + $0x28] sm:$0xf]
    %v1110 = vld [vmem:[%s4 + $0x2c] sm:$0xf]
    %v1111 = vld [vmem:[%s4 + $0x30] sm:$0xf]
    %v1112 = vld [vmem:[%s4 + $0x34] sm:$0xf]
    %v1113 = vld [vmem:[%s4 + $0x38] sm:$0xf]
    %v1114 = vld [vmem:[%s4 + $0x3c] sm:$0xf]
    %v1115 = vld [vmem:[%s4 + $0x40] sm:$0xf]
    %v1116 = vld [vmem:[%s4 + $0x44] sm:$0xf]
    %v1117 = vld [vmem:[%s4 + $0x48] sm:$0xf]
    %v1118 = vld [vmem:[%s4 + $0x4c] sm:$0xf]
    %v1119 = vld [vmem:[%s4 + $0x50] sm:$0xf]
    %v1120 = vld [vmem:[%s4 + $0x54] sm:$0xf]
    %v1121 = vld [vmem:[%s4 + $0x58] sm:$0xf]
    %v1122 = vld [vmem:[%s4 + $0x5c] sm:$0xf]
    %v1123 = vld [vmem:[%s4 + $0x60] sm:$0xf]
    %v1124 = vld [vmem:[%s4 + $0x64] sm:$0xf]
    %v1125 = vld [vmem:[%s4 + $0x68] sm:$0xf]
    %v1126 = vld [vmem:[%s4 + $0x6c] sm:$0xf]
    %v1127 = vld [vmem:[%s4 + $0x70] sm:$0xf]
    %v1128 = vld [vmem:[%s4 + $0x74] sm:$0xf]
    %v1129 = vld [vmem:[%s4 + $0x78] sm:$0xf]
    %v1130 = vld [vmem:[%s4 + $0x7c] sm:$0xf]
    %v1131 = vld [vmem:[%s4 + $0x80] sm:$0xf]
    %v1132 = vld [vmem:[%s4 + $0x84] sm:$0xf]
    %v1133 = vld [vmem:[%s4 + $0x88] sm:$0xf]
    %v1134 = vld [vmem:[%s4 + $0x8c] sm:$0xf]
    %v1135 = vld [vmem:[%s4 + $0x90] sm:$0xf]
    %v1136 = vld [vmem:[%s4 + $0x94] sm:$0xf]
    %v1137 = vld [vmem:[%s4 + $0x98] sm:$0xf]
    %v1138 = vld [vmem:[%s4 + $0x9c] sm:$0xf]
    %v1139 = vld [vmem:[%s4 + $0xa0] sm:$0xf]
    %v1140 = vld [vmem:[%s4 + $0xa4] sm:$0xf]
    %v1141 = vld [vmem:[%s4 + $0xa8] sm:$0xf]
    %v1142 = vld [vmem:[%s4 + $0xac] sm:$0xf]
    %v1143 = vld [vmem:[%s4 + $0xb0] sm:$0xf]
    %v1144 = vld [vmem:[%s4 + $0xb4] sm:$0xf]
    %v1145 = vld [vmem:[%s4 + $0xb8] sm:$0xf]
    %v1146 = vld [vmem:[%s4 + $0xbc] sm:$0xf]
    %v1147 = vld [vmem:[%s4 + $0xc0] sm:$0xf]
    %v1148 = vld [vmem:[%s4 + $0xc4] sm:$0xf]
    %v1149 = vld [vmem:[%s4 + $0xc8] sm:$0xf]
    %v1150 = vld [vmem:[%s4 + $0xcc] sm:$0xf]
    %v1151 = vld [vmem:[%s4 + $0xd0] sm:$0xf]
    %v1152 = vld [vmem:[%s4 + $0xd4] sm:$0xf]
    %v1153 = vld [vmem:[%s4 + $0xd8] sm:$0xf]
    %v1154 = vld [vmem:[%s4 + $0xdc] sm:$0xf]
    %v1155 = vld [vmem:[%s4 + $0xe0] sm:$0xf]
    %v1156 = vld [vmem:[%s4 + $0xe4] sm:$0xf]
    %v1157 = vld [vmem:[%s4 + $0xe8] sm:$0xf]
    %v1158 = vld [vmem:[%s4 + $0xec] sm:$0xf]
    %v1159 = vld [vmem:[%s4 + $0xf0] sm:$0xf]
    %v1160 = vld [vmem:[%s4 + $0xf4] sm:$0xf]
    %v1161 = vld [vmem:[%s4 + $0xf8] sm:$0xf]
    %v1162 = vld [vmem:[%s4 + $0xfc] sm:$0xf]
    %v1163 = vunpack.c.l.bf16 %v1099
    %v1164 = vunpack.c.l.bf16 %v1100
    %v1165 = vunpack.c.l.bf16 %v1101
    %v1166 = vunpack.c.l.bf16 %v1102
    %v1167 = vunpack.c.l.bf16 %v1103
    %v1168 = vunpack.c.l.bf16 %v1104
    %v1169 = vunpack.c.l.bf16 %v1105
    %v1170 = vunpack.c.l.bf16 %v1106
    %v1171 = vunpack.c.l.bf16 %v1107
    %v1172 = vunpack.c.l.bf16 %v1108
    %v1173 = vunpack.c.l.bf16 %v1109
    %v1174 = vunpack.c.l.bf16 %v1110
    %v1175 = vunpack.c.l.bf16 %v1111
    %v1176 = vunpack.c.l.bf16 %v1112
    %v1177 = vunpack.c.l.bf16 %v1113
    %v1178 = vunpack.c.l.bf16 %v1114
    %v1179 = vunpack.c.l.bf16 %v1115
    %v1180 = vunpack.c.l.bf16 %v1116
    %v1181 = vunpack.c.l.bf16 %v1117
    %v1182 = vunpack.c.l.bf16 %v1118
    %v1183 = vunpack.c.l.bf16 %v1119
    %v1184 = vunpack.c.l.bf16 %v1120
    %v1185 = vunpack.c.l.bf16 %v1121
    %v1186 = vunpack.c.l.bf16 %v1122
    %v1187 = vunpack.c.l.bf16 %v1123
    %v1188 = vunpack.c.l.bf16 %v1124
    %v1189 = vunpack.c.l.bf16 %v1125
    %v1190 = vunpack.c.l.bf16 %v1126
    %v1191 = vunpack.c.l.bf16 %v1127
    %v1192 = vunpack.c.l.bf16 %v1128
    %v1193 = vunpack.c.l.bf16 %v1129
    %v1194 = vunpack.c.l.bf16 %v1130
    %v1195 = vunpack.c.l.bf16 %v1131
    %v1196 = vunpack.c.l.bf16 %v1132
    %v1197 = vunpack.c.l.bf16 %v1133
    %v1198 = vunpack.c.l.bf16 %v1134
    %v1199 = vunpack.c.l.bf16 %v1135
    %v1200 = vunpack.c.l.bf16 %v1136
    %v1201 = vunpack.c.l.bf16 %v1137
    %v1202 = vunpack.c.l.bf16 %v1138
    %v1203 = vunpack.c.l.bf16 %v1139
    %v1204 = vunpack.c.l.bf16 %v1140
    %v1205 = vunpack.c.l.bf16 %v1141
    %v1206 = vunpack.c.l.bf16 %v1142
    %v1207 = vunpack.c.l.bf16 %v1143
    %v1208 = vunpack.c.l.bf16 %v1144
    %v1209 = vunpack.c.l.bf16 %v1145
    %v1210 = vunpack.c.l.bf16 %v1146
    %v1211 = vunpack.c.l.bf16 %v1147
    %v1212 = vunpack.c.l.bf16 %v1148
    %v1213 = vunpack.c.l.bf16 %v1149
    %v1214 = vunpack.c.l.bf16 %v1150
    %v1215 = vunpack.c.l.bf16 %v1151
    %v1216 = vunpack.c.l.bf16 %v1152
    %v1217 = vunpack.c.l.bf16 %v1153
    %v1218 = vunpack.c.l.bf16 %v1154
    %v1219 = vunpack.c.l.bf16 %v1155
    %v1220 = vunpack.c.l.bf16 %v1156
    %v1221 = vunpack.c.l.bf16 %v1157
    %v1222 = vunpack.c.l.bf16 %v1158
    %v1223 = vunpack.c.l.bf16 %v1159
    %v1224 = vunpack.c.l.bf16 %v1160
    %v1225 = vunpack.c.l.bf16 %v1161
    %v1226 = vunpack.c.l.bf16 %v1162
    %v1227 = vadd.f32 %v1035, %v1163
    %v1228 = vadd.f32 %v1036, %v1164
    %v1229 = vadd.f32 %v1037, %v1165
    %v1230 = vadd.f32 %v1038, %v1166
    %v1231 = vadd.f32 %v1039, %v1167
    %v1232 = vadd.f32 %v1040, %v1168
    %v1233 = vadd.f32 %v1041, %v1169
    %v1234 = vadd.f32 %v1042, %v1170
    %v1235 = vadd.f32 %v1043, %v1171
    %v1236 = vadd.f32 %v1044, %v1172
    %v1237 = vadd.f32 %v1045, %v1173
    %v1238 = vadd.f32 %v1046, %v1174
    %v1239 = vadd.f32 %v1047, %v1175
    %v1240 = vadd.f32 %v1048, %v1176
    %v1241 = vadd.f32 %v1049, %v1177
    %v1242 = vadd.f32 %v1050, %v1178
    %v1243 = vadd.f32 %v1051, %v1179
    %v1244 = vadd.f32 %v1052, %v1180
    %v1245 = vadd.f32 %v1053, %v1181
    %v1246 = vadd.f32 %v1054, %v1182
    %v1247 = vadd.f32 %v1055, %v1183
    %v1248 = vadd.f32 %v1056, %v1184
    %v1249 = vadd.f32 %v1057, %v1185
    %v1250 = vadd.f32 %v1058, %v1186
    %v1251 = vadd.f32 %v1059, %v1187
    %v1252 = vadd.f32 %v1060, %v1188
    %v1253 = vadd.f32 %v1061, %v1189
    %v1254 = vadd.f32 %v1062, %v1190
    %v1255 = vadd.f32 %v1063, %v1191
    %v1256 = vadd.f32 %v1064, %v1192
    %v1257 = vadd.f32 %v1065, %v1193
    %v1258 = vadd.f32 %v1066, %v1194
    %v1259 = vadd.f32 %v1067, %v1195
    %v1260 = vadd.f32 %v1068, %v1196
    %v1261 = vadd.f32 %v1069, %v1197
    %v1262 = vadd.f32 %v1070, %v1198
    %v1263 = vadd.f32 %v1071, %v1199
    %v1264 = vadd.f32 %v1072, %v1200
    %v1265 = vadd.f32 %v1073, %v1201
    %v1266 = vadd.f32 %v1074, %v1202
    %v1267 = vadd.f32 %v1075, %v1203
    %v1268 = vadd.f32 %v1076, %v1204
    %v1269 = vadd.f32 %v1077, %v1205
    %v1270 = vadd.f32 %v1078, %v1206
    %v1271 = vadd.f32 %v1079, %v1207
    %v1272 = vadd.f32 %v1080, %v1208
    %v1273 = vadd.f32 %v1081, %v1209
    %v1274 = vadd.f32 %v1082, %v1210
    %v1275 = vadd.f32 %v1083, %v1211
    %v1276 = vadd.f32 %v1084, %v1212
    %v1277 = vadd.f32 %v1085, %v1213
    %v1278 = vadd.f32 %v1086, %v1214
    %v1279 = vadd.f32 %v1087, %v1215
    %v1280 = vadd.f32 %v1088, %v1216
    %v1281 = vadd.f32 %v1089, %v1217
    %v1282 = vadd.f32 %v1090, %v1218
    %v1283 = vadd.f32 %v1091, %v1219
    %v1284 = vadd.f32 %v1092, %v1220
    %v1285 = vadd.f32 %v1093, %v1221
    %v1286 = vadd.f32 %v1094, %v1222
    %v1287 = vadd.f32 %v1095, %v1223
    %v1288 = vadd.f32 %v1096, %v1224
    %v1289 = vadd.f32 %v1097, %v1225
    %v1290 = vadd.f32 %v1098, %v1226
    %v1291 = vmax.f32 %v1227, 0.0
    %v1292 = vmax.f32 %v1228, 0.0
    %v1293 = vmax.f32 %v1229, 0.0
    %v1294 = vmax.f32 %v1230, 0.0
    %v1295 = vmax.f32 %v1231, 0.0
    %v1296 = vmax.f32 %v1232, 0.0
    %v1297 = vmax.f32 %v1233, 0.0
    %v1298 = vmax.f32 %v1234, 0.0
    %v1299 = vmax.f32 %v1235, 0.0
    %v1300 = vmax.f32 %v1236, 0.0
    %v1301 = vmax.f32 %v1237, 0.0
    %v1302 = vmax.f32 %v1238, 0.0
    %v1303 = vmax.f32 %v1239, 0.0
    %v1304 = vmax.f32 %v1240, 0.0
    %v1305 = vmax.f32 %v1241, 0.0
    %v1306 = vmax.f32 %v1242, 0.0
    %v1307 = vmax.f32 %v1243, 0.0
    %v1308 = vmax.f32 %v1244, 0.0
    %v1309 = vmax.f32 %v1245, 0.0
    %v1310 = vmax.f32 %v1246, 0.0
    %v1311 = vmax.f32 %v1247, 0.0
    %v1312 = vmax.f32 %v1248, 0.0
    %v1313 = vmax.f32 %v1249, 0.0
    %v1314 = vmax.f32 %v1250, 0.0
    %v1315 = vmax.f32 %v1251, 0.0
    %v1316 = vmax.f32 %v1252, 0.0
    %v1317 = vmax.f32 %v1253, 0.0
    %v1318 = vmax.f32 %v1254, 0.0
    %v1319 = vmax.f32 %v1255, 0.0
    %v1320 = vmax.f32 %v1256, 0.0
    %v1321 = vmax.f32 %v1257, 0.0
    %v1322 = vmax.f32 %v1258, 0.0
    %v1323 = vmax.f32 %v1259, 0.0
    %v1324 = vmax.f32 %v1260, 0.0
    %v1325 = vmax.f32 %v1261, 0.0
    %v1326 = vmax.f32 %v1262, 0.0
    %v1327 = vmax.f32 %v1263, 0.0
    %v1328 = vmax.f32 %v1264, 0.0
    %v1329 = vmax.f32 %v1265, 0.0
    %v1330 = vmax.f32 %v1266, 0.0
    %v1331 = vmax.f32 %v1267, 0.0
    %v1332 = vmax.f32 %v1268, 0.0
    %v1333 = vmax.f32 %v1269, 0.0
    %v1334 = vmax.f32 %v1270, 0.0
    %v1335 = vmax.f32 %v1271, 0.0
    %v1336 = vmax.f32 %v1272, 0.0
    %v1337 = vmax.f32 %v1273, 0.0
    %v1338 = vmax.f32 %v1274, 0.0
    %v1339 = vmax.f32 %v1275, 0.0
    %v1340 = vmax.f32 %v1276, 0.0
    %v1341 = vmax.f32 %v1277, 0.0
    %v1342 = vmax.f32 %v1278, 0.0
    %v1343 = vmax.f32 %v1279, 0.0
    %v1344 = vmax.f32 %v1280, 0.0
    %v1345 = vmax.f32 %v1281, 0.0
    %v1346 = vmax.f32 %v1282, 0.0
    %v1347 = vmax.f32 %v1283, 0.0
    %v1348 = vmax.f32 %v1284, 0.0
    %v1349 = vmax.f32 %v1285, 0.0
    %v1350 = vmax.f32 %v1286, 0.0
    %v1351 = vmax.f32 %v1287, 0.0
    %v1352 = vmax.f32 %v1288, 0.0
    %v1353 = vmax.f32 %v1289, 0.0
    %v1354 = vmax.f32 %v1290, 0.0
    %1355 = vst [vmem:[%s5] sm:$0xff] %v1291
    %1356 = vst [vmem:[%s5 + $0x8] sm:$0xff] %v1292
    %1357 = vst [vmem:[%s5 + $0x10] sm:$0xff] %v1293
    %1358 = vst [vmem:[%s5 + $0x18] sm:$0xff] %v1294
    %1359 = vst [vmem:[%s5 + $0x20] sm:$0xff] %v1295
    %1360 = vst [vmem:[%s5 + $0x28] sm:$0xff] %v1296
    %1361 = vst [vmem:[%s5 + $0x30] sm:$0xff] %v1297
    %1362 = vst [vmem:[%s5 + $0x38] sm:$0xff] %v1298
    %1363 = vst [vmem:[%s5 + $0x40] sm:$0xff] %v1299
    %1364 = vst [vmem:[%s5 + $0x48] sm:$0xff] %v1300
    %1365 = vst [vmem:[%s5 + $0x50] sm:$0xff] %v1301
    %1366 = vst [vmem:[%s5 + $0x58] sm:$0xff] %v1302
    %1367 = vst [vmem:[%s5 + $0x60] sm:$0xff] %v1303
    %1368 = vst [vmem:[%s5 + $0x68] sm:$0xff] %v1304
    %1369 = vst [vmem:[%s5 + $0x70] sm:$0xff] %v1305
    %1370 = vst [vmem:[%s5 + $0x78] sm:$0xff] %v1306
    %1371 = vst [vmem:[%s5 + $0x80] sm:$0xff] %v1307
    %1372 = vst [vmem:[%s5 + $0x88] sm:$0xff] %v1308
    %1373 = vst [vmem:[%s5 + $0x90] sm:$0xff] %v1309
    %1374 = vst [vmem:[%s5 + $0x98] sm:$0xff] %v1310
    %1375 = vst [vmem:[%s5 + $0xa0] sm:$0xff] %v1311
    %1376 = vst [vmem:[%s5 + $0xa8] sm:$0xff] %v1312
    %1377 = vst [vmem:[%s5 + $0xb0] sm:$0xff] %v1313
    %1378 = vst [vmem:[%s5 + $0xb8] sm:$0xff] %v1314
    %1379 = vst [vmem:[%s5 + $0xc0] sm:$0xff] %v1315
    %1380 = vst [vmem:[%s5 + $0xc8] sm:$0xff] %v1316
    %1381 = vst [vmem:[%s5 + $0xd0] sm:$0xff] %v1317
    %1382 = vst [vmem:[%s5 + $0xd8] sm:$0xff] %v1318
    %1383 = vst [vmem:[%s5 + $0xe0] sm:$0xff] %v1319
    %1384 = vst [vmem:[%s5 + $0xe8] sm:$0xff] %v1320
    %1385 = vst [vmem:[%s5 + $0xf0] sm:$0xff] %v1321
    %1386 = vst [vmem:[%s5 + $0xf8] sm:$0xff] %v1322
    %1387 = vst [vmem:[%s5 + $0x100] sm:$0xff] %v1323
    %1388 = vst [vmem:[%s5 + $0x108] sm:$0xff] %v1324
    %1389 = vst [vmem:[%s5 + $0x110] sm:$0xff] %v1325
    %1390 = vst [vmem:[%s5 + $0x118] sm:$0xff] %v1326
    %1391 = vst [vmem:[%s5 + $0x120] sm:$0xff] %v1327
    %1392 = vst [vmem:[%s5 + $0x128] sm:$0xff] %v1328
    %1393 = vst [vmem:[%s5 + $0x130] sm:$0xff] %v1329
    %1394 = vst [vmem:[%s5 + $0x138] sm:$0xff] %v1330
    %1395 = vst [vmem:[%s5 + $0x140] sm:$0xff] %v1331
    %1396 = vst [vmem:[%s5 + $0x148] sm:$0xff] %v1332
    %1397 = vst [vmem:[%s5 + $0x150] sm:$0xff] %v1333
    %1398 = vst [vmem:[%s5 + $0x158] sm:$0xff] %v1334
    %1399 = vst [vmem:[%s5 + $0x160] sm:$0xff] %v1335
    %1400 = vst [vmem:[%s5 + $0x168] sm:$0xff] %v1336
    %1401 = vst [vmem:[%s5 + $0x170] sm:$0xff] %v1337
    %1402 = vst [vmem:[%s5 + $0x178] sm:$0xff] %v1338
    %1403 = vst [vmem:[%s5 + $0x180] sm:$0xff] %v1339
    %1404 = vst [vmem:[%s5 + $0x188] sm:$0xff] %v1340
    %1405 = vst [vmem:[%s5 + $0x190] sm:$0xff] %v1341
    %1406 = vst [vmem:[%s5 + $0x198] sm:$0xff] %v1342
    %1407 = vst [vmem:[%s5 + $0x1a0] sm:$0xff] %v1343
    %1408 = vst [vmem:[%s5 + $0x1a8] sm:$0xff] %v1344
    %1409 = vst [vmem:[%s5 + $0x1b0] sm:$0xff] %v1345
    %1410 = vst [vmem:[%s5 + $0x1b8] sm:$0xff] %v1346
    %1411 = vst [vmem:[%s5 + $0x1c0] sm:$0xff] %v1347
    %1412 = vst [vmem:[%s5 + $0x1c8] sm:$0xff] %v1348
    %1413 = vst [vmem:[%s5 + $0x1d0] sm:$0xff] %v1349
    %1414 = vst [vmem:[%s5 + $0x1d8] sm:$0xff] %v1350
    %1415 = vst [vmem:[%s5 + $0x1e0] sm:$0xff] %v1351
    %1416 = vst [vmem:[%s5 + $0x1e8] sm:$0xff] %v1352
    %1417 = vst [vmem:[%s5 + $0x1f0] sm:$0xff] %v1353
    %1418 = vst [vmem:[%s5 + $0x1f8] sm:$0xff] %v1354
  $region29: #{_forward.7} parent=0 // pred_fallthru
    _
  // Predicated region
  $region30: #{_forward.7} parent=0 // pred_check
    _
  $region31: #{_forward.7} parent=0 // pred_check_branch
    %1420 = sbr.rel (0) target = $region33
  $region32: #{_forward.7} parent=0 // pred_region
    _
  $region33: #{_forward.7} parent=0 // pred_fallthru
    _
  // Predicated region
  $region34: #{_forward.7} parent=0 // pred_check
    _
  $region35: #{_forward.7} parent=0 // pred_check_branch
    %1422 = sbr.rel (0) target = $region37
  $region36: #{_forward.7} parent=0 // pred_region
    _
  $region37: #{_forward.7} parent=0 // pred_fallthru
    _

// kernel: _forward.5
$region0: #{_forward.5}
  #allocation0 [shape = 'u32[]', space=smem, size = 0x4, offset = 0x4, fixed_abs, tag = 'smem constant byte address 0x4 - core index']
  #allocation1 [shape = 'u32[144,128]{1,0:T(1,128)}', space=vmem, size = 0x12000, scoped, tag = 'internal scratch']
  %s0 = inlined_call_operand.vmem [shape: bf16[2,18,18,128], index: 0, kind: input, shape index: {}]
  %s1 = inlined_call_operand.vmem [shape: f32[3,3,1,128], index: 1, kind: input, shape index: {}]
  %s2 = inlined_call_operand.vmem [shape: f32[1,128], index: 2, kind: input, shape index: {}]
  %s3 = inlined_call_operand.vmem [shape: f32[1,128], index: 3, kind: input, shape index: {}]
  %s4 = inlined_call_operand.vmem [shape: bf16[2,16,16,128], index: 4, kind: output, shape index: {}]
  %s5 = sld [smem:[#allocation0]]
  $region49: #{_forward.5} parent=0
    _
  %s7 = ssub.s32 1, %s5
  %s8 = scalar_select 0, %s7, %s5
  loop: start=0, step=1, limit=4
  $region2: #{_forward.5} parent=0 // loop_pre_header
    _
  $region3: #{_forward.5} parent=0 // loop_header
    %s10 = sphi 0, %s14
    %p11 = scmp.ge.s32.totalorder %s10, 4
    %s17 = sphi 0, %s29
    %s18 = sphi 0, %s25
    %s19 = sphi 0, %s17
    %s20 = sphi 0, %s18
    %s21 = sphi 0, %s19
    %s22 = sphi 0, %s20
    %s34 = sphi 0, %s36
    %s37 = sphi 0, %s34
    %s38 = sphi 0, %s37
    %s54 = sphi 0, %s38
    %s60 = sphi 0, %s62
    %s63 = sphi 0, %s60
    %s64 = sphi 0, %s63
    %s80 = sphi 0, %s64
    %s86 = sphi 0, %s88
    %s89 = sphi 0, %s86
    %s90 = sphi 0, %s89
    %s106 = sphi 0, %s90
    %s112 = sphi 0, %s114
    %s115 = sphi 0, %s112
    %s116 = sphi 0, %s115
    %s132 = sphi 0, %s116
    %s140 = sphi 0, %s142
    %s143 = sphi 0, %s140
    %s144 = sphi 0, %s143
    %s160 = sphi 0, %s144
  $region4: #{_forward.5} parent=0 // loop_header_branch
    %13 = sbr.rel (%p11) target = $region8
  $region5: #{_forward.5} parent=0 // loop_body
    %s15 = ssub.s32 %s10, 1
    %s16 = ssub.s32 %s10, 2
    %s23 = sadd.s32 1, %s18
    %p24 = scmp.ge.s32.totalorder %s23, 1
    %s25 = scalar_select %p24, 0, %s23
    %s26 = sadd.s32 1, %s17
    %s27 = scalar_select %p24, %s26, %s17
    %p28 = scmp.ge.s32.totalorder %s27, 2
    %s29 = scalar_select %p28, 0, %s27
    %s30 = ssub.s32 %s17, %s29
    %s31 = ssub.s32 %s18, %s25
    %s32 = sor.u32 %s30, %s31
    %p33 = scmp.eq.s32.totalorder %s32, 0
    %s35 = sadd.s32 %s34, 1
    %s36 = scalar_select %p33, %s34, %s35
    %p39 = pneg %p33
    %p40 = scmp.eq.s32.totalorder %s10, 1
    %p41 = por %p39, %p40
    %p42 = scmp.ne.s32.totalorder %s34, %s37
    %p43 = scmp.eq.s32.totalorder %s10, 0
    %p44 = por %p42, %p43
    %p45 = scmp.ne.s32.totalorder %s34, %s37
    %p46 = scmp.eq.s32.totalorder %s15, 1
    %p47 = por %p45, %p46
    %p48 = scmp.ne.s32.totalorder %s37, %s38
    %p49 = scmp.eq.s32.totalorder %s15, 0
    %p50 = por %p48, %p49
    %p51 = scmp.ne.s32.totalorder %s37, %s38
    %p52 = scmp.eq.s32.totalorder %s16, 1
    %p53 = por %p51, %p52
    %p55 = scmp.ne.s32.totalorder %s38, %s54
    %p56 = scmp.eq.s32.totalorder %s16, 0
    %p57 = por %p55, %p56
    %s58 = ssub.s32 %s18, %s25
    %p59 = scmp.eq.s32.totalorder %s58, 0
    %s61 = sadd.s32 %s60, 1
    %s62 = scalar_select %p59, %s60, %s61
    %p65 = pneg %p59
    %p66 = scmp.eq.s32.totalorder %s10, 1
    %p67 = por %p65, %p66
    %p68 = scmp.ne.s32.totalorder %s60, %s63
    %p69 = scmp.eq.s32.totalorder %s10, 0
    %p70 = por %p68, %p69
    %p71 = scmp.ne.s32.totalorder %s60, %s63
    %p72 = scmp.eq.s32.totalorder %s15, 1
    %p73 = por %p71, %p72
    %p74 = scmp.ne.s32.totalorder %s63, %s64
    %p75 = scmp.eq.s32.totalorder %s15, 0
    %p76 = por %p74, %p75
    %p77 = scmp.ne.s32.totalorder %s63, %s64
    %p78 = scmp.eq.s32.totalorder %s16, 1
    %p79 = por %p77, %p78
    %p81 = scmp.ne.s32.totalorder %s64, %s80
    %p82 = scmp.eq.s32.totalorder %s16, 0
    %p83 = por %p81, %p82
    %s84 = ssub.s32 %s18, %s25
    %p85 = scmp.eq.s32.totalorder %s84, 0
    %s87 = sadd.s32 %s86, 1
    %s88 = scalar_select %p85, %s86, %s87
    %p91 = pneg %p85
    %p92 = scmp.eq.s32.totalorder %s10, 1
    %p93 = por %p91, %p92
    %p94 = scmp.ne.s32.totalorder %s86, %s89
    %p95 = scmp.eq.s32.totalorder %s10, 0
    %p96 = por %p94, %p95
    %p97 = scmp.ne.s32.totalorder %s86, %s89
    %p98 = scmp.eq.s32.totalorder %s15, 1
    %p99 = por %p97, %p98
    %p100 = scmp.ne.s32.totalorder %s89, %s90
    %p101 = scmp.eq.s32.totalorder %s15, 0
    %p102 = por %p100, %p101
    %p103 = scmp.ne.s32.totalorder %s89, %s90
    %p104 = scmp.eq.s32.totalorder %s16, 1
    %p105 = por %p103, %p104
    %p107 = scmp.ne.s32.totalorder %s90, %s106
    %p108 = scmp.eq.s32.totalorder %s16, 0
    %p109 = por %p107, %p108
    %s110 = ssub.s32 %s18, %s25
    %p111 = scmp.eq.s32.totalorder %s110, 0
    %s113 = sadd.s32 %s112, 1
    %s114 = scalar_select %p111, %s112, %s113
    %p117 = pneg %p111
    %p118 = scmp.eq.s32.totalorder %s10, 1
    %p119 = por %p117, %p118
    %p120 = scmp.ne.s32.totalorder %s112, %s115
    %p121 = scmp.eq.s32.totalorder %s10, 0
    %p122 = por %p120, %p121
    %p123 = scmp.ne.s32.totalorder %s112, %s115
    %p124 = scmp.eq.s32.totalorder %s15, 1
    %p125 = por %p123, %p124
    %p126 = scmp.ne.s32.totalorder %s115, %s116
    %p127 = scmp.eq.s32.totalorder %s15, 0
    %p128 = por %p126, %p127
    %p129 = scmp.ne.s32.totalorder %s115, %s116
    %p130 = scmp.eq.s32.totalorder %s16, 1
    %p131 = por %p129, %p130
    %p133 = scmp.ne.s32.totalorder %s116, %s132
    %p134 = scmp.eq.s32.totalorder %s16, 0
    %p135 = por %p133, %p134
    %s136 = ssub.s32 %s17, %s29
    %s137 = ssub.s32 %s18, %s25
    %s138 = sor.u32 %s136, %s137
    %p139 = scmp.eq.s32.totalorder %s138, 0
    %s141 = sadd.s32 %s140, 1
    %s142 = scalar_select %p139, %s140, %s141
    %p145 = pneg %p139
    %p146 = scmp.eq.s32.totalorder %s10, 1
    %p147 = por %p145, %p146
    %p148 = scmp.ne.s32.totalorder %s140, %s143
    %p149 = scmp.eq.s32.totalorder %s10, 0
    %p150 = por %p148, %p149
    %p151 = scmp.ne.s32.totalorder %s140, %s143
    %p152 = scmp.eq.s32.totalorder %s15, 1
    %p153 = por %p151, %p152
    %p154 = scmp.ne.s32.totalorder %s143, %s144
    %p155 = scmp.eq.s32.totalorder %s15, 0
    %p156 = por %p154, %p155
    %p157 = scmp.ne.s32.totalorder %s143, %s144
    %p158 = scmp.eq.s32.totalorder %s16, 1
    %p159 = por %p157, %p158
    %p161 = scmp.ne.s32.totalorder %s144, %s160
    %p162 = scmp.eq.s32.totalorder %s16, 0
    %p163 = por %p161, %p162
    %p164 = scmp.le.s32.totalorder 1, %s10
    %p165 = scmp.lt.s32.totalorder %s10, 3
    %p166 = pnand %p164, %p165
    %p167 = pneg %p166
    // Predicated region
    $region9: #{_forward.5} parent=5 // pred_check
      _
    $region10: #{_forward.5} parent=5 // pred_check_branch
      %169 = sbr.rel (%p166) target = $region12
    $region11: #{_forward.5} parent=5 // pred_region
      %s170 = ssub.s32 %s10, 1
      // Predicated region
      $region13: #{_forward.5} parent=11 // pred_check
        %p171 = pneg %p76
      $region14: #{_forward.5} parent=11 // pred_check_branch
        %173 = sbr.rel (%p171) target = $region16
      $region15: #{_forward.5} parent=11 // pred_region
        %p174 = scmp.lt.s32.totalorder %s20, 0
        %s175 = scalar_select %p174, %s20, 0
        %s176 = scalar_lea.vmem %s1, %s175
      $region16: #{_forward.5} parent=11 // pred_fallthru
        _
      // Predicated region
      $region17: #{_forward.5} parent=11 // pred_check
        %p177 = pneg %p102
      $region18: #{_forward.5} parent=11 // pred_check_branch
        %179 = sbr.rel (%p177) target = $region20
      $region19: #{_forward.5} parent=11 // pred_region
        %p180 = scmp.lt.s32.totalorder %s20, 0
        %s181 = scalar_select %p180, %s20, 0
        %s182 = scalar_lea.vmem %s2, %s181
      $region20: #{_forward.5} parent=11 // pred_fallthru
        _
      // Predicated region
      $region21: #{_forward.5} parent=11 // pred_check
        %p183 = pneg %p128
      $region22: #{_forward.5} parent=11 // pred_check_branch
        %185 = sbr.rel (%p183) target = $region24
      $region23: #{_forward.5} parent=11 // pred_region
        %p186 = scmp.lt.s32.totalorder %s20, 0
        %s187 = scalar_select %p186, %s20, 0
        %s188 = scalar_lea.vmem %s3, %s187
      $region24: #{_forward.5} parent=11 // pred_fallthru
        _
    $region12: #{_forward.5} parent=5 // pred_fallthru
      _
    %p189 = scmp.lt.s32.totalorder %s10, 2
    // Predicated region
    $region25: #{_forward.5} parent=5 // pred_check
      %p190 = pneg %p189
    $region26: #{_forward.5} parent=5 // pred_check_branch
      %192 = sbr.rel (%p190) target = $region28
    $region27: #{_forward.5} parent=5 // pred_region
      // Predicated region
      $region29: #{_forward.5} parent=27 // pred_check
        %p193 = pneg %p44
      $region30: #{_forward.5} parent=27 // pred_check_branch
        %195 = sbr.rel (%p193) target = $region32
      $region31: #{_forward.5} parent=27 // pred_region
        %p196 = scmp.lt.s32.totalorder %s17, 1
        %s197 = scalar_select %p196, %s17, 1
        %p198 = scmp.lt.s32.totalorder %s18, 0
        %s199 = scalar_select %p198, %s18, 0
        %s200 = smul.addr %s197, 54
        %s201 = sadd.s32 %s199, %s200
        %s202 = smul.addr %s201, 4
        %s203 = scalar_lea.vmem %s0, %s202
      $region32: #{_forward.5} parent=27 // pred_fallthru
        _
    $region28: #{_forward.5} parent=5 // pred_fallthru
      _
    %p204 = scmp.le.s32.totalorder 1, %s10
    %p205 = scmp.lt.s32.totalorder %s10, 3
    %p206 = pnand %p204, %p205
    %p207 = pneg %p206
    // Predicated region
    $region33: #{_forward.5} parent=5 // pred_check
      _
    $region34: #{_forward.5} parent=5 // pred_check_branch
      %209 = sbr.rel (%p206) target = $region36
    $region35: #{_forward.5} parent=5 // pred_region
      %s210 = ssub.s32 %s10, 1
      %p211 = scmp.lt.s32.totalorder %s19, 1
      %s212 = scalar_select %p211, %s19, 1
      %p213 = scmp.lt.s32.totalorder %s20, 0
      %s214 = scalar_select %p213, %s20, 0
      %s215 = smul.addr %s212, 54
      %s216 = sadd.s32 %s214, %s215
      %s217 = smul.addr %s216, 4
      %s218 = scalar_lea.vmem %s0, %s217
      %p219 = pneg %p50
      %p220 = pneg %p47
      %p221 = scmp.lt.s32.totalorder %s20, 0
      %s222 = scalar_select %p221, %s20, 0
      %s223 = scalar_lea.vmem %s1, %s222
      %p224 = pneg %p76
      %p225 = pneg %p73
      %p226 = scmp.lt.s32.totalorder %s20, 0
      %s227 = scalar_select %p226, %s20, 0
      %s228 = scalar_lea.vmem %s2, %s227
      %p229 = pneg %p102
      %p230 = pneg %p99
      %p231 = scmp.lt.s32.totalorder %s20, 0
      %s232 = scalar_select %p231, %s20, 0
      %s233 = scalar_lea.vmem %s3, %s232
      %p234 = pneg %p128
      %p235 = pneg %p125
      %p236 = pneg %p156
      %p237 = pneg %p153
      %p238 = scmp.lt.s32.totalorder %s19, 1
      %s239 = scalar_select %p238, %s19, 1
      %p240 = scmp.lt.s32.totalorder %s20, 0
      %s241 = scalar_select %p240, %s20, 0
      %s242 = smul.addr %s239, 32
      %s243 = sadd.s32 %s241, %s242
      %s244 = smul.addr %s243, 4
      %s245 = scalar_lea.vmem %s4, %s244
      %p246 = scmp.lt.s32.totalorder %s19, 1
      %s247 = scalar_select %p246, %s19, 1
      %p248 = scmp.lt.s32.totalorder %s20, 0
      %s249 = scalar_select %p248, %s20, 0
      %s250 = smul.addr %s247, 54
      %s251 = sadd.s32 %s249, %s250
      %s252 = smul.addr %s251, 4
      %s253 = scalar_lea.vmem %s0, %s252
      %p254 = scmp.lt.s32.totalorder %s20, 0
      %s255 = scalar_select %p254, %s20, 0
      %s256 = scalar_lea.vmem %s1, %s255
      %p257 = scmp.lt.s32.totalorder %s20, 0
      %s258 = scalar_select %p257, %s20, 0
      %s259 = scalar_lea.vmem %s2, %s258
      %p260 = scmp.lt.s32.totalorder %s20, 0
      %s261 = scalar_select %p260, %s20, 0
      %s262 = scalar_lea.vmem %s3, %s261
      %p263 = scmp.lt.s32.totalorder %s19, 1
      %s264 = scalar_select %p263, %s19, 1
      %p265 = scmp.lt.s32.totalorder %s20, 0
      %s266 = scalar_select %p265, %s20, 0
      %s267 = smul.addr %s264, 32
      %s268 = sadd.s32 %s266, %s267
      %s269 = smul.addr %s268, 4
      %s270 = scalar_lea.vmem %s4, %s269
      %v271 = vld [vmem:[%s253] sm:$0xf]
      %v272 = vld [vmem:[%s253 + $0x4] sm:$0xf]
      %v273 = vld [vmem:[%s253 + $0x8] sm:$0x1]
      %v274 = vld [vmem:[%s253 + $0xc] sm:$0xf]
      %v275 = vld [vmem:[%s253 + $0x10] sm:$0xf]
      %v276 = vld [vmem:[%s253 + $0x14] sm:$0x1]
      %v277 = vld [vmem:[%s253 + $0x18] sm:$0xf]
      %v278 = vld [vmem:[%s253 + $0x1c] sm:$0xf]
      %v279 = vld [vmem:[%s253 + $0x20] sm:$0x1]
      %v280 = vld [vmem:[%s253 + $0x24] sm:$0xf]
      %v281 = vld [vmem:[%s253 + $0x28] sm:$0xf]
      %v282 = vld [vmem:[%s253 + $0x2c] sm:$0x1]
      %v283 = vld [vmem:[%s253 + $0x30] sm:$0xf]
      %v284 = vld [vmem:[%s253 + $0x34] sm:$0xf]
      %v285 = vld [vmem:[%s253 + $0x38] sm:$0x1]
      %v286 = vld [vmem:[%s253 + $0x3c] sm:$0xf]
      %v287 = vld [vmem:[%s253 + $0x40] sm:$0xf]
      %v288 = vld [vmem:[%s253 + $0x44] sm:$0x1]
      %v289 = vld [vmem:[%s253 + $0x48] sm:$0xf]
      %v290 = vld [vmem:[%s253 + $0x4c] sm:$0xf]
      %v291 = vld [vmem:[%s253 + $0x50] sm:$0x1]
      %v292 = vld [vmem:[%s253 + $0x54] sm:$0xf]
      %v293 = vld [vmem:[%s253 + $0x58] sm:$0xf]
      %v294 = vld [vmem:[%s253 + $0x5c] sm:$0x1]
      %v295 = vld [vmem:[%s253 + $0x60] sm:$0xf]
      %v296 = vld [vmem:[%s253 + $0x64] sm:$0xf]
      %v297 = vld [vmem:[%s253 + $0x68] sm:$0x1]
      %v298 = vld [vmem:[%s253 + $0x6c] sm:$0xf]
      %v299 = vld [vmem:[%s253 + $0x70] sm:$0xf]
      %v300 = vld [vmem:[%s253 + $0x74] sm:$0x1]
      %v301 = vld [vmem:[%s253 + $0x78] sm:$0xf]
      %v302 = vld [vmem:[%s253 + $0x7c] sm:$0xf]
      %v303 = vld [vmem:[%s253 + $0x80] sm:$0x1]
      %v304 = vld [vmem:[%s253 + $0x84] sm:$0xf]
      %v305 = vld [vmem:[%s253 + $0x88] sm:$0xf]
      %v306 = vld [vmem:[%s253 + $0x8c] sm:$0x1]
      %v307 = vld [vmem:[%s253 + $0x90] sm:$0xf]
      %v308 = vld [vmem:[%s253 + $0x94] sm:$0xf]
      %v309 = vld [vmem:[%s253 + $0x98] sm:$0x1]
      %v310 = vld [vmem:[%s253 + $0x9c] sm:$0xf]
      %v311 = vld [vmem:[%s253 + $0xa0] sm:$0xf]
      %v312 = vld [vmem:[%s253 + $0xa4] sm:$0x1]
      %v313 = vld [vmem:[%s253 + $0xa8] sm:$0xf]
      %v314 = vld [vmem:[%s253 + $0xac] sm:$0xf]
      %v315 = vld [vmem:[%s253 + $0xb0] sm:$0x1]
      %v316 = vld [vmem:[%s253 + $0xb4] sm:$0xf]
      %v317 = vld [vmem:[%s253 + $0xb8] sm:$0xf]
      %v318 = vld [vmem:[%s253 + $0xbc] sm:$0x1]
      %v319 = vunpack.c.l.bf16 %v271
      %v320 = vunpack.c.l.bf16 %v272
      %v321 = vunpack.c.l.bf16 %v273
      %v322 = vunpack.c.l.bf16 %v274
      %v323 = vunpack.c.l.bf16 %v275
      %v324 = vunpack.c.l.bf16 %v276
      %v325 = vunpack.c.l.bf16 %v277
      %v326 = vunpack.c.l.bf16 %v278
      %v327 = vunpack.c.l.bf16 %v279
      %v328 = vunpack.c.l.bf16 %v280
      %v329 = vunpack.c.l.bf16 %v281
      %v330 = vunpack.c.l.bf16 %v282
      %v331 = vunpack.c.l.bf16 %v283
      %v332 = vunpack.c.l.bf16 %v284
      %v333 = vunpack.c.l.bf16 %v285
      %v334 = vunpack.c.l.bf16 %v286
      %v335 = vunpack.c.l.bf16 %v287
      %v336 = vunpack.c.l.bf16 %v288
      %v337 = vunpack.c.l.bf16 %v289
      %v338 = vunpack.c.l.bf16 %v290
      %v339 = vunpack.c.l.bf16 %v291
      %v340 = vunpack.c.l.bf16 %v292
      %v341 = vunpack.c.l.bf16 %v293
      %v342 = vunpack.c.l.bf16 %v294
      %v343 = vunpack.c.l.bf16 %v295
      %v344 = vunpack.c.l.bf16 %v296
      %v345 = vunpack.c.l.bf16 %v297
      %v346 = vunpack.c.l.bf16 %v298
      %v347 = vunpack.c.l.bf16 %v299
      %v348 = vunpack.c.l.bf16 %v300
      %v349 = vunpack.c.l.bf16 %v301
      %v350 = vunpack.c.l.bf16 %v302
      %v351 = vunpack.c.l.bf16 %v303
      %v352 = vunpack.c.l.bf16 %v304
      %v353 = vunpack.c.l.bf16 %v305
      %v354 = vunpack.c.l.bf16 %v306
      %v355 = vunpack.c.l.bf16 %v307
      %v356 = vunpack.c.l.bf16 %v308
      %v357 = vunpack.c.l.bf16 %v309
      %v358 = vunpack.c.l.bf16 %v310
      %v359 = vunpack.c.l.bf16 %v311
      %v360 = vunpack.c.l.bf16 %v312
      %v361 = vunpack.c.l.bf16 %v313
      %v362 = vunpack.c.l.bf16 %v314
      %v363 = vunpack.c.l.bf16 %v315
      %v364 = vunpack.c.l.bf16 %v316
      %v365 = vunpack.c.l.bf16 %v317
      %v366 = vunpack.c.l.bf16 %v318
      %v367 = vld [vmem:[%s256] sm:$0x1]
      %v369 = vlaneseq
      %v370 = vshrl.u32 %v369, 7
      %v371 = vsub.s32 0, %v370
      %v372 = vrot.slane %v367, %v371
      %v374 = vmul.f32 %v319, %v372
      %v375 = vmul.f32 %v320, %v372
      %v376 = vmul.f32 %v322, %v372
      %v377 = vmul.f32 %v323, %v372
      %v378 = vmul.f32 %v325, %v372
      %v379 = vmul.f32 %v326, %v372
      %v380 = vmul.f32 %v328, %v372
      %v381 = vmul.f32 %v329, %v372
      %v382 = vmul.f32 %v331, %v372
      %v383 = vmul.f32 %v332, %v372
      %v384 = vmul.f32 %v334, %v372
      %v385 = vmul.f32 %v335, %v372
      %v386 = vmul.f32 %v337, %v372
      %v387 = vmul.f32 %v338, %v372
      %v388 = vmul.f32 %v340, %v372
      %v389 = vmul.f32 %v341, %v372
      %v390 = vmul.f32 %v343, %v372
      %v391 = vmul.f32 %v344, %v372
      %v392 = vmul.f32 %v346, %v372
      %v393 = vmul.f32 %v347, %v372
      %v394 = vmul.f32 %v349, %v372
      %v395 = vmul.f32 %v350, %v372
      %v396 = vmul.f32 %v352, %v372
      %v397 = vmul.f32 %v353, %v372
      %v398 = vmul.f32 %v355, %v372
      %v399 = vmul.f32 %v356, %v372
      %v400 = vmul.f32 %v358, %v372
      %v401 = vmul.f32 %v359, %v372
      %v402 = vmul.f32 %v361, %v372
      %v403 = vmul.f32 %v362, %v372
      %v404 = vmul.f32 %v364, %v372
      %v405 = vmul.f32 %v365, %v372
      %s406 = scalar_lea.vmem %s256, 1
      %v407 = vld [vmem:[%s406] sm:$0x1]
      %v409 = vlaneseq
      %v410 = vshrl.u32 %v409, 7
      %v411 = vsub.s32 0, %v410
      %v412 = vrot.slane %v407, %v411
      %v414 = vmul.f32 %v319, %v412
      %v415 = vmul.f32 %v320, %v412
      %v416 = vmul.f32 %v321, %v412
      %v417 = vmul.f32 %v322, %v412
      %v418 = vmul.f32 %v323, %v412
      %v419 = vmul.f32 %v324, %v412
      %v420 = vmul.f32 %v325, %v412
      %v421 = vmul.f32 %v326, %v412
      %v422 = vmul.f32 %v327, %v412
      %v423 = vmul.f32 %v328, %v412
      %v424 = vmul.f32 %v329, %v412
      %v425 = vmul.f32 %v330, %v412
      %v426 = vmul.f32 %v331, %v412
      %v427 = vmul.f32 %v332, %v412
      %v428 = vmul.f32 %v333, %v412
      %v429 = vmul.f32 %v334, %v412
      %v430 = vmul.f32 %v335, %v412
      %v431 = vmul.f32 %v336, %v412
      %v432 = vmul.f32 %v337, %v412
      %v433 = vmul.f32 %v338, %v412
      %v434 = vmul.f32 %v339, %v412
      %v435 = vmul.f32 %v340, %v412
      %v436 = vmul.f32 %v341, %v412
      %v437 = vmul.f32 %v342, %v412
      %v438 = vmul.f32 %v343, %v412
      %v439 = vmul.f32 %v344, %v412
      %v440 = vmul.f32 %v345, %v412
      %v441 = vmul.f32 %v346, %v412
      %v442 = vmul.f32 %v347, %v412
      %v443 = vmul.f32 %v348, %v412
      %v444 = vmul.f32 %v349, %v412
      %v445 = vmul.f32 %v350, %v412
      %v446 = vmul.f32 %v351, %v412
      %v447 = vmul.f32 %v352, %v412
      %v448 = vmul.f32 %v353, %v412
      %v449 = vmul.f32 %v354, %v412
      %v450 = vmul.f32 %v355, %v412
      %v451 = vmul.f32 %v356, %v412
      %v452 = vmul.f32 %v357, %v412
      %v453 = vmul.f32 %v358, %v412
      %v454 = vmul.f32 %v359, %v412
      %v455 = vmul.f32 %v360, %v412
      %v456 = vmul.f32 %v361, %v412
      %v457 = vmul.f32 %v362, %v412
      %v458 = vmul.f32 %v363, %v412
      %v459 = vmul.f32 %v364, %v412
      %v460 = vmul.f32 %v365, %v412
      %v461 = vmul.f32 %v366, %v412
      %vm510 = vcmask 1046528
      %v511 = vrot.slane %v414, 1
      %v512 = vrot.slane %v415, 1
      %v513 = vsel %vm510, %v511, %v512
      %v514 = vrot.slane %v416, 1
      %v515 = vsel %vm510, %v512, %v514
      %v516 = vrot.slane %v417, 1
      %v517 = vrot.slane %v418, 1
      %v518 = vsel %vm510, %v516, %v517
      %v519 = vrot.slane %v419, 1
      %v520 = vsel %vm510, %v517, %v519
      %v521 = vrot.slane %v420, 1
      %v522 = vrot.slane %v421, 1
      %v523 = vsel %vm510, %v521, %v522
      %v524 = vrot.slane %v422, 1
      %v525 = vsel %vm510, %v522, %v524
      %v526 = vrot.slane %v423, 1
      %v527 = vrot.slane %v424, 1
      %v528 = vsel %vm510, %v526, %v527
      %v529 = vrot.slane %v425, 1
      %v530 = vsel %vm510, %v527, %v529
      %v531 = vrot.slane %v426, 1
      %v532 = vrot.slane %v427, 1
      %v533 = vsel %vm510, %v531, %v532
      %v534 = vrot.slane %v428, 1
      %v535 = vsel %vm510, %v532, %v534
      %v536 = vrot.slane %v429, 1
      %v537 = vrot.slane %v430, 1
      %v538 = vsel %vm510, %v536, %v537
      %v539 = vrot.slane %v431, 1
      %v540 = vsel %vm510, %v537, %v539
      %v541 = vrot.slane %v432, 1
      %v542 = vrot.slane %v433, 1
      %v543 = vsel %vm510, %v541, %v542
      %v544 = vrot.slane %v434, 1
      %v545 = vsel %vm510, %v542, %v544
      %v546 = vrot.slane %v435, 1
      %v547 = vrot.slane %v436, 1
      %v548 = vsel %vm510, %v546, %v547
      %v549 = vrot.slane %v437, 1
      %v550 = vsel %vm510, %v547, %v549
      %v551 = vrot.slane %v438, 1
      %v552 = vrot.slane %v439, 1
      %v553 = vsel %vm510, %v551, %v552
      %v554 = vrot.slane %v440, 1
      %v555 = vsel %vm510, %v552, %v554
      %v556 = vrot.slane %v441, 1
      %v557 = vrot.slane %v442, 1
      %v558 = vsel %vm510, %v556, %v557
      %v559 = vrot.slane %v443, 1
      %v560 = vsel %vm510, %v557, %v559
      %v561 = vrot.slane %v444, 1
      %v562 = vrot.slane %v445, 1
      %v563 = vsel %vm510, %v561, %v562
      %v564 = vrot.slane %v446, 1
      %v565 = vsel %vm510, %v562, %v564
      %v566 = vrot.slane %v447, 1
      %v567 = vrot.slane %v448, 1
      %v568 = vsel %vm510, %v566, %v567
      %v569 = vrot.slane %v449, 1
      %v570 = vsel %vm510, %v567, %v569
      %v571 = vrot.slane %v450, 1
      %v572 = vrot.slane %v451, 1
      %v573 = vsel %vm510, %v571, %v572
      %v574 = vrot.slane %v452, 1
      %v575 = vsel %vm510, %v572, %v574
      %v576 = vrot.slane %v453, 1
      %v577 = vrot.slane %v454, 1
      %v578 = vsel %vm510, %v576, %v577
      %v579 = vrot.slane %v455, 1
      %v580 = vsel %vm510, %v577, %v579
      %v581 = vrot.slane %v456, 1
      %v582 = vrot.slane %v457, 1
      %v583 = vsel %vm510, %v581, %v582
      %v584 = vrot.slane %v458, 1
      %v585 = vsel %vm510, %v582, %v584
      %v586 = vrot.slane %v459, 1
      %v587 = vrot.slane %v460, 1
      %v588 = vsel %vm510, %v586, %v587
      %v589 = vrot.slane %v461, 1
      %v590 = vsel %vm510, %v587, %v589
      %v623 = vadd.f32 %v374, %v513
      %v624 = vadd.f32 %v375, %v515
      %v625 = vadd.f32 %v376, %v518
      %v626 = vadd.f32 %v377, %v520
      %v627 = vadd.f32 %v378, %v523
      %v628 = vadd.f32 %v379, %v525
      %v629 = vadd.f32 %v380, %v528
      %v630 = vadd.f32 %v381, %v530
      %v631 = vadd.f32 %v382, %v533
      %v632 = vadd.f32 %v383, %v535
      %v633 = vadd.f32 %v384, %v538
      %v634 = vadd.f32 %v385, %v540
      %v635 = vadd.f32 %v386, %v543
      %v636 = vadd.f32 %v387, %v545
      %v637 = vadd.f32 %v388, %v548
      %v638 = vadd.f32 %v389, %v550
      %v639 = vadd.f32 %v390, %v553
      %v640 = vadd.f32 %v391, %v555
      %v641 = vadd.f32 %v392, %v558
      %v642 = vadd.f32 %v393, %v560
      %v643 = vadd.f32 %v394, %v563
      %v644 = vadd.f32 %v395, %v565
      %v645 = vadd.f32 %v396, %v568
      %v646 = vadd.f32 %v397, %v570
      %v647 = vadd.f32 %v398, %v573
      %v648 = vadd.f32 %v399, %v575
      %v649 = vadd.f32 %v400, %v578
      %v650 = vadd.f32 %v401, %v580
      %v651 = vadd.f32 %v402, %v583
      %v652 = vadd.f32 %v403, %v585
      %v653 = vadd.f32 %v404, %v588
      %v654 = vadd.f32 %v405, %v590
      %s655 = scalar_lea.vmem %s256, 2
      %v656 = vld [vmem:[%s655] sm:$0x1]
      %v658 = vlaneseq
      %v659 = vshrl.u32 %v658, 7
      %v660 = vsub.s32 0, %v659
      %v661 = vrot.slane %v656, %v660
      %v663 = vmul.f32 %v319, %v661
      %v664 = vmul.f32 %v320, %v661
      %v665 = vmul.f32 %v321, %v661
      %v666 = vmul.f32 %v322, %v661
      %v667 = vmul.f32 %v323, %v661
      %v668 = vmul.f32 %v324, %v661
      %v669 = vmul.f32 %v325, %v661
      %v670 = vmul.f32 %v326, %v661
      %v671 = vmul.f32 %v327, %v661
      %v672 = vmul.f32 %v328, %v661
      %v673 = vmul.f32 %v329, %v661
      %v674 = vmul.f32 %v330, %v661
      %v675 = vmul.f32 %v331, %v661
      %v676 = vmul.f32 %v332, %v661
      %v677 = vmul.f32 %v333, %v661
      %v678 = vmul.f32 %v334, %v661
      %v679 = vmul.f32 %v335, %v661
      %v680 = vmul.f32 %v336, %v661
      %v681 = vmul.f32 %v337, %v661
      %v682 = vmul.f32 %v338, %v661
      %v683 = vmul.f32 %v339, %v661
      %v684 = vmul.f32 %v340, %v661
      %v685 = vmul.f32 %v341, %v661
      %v686 = vmul.f32 %v342, %v661
      %v687 = vmul.f32 %v343, %v661
      %v688 = vmul.f32 %v344, %v661
      %v689 = vmul.f32 %v345, %v661
      %v690 = vmul.f32 %v346, %v661
      %v691 = vmul.f32 %v347, %v661
      %v692 = vmul.f32 %v348, %v661
      %v693 = vmul.f32 %v349, %v661
      %v694 = vmul.f32 %v350, %v661
      %v695 = vmul.f32 %v351, %v661
      %v696 = vmul.f32 %v352, %v661
      %v697 = vmul.f32 %v353, %v661
      %v698 = vmul.f32 %v354, %v661
      %v699 = vmul.f32 %v355, %v661
      %v700 = vmul.f32 %v356, %v661
      %v701 = vmul.f32 %v357, %v661
      %v702 = vmul.f32 %v358, %v661
      %v703 = vmul.f32 %v359, %v661
      %v704 = vmul.f32 %v360, %v661
      %v705 = vmul.f32 %v361, %v661
      %v706 = vmul.f32 %v362, %v661
      %v707 = vmul.f32 %v363, %v661
      %v708 = vmul.f32 %v364, %v661
      %v709 = vmul.f32 %v365, %v661
      %v710 = vmul.f32 %v366, %v661
      %vm759 = vcmask 1045504
      %v760 = vrot.slane %v663, 2
      %v761 = vrot.slane %v664, 2
      %v762 = vsel %vm759, %v760, %v761
      %v763 = vrot.slane %v665, 2
      %v764 = vsel %vm759, %v761, %v763
      %v765 = vrot.slane %v666, 2
      %v766 = vrot.slane %v667, 2
      %v767 = vsel %vm759, %v765, %v766
      %v768 = vrot.slane %v668, 2
      %v769 = vsel %vm759, %v766, %v768
      %v770 = vrot.slane %v669, 2
      %v771 = vrot.slane %v670, 2
      %v772 = vsel %vm759, %v770, %v771
      %v773 = vrot.slane %v671, 2
      %v774 = vsel %vm759, %v771, %v773
      %v775 = vrot.slane %v672, 2
      %v776 = vrot.slane %v673, 2
      %v777 = vsel %vm759, %v775, %v776
      %v778 = vrot.slane %v674, 2
      %v779 = vsel %vm759, %v776, %v778
      %v780 = vrot.slane %v675, 2
      %v781 = vrot.slane %v676, 2
      %v782 = vsel %vm759, %v780, %v781
      %v783 = vrot.slane %v677, 2
      %v784 = vsel %vm759, %v781, %v783
      %v785 = vrot.slane %v678, 2
      %v786 = vrot.slane %v679, 2
      %v787 = vsel %vm759, %v785, %v786
      %v788 = vrot.slane %v680, 2
      %v789 = vsel %vm759, %v786, %v788
      %v790 = vrot.slane %v681, 2
      %v791 = vrot.slane %v682, 2
      %v792 = vsel %vm759, %v790, %v791
      %v793 = vrot.slane %v683, 2
      %v794 = vsel %vm759, %v791, %v793
      %v795 = vrot.slane %v684, 2
      %v796 = vrot.slane %v685, 2
      %v797 = vsel %vm759, %v795, %v796
      %v798 = vrot.slane %v686, 2
      %v799 = vsel %vm759, %v796, %v798
      %v800 = vrot.slane %v687, 2
      %v801 = vrot.slane %v688, 2
      %v802 = vsel %vm759, %v800, %v801
      %v803 = vrot.slane %v689, 2
      %v804 = vsel %vm759, %v801, %v803
      %v805 = vrot.slane %v690, 2
      %v806 = vrot.slane %v691, 2
      %v807 = vsel %vm759, %v805, %v806
      %v808 = vrot.slane %v692, 2
      %v809 = vsel %vm759, %v806, %v808
      %v810 = vrot.slane %v693, 2
      %v811 = vrot.slane %v694, 2
      %v812 = vsel %vm759, %v810, %v811
      %v813 = vrot.slane %v695, 2
      %v814 = vsel %vm759, %v811, %v813
      %v815 = vrot.slane %v696, 2
      %v816 = vrot.slane %v697, 2
      %v817 = vsel %vm759, %v815, %v816
      %v818 = vrot.slane %v698, 2
      %v819 = vsel %vm759, %v816, %v818
      %v820 = vrot.slane %v699, 2
      %v821 = vrot.slane %v700, 2
      %v822 = vsel %vm759, %v820, %v821
      %v823 = vrot.slane %v701, 2
      %v824 = vsel %vm759, %v821, %v823
      %v825 = vrot.slane %v702, 2
      %v826 = vrot.slane %v703, 2
      %v827 = vsel %vm759, %v825, %v826
      %v828 = vrot.slane %v704, 2
      %v829 = vsel %vm759, %v826, %v828
      %v830 = vrot.slane %v705, 2
      %v831 = vrot.slane %v706, 2
      %v832 = vsel %vm759, %v830, %v831
      %v833 = vrot.slane %v707, 2
      %v834 = vsel %vm759, %v831, %v833
      %v835 = vrot.slane %v708, 2
      %v836 = vrot.slane %v709, 2
      %v837 = vsel %vm759, %v835, %v836
      %v838 = vrot.slane %v710, 2
      %v839 = vsel %vm759, %v836, %v838
      %v872 = vadd.f32 %v623, %v762
      %v873 = vadd.f32 %v624, %v764
      %v874 = vadd.f32 %v625, %v767
      %v875 = vadd.f32 %v626, %v769
      %v876 = vadd.f32 %v627, %v772
      %v877 = vadd.f32 %v628, %v774
      %v878 = vadd.f32 %v629, %v777
      %v879 = vadd.f32 %v630, %v779
      %v880 = vadd.f32 %v631, %v782
      %v881 = vadd.f32 %v632, %v784
      %v882 = vadd.f32 %v633, %v787
      %v883 = vadd.f32 %v634, %v789
      %v884 = vadd.f32 %v635, %v792
      %v885 = vadd.f32 %v636, %v794
      %v886 = vadd.f32 %v637, %v797
      %v887 = vadd.f32 %v638, %v799
      %v888 = vadd.f32 %v639, %v802
      %v889 = vadd.f32 %v640, %v804
      %v890 = vadd.f32 %v641, %v807
      %v891 = vadd.f32 %v642, %v809
      %v892 = vadd.f32 %v643, %v812
      %v893 = vadd.f32 %v644, %v814
      %v894 = vadd.f32 %v645, %v817
      %v895 = vadd.f32 %v646, %v819
      %v896 = vadd.f32 %v647, %v822
      %v897 = vadd.f32 %v648, %v824
      %v898 = vadd.f32 %v649, %v827
      %v899 = vadd.f32 %v650, %v829
      %v900 = vadd.f32 %v651, %v832
      %v901 = vadd.f32 %v652, %v834
      %v902 = vadd.f32 %v653, %v837
      %v903 = vadd.f32 %v654, %v839
      %s904 = scalar_lea.vmem %s253, 12
      %v905 = vld [vmem:[%s904] sm:$0xf]
      %v906 = vld [vmem:[%s904 + $0x4] sm:$0xf]
      %v907 = vld [vmem:[%s904 + $0x8] sm:$0x1]
      %v908 = vld [vmem:[%s904 + $0xc] sm:$0xf]
      %v909 = vld [vmem:[%s904 + $0x10] sm:$0xf]
      %v910 = vld [vmem:[%s904 + $0x14] sm:$0x1]
      %v911 = vld [vmem:[%s904 + $0x18] sm:$0xf]
      %v912 = vld [vmem:[%s904 + $0x1c] sm:$0xf]
      %v913 = vld [vmem:[%s904 + $0x20] sm:$0x1]
      %v914 = vld [vmem:[%s904 + $0x24] sm:$0xf]
      %v915 = vld [vmem:[%s904 + $0x28] sm:$0xf]
      %v916 = vld [vmem:[%s904 + $0x2c] sm:$0x1]
      %v917 = vld [vmem:[%s904 + $0x30] sm:$0xf]
      %v918 = vld [vmem:[%s904 + $0x34] sm:$0xf]
      %v919 = vld [vmem:[%s904 + $0x38] sm:$0x1]
      %v920 = vld [vmem:[%s904 + $0x3c] sm:$0xf]
      %v921 = vld [vmem:[%s904 + $0x40] sm:$0xf]
      %v922 = vld [vmem:[%s904 + $0x44] sm:$0x1]
      %v923 = vld [vmem:[%s904 + $0x48] sm:$0xf]
      %v924 = vld [vmem:[%s904 + $0x4c] sm:$0xf]
      %v925 = vld [vmem:[%s904 + $0x50] sm:$0x1]
      %v926 = vld [vmem:[%s904 + $0x54] sm:$0xf]
      %v927 = vld [vmem:[%s904 + $0x58] sm:$0xf]
      %v928 = vld [vmem:[%s904 + $0x5c] sm:$0x1]
      %v929 = vld [vmem:[%s904 + $0x60] sm:$0xf]
      %v930 = vld [vmem:[%s904 + $0x64] sm:$0xf]
      %v931 = vld [vmem:[%s904 + $0x68] sm:$0x1]
      %v932 = vld [vmem:[%s904 + $0x6c] sm:$0xf]
      %v933 = vld [vmem:[%s904 + $0x70] sm:$0xf]
      %v934 = vld [vmem:[%s904 + $0x74] sm:$0x1]
      %v935 = vld [vmem:[%s904 + $0x78] sm:$0xf]
      %v936 = vld [vmem:[%s904 + $0x7c] sm:$0xf]
      %v937 = vld [vmem:[%s904 + $0x80] sm:$0x1]
      %v938 = vld [vmem:[%s904 + $0x84] sm:$0xf]
      %v939 = vld [vmem:[%s904 + $0x88] sm:$0xf]
      %v940 = vld [vmem:[%s904 + $0x8c] sm:$0x1]
      %v941 = vld [vmem:[%s904 + $0x90] sm:$0xf]
      %v942 = vld [vmem:[%s904 + $0x94] sm:$0xf]
      %v943 = vld [vmem:[%s904 + $0x98] sm:$0x1]
      %v944 = vld [vmem:[%s904 + $0x9c] sm:$0xf]
      %v945 = vld [vmem:[%s904 + $0xa0] sm:$0xf]
      %v946 = vld [vmem:[%s904 + $0xa4] sm:$0x1]
      %v947 = vld [vmem:[%s904 + $0xa8] sm:$0xf]
      %v948 = vld [vmem:[%s904 + $0xac] sm:$0xf]
      %v949 = vld [vmem:[%s904 + $0xb0] sm:$0x1]
      %v950 = vld [vmem:[%s904 + $0xb4] sm:$0xf]
      %v951 = vld [vmem:[%s904 + $0xb8] sm:$0xf]
      %v952 = vld [vmem:[%s904 + $0xbc] sm:$0x1]
      %v953 = vunpack.c.l.bf16 %v905
      %v954 = vunpack.c.l.bf16 %v906
      %v955 = vunpack.c.l.bf16 %v907
      %v956 = vunpack.c.l.bf16 %v908
      %v957 = vunpack.c.l.bf16 %v909
      %v958 = vunpack.c.l.bf16 %v910
      %v959 = vunpack.c.l.bf16 %v911
      %v960 = vunpack.c.l.bf16 %v912
      %v961 = vunpack.c.l.bf16 %v913
      %v962 = vunpack.c.l.bf16 %v914
      %v963 = vunpack.c.l.bf16 %v915
      %v964 = vunpack.c.l.bf16 %v916
      %v965 = vunpack.c.l.bf16 %v917
      %v966 = vunpack.c.l.bf16 %v918
      %v967 = vunpack.c.l.bf16 %v919
      %v968 = vunpack.c.l.bf16 %v920
      %v969 = vunpack.c.l.bf16 %v921
      %v970 = vunpack.c.l.bf16 %v922
      %v971 = vunpack.c.l.bf16 %v923
      %v972 = vunpack.c.l.bf16 %v924
      %v973 = vunpack.c.l.bf16 %v925
      %v974 = vunpack.c.l.bf16 %v926
      %v975 = vunpack.c.l.bf16 %v927
      %v976 = vunpack.c.l.bf16 %v928
      %v977 = vunpack.c.l.bf16 %v929
      %v978 = vunpack.c.l.bf16 %v930
      %v979 = vunpack.c.l.bf16 %v931
      %v980 = vunpack.c.l.bf16 %v932
      %v981 = vunpack.c.l.bf16 %v933
      %v982 = vunpack.c.l.bf16 %v934
      %v983 = vunpack.c.l.bf16 %v935
      %v984 = vunpack.c.l.bf16 %v936
      %v985 = vunpack.c.l.bf16 %v937
      %v986 = vunpack.c.l.bf16 %v938
      %v987 = vunpack.c.l.bf16 %v939
      %v988 = vunpack.c.l.bf16 %v940
      %v989 = vunpack.c.l.bf16 %v941
      %v990 = vunpack.c.l.bf16 %v942
      %v991 = vunpack.c.l.bf16 %v943
      %v992 = vunpack.c.l.bf16 %v944
      %v993 = vunpack.c.l.bf16 %v945
      %v994 = vunpack.c.l.bf16 %v946
      %v995 = vunpack.c.l.bf16 %v947
      %v996 = vunpack.c.l.bf16 %v948
      %v997 = vunpack.c.l.bf16 %v949
      %v998 = vunpack.c.l.bf16 %v950
      %v999 = vunpack.c.l.bf16 %v951
      %v1000 = vunpack.c.l.bf16 %v952
      %s1001 = scalar_lea.vmem %s256, 3
      %v1002 = vld [vmem:[%s1001] sm:$0x1]
      %v1004 = vlaneseq
      %v1005 = vshrl.u32 %v1004, 7
      %v1006 = vsub.s32 0, %v1005
      %v1007 = vrot.slane %v1002, %v1006
      %v1009 = vmul.f32 %v953, %v1007
      %v1010 = vmul.f32 %v954, %v1007
      %v1011 = vmul.f32 %v956, %v1007
      %v1012 = vmul.f32 %v957, %v1007
      %v1013 = vmul.f32 %v959, %v1007
      %v1014 = vmul.f32 %v960, %v1007
      %v1015 = vmul.f32 %v962, %v1007
      %v1016 = vmul.f32 %v963, %v1007
      %v1017 = vmul.f32 %v965, %v1007
      %v1018 = vmul.f32 %v966, %v1007
      %v1019 = vmul.f32 %v968, %v1007
      %v1020 = vmul.f32 %v969, %v1007
      %v1021 = vmul.f32 %v971, %v1007
      %v1022 = vmul.f32 %v972, %v1007
      %v1023 = vmul.f32 %v974, %v1007
      %v1024 = vmul.f32 %v975, %v1007
      %v1025 = vmul.f32 %v977, %v1007
      %v1026 = vmul.f32 %v978, %v1007
      %v1027 = vmul.f32 %v980, %v1007
      %v1028 = vmul.f32 %v981, %v1007
      %v1029 = vmul.f32 %v983, %v1007
      %v1030 = vmul.f32 %v984, %v1007
      %v1031 = vmul.f32 %v986, %v1007
      %v1032 = vmul.f32 %v987, %v1007
      %v1033 = vmul.f32 %v989, %v1007
      %v1034 = vmul.f32 %v990, %v1007
      %v1035 = vmul.f32 %v992, %v1007
      %v1036 = vmul.f32 %v993, %v1007
      %v1037 = vmul.f32 %v995, %v1007
      %v1038 = vmul.f32 %v996, %v1007
      %v1039 = vmul.f32 %v998, %v1007
      %v1040 = vmul.f32 %v999, %v1007
      %v1041 = vadd.f32 %v872, %v1009
      %v1042 = vadd.f32 %v873, %v1010
      %v1043 = vadd.f32 %v874, %v1011
      %v1044 = vadd.f32 %v875, %v1012
      %v1045 = vadd.f32 %v876, %v1013
      %v1046 = vadd.f32 %v877, %v1014
      %v1047 = vadd.f32 %v878, %v1015
      %v1048 = vadd.f32 %v879, %v1016
      %v1049 = vadd.f32 %v880, %v1017
      %v1050 = vadd.f32 %v881, %v1018
      %v1051 = vadd.f32 %v882, %v1019
      %v1052 = vadd.f32 %v883, %v1020
      %v1053 = vadd.f32 %v884, %v1021
      %v1054 = vadd.f32 %v885, %v1022
      %v1055 = vadd.f32 %v886, %v1023
      %v1056 = vadd.f32 %v887, %v1024
      %v1057 = vadd.f32 %v888, %v1025
      %v1058 = vadd.f32 %v889, %v1026
      %v1059 = vadd.f32 %v890, %v1027
      %v1060 = vadd.f32 %v891, %v1028
      %v1061 = vadd.f32 %v892, %v1029
      %v1062 = vadd.f32 %v893, %v1030
      %v1063 = vadd.f32 %v894, %v1031
      %v1064 = vadd.f32 %v895, %v1032
      %v1065 = vadd.f32 %v896, %v1033
      %v1066 = vadd.f32 %v897, %v1034
      %v1067 = vadd.f32 %v898, %v1035
      %v1068 = vadd.f32 %v899, %v1036
      %v1069 = vadd.f32 %v900, %v1037
      %v1070 = vadd.f32 %v901, %v1038
      %v1071 = vadd.f32 %v902, %v1039
      %v1072 = vadd.f32 %v903, %v1040
      %s1073 = scalar_lea.vmem %s256, 4
      %v1074 = vld [vmem:[%s1073] sm:$0x1]
      %v1076 = vlaneseq
      %v1077 = vshrl.u32 %v1076, 7
      %v1078 = vsub.s32 0, %v1077
      %v1079 = vrot.slane %v1074, %v1078
      %v1081 = vmul.f32 %v953, %v1079
      %v1082 = vmul.f32 %v954, %v1079
      %v1083 = vmul.f32 %v955, %v1079
      %v1084 = vmul.f32 %v956, %v1079
      %v1085 = vmul.f32 %v957, %v1079
      %v1086 = vmul.f32 %v958, %v1079
      %v1087 = vmul.f32 %v959, %v1079
      %v1088 = vmul.f32 %v960, %v1079
      %v1089 = vmul.f32 %v961, %v1079
      %v1090 = vmul.f32 %v962, %v1079
      %v1091 = vmul.f32 %v963, %v1079
      %v1092 = vmul.f32 %v964, %v1079
      %v1093 = vmul.f32 %v965, %v1079
      %v1094 = vmul.f32 %v966, %v1079
      %v1095 = vmul.f32 %v967, %v1079
      %v1096 = vmul.f32 %v968, %v1079
      %v1097 = vmul.f32 %v969, %v1079
      %v1098 = vmul.f32 %v970, %v1079
      %v1099 = vmul.f32 %v971, %v1079
      %v1100 = vmul.f32 %v972, %v1079
      %v1101 = vmul.f32 %v973, %v1079
      %v1102 = vmul.f32 %v974, %v1079
      %v1103 = vmul.f32 %v975, %v1079
      %v1104 = vmul.f32 %v976, %v1079
      %v1105 = vmul.f32 %v977, %v1079
      %v1106 = vmul.f32 %v978, %v1079
      %v1107 = vmul.f32 %v979, %v1079
      %v1108 = vmul.f32 %v980, %v1079
      %v1109 = vmul.f32 %v981, %v1079
      %v1110 = vmul.f32 %v982, %v1079
      %v1111 = vmul.f32 %v983, %v1079
      %v1112 = vmul.f32 %v984, %v1079
      %v1113 = vmul.f32 %v985, %v1079
      %v1114 = vmul.f32 %v986, %v1079
      %v1115 = vmul.f32 %v987, %v1079
      %v1116 = vmul.f32 %v988, %v1079
      %v1117 = vmul.f32 %v989, %v1079
      %v1118 = vmul.f32 %v990, %v1079
      %v1119 = vmul.f32 %v991, %v1079
      %v1120 = vmul.f32 %v992, %v1079
      %v1121 = vmul.f32 %v993, %v1079
      %v1122 = vmul.f32 %v994, %v1079
      %v1123 = vmul.f32 %v995, %v1079
      %v1124 = vmul.f32 %v996, %v1079
      %v1125 = vmul.f32 %v997, %v1079
      %v1126 = vmul.f32 %v998, %v1079
      %v1127 = vmul.f32 %v999, %v1079
      %v1128 = vmul.f32 %v1000, %v1079
      %v1177 = vrot.slane %v1081, 1
      %v1178 = vrot.slane %v1082, 1
      %v1179 = vsel %vm510, %v1177, %v1178
      %v1180 = vrot.slane %v1083, 1
      %v1181 = vsel %vm510, %v1178, %v1180
      %v1182 = vrot.slane %v1084, 1
      %v1183 = vrot.slane %v1085, 1
      %v1184 = vsel %vm510, %v1182, %v1183
      %v1185 = vrot.slane %v1086, 1
      %v1186 = vsel %vm510, %v1183, %v1185
      %v1187 = vrot.slane %v1087, 1
      %v1188 = vrot.slane %v1088, 1
      %v1189 = vsel %vm510, %v1187, %v1188
      %v1190 = vrot.slane %v1089, 1
      %v1191 = vsel %vm510, %v1188, %v1190
      %v1192 = vrot.slane %v1090, 1
      %v1193 = vrot.slane %v1091, 1
      %v1194 = vsel %vm510, %v1192, %v1193
      %v1195 = vrot.slane %v1092, 1
      %v1196 = vsel %vm510, %v1193, %v1195
      %v1197 = vrot.slane %v1093, 1
      %v1198 = vrot.slane %v1094, 1
      %v1199 = vsel %vm510, %v1197, %v1198
      %v1200 = vrot.slane %v1095, 1
      %v1201 = vsel %vm510, %v1198, %v1200
      %v1202 = vrot.slane %v1096, 1
      %v1203 = vrot.slane %v1097, 1
      %v1204 = vsel %vm510, %v1202, %v1203
      %v1205 = vrot.slane %v1098, 1
      %v1206 = vsel %vm510, %v1203, %v1205
      %v1207 = vrot.slane %v1099, 1
      %v1208 = vrot.slane %v1100, 1
      %v1209 = vsel %vm510, %v1207, %v1208
      %v1210 = vrot.slane %v1101, 1
      %v1211 = vsel %vm510, %v1208, %v1210
      %v1212 = vrot.slane %v1102, 1
      %v1213 = vrot.slane %v1103, 1
      %v1214 = vsel %vm510, %v1212, %v1213
      %v1215 = vrot.slane %v1104, 1
      %v1216 = vsel %vm510, %v1213, %v1215
      %v1217 = vrot.slane %v1105, 1
      %v1218 = vrot.slane %v1106, 1
      %v1219 = vsel %vm510, %v1217, %v1218
      %v1220 = vrot.slane %v1107, 1
      %v1221 = vsel %vm510, %v1218, %v1220
      %v1222 = vrot.slane %v1108, 1
      %v1223 = vrot.slane %v1109, 1
      %v1224 = vsel %vm510, %v1222, %v1223
      %v1225 = vrot.slane %v1110, 1
      %v1226 = vsel %vm510, %v1223, %v1225
      %v1227 = vrot.slane %v1111, 1
      %v1228 = vrot.slane %v1112, 1
      %v1229 = vsel %vm510, %v1227, %v1228
      %v1230 = vrot.slane %v1113, 1
      %v1231 = vsel %vm510, %v1228, %v1230
      %v1232 = vrot.slane %v1114, 1
      %v1233 = vrot.slane %v1115, 1
      %v1234 = vsel %vm510, %v1232, %v1233
      %v1235 = vrot.slane %v1116, 1
      %v1236 = vsel %vm510, %v1233, %v1235
      %v1237 = vrot.slane %v1117, 1
      %v1238 = vrot.slane %v1118, 1
      %v1239 = vsel %vm510, %v1237, %v1238
      %v1240 = vrot.slane %v1119, 1
      %v1241 = vsel %vm510, %v1238, %v1240
      %v1242 = vrot.slane %v1120, 1
      %v1243 = vrot.slane %v1121, 1
      %v1244 = vsel %vm510, %v1242, %v1243
      %v1245 = vrot.slane %v1122, 1
      %v1246 = vsel %vm510, %v1243, %v1245
      %v1247 = vrot.slane %v1123, 1
      %v1248 = vrot.slane %v1124, 1
      %v1249 = vsel %vm510, %v1247, %v1248
      %v1250 = vrot.slane %v1125, 1
      %v1251 = vsel %vm510, %v1248, %v1250
      %v1252 = vrot.slane %v1126, 1
      %v1253 = vrot.slane %v1127, 1
      %v1254 = vsel %vm510, %v1252, %v1253
      %v1255 = vrot.slane %v1128, 1
      %v1256 = vsel %vm510, %v1253, %v1255
      %v1289 = vadd.f32 %v1041, %v1179
      %v1290 = vadd.f32 %v1042, %v1181
      %v1291 = vadd.f32 %v1043, %v1184
      %v1292 = vadd.f32 %v1044, %v1186
      %v1293 = vadd.f32 %v1045, %v1189
      %v1294 = vadd.f32 %v1046, %v1191
      %v1295 = vadd.f32 %v1047, %v1194
      %v1296 = vadd.f32 %v1048, %v1196
      %v1297 = vadd.f32 %v1049, %v1199
      %v1298 = vadd.f32 %v1050, %v1201
      %v1299 = vadd.f32 %v1051, %v1204
      %v1300 = vadd.f32 %v1052, %v1206
      %v1301 = vadd.f32 %v1053, %v1209
      %v1302 = vadd.f32 %v1054, %v1211
      %v1303 = vadd.f32 %v1055, %v1214
      %v1304 = vadd.f32 %v1056, %v1216
      %v1305 = vadd.f32 %v1057, %v1219
      %v1306 = vadd.f32 %v1058, %v1221
      %v1307 = vadd.f32 %v1059, %v1224
      %v1308 = vadd.f32 %v1060, %v1226
      %v1309 = vadd.f32 %v1061, %v1229
      %v1310 = vadd.f32 %v1062, %v1231
      %v1311 = vadd.f32 %v1063, %v1234
      %v1312 = vadd.f32 %v1064, %v1236
      %v1313 = vadd.f32 %v1065, %v1239
      %v1314 = vadd.f32 %v1066, %v1241
      %v1315 = vadd.f32 %v1067, %v1244
      %v1316 = vadd.f32 %v1068, %v1246
      %v1317 = vadd.f32 %v1069, %v1249
      %v1318 = vadd.f32 %v1070, %v1251
      %v1319 = vadd.f32 %v1071, %v1254
      %v1320 = vadd.f32 %v1072, %v1256
      %s1321 = scalar_lea.vmem %s256, 5
      %v1322 = vld [vmem:[%s1321] sm:$0x1]
      %v1324 = vlaneseq
      %v1325 = vshrl.u32 %v1324, 7
      %v1326 = vsub.s32 0, %v1325
      %v1327 = vrot.slane %v1322, %v1326
      %v1329 = vmul.f32 %v953, %v1327
      %v1330 = vmul.f32 %v954, %v1327
      %v1331 = vmul.f32 %v955, %v1327
      %v1332 = vmul.f32 %v956, %v1327
      %v1333 = vmul.f32 %v957, %v1327
      %v1334 = vmul.f32 %v958, %v1327
      %v1335 = vmul.f32 %v959, %v1327
      %v1336 = vmul.f32 %v960, %v1327
      %v1337 = vmul.f32 %v961, %v1327
      %v1338 = vmul.f32 %v962, %v1327
      %v1339 = vmul.f32 %v963, %v1327
      %v1340 = vmul.f32 %v964, %v1327
      %v1341 = vmul.f32 %v965, %v1327
      %v1342 = vmul.f32 %v966, %v1327
      %v1343 = vmul.f32 %v967, %v1327
      %v1344 = vmul.f32 %v968, %v1327
      %v1345 = vmul.f32 %v969, %v1327
      %v1346 = vmul.f32 %v970, %v1327
      %v1347 = vmul.f32 %v971, %v1327
      %v1348 = vmul.f32 %v972, %v1327
      %v1349 = vmul.f32 %v973, %v1327
      %v1350 = vmul.f32 %v974, %v1327
      %v1351 = vmul.f32 %v975, %v1327
      %v1352 = vmul.f32 %v976, %v1327
      %v1353 = vmul.f32 %v977, %v1327
      %v1354 = vmul.f32 %v978, %v1327
      %v1355 = vmul.f32 %v979, %v1327
      %v1356 = vmul.f32 %v980, %v1327
      %v1357 = vmul.f32 %v981, %v1327
      %v1358 = vmul.f32 %v982, %v1327
      %v1359 = vmul.f32 %v983, %v1327
      %v1360 = vmul.f32 %v984, %v1327
      %v1361 = vmul.f32 %v985, %v1327
      %v1362 = vmul.f32 %v986, %v1327
      %v1363 = vmul.f32 %v987, %v1327
      %v1364 = vmul.f32 %v988, %v1327
      %v1365 = vmul.f32 %v989, %v1327
      %v1366 = vmul.f32 %v990, %v1327
      %v1367 = vmul.f32 %v991, %v1327
      %v1368 = vmul.f32 %v992, %v1327
      %v1369 = vmul.f32 %v993, %v1327
      %v1370 = vmul.f32 %v994, %v1327
      %v1371 = vmul.f32 %v995, %v1327
      %v1372 = vmul.f32 %v996, %v1327
      %v1373 = vmul.f32 %v997, %v1327
      %v1374 = vmul.f32 %v998, %v1327
      %v1375 = vmul.f32 %v999, %v1327
      %v1376 = vmul.f32 %v1000, %v1327
      %v1425 = vrot.slane %v1329, 2
      %v1426 = vrot.slane %v1330, 2
      %v1427 = vsel %vm759, %v1425, %v1426
      %v1428 = vrot.slane %v1331, 2
      %v1429 = vsel %vm759, %v1426, %v1428
      %v1430 = vrot.slane %v1332, 2
      %v1431 = vrot.slane %v1333, 2
      %v1432 = vsel %vm759, %v1430, %v1431
      %v1433 = vrot.slane %v1334, 2
      %v1434 = vsel %vm759, %v1431, %v1433
      %v1435 = vrot.slane %v1335, 2
      %v1436 = vrot.slane %v1336, 2
      %v1437 = vsel %vm759, %v1435, %v1436
      %v1438 = vrot.slane %v1337, 2
      %v1439 = vsel %vm759, %v1436, %v1438
      %v1440 = vrot.slane %v1338, 2
      %v1441 = vrot.slane %v1339, 2
      %v1442 = vsel %vm759, %v1440, %v1441
      %v1443 = vrot.slane %v1340, 2
      %v1444 = vsel %vm759, %v1441, %v1443
      %v1445 = vrot.slane %v1341, 2
      %v1446 = vrot.slane %v1342, 2
      %v1447 = vsel %vm759, %v1445, %v1446
      %v1448 = vrot.slane %v1343, 2
      %v1449 = vsel %vm759, %v1446, %v1448
      %v1450 = vrot.slane %v1344, 2
      %v1451 = vrot.slane %v1345, 2
      %v1452 = vsel %vm759, %v1450, %v1451
      %v1453 = vrot.slane %v1346, 2
      %v1454 = vsel %vm759, %v1451, %v1453
      %v1455 = vrot.slane %v1347, 2
      %v1456 = vrot.slane %v1348, 2
      %v1457 = vsel %vm759, %v1455, %v1456
      %v1458 = vrot.slane %v1349, 2
      %v1459 = vsel %vm759, %v1456, %v1458
      %v1460 = vrot.slane %v1350, 2
      %v1461 = vrot.slane %v1351, 2
      %v1462 = vsel %vm759, %v1460, %v1461
      %v1463 = vrot.slane %v1352, 2
      %v1464 = vsel %vm759, %v1461, %v1463
      %v1465 = vrot.slane %v1353, 2
      %v1466 = vrot.slane %v1354, 2
      %v1467 = vsel %vm759, %v1465, %v1466
      %v1468 = vrot.slane %v1355, 2
      %v1469 = vsel %vm759, %v1466, %v1468
      %v1470 = vrot.slane %v1356, 2
      %v1471 = vrot.slane %v1357, 2
      %v1472 = vsel %vm759, %v1470, %v1471
      %v1473 = vrot.slane %v1358, 2
      %v1474 = vsel %vm759, %v1471, %v1473
      %v1475 = vrot.slane %v1359, 2
      %v1476 = vrot.slane %v1360, 2
      %v1477 = vsel %vm759, %v1475, %v1476
      %v1478 = vrot.slane %v1361, 2
      %v1479 = vsel %vm759, %v1476, %v1478
      %v1480 = vrot.slane %v1362, 2
      %v1481 = vrot.slane %v1363, 2
      %v1482 = vsel %vm759, %v1480, %v1481
      %v1483 = vrot.slane %v1364, 2
      %v1484 = vsel %vm759, %v1481, %v1483
      %v1485 = vrot.slane %v1365, 2
      %v1486 = vrot.slane %v1366, 2
      %v1487 = vsel %vm759, %v1485, %v1486
      %v1488 = vrot.slane %v1367, 2
      %v1489 = vsel %vm759, %v1486, %v1488
      %v1490 = vrot.slane %v1368, 2
      %v1491 = vrot.slane %v1369, 2
      %v1492 = vsel %vm759, %v1490, %v1491
      %v1493 = vrot.slane %v1370, 2
      %v1494 = vsel %vm759, %v1491, %v1493
      %v1495 = vrot.slane %v1371, 2
      %v1496 = vrot.slane %v1372, 2
      %v1497 = vsel %vm759, %v1495, %v1496
      %v1498 = vrot.slane %v1373, 2
      %v1499 = vsel %vm759, %v1496, %v1498
      %v1500 = vrot.slane %v1374, 2
      %v1501 = vrot.slane %v1375, 2
      %v1502 = vsel %vm759, %v1500, %v1501
      %v1503 = vrot.slane %v1376, 2
      %v1504 = vsel %vm759, %v1501, %v1503
      %v1537 = vadd.f32 %v1289, %v1427
      %v1538 = vadd.f32 %v1290, %v1429
      %v1539 = vadd.f32 %v1291, %v1432
      %v1540 = vadd.f32 %v1292, %v1434
      %v1541 = vadd.f32 %v1293, %v1437
      %v1542 = vadd.f32 %v1294, %v1439
      %v1543 = vadd.f32 %v1295, %v1442
      %v1544 = vadd.f32 %v1296, %v1444
      %v1545 = vadd.f32 %v1297, %v1447
      %v1546 = vadd.f32 %v1298, %v1449
      %v1547 = vadd.f32 %v1299, %v1452
      %v1548 = vadd.f32 %v1300, %v1454
      %v1549 = vadd.f32 %v1301, %v1457
      %v1550 = vadd.f32 %v1302, %v1459
      %v1551 = vadd.f32 %v1303, %v1462
      %v1552 = vadd.f32 %v1304, %v1464
      %v1553 = vadd.f32 %v1305, %v1467
      %v1554 = vadd.f32 %v1306, %v1469
      %v1555 = vadd.f32 %v1307, %v1472
      %v1556 = vadd.f32 %v1308, %v1474
      %v1557 = vadd.f32 %v1309, %v1477
      %v1558 = vadd.f32 %v1310, %v1479
      %v1559 = vadd.f32 %v1311, %v1482
      %v1560 = vadd.f32 %v1312, %v1484
      %v1561 = vadd.f32 %v1313, %v1487
      %v1562 = vadd.f32 %v1314, %v1489
      %v1563 = vadd.f32 %v1315, %v1492
      %v1564 = vadd.f32 %v1316, %v1494
      %v1565 = vadd.f32 %v1317, %v1497
      %v1566 = vadd.f32 %v1318, %v1499
      %v1567 = vadd.f32 %v1319, %v1502
      %v1568 = vadd.f32 %v1320, %v1504
      %s1569 = scalar_lea.vmem %s253, 24
      %v1570 = vld [vmem:[%s1569] sm:$0xf]
      %v1571 = vld [vmem:[%s1569 + $0x4] sm:$0xf]
      %v1572 = vld [vmem:[%s1569 + $0x8] sm:$0x1]
      %v1573 = vld [vmem:[%s1569 + $0xc] sm:$0xf]
      %v1574 = vld [vmem:[%s1569 + $0x10] sm:$0xf]
      %v1575 = vld [vmem:[%s1569 + $0x14] sm:$0x1]
      %v1576 = vld [vmem:[%s1569 + $0x18] sm:$0xf]
      %v1577 = vld [vmem:[%s1569 + $0x1c] sm:$0xf]
      %v1578 = vld [vmem:[%s1569 + $0x20] sm:$0x1]
      %v1579 = vld [vmem:[%s1569 + $0x24] sm:$0xf]
      %v1580 = vld [vmem:[%s1569 + $0x28] sm:$0xf]
      %v1581 = vld [vmem:[%s1569 + $0x2c] sm:$0x1]
      %v1582 = vld [vmem:[%s1569 + $0x30] sm:$0xf]
      %v1583 = vld [vmem:[%s1569 + $0x34] sm:$0xf]
      %v1584 = vld [vmem:[%s1569 + $0x38] sm:$0x1]
      %v1585 = vld [vmem:[%s1569 + $0x3c] sm:$0xf]
      %v1586 = vld [vmem:[%s1569 + $0x40] sm:$0xf]
      %v1587 = vld [vmem:[%s1569 + $0x44] sm:$0x1]
      %v1588 = vld [vmem:[%s1569 + $0x48] sm:$0xf]
      %v1589 = vld [vmem:[%s1569 + $0x4c] sm:$0xf]
      %v1590 = vld [vmem:[%s1569 + $0x50] sm:$0x1]
      %v1591 = vld [vmem:[%s1569 + $0x54] sm:$0xf]
      %v1592 = vld [vmem:[%s1569 + $0x58] sm:$0xf]
      %v1593 = vld [vmem:[%s1569 + $0x5c] sm:$0x1]
      %v1594 = vld [vmem:[%s1569 + $0x60] sm:$0xf]
      %v1595 = vld [vmem:[%s1569 + $0x64] sm:$0xf]
      %v1596 = vld [vmem:[%s1569 + $0x68] sm:$0x1]
      %v1597 = vld [vmem:[%s1569 + $0x6c] sm:$0xf]
      %v1598 = vld [vmem:[%s1569 + $0x70] sm:$0xf]
      %v1599 = vld [vmem:[%s1569 + $0x74] sm:$0x1]
      %v1600 = vld [vmem:[%s1569 + $0x78] sm:$0xf]
      %v1601 = vld [vmem:[%s1569 + $0x7c] sm:$0xf]
      %v1602 = vld [vmem:[%s1569 + $0x80] sm:$0x1]
      %v1603 = vld [vmem:[%s1569 + $0x84] sm:$0xf]
      %v1604 = vld [vmem:[%s1569 + $0x88] sm:$0xf]
      %v1605 = vld [vmem:[%s1569 + $0x8c] sm:$0x1]
      %v1606 = vld [vmem:[%s1569 + $0x90] sm:$0xf]
      %v1607 = vld [vmem:[%s1569 + $0x94] sm:$0xf]
      %v1608 = vld [vmem:[%s1569 + $0x98] sm:$0x1]
      %v1609 = vld [vmem:[%s1569 + $0x9c] sm:$0xf]
      %v1610 = vld [vmem:[%s1569 + $0xa0] sm:$0xf]
      %v1611 = vld [vmem:[%s1569 + $0xa4] sm:$0x1]
      %v1612 = vld [vmem:[%s1569 + $0xa8] sm:$0xf]
      %v1613 = vld [vmem:[%s1569 + $0xac] sm:$0xf]
      %v1614 = vld [vmem:[%s1569 + $0xb0] sm:$0x1]
      %v1615 = vld [vmem:[%s1569 + $0xb4] sm:$0xf]
      %v1616 = vld [vmem:[%s1569 + $0xb8] sm:$0xf]
      %v1617 = vld [vmem:[%s1569 + $0xbc] sm:$0x1]
      %v1618 = vunpack.c.l.bf16 %v1570
      %v1619 = vunpack.c.l.bf16 %v1571
      %v1620 = vunpack.c.l.bf16 %v1572
      %v1621 = vunpack.c.l.bf16 %v1573
      %v1622 = vunpack.c.l.bf16 %v1574
      %v1623 = vunpack.c.l.bf16 %v1575
      %v1624 = vunpack.c.l.bf16 %v1576
      %v1625 = vunpack.c.l.bf16 %v1577
      %v1626 = vunpack.c.l.bf16 %v1578
      %v1627 = vunpack.c.l.bf16 %v1579
      %v1628 = vunpack.c.l.bf16 %v1580
      %v1629 = vunpack.c.l.bf16 %v1581
      %v1630 = vunpack.c.l.bf16 %v1582
      %v1631 = vunpack.c.l.bf16 %v1583
      %v1632 = vunpack.c.l.bf16 %v1584
      %v1633 = vunpack.c.l.bf16 %v1585
      %v1634 = vunpack.c.l.bf16 %v1586
      %v1635 = vunpack.c.l.bf16 %v1587
      %v1636 = vunpack.c.l.bf16 %v1588
      %v1637 = vunpack.c.l.bf16 %v1589
      %v1638 = vunpack.c.l.bf16 %v1590
      %v1639 = vunpack.c.l.bf16 %v1591
      %v1640 = vunpack.c.l.bf16 %v1592
      %v1641 = vunpack.c.l.bf16 %v1593
      %v1642 = vunpack.c.l.bf16 %v1594
      %v1643 = vunpack.c.l.bf16 %v1595
      %v1644 = vunpack.c.l.bf16 %v1596
      %v1645 = vunpack.c.l.bf16 %v1597
      %v1646 = vunpack.c.l.bf16 %v1598
      %v1647 = vunpack.c.l.bf16 %v1599
      %v1648 = vunpack.c.l.bf16 %v1600
      %v1649 = vunpack.c.l.bf16 %v1601
      %v1650 = vunpack.c.l.bf16 %v1602
      %v1651 = vunpack.c.l.bf16 %v1603
      %v1652 = vunpack.c.l.bf16 %v1604
      %v1653 = vunpack.c.l.bf16 %v1605
      %v1654 = vunpack.c.l.bf16 %v1606
      %v1655 = vunpack.c.l.bf16 %v1607
      %v1656 = vunpack.c.l.bf16 %v1608
      %v1657 = vunpack.c.l.bf16 %v1609
      %v1658 = vunpack.c.l.bf16 %v1610
      %v1659 = vunpack.c.l.bf16 %v1611
      %v1660 = vunpack.c.l.bf16 %v1612
      %v1661 = vunpack.c.l.bf16 %v1613
      %v1662 = vunpack.c.l.bf16 %v1614
      %v1663 = vunpack.c.l.bf16 %v1615
      %v1664 = vunpack.c.l.bf16 %v1616
      %v1665 = vunpack.c.l.bf16 %v1617
      %s1666 = scalar_lea.vmem %s256, 6
      %v1667 = vld [vmem:[%s1666] sm:$0x1]
      %v1669 = vlaneseq
      %v1670 = vshrl.u32 %v1669, 7
      %v1671 = vsub.s32 0, %v1670
      %v1672 = vrot.slane %v1667, %v1671
      %v1674 = vmul.f32 %v1618, %v1672
      %v1675 = vmul.f32 %v1619, %v1672
      %v1676 = vmul.f32 %v1621, %v1672
      %v1677 = vmul.f32 %v1622, %v1672
      %v1678 = vmul.f32 %v1624, %v1672
      %v1679 = vmul.f32 %v1625, %v1672
      %v1680 = vmul.f32 %v1627, %v1672
      %v1681 = vmul.f32 %v1628, %v1672
      %v1682 = vmul.f32 %v1630, %v1672
      %v1683 = vmul.f32 %v1631, %v1672
      %v1684 = vmul.f32 %v1633, %v1672
      %v1685 = vmul.f32 %v1634, %v1672
      %v1686 = vmul.f32 %v1636, %v1672
      %v1687 = vmul.f32 %v1637, %v1672
      %v1688 = vmul.f32 %v1639, %v1672
      %v1689 = vmul.f32 %v1640, %v1672
      %v1690 = vmul.f32 %v1642, %v1672
      %v1691 = vmul.f32 %v1643, %v1672
      %v1692 = vmul.f32 %v1645, %v1672
      %v1693 = vmul.f32 %v1646, %v1672
      %v1694 = vmul.f32 %v1648, %v1672
      %v1695 = vmul.f32 %v1649, %v1672
      %v1696 = vmul.f32 %v1651, %v1672
      %v1697 = vmul.f32 %v1652, %v1672
      %v1698 = vmul.f32 %v1654, %v1672
      %v1699 = vmul.f32 %v1655, %v1672
      %v1700 = vmul.f32 %v1657, %v1672
      %v1701 = vmul.f32 %v1658, %v1672
      %v1702 = vmul.f32 %v1660, %v1672
      %v1703 = vmul.f32 %v1661, %v1672
      %v1704 = vmul.f32 %v1663, %v1672
      %v1705 = vmul.f32 %v1664, %v1672
      %v1706 = vadd.f32 %v1537, %v1674
      %v1707 = vadd.f32 %v1538, %v1675
      %v1708 = vadd.f32 %v1539, %v1676
      %v1709 = vadd.f32 %v1540, %v1677
      %v1710 = vadd.f32 %v1541, %v1678
      %v1711 = vadd.f32 %v1542, %v1679
      %v1712 = vadd.f32 %v1543, %v1680
      %v1713 = vadd.f32 %v1544, %v1681
      %v1714 = vadd.f32 %v1545, %v1682
      %v1715 = vadd.f32 %v1546, %v1683
      %v1716 = vadd.f32 %v1547, %v1684
      %v1717 = vadd.f32 %v1548, %v1685
      %v1718 = vadd.f32 %v1549, %v1686
      %v1719 = vadd.f32 %v1550, %v1687
      %v1720 = vadd.f32 %v1551, %v1688
      %v1721 = vadd.f32 %v1552, %v1689
      %v1722 = vadd.f32 %v1553, %v1690
      %v1723 = vadd.f32 %v1554, %v1691
      %v1724 = vadd.f32 %v1555, %v1692
      %v1725 = vadd.f32 %v1556, %v1693
      %v1726 = vadd.f32 %v1557, %v1694
      %v1727 = vadd.f32 %v1558, %v1695
      %v1728 = vadd.f32 %v1559, %v1696
      %v1729 = vadd.f32 %v1560, %v1697
      %v1730 = vadd.f32 %v1561, %v1698
      %v1731 = vadd.f32 %v1562, %v1699
      %v1732 = vadd.f32 %v1563, %v1700
      %v1733 = vadd.f32 %v1564, %v1701
      %v1734 = vadd.f32 %v1565, %v1702
      %v1735 = vadd.f32 %v1566, %v1703
      %v1736 = vadd.f32 %v1567, %v1704
      %v1737 = vadd.f32 %v1568, %v1705
      %s1738 = scalar_lea.vmem %s256, 7
      %v1739 = vld [vmem:[%s1738] sm:$0x1]
      %v1741 = vlaneseq
      %v1742 = vshrl.u32 %v1741, 7
      %v1743 = vsub.s32 0, %v1742
      %v1744 = vrot.slane %v1739, %v1743
      %v1746 = vmul.f32 %v1618, %v1744
      %v1747 = vmul.f32 %v1619, %v1744
      %v1748 = vmul.f32 %v1620, %v1744
      %v1749 = vmul.f32 %v1621, %v1744
      %v1750 = vmul.f32 %v1622, %v1744
      %v1751 = vmul.f32 %v1623, %v1744
      %v1752 = vmul.f32 %v1624, %v1744
      %v1753 = vmul.f32 %v1625, %v1744
      %v1754 = vmul.f32 %v1626, %v1744
      %v1755 = vmul.f32 %v1627, %v1744
      %v1756 = vmul.f32 %v1628, %v1744
      %v1757 = vmul.f32 %v1629, %v1744
      %v1758 = vmul.f32 %v1630, %v1744
      %v1759 = vmul.f32 %v1631, %v1744
      %v1760 = vmul.f32 %v1632, %v1744
      %v1761 = vmul.f32 %v1633, %v1744
      %v1762 = vmul.f32 %v1634, %v1744
      %v1763 = vmul.f32 %v1635, %v1744
      %v1764 = vmul.f32 %v1636, %v1744
      %v1765 = vmul.f32 %v1637, %v1744
      %v1766 = vmul.f32 %v1638, %v1744
      %v1767 = vmul.f32 %v1639, %v1744
      %v1768 = vmul.f32 %v1640, %v1744
      %v1769 = vmul.f32 %v1641, %v1744
      %v1770 = vmul.f32 %v1642, %v1744
      %v1771 = vmul.f32 %v1643, %v1744
      %v1772 = vmul.f32 %v1644, %v1744
      %v1773 = vmul.f32 %v1645, %v1744
      %v1774 = vmul.f32 %v1646, %v1744
      %v1775 = vmul.f32 %v1647, %v1744
      %v1776 = vmul.f32 %v1648, %v1744
      %v1777 = vmul.f32 %v1649, %v1744
      %v1778 = vmul.f32 %v1650, %v1744
      %v1779 = vmul.f32 %v1651, %v1744
      %v1780 = vmul.f32 %v1652, %v1744
      %v1781 = vmul.f32 %v1653, %v1744
      %v1782 = vmul.f32 %v1654, %v1744
      %v1783 = vmul.f32 %v1655, %v1744
      %v1784 = vmul.f32 %v1656, %v1744
      %v1785 = vmul.f32 %v1657, %v1744
      %v1786 = vmul.f32 %v1658, %v1744
      %v1787 = vmul.f32 %v1659, %v1744
      %v1788 = vmul.f32 %v1660, %v1744
      %v1789 = vmul.f32 %v1661, %v1744
      %v1790 = vmul.f32 %v1662, %v1744
      %v1791 = vmul.f32 %v1663, %v1744
      %v1792 = vmul.f32 %v1664, %v1744
      %v1793 = vmul.f32 %v1665, %v1744
      %v1842 = vrot.slane %v1746, 1
      %v1843 = vrot.slane %v1747, 1
      %v1844 = vsel %vm510, %v1842, %v1843
      %v1845 = vrot.slane %v1748, 1
      %v1846 = vsel %vm510, %v1843, %v1845
      %v1847 = vrot.slane %v1749, 1
      %v1848 = vrot.slane %v1750, 1
      %v1849 = vsel %vm510, %v1847, %v1848
      %v1850 = vrot.slane %v1751, 1
      %v1851 = vsel %vm510, %v1848, %v1850
      %v1852 = vrot.slane %v1752, 1
      %v1853 = vrot.slane %v1753, 1
      %v1854 = vsel %vm510, %v1852, %v1853
      %v1855 = vrot.slane %v1754, 1
      %v1856 = vsel %vm510, %v1853, %v1855
      %v1857 = vrot.slane %v1755, 1
      %v1858 = vrot.slane %v1756, 1
      %v1859 = vsel %vm510, %v1857, %v1858
      %v1860 = vrot.slane %v1757, 1
      %v1861 = vsel %vm510, %v1858, %v1860
      %v1862 = vrot.slane %v1758, 1
      %v1863 = vrot.slane %v1759, 1
      %v1864 = vsel %vm510, %v1862, %v1863
      %v1865 = vrot.slane %v1760, 1
      %v1866 = vsel %vm510, %v1863, %v1865
      %v1867 = vrot.slane %v1761, 1
      %v1868 = vrot.slane %v1762, 1
      %v1869 = vsel %vm510, %v1867, %v1868
      %v1870 = vrot.slane %v1763, 1
      %v1871 = vsel %vm510, %v1868, %v1870
      %v1872 = vrot.slane %v1764, 1
      %v1873 = vrot.slane %v1765, 1
      %v1874 = vsel %vm510, %v1872, %v1873
      %v1875 = vrot.slane %v1766, 1
      %v1876 = vsel %vm510, %v1873, %v1875
      %v1877 = vrot.slane %v1767, 1
      %v1878 = vrot.slane %v1768, 1
      %v1879 = vsel %vm510, %v1877, %v1878
      %v1880 = vrot.slane %v1769, 1
      %v1881 = vsel %vm510, %v1878, %v1880
      %v1882 = vrot.slane %v1770, 1
      %v1883 = vrot.slane %v1771, 1
      %v1884 = vsel %vm510, %v1882, %v1883
      %v1885 = vrot.slane %v1772, 1
      %v1886 = vsel %vm510, %v1883, %v1885
      %v1887 = vrot.slane %v1773, 1
      %v1888 = vrot.slane %v1774, 1
      %v1889 = vsel %vm510, %v1887, %v1888
      %v1890 = vrot.slane %v1775, 1
      %v1891 = vsel %vm510, %v1888, %v1890
      %v1892 = vrot.slane %v1776, 1
      %v1893 = vrot.slane %v1777, 1
      %v1894 = vsel %vm510, %v1892, %v1893
      %v1895 = vrot.slane %v1778, 1
      %v1896 = vsel %vm510, %v1893, %v1895
      %v1897 = vrot.slane %v1779, 1
      %v1898 = vrot.slane %v1780, 1
      %v1899 = vsel %vm510, %v1897, %v1898
      %v1900 = vrot.slane %v1781, 1
      %v1901 = vsel %vm510, %v1898, %v1900
      %v1902 = vrot.slane %v1782, 1
      %v1903 = vrot.slane %v1783, 1
      %v1904 = vsel %vm510, %v1902, %v1903
      %v1905 = vrot.slane %v1784, 1
      %v1906 = vsel %vm510, %v1903, %v1905
      %v1907 = vrot.slane %v1785, 1
      %v1908 = vrot.slane %v1786, 1
      %v1909 = vsel %vm510, %v1907, %v1908
      %v1910 = vrot.slane %v1787, 1
      %v1911 = vsel %vm510, %v1908, %v1910
      %v1912 = vrot.slane %v1788, 1
      %v1913 = vrot.slane %v1789, 1
      %v1914 = vsel %vm510, %v1912, %v1913
      %v1915 = vrot.slane %v1790, 1
      %v1916 = vsel %vm510, %v1913, %v1915
      %v1917 = vrot.slane %v1791, 1
      %v1918 = vrot.slane %v1792, 1
      %v1919 = vsel %vm510, %v1917, %v1918
      %v1920 = vrot.slane %v1793, 1
      %v1921 = vsel %vm510, %v1918, %v1920
      %v1954 = vadd.f32 %v1706, %v1844
      %v1955 = vadd.f32 %v1707, %v1846
      %v1956 = vadd.f32 %v1708, %v1849
      %v1957 = vadd.f32 %v1709, %v1851
      %v1958 = vadd.f32 %v1710, %v1854
      %v1959 = vadd.f32 %v1711, %v1856
      %v1960 = vadd.f32 %v1712, %v1859
      %v1961 = vadd.f32 %v1713, %v1861
      %v1962 = vadd.f32 %v1714, %v1864
      %v1963 = vadd.f32 %v1715, %v1866
      %v1964 = vadd.f32 %v1716, %v1869
      %v1965 = vadd.f32 %v1717, %v1871
      %v1966 = vadd.f32 %v1718, %v1874
      %v1967 = vadd.f32 %v1719, %v1876
      %v1968 = vadd.f32 %v1720, %v1879
      %v1969 = vadd.f32 %v1721, %v1881
      %v1970 = vadd.f32 %v1722, %v1884
      %v1971 = vadd.f32 %v1723, %v1886
      %v1972 = vadd.f32 %v1724, %v1889
      %v1973 = vadd.f32 %v1725, %v1891
      %v1974 = vadd.f32 %v1726, %v1894
      %v1975 = vadd.f32 %v1727, %v1896
      %v1976 = vadd.f32 %v1728, %v1899
      %v1977 = vadd.f32 %v1729, %v1901
      %v1978 = vadd.f32 %v1730, %v1904
      %v1979 = vadd.f32 %v1731, %v1906
      %v1980 = vadd.f32 %v1732, %v1909
      %v1981 = vadd.f32 %v1733, %v1911
      %v1982 = vadd.f32 %v1734, %v1914
      %v1983 = vadd.f32 %v1735, %v1916
      %v1984 = vadd.f32 %v1736, %v1919
      %v1985 = vadd.f32 %v1737, %v1921
      %s1986 = scalar_lea.vmem %s256, 8
      %v1987 = vld [vmem:[%s1986] sm:$0x1]
      %v1989 = vlaneseq
      %v1990 = vshrl.u32 %v1989, 7
      %v1991 = vsub.s32 0, %v1990
      %v1992 = vrot.slane %v1987, %v1991
      %v1994 = vmul.f32 %v1618, %v1992
      %v1995 = vmul.f32 %v1619, %v1992
      %v1996 = vmul.f32 %v1620, %v1992
      %v1997 = vmul.f32 %v1621, %v1992
      %v1998 = vmul.f32 %v1622, %v1992
      %v1999 = vmul.f32 %v1623, %v1992
      %v2000 = vmul.f32 %v1624, %v1992
      %v2001 = vmul.f32 %v1625, %v1992
      %v2002 = vmul.f32 %v1626, %v1992
      %v2003 = vmul.f32 %v1627, %v1992
      %v2004 = vmul.f32 %v1628, %v1992
      %v2005 = vmul.f32 %v1629, %v1992
      %v2006 = vmul.f32 %v1630, %v1992
      %v2007 = vmul.f32 %v1631, %v1992
      %v2008 = vmul.f32 %v1632, %v1992
      %v2009 = vmul.f32 %v1633, %v1992
      %v2010 = vmul.f32 %v1634, %v1992
      %v2011 = vmul.f32 %v1635, %v1992
      %v2012 = vmul.f32 %v1636, %v1992
      %v2013 = vmul.f32 %v1637, %v1992
      %v2014 = vmul.f32 %v1638, %v1992
      %v2015 = vmul.f32 %v1639, %v1992
      %v2016 = vmul.f32 %v1640, %v1992
      %v2017 = vmul.f32 %v1641, %v1992
      %v2018 = vmul.f32 %v1642, %v1992
      %v2019 = vmul.f32 %v1643, %v1992
      %v2020 = vmul.f32 %v1644, %v1992
      %v2021 = vmul.f32 %v1645, %v1992
      %v2022 = vmul.f32 %v1646, %v1992
      %v2023 = vmul.f32 %v1647, %v1992
      %v2024 = vmul.f32 %v1648, %v1992
      %v2025 = vmul.f32 %v1649, %v1992
      %v2026 = vmul.f32 %v1650, %v1992
      %v2027 = vmul.f32 %v1651, %v1992
      %v2028 = vmul.f32 %v1652, %v1992
      %v2029 = vmul.f32 %v1653, %v1992
      %v2030 = vmul.f32 %v1654, %v1992
      %v2031 = vmul.f32 %v1655, %v1992
      %v2032 = vmul.f32 %v1656, %v1992
      %v2033 = vmul.f32 %v1657, %v1992
      %v2034 = vmul.f32 %v1658, %v1992
      %v2035 = vmul.f32 %v1659, %v1992
      %v2036 = vmul.f32 %v1660, %v1992
      %v2037 = vmul.f32 %v1661, %v1992
      %v2038 = vmul.f32 %v1662, %v1992
      %v2039 = vmul.f32 %v1663, %v1992
      %v2040 = vmul.f32 %v1664, %v1992
      %v2041 = vmul.f32 %v1665, %v1992
      %v2090 = vrot.slane %v1994, 2
      %v2091 = vrot.slane %v1995, 2
      %v2092 = vsel %vm759, %v2090, %v2091
      %v2093 = vrot.slane %v1996, 2
      %v2094 = vsel %vm759, %v2091, %v2093
      %v2095 = vrot.slane %v1997, 2
      %v2096 = vrot.slane %v1998, 2
      %v2097 = vsel %vm759, %v2095, %v2096
      %v2098 = vrot.slane %v1999, 2
      %v2099 = vsel %vm759, %v2096, %v2098
      %v2100 = vrot.slane %v2000, 2
      %v2101 = vrot.slane %v2001, 2
      %v2102 = vsel %vm759, %v2100, %v2101
      %v2103 = vrot.slane %v2002, 2
      %v2104 = vsel %vm759, %v2101, %v2103
      %v2105 = vrot.slane %v2003, 2
      %v2106 = vrot.slane %v2004, 2
      %v2107 = vsel %vm759, %v2105, %v2106
      %v2108 = vrot.slane %v2005, 2
      %v2109 = vsel %vm759, %v2106, %v2108
      %v2110 = vrot.slane %v2006, 2
      %v2111 = vrot.slane %v2007, 2
      %v2112 = vsel %vm759, %v2110, %v2111
      %v2113 = vrot.slane %v2008, 2
      %v2114 = vsel %vm759, %v2111, %v2113
      %v2115 = vrot.slane %v2009, 2
      %v2116 = vrot.slane %v2010, 2
      %v2117 = vsel %vm759, %v2115, %v2116
      %v2118 = vrot.slane %v2011, 2
      %v2119 = vsel %vm759, %v2116, %v2118
      %v2120 = vrot.slane %v2012, 2
      %v2121 = vrot.slane %v2013, 2
      %v2122 = vsel %vm759, %v2120, %v2121
      %v2123 = vrot.slane %v2014, 2
      %v2124 = vsel %vm759, %v2121, %v2123
      %v2125 = vrot.slane %v2015, 2
      %v2126 = vrot.slane %v2016, 2
      %v2127 = vsel %vm759, %v2125, %v2126
      %v2128 = vrot.slane %v2017, 2
      %v2129 = vsel %vm759, %v2126, %v2128
      %v2130 = vrot.slane %v2018, 2
      %v2131 = vrot.slane %v2019, 2
      %v2132 = vsel %vm759, %v2130, %v2131
      %v2133 = vrot.slane %v2020, 2
      %v2134 = vsel %vm759, %v2131, %v2133
      %v2135 = vrot.slane %v2021, 2
      %v2136 = vrot.slane %v2022, 2
      %v2137 = vsel %vm759, %v2135, %v2136
      %v2138 = vrot.slane %v2023, 2
      %v2139 = vsel %vm759, %v2136, %v2138
      %v2140 = vrot.slane %v2024, 2
      %v2141 = vrot.slane %v2025, 2
      %v2142 = vsel %vm759, %v2140, %v2141
      %v2143 = vrot.slane %v2026, 2
      %v2144 = vsel %vm759, %v2141, %v2143
      %v2145 = vrot.slane %v2027, 2
      %v2146 = vrot.slane %v2028, 2
      %v2147 = vsel %vm759, %v2145, %v2146
      %v2148 = vrot.slane %v2029, 2
      %v2149 = vsel %vm759, %v2146, %v2148
      %v2150 = vrot.slane %v2030, 2
      %v2151 = vrot.slane %v2031, 2
      %v2152 = vsel %vm759, %v2150, %v2151
      %v2153 = vrot.slane %v2032, 2
      %v2154 = vsel %vm759, %v2151, %v2153
      %v2155 = vrot.slane %v2033, 2
      %v2156 = vrot.slane %v2034, 2
      %v2157 = vsel %vm759, %v2155, %v2156
      %v2158 = vrot.slane %v2035, 2
      %v2159 = vsel %vm759, %v2156, %v2158
      %v2160 = vrot.slane %v2036, 2
      %v2161 = vrot.slane %v2037, 2
      %v2162 = vsel %vm759, %v2160, %v2161
      %v2163 = vrot.slane %v2038, 2
      %v2164 = vsel %vm759, %v2161, %v2163
      %v2165 = vrot.slane %v2039, 2
      %v2166 = vrot.slane %v2040, 2
      %v2167 = vsel %vm759, %v2165, %v2166
      %v2168 = vrot.slane %v2041, 2
      %v2169 = vsel %vm759, %v2166, %v2168
      %v2202 = vadd.f32 %v1954, %v2092
      %v2203 = vadd.f32 %v1955, %v2094
      %v2204 = vadd.f32 %v1956, %v2097
      %v2205 = vadd.f32 %v1957, %v2099
      %v2206 = vadd.f32 %v1958, %v2102
      %v2207 = vadd.f32 %v1959, %v2104
      %v2208 = vadd.f32 %v1960, %v2107
      %v2209 = vadd.f32 %v1961, %v2109
      %v2210 = vadd.f32 %v1962, %v2112
      %v2211 = vadd.f32 %v1963, %v2114
      %v2212 = vadd.f32 %v1964, %v2117
      %v2213 = vadd.f32 %v1965, %v2119
      %v2214 = vadd.f32 %v1966, %v2122
      %v2215 = vadd.f32 %v1967, %v2124
      %v2216 = vadd.f32 %v1968, %v2127
      %v2217 = vadd.f32 %v1969, %v2129
      %v2218 = vadd.f32 %v1970, %v2132
      %v2219 = vadd.f32 %v1971, %v2134
      %v2220 = vadd.f32 %v1972, %v2137
      %v2221 = vadd.f32 %v1973, %v2139
      %v2222 = vadd.f32 %v1974, %v2142
      %v2223 = vadd.f32 %v1975, %v2144
      %v2224 = vadd.f32 %v1976, %v2147
      %v2225 = vadd.f32 %v1977, %v2149
      %v2226 = vadd.f32 %v1978, %v2152
      %v2227 = vadd.f32 %v1979, %v2154
      %v2228 = vadd.f32 %v1980, %v2157
      %v2229 = vadd.f32 %v1981, %v2159
      %v2230 = vadd.f32 %v1982, %v2162
      %v2231 = vadd.f32 %v1983, %v2164
      %v2232 = vadd.f32 %v1984, %v2167
      %v2233 = vadd.f32 %v1985, %v2169
      %v2234 = vld [vmem:[%s259] sm:$0x1]
      %v2236 = vlaneseq
      %v2237 = vshrl.u32 %v2236, 7
      %v2238 = vsub.s32 0, %v2237
      %v2239 = vrot.slane %v2234, %v2238
      %v2241 = vmul.f32 %v2202, %v2239
      %v2242 = vmul.f32 %v2203, %v2239
      %v2243 = vmul.f32 %v2204, %v2239
      %v2244 = vmul.f32 %v2205, %v2239
      %v2245 = vmul.f32 %v2206, %v2239
      %v2246 = vmul.f32 %v2207, %v2239
      %v2247 = vmul.f32 %v2208, %v2239
      %v2248 = vmul.f32 %v2209, %v2239
      %v2249 = vmul.f32 %v2210, %v2239
      %v2250 = vmul.f32 %v2211, %v2239
      %v2251 = vmul.f32 %v2212, %v2239
      %v2252 = vmul.f32 %v2213, %v2239
      %v2253 = vmul.f32 %v2214, %v2239
      %v2254 = vmul.f32 %v2215, %v2239
      %v2255 = vmul.f32 %v2216, %v2239
      %v2256 = vmul.f32 %v2217, %v2239
      %v2257 = vmul.f32 %v2218, %v2239
      %v2258 = vmul.f32 %v2219, %v2239
      %v2259 = vmul.f32 %v2220, %v2239
      %v2260 = vmul.f32 %v2221, %v2239
      %v2261 = vmul.f32 %v2222, %v2239
      %v2262 = vmul.f32 %v2223, %v2239
      %v2263 = vmul.f32 %v2224, %v2239
      %v2264 = vmul.f32 %v2225, %v2239
      %v2265 = vmul.f32 %v2226, %v2239
      %v2266 = vmul.f32 %v2227, %v2239
      %v2267 = vmul.f32 %v2228, %v2239
      %v2268 = vmul.f32 %v2229, %v2239
      %v2269 = vmul.f32 %v2230, %v2239
      %v2270 = vmul.f32 %v2231, %v2239
      %v2271 = vmul.f32 %v2232, %v2239
      %v2272 = vmul.f32 %v2233, %v2239
      %v2273 = vld [vmem:[%s262] sm:$0x1]
      %v2275 = vlaneseq
      %v2276 = vshrl.u32 %v2275, 7
      %v2277 = vsub.s32 0, %v2276
      %v2278 = vrot.slane %v2273, %v2277
      %v2280 = vadd.f32 %v2241, %v2278
      %v2281 = vadd.f32 %v2242, %v2278
      %v2282 = vadd.f32 %v2243, %v2278
      %v2283 = vadd.f32 %v2244, %v2278
      %v2284 = vadd.f32 %v2245, %v2278
      %v2285 = vadd.f32 %v2246, %v2278
      %v2286 = vadd.f32 %v2247, %v2278
      %v2287 = vadd.f32 %v2248, %v2278
      %v2288 = vadd.f32 %v2249, %v2278
      %v2289 = vadd.f32 %v2250, %v2278
      %v2290 = vadd.f32 %v2251, %v2278
      %v2291 = vadd.f32 %v2252, %v2278
      %v2292 = vadd.f32 %v2253, %v2278
      %v2293 = vadd.f32 %v2254, %v2278
      %v2294 = vadd.f32 %v2255, %v2278
      %v2295 = vadd.f32 %v2256, %v2278
      %v2296 = vadd.f32 %v2257, %v2278
      %v2297 = vadd.f32 %v2258, %v2278
      %v2298 = vadd.f32 %v2259, %v2278
      %v2299 = vadd.f32 %v2260, %v2278
      %v2300 = vadd.f32 %v2261, %v2278
      %v2301 = vadd.f32 %v2262, %v2278
      %v2302 = vadd.f32 %v2263, %v2278
      %v2303 = vadd.f32 %v2264, %v2278
      %v2304 = vadd.f32 %v2265, %v2278
      %v2305 = vadd.f32 %v2266, %v2278
      %v2306 = vadd.f32 %v2267, %v2278
      %v2307 = vadd.f32 %v2268, %v2278
      %v2308 = vadd.f32 %v2269, %v2278
      %v2309 = vadd.f32 %v2270, %v2278
      %v2310 = vadd.f32 %v2271, %v2278
      %v2311 = vadd.f32 %v2272, %v2278
      %v2312 = vmax.f32 %v2280, 0.0
      %v2313 = vmax.f32 %v2281, 0.0
      %v2314 = vmax.f32 %v2282, 0.0
      %v2315 = vmax.f32 %v2283, 0.0
      %v2316 = vmax.f32 %v2284, 0.0
      %v2317 = vmax.f32 %v2285, 0.0
      %v2318 = vmax.f32 %v2286, 0.0
      %v2319 = vmax.f32 %v2287, 0.0
      %v2320 = vmax.f32 %v2288, 0.0
      %v2321 = vmax.f32 %v2289, 0.0
      %v2322 = vmax.f32 %v2290, 0.0
      %v2323 = vmax.f32 %v2291, 0.0
      %v2324 = vmax.f32 %v2292, 0.0
      %v2325 = vmax.f32 %v2293, 0.0
      %v2326 = vmax.f32 %v2294, 0.0
      %v2327 = vmax.f32 %v2295, 0.0
      %v2328 = vmax.f32 %v2296, 0.0
      %v2329 = vmax.f32 %v2297, 0.0
      %v2330 = vmax.f32 %v2298, 0.0
      %v2331 = vmax.f32 %v2299, 0.0
      %v2332 = vmax.f32 %v2300, 0.0
      %v2333 = vmax.f32 %v2301, 0.0
      %v2334 = vmax.f32 %v2302, 0.0
      %v2335 = vmax.f32 %v2303, 0.0
      %v2336 = vmax.f32 %v2304, 0.0
      %v2337 = vmax.f32 %v2305, 0.0
      %v2338 = vmax.f32 %v2306, 0.0
      %v2339 = vmax.f32 %v2307, 0.0
      %v2340 = vmax.f32 %v2308, 0.0
      %v2341 = vmax.f32 %v2309, 0.0
      %v2342 = vmax.f32 %v2310, 0.0
      %v2343 = vmax.f32 %v2311, 0.0
      %v2344 = vpack.c.bf16 %v2313, %v2312
      %v2345 = vpack.c.bf16 %v2315, %v2314
      %v2346 = vpack.c.bf16 %v2317, %v2316
      %v2347 = vpack.c.bf16 %v2319, %v2318
      %v2348 = vpack.c.bf16 %v2321, %v2320
      %v2349 = vpack.c.bf16 %v2323, %v2322
      %v2350 = vpack.c.bf16 %v2325, %v2324
      %v2351 = vpack.c.bf16 %v2327, %v2326
      %v2352 = vpack.c.bf16 %v2329, %v2328
      %v2353 = vpack.c.bf16 %v2331, %v2330
      %v2354 = vpack.c.bf16 %v2333, %v2332
      %v2355 = vpack.c.bf16 %v2335, %v2334
      %v2356 = vpack.c.bf16 %v2337, %v2336
      %v2357 = vpack.c.bf16 %v2339, %v2338
      %v2358 = vpack.c.bf16 %v2341, %v2340
      %v2359 = vpack.c.bf16 %v2343, %v2342
      %v2376 = vunpack.c.l.b16 %v2344
      %v2377 = vunpack.c.h.b16 %v2344
      %v2378 = vunpack.c.l.b16 %v2345
      %v2379 = vunpack.c.h.b16 %v2345
      %v2380 = vunpack.c.l.b16 %v2346
      %v2381 = vunpack.c.h.b16 %v2346
      %v2382 = vunpack.c.l.b16 %v2347
      %v2383 = vunpack.c.h.b16 %v2347
      %v2384 = vunpack.c.l.b16 %v2348
      %v2385 = vunpack.c.h.b16 %v2348
      %v2386 = vunpack.c.l.b16 %v2349
      %v2387 = vunpack.c.h.b16 %v2349
      %v2388 = vunpack.c.l.b16 %v2350
      %v2389 = vunpack.c.h.b16 %v2350
      %v2390 = vunpack.c.l.b16 %v2351
      %v2391 = vunpack.c.h.b16 %v2351
      %v2392 = vunpack.c.l.b16 %v2352
      %v2393 = vunpack.c.h.b16 %v2352
      %v2394 = vunpack.c.l.b16 %v2353
      %v2395 = vunpack.c.h.b16 %v2353
      %v2396 = vunpack.c.l.b16 %v2354
      %v2397 = vunpack.c.h.b16 %v2354
      %v2398 = vunpack.c.l.b16 %v2355
      %v2399 = vunpack.c.h.b16 %v2355
      %v2400 = vunpack.c.l.b16 %v2356
      %v2401 = vunpack.c.h.b16 %v2356
      %v2402 = vunpack.c.l.b16 %v2357
      %v2403 = vunpack.c.h.b16 %v2357
      %v2404 = vunpack.c.l.b16 %v2358
      %v2405 = vunpack.c.h.b16 %v2358
      %v2406 = vunpack.c.l.b16 %v2359
      %v2407 = vunpack.c.h.b16 %v2359
      %v2408 = vpack.c.b16 %v2376, %v2376
      %v2409 = vpack.c.b16 %v2377, %v2377
      %v2410 = vpack.c.b16 %v2378, %v2378
      %v2411 = vpack.c.b16 %v2379, %v2379
      %v2412 = vpack.c.b16 %v2380, %v2380
      %v2413 = vpack.c.b16 %v2381, %v2381
      %v2414 = vpack.c.b16 %v2382, %v2382
      %v2415 = vpack.c.b16 %v2383, %v2383
      %v2416 = vpack.c.b16 %v2384, %v2384
      %v2417 = vpack.c.b16 %v2385, %v2385
      %v2418 = vpack.c.b16 %v2386, %v2386
      %v2419 = vpack.c.b16 %v2387, %v2387
      %v2420 = vpack.c.b16 %v2388, %v2388
      %v2421 = vpack.c.b16 %v2389, %v2389
      %v2422 = vpack.c.b16 %v2390, %v2390
      %v2423 = vpack.c.b16 %v2391, %v2391
      %v2424 = vpack.c.b16 %v2392, %v2392
      %v2425 = vpack.c.b16 %v2393, %v2393
      %v2426 = vpack.c.b16 %v2394, %v2394
      %v2427 = vpack.c.b16 %v2395, %v2395
      %v2428 = vpack.c.b16 %v2396, %v2396
      %v2429 = vpack.c.b16 %v2397, %v2397
      %v2430 = vpack.c.b16 %v2398, %v2398
      %v2431 = vpack.c.b16 %v2399, %v2399
      %v2432 = vpack.c.b16 %v2400, %v2400
      %v2433 = vpack.c.b16 %v2401, %v2401
      %v2434 = vpack.c.b16 %v2402, %v2402
      %v2435 = vpack.c.b16 %v2403, %v2403
      %v2436 = vpack.c.b16 %v2404, %v2404
      %v2437 = vpack.c.b16 %v2405, %v2405
      %v2438 = vpack.c.b16 %v2406, %v2406
      %v2439 = vpack.c.b16 %v2407, %v2407
      %2472 = vst [vmem:[%s270] sm:$0xf] %v2408
      %2473 = vst [vmem:[%s270 + $0x4] sm:$0xf] %v2409
      %2474 = vst [vmem:[%s270 + $0x8] sm:$0xf] %v2410
      %2475 = vst [vmem:[%s270 + $0xc] sm:$0xf] %v2411
      %2476 = vst [vmem:[%s270 + $0x10] sm:$0xf] %v2412
      %2477 = vst [vmem:[%s270 + $0x14] sm:$0xf] %v2413
      %2478 = vst [vmem:[%s270 + $0x18] sm:$0xf] %v2414
      %2479 = vst [vmem:[%s270 + $0x1c] sm:$0xf] %v2415
      %2480 = vst [vmem:[%s270 + $0x20] sm:$0xf] %v2416
      %2481 = vst [vmem:[%s270 + $0x24] sm:$0xf] %v2417
      %2482 = vst [vmem:[%s270 + $0x28] sm:$0xf] %v2418
      %2483 = vst [vmem:[%s270 + $0x2c] sm:$0xf] %v2419
      %2484 = vst [vmem:[%s270 + $0x30] sm:$0xf] %v2420
      %2485 = vst [vmem:[%s270 + $0x34] sm:$0xf] %v2421
      %2486 = vst [vmem:[%s270 + $0x38] sm:$0xf] %v2422
      %2487 = vst [vmem:[%s270 + $0x3c] sm:$0xf] %v2423
      %2488 = vst [vmem:[%s270 + $0x40] sm:$0xf] %v2424
      %2489 = vst [vmem:[%s270 + $0x44] sm:$0xf] %v2425
      %2490 = vst [vmem:[%s270 + $0x48] sm:$0xf] %v2426
      %2491 = vst [vmem:[%s270 + $0x4c] sm:$0xf] %v2427
      %2492 = vst [vmem:[%s270 + $0x50] sm:$0xf] %v2428
      %2493 = vst [vmem:[%s270 + $0x54] sm:$0xf] %v2429
      %2494 = vst [vmem:[%s270 + $0x58] sm:$0xf] %v2430
      %2495 = vst [vmem:[%s270 + $0x5c] sm:$0xf] %v2431
      %2496 = vst [vmem:[%s270 + $0x60] sm:$0xf] %v2432
      %2497 = vst [vmem:[%s270 + $0x64] sm:$0xf] %v2433
      %2498 = vst [vmem:[%s270 + $0x68] sm:$0xf] %v2434
      %2499 = vst [vmem:[%s270 + $0x6c] sm:$0xf] %v2435
      %2500 = vst [vmem:[%s270 + $0x70] sm:$0xf] %v2436
      %2501 = vst [vmem:[%s270 + $0x74] sm:$0xf] %v2437
      %2502 = vst [vmem:[%s270 + $0x78] sm:$0xf] %v2438
      %2503 = vst [vmem:[%s270 + $0x7c] sm:$0xf] %v2439
      %p2504 = scmp.lt.s32.totalorder %s19, 1
      %s2505 = scalar_select %p2504, %s19, 1
      %p2506 = scmp.lt.s32.totalorder %s20, 0
      %s2507 = scalar_select %p2506, %s20, 0
      %s2508 = smul.addr %s2505, 32
      %s2509 = sadd.s32 %s2507, %s2508
      %s2510 = smul.addr %s2509, 4
      %s2511 = scalar_lea.vmem %s4, %s2510
      // Predicated region
      $region37: #{_forward.5} parent=35 // pred_check
        %p2512 = pneg %p153
      $region38: #{_forward.5} parent=35 // pred_check_branch
        %2514 = sbr.rel (%p2512) target = $region40
      $region39: #{_forward.5} parent=35 // pred_region
        _
      $region40: #{_forward.5} parent=35 // pred_fallthru
        _
    $region36: #{_forward.5} parent=5 // pred_fallthru
      _
    %p2515 = scmp.le.s32.totalorder 2, %s10
    // Predicated region
    $region41: #{_forward.5} parent=5 // pred_check
      %p2516 = pneg %p2515
    $region42: #{_forward.5} parent=5 // pred_check_branch
      %2518 = sbr.rel (%p2516) target = $region44
    $region43: #{_forward.5} parent=5 // pred_region
      %s2519 = ssub.s32 %s10, 2
      // Predicated region
      $region45: #{_forward.5} parent=43 // pred_check
        %p2520 = pneg %p159
      $region46: #{_forward.5} parent=43 // pred_check_branch
        %2522 = sbr.rel (%p2520) target = $region48
      $region47: #{_forward.5} parent=43 // pred_region
        %p2523 = scmp.lt.s32.totalorder %s21, 1
        %s2524 = scalar_select %p2523, %s21, 1
        %p2525 = scmp.lt.s32.totalorder %s22, 0
        %s2526 = scalar_select %p2525, %s22, 0
        %s2527 = smul.addr %s2524, 32
        %s2528 = sadd.s32 %s2526, %s2527
        %s2529 = smul.addr %s2528, 4
        %s2530 = scalar_lea.vmem %s4, %s2529
      $region48: #{_forward.5} parent=43 // pred_fallthru
        _
    $region44: #{_forward.5} parent=5 // pred_fallthru
      _
  $region6: #{_forward.5} parent=0 // loop_footer
    %s14 = sadd.s32 1, %s10
  $region7: #{_forward.5} parent=0 // loop_footer_branch
    %9 = sbr.rel target = $region3
  $region8: #{_forward.5} parent=0 // loop_exit
    _

</llo_original>
